<compile_context>
chip_gen: v6e
topology: v6e:2x2x1
jax: 0.10.0
libtpu: 0.0.40
codegen_flags: <defaults>
</compile_context>

<pallas_src>
import functools

import numpy as np
import jax
import jax.numpy as jnp
from jax import lax
from jax.experimental import pallas as pl
from jax.experimental.pallas import tpu as pltpu


# ----------------------------- fused kernel ---------------------------------

def _lenet_kernel(x_ref, c1w_ref, c1b_ref, pc1_ref, c2w_ref, pc2_ref,
                  f1w_ref, f23w_ref, b_ref, out_ref, *, tb):
    """One grid step processes `tb` samples; activation rows are (h*tb + b)."""
    f32, bf16 = jnp.float32, jnp.bfloat16
    dot = lambda a, b: jnp.dot(a, b, preferred_element_type=f32)

    def row_pool(y, out_rows):
        # 2x2/stride-2 pool over rows: tile-aligned slices + VPU max (no MXU).
        parts = [jnp.maximum(y[(2 * r) * tb:(2 * r + 1) * tb, :],
                             y[(2 * r + 1) * tb:(2 * r + 2) * tb, :])
                 for r in range(out_rows)]
        return jnp.concatenate(parts, axis=0)

    # ---- conv1 (1->6, k5) + ReLU: banded over the 5 kernel-row offsets,
    #      M = 24*tb (fills the MXU rows), K = 28.
    acc = dot(x_ref[0:24 * tb, :].astype(bf16), c1w_ref[0])
    for kh in range(1, 5):
        acc = acc + dot(x_ref[kh * tb:(kh + 24) * tb, :].astype(bf16),
                        c1w_ref[kh])
    y = jnp.maximum(acc + c1b_ref[...], 0.0)                 # (24*tb, 144)

    # ---- maxpool #1: rows on the VPU, columns via 2 exact 0/1 selector matmuls
    rm = row_pool(y, 12).astype(bf16)                        # (12*tb, 144)
    p1 = jnp.maximum(dot(rm, pc1_ref[0]), dot(rm, pc1_ref[1]))  # (12*tb, 72)

    # ---- conv2 (6->16, k5) + ReLU: M = 8*tb, K = 72
    acc = dot(p1[0:8 * tb, :].astype(bf16), c2w_ref[0])
    for kh in range(1, 5):
        acc = acc + dot(p1[kh * tb:(kh + 8) * tb, :].astype(bf16),
                        c2w_ref[kh])
    y = jnp.maximum(acc + b_ref[0:1, :], 0.0)                # (8*tb, 128)

    # ---- maxpool #2
    rm = row_pool(y, 4).astype(bf16)                         # (4*tb, 128)
    p2 = jnp.maximum(dot(rm, pc2_ref[0]), dot(rm, pc2_ref[1]))  # (4*tb, 64)

    # ---- fc1: PyTorch (C,H,W) flatten folded into per-row weight slabs,
    #      banded over the 4 pooled rows.  Output padded to 128 lanes.
    acc = dot(p2[0:tb, :].astype(bf16), f1w_ref[0])
    for h in range(1, 4):
        acc = acc + dot(p2[h * tb:(h + 1) * tb, :].astype(bf16), f1w_ref[h])
    h1 = jnp.maximum(acc + b_ref[1:2, :], 0.0)               # (tb, 128)

    # ---- fc2 + ReLU, fc3 (both zero-padded to 128 lanes -> dense vst)
    h2 = jnp.maximum(dot(h1.astype(bf16), f23w_ref[0]) + b_ref[2:3, :], 0.0)
    out_ref[...] = dot(h2.astype(bf16), f23w_ref[1]) + b_ref[3:4, :]


# ------------------------ parameter preprocessing ----------------------------
# Done ONCE outside the hot path (host numpy). All layout work lives here.

def _banded_conv_weights(w_oihw, in_w, out_w):
    """slab[kh][wi*IC+ic, ow*OC+oc] = w[oc, ic, kh, wi-ow] if 0<=wi-ow<KW else 0."""
    w = np.asarray(jax.device_get(w_oihw), np.float32)
    oc, ic, khs, kws = w.shape
    slab = np.zeros((khs, in_w, ic, out_w, oc), np.float32)
    for kh in range(khs):
        for kw in range(kws):
            for ow in range(out_w):
                slab[kh, ow + kw, :, ow, :] = w[:, :, kh, kw].T   # (ic, oc)
    return slab.reshape(khs, in_w * ic, out_w * oc)


def _col_pool_select(out_w, nch):
    """0/1 selectors: s[q][(2w+q)*nch+c, w*nch+c] = 1 (exact lane downsample)."""
    s = np.zeros((2, 2 * out_w * nch, out_w * nch), np.float32)
    for q in range(2):
        for w in range(out_w):
            for c in range(nch):
                s[q, (2 * w + q) * nch + c, w * nch + c] = 1.0
    return s


def prepare_params(params):
    """PyTorch-layout params -> kernel operands (banded conv slabs, pool
    selectors, folded/padded fc weights, packed bias slab).  MXU operands bf16."""
    (w1, c1b), (w2, c2b) = params["conv1"], params["conv2"]
    (f1w, f1b), (f2w, f2b), (f3w, f3b) = params["fc1"], params["fc2"], params["fc3"]

    npf = lambda a: np.asarray(jax.device_get(a), np.float32)
    as_bf = lambda a: jnp.asarray(a, jnp.bfloat16)
    as_f32 = lambda a: jnp.asarray(a, jnp.float32)

    # fc1: fold PyTorch (C=16,H=4,W=4) flatten into per-row slabs, pad 120->128.
    f1w_k = np.transpose(npf(f1w).reshape(120, 16, 4, 4), (2, 3, 1, 0))
    f1w_k = f1w_k.reshape(4, 64, 120)                        # [(h), w*16+c, j]
    f1w_p = np.zeros((4, 64, 128), np.float32)
    f1w_p[..., :120] = f1w_k

    # fc2/fc3: transpose + zero-pad to (128, 128), stacked into one slab.
    f2w_p = np.zeros((128, 128), np.float32); f2w_p[:120, :84] = npf(f2w).T
    f3w_p = np.zeros((128, 128), np.float32); f3w_p[:84, :10] = npf(f3w).T

    # biases: conv2 + fc1..fc3 packed into one (4, 128) f32 slab.
    b128 = np.zeros((4, 128), np.float32)
    b128[0, :] = np.tile(npf(c2b), 8)
    b128[1, :120] = npf(f1b)
    b128[2, :84] = npf(f2b)
    b128[3, :10] = npf(f3b)

    return dict(
        c1w=as_bf(_banded_conv_weights(w1, 28, 24)),         # (5, 28, 144)
        c1b=as_f32(np.tile(npf(c1b), 24).reshape(1, 144)),   # (1, 144)
        pc1=as_bf(_col_pool_select(12, 6)),                  # (2, 144, 72)
        c2w=as_bf(_banded_conv_weights(w2, 12, 8)),          # (5, 72, 128)
        pc2=as_bf(_col_pool_select(4, 16)),                  # (2, 128, 64)
        f1w=as_bf(f1w_p),                                    # (4, 64, 128)
        f23w=as_bf(np.stack([f2w_p, f3w_p])),                # (2, 128, 128)
        b=as_f32(b128),                                      # (4, 128)
    )


# ------------------------------ forward pass ---------------------------------

def _const_index_map(ndim):
    return lambda i: (0,) * ndim


def _pick_tb(batch):
    for tb in (32, 16, 8):
        if batch >= tb and batch % tb == 0:
            return tb
    return 8          # small / ragged batches get padded up to a multiple of 8


_FLOPS_PER_SAMPLE = 2_464_768   # conv1+pool1+conv2+pool2+fc1+fc2+fc3 (padded)


@jax.jit
def lenet_forward(x_nchw, kp):
    B = x_nchw.shape[0]
    assert x_nchw.shape[1:] == (1, 28, 28), x_nchw.shape
    TB = _pick_tb(B)
    Bp = -(-B // TB) * TB
    nsteps = Bp // TB

    x = x_nchw.reshape(B, 28, 28).astype(jnp.float32)
    if Bp != B:
        x = jnp.concatenate([x, jnp.zeros((Bp - B, 28, 28), x.dtype)], axis=0)

    # (row-major, batch-minor) slab: row = (step*28 + h)*TB + b.  The batch
    # transpose is done once by XLA outside the kernel.
    x_slab = (x.reshape(nsteps, TB, 28, 28)
                .transpose(0, 2, 1, 3)
                .reshape(nsteps * 28 * TB, 28))

    operands = (kp["c1w"], kp["c1b"], kp["pc1"], kp["c2w"], kp["pc2"],
                kp["f1w"], kp["f23w"], kp["b"])

    in_specs = [pl.BlockSpec((28 * TB, 28), lambda i: (i, 0))]
    in_specs += [pl.BlockSpec(op.shape, _const_index_map(op.ndim))
                 for op in operands]

    bytes_accessed = int(x_slab.size * 4 + Bp * 128 * 4
                         + sum(int(op.size) * op.dtype.itemsize
                               for op in operands))

    out = pl.pallas_call(
        functools.partial(_lenet_kernel, tb=TB),
        out_shape=jax.ShapeDtypeStruct((Bp, 128), jnp.float32),
        grid_spec=pltpu.PrefetchScalarGridSpec(
            num_scalar_prefetch=0,
            grid=(nsteps,),
            in_specs=in_specs,
            out_specs=pl.BlockSpec((TB, 128), lambda i: (i, 0)),
        ),
        compiler_params=pltpu.CompilerParams(
            dimension_semantics=("parallel",)),
        cost_estimate=pl.CostEstimate(flops=Bp * _FLOPS_PER_SAMPLE,
                                      transcendentals=0,
                                      bytes_accessed=bytes_accessed),
    )(x_slab, *operands)
    return out[:B, :10]


# ------------------------- pure-JAX reference (check) ------------------------

def net_reference(x_nchw, params):
    hp = lax.Precision.HIGHEST

    def conv(x, w, b):
        oc, ic, kh, kw = w.shape
        oh, ow = x.shape[2] - kh + 1, x.shape[3] - kw + 1
        cols = jnp.stack([x[:, :, i:i + oh, j:j + ow]
                          for i in range(kh) for j in range(kw)], axis=2)
        out = jnp.einsum("bikhw,oik->bohw", cols, w.reshape(oc, ic, kh * kw),
                         precision=hp)
        return out + b[None, :, None, None]

    def pool(x):
        return jnp.maximum(
            jnp.maximum(x[:, :, 0::2, 0::2], x[:, :, 0::2, 1::2]),
            jnp.maximum(x[:, :, 1::2, 0::2], x[:, :, 1::2, 1::2]))

    (w1, b1), (w2, b2) = params["conv1"], params["conv2"]
    (f1w, f1b), (f2w, f2b), (f3w, f3b) = params["fc1"], params["fc2"], params["fc3"]
    y = pool(jax.nn.relu(conv(x_nchw, w1, b1)))
    y = pool(jax.nn.relu(conv(y, w2, b2)))
    y = y.reshape(y.shape[0], -1)                     # PyTorch (C,H,W) flatten
    y = jax.nn.relu(jnp.dot(y, f1w.T, precision=hp) + f1b)
    y = jax.nn.relu(jnp.dot(y, f2w.T, precision=hp) + f2b)
    return jnp.dot(y, f3w.T, precision=hp) + f3b


# ----------------------------------- init ------------------------------------

def init_params(key):
    # PyTorch-layout params, uniform(-1/sqrt(fan_in), 1/sqrt(fan_in)).
    ks = jax.random.split(key, 10)

    def u(k, shape, fan_in):
        bound = 1.0 / float(np.sqrt(fan_in))
        return jax.random.uniform(k, shape, jnp.float32, -bound, bound)

    return dict(
        conv1=(u(ks[0], (6, 1, 5, 5), 25), u(ks[1], (6,), 25)),
        conv2=(u(ks[2], (16, 6, 5, 5), 150), u(ks[3], (16,), 150)),
        fc1=(u(ks[4], (120, 256), 256), u(ks[5], (120,), 256)),
        fc2=(u(ks[6], (84, 120), 120), u(ks[7], (84,), 120)),
        fc3=(u(ks[8], (10, 84), 84), u(ks[9], (10,), 84)),
    )


if __name__ == "__main__":
    key = jax.random.PRNGKey(0)
    k_param, k_x = jax.random.split(key)
    params = init_params(k_param)
    kparams = prepare_params(params)          # once, off the hot path
    # Batch of 64 -> TB=32 samples per grid step, grid=(2,) (keeps both v7x
    # TensorCores busy and fills the MXU rows on all generations).
    x = jax.random.normal(k_x, (64, 1, 28, 28), dtype=jnp.float32)

    out = jax.block_until_ready(lenet_forward(x, kparams))
    assert out.shape == (64, 10), out.shape

    ref = jax.block_until_ready(net_reference(x, params))
    err = float(jnp.max(jnp.abs(out - ref)))
    # bf16 MXU operands with f32 accumulation vs an f32 reference: expected
    # max-abs error ~1e-2; 6e-2 still catches any layout / bias / pooling bug.
    assert err < 6e-2, f"mismatch vs reference: {err}"
    print("KERNEL_OK")
</pallas_src>

<mosaic_0001>
module attributes {stable_mosaic.version = 11 : i64} {
  func.func @_lenet_kernel(%arg0: i32, %arg1: memref<896x28xf32, #tpu.memory_space<vmem>>, %arg2: memref<5x28x144xbf16, #tpu.memory_space<vmem>>, %arg3: memref<1x144xf32, #tpu.memory_space<vmem>>, %arg4: memref<2x144x72xbf16, #tpu.memory_space<vmem>>, %arg5: memref<5x72x128xbf16, #tpu.memory_space<vmem>>, %arg6: memref<2x128x64xbf16, #tpu.memory_space<vmem>>, %arg7: memref<4x64x128xbf16, #tpu.memory_space<vmem>>, %arg8: memref<2x128x128xbf16, #tpu.memory_space<vmem>>, %arg9: memref<4x128xf32, #tpu.memory_space<vmem>>, %arg10: memref<32x128xf32, #tpu.memory_space<vmem>>) attributes {dimension_semantics = [#tpu.dimension_semantics<parallel>], iteration_bounds = array<i64: 2>, scalar_prefetch = 0 : i64, scratch_operands = 0 : i64, tpu.core_type = #tpu.core_type<tc>, window_params = [{transform_indices = @transform_0, window_bounds = array<i64: 896, 28>}, {pipeline_mode = #tpu.pipeline_mode<synchronous>, transform_indices = @transform_1, window_bounds = array<i64: 5, 28, 144>}, {pipeline_mode = #tpu.pipeline_mode<synchronous>, transform_indices = @transform_2, window_bounds = array<i64: 1, 144>}, {pipeline_mode = #tpu.pipeline_mode<synchronous>, transform_indices = @transform_3, window_bounds = array<i64: 2, 144, 72>}, {pipeline_mode = #tpu.pipeline_mode<synchronous>, transform_indices = @transform_4, window_bounds = array<i64: 5, 72, 128>}, {pipeline_mode = #tpu.pipeline_mode<synchronous>, transform_indices = @transform_5, window_bounds = array<i64: 2, 128, 64>}, {pipeline_mode = #tpu.pipeline_mode<synchronous>, transform_indices = @transform_6, window_bounds = array<i64: 4, 64, 128>}, {pipeline_mode = #tpu.pipeline_mode<synchronous>, transform_indices = @transform_7, window_bounds = array<i64: 2, 128, 128>}, {pipeline_mode = #tpu.pipeline_mode<synchronous>, transform_indices = @transform_8, window_bounds = array<i64: 4, 128>}, {transform_indices = @transform_9, window_bounds = array<i64: 32, 128>}]} {
    %c0 = arith.constant 0 : index
    %c0_0 = arith.constant 0 : index
    %0 = vector.load %arg1[%c0, %c0_0] : memref<896x28xf32, #tpu.memory_space<vmem>>, vector<768x28xf32>
    %1 = arith.truncf %0 : vector<768x28xf32> to vector<768x28xbf16>
    %c0_1 = arith.constant 0 : index
    %c0_2 = arith.constant 0 : index
    %c0_3 = arith.constant 0 : index
    %2 = vector.load %arg2[%c0_1, %c0_2, %c0_3] : memref<5x28x144xbf16, #tpu.memory_space<vmem>>, vector<1x28x144xbf16>
    %3 = vector.shape_cast %2 : vector<1x28x144xbf16> to vector<28x144xbf16>
    %cst = arith.constant dense<0.000000e+00> : vector<768x144xf32>
    %4 = tpu.matmul %1, %3, %cst {dimension_numbers = #tpu.dot_dimension_numbers<[1], [0], [0], [1], [0, 0, 1, 1], [], []>} : vector<768x28xbf16>, vector<28x144xbf16>, vector<768x144xf32> -> vector<768x144xf32>
    %c32 = arith.constant 32 : index
    %c0_4 = arith.constant 0 : index
    %5 = vector.load %arg1[%c32, %c0_4] : memref<896x28xf32, #tpu.memory_space<vmem>>, vector<768x28xf32>
    %6 = arith.truncf %5 : vector<768x28xf32> to vector<768x28xbf16>
    %c1 = arith.constant 1 : index
    %c0_5 = arith.constant 0 : index
    %c0_6 = arith.constant 0 : index
    %7 = vector.load %arg2[%c1, %c0_5, %c0_6] : memref<5x28x144xbf16, #tpu.memory_space<vmem>>, vector<1x28x144xbf16>
    %8 = vector.shape_cast %7 : vector<1x28x144xbf16> to vector<28x144xbf16>
    %cst_7 = arith.constant dense<0.000000e+00> : vector<768x144xf32>
    %9 = tpu.matmul %6, %8, %cst_7 {dimension_numbers = #tpu.dot_dimension_numbers<[1], [0], [0], [1], [0, 0, 1, 1], [], []>} : vector<768x28xbf16>, vector<28x144xbf16>, vector<768x144xf32> -> vector<768x144xf32>
    %10 = arith.addf %4, %9 : vector<768x144xf32>
    %c64 = arith.constant 64 : index
    %c0_8 = arith.constant 0 : index
    %11 = vector.load %arg1[%c64, %c0_8] : memref<896x28xf32, #tpu.memory_space<vmem>>, vector<768x28xf32>
    %12 = arith.truncf %11 : vector<768x28xf32> to vector<768x28xbf16>
    %c2 = arith.constant 2 : index
    %c0_9 = arith.constant 0 : index
    %c0_10 = arith.constant 0 : index
    %13 = vector.load %arg2[%c2, %c0_9, %c0_10] : memref<5x28x144xbf16, #tpu.memory_space<vmem>>, vector<1x28x144xbf16>
    %14 = vector.shape_cast %13 : vector<1x28x144xbf16> to vector<28x144xbf16>
    %cst_11 = arith.constant dense<0.000000e+00> : vector<768x144xf32>
    %15 = tpu.matmul %12, %14, %cst_11 {dimension_numbers = #tpu.dot_dimension_numbers<[1], [0], [0], [1], [0, 0, 1, 1], [], []>} : vector<768x28xbf16>, vector<28x144xbf16>, vector<768x144xf32> -> vector<768x144xf32>
    %16 = arith.addf %10, %15 : vector<768x144xf32>
    %c96 = arith.constant 96 : index
    %c0_12 = arith.constant 0 : index
    %17 = vector.load %arg1[%c96, %c0_12] : memref<896x28xf32, #tpu.memory_space<vmem>>, vector<768x28xf32>
    %18 = arith.truncf %17 : vector<768x28xf32> to vector<768x28xbf16>
    %c3 = arith.constant 3 : index
    %c0_13 = arith.constant 0 : index
    %c0_14 = arith.constant 0 : index
    %19 = vector.load %arg2[%c3, %c0_13, %c0_14] : memref<5x28x144xbf16, #tpu.memory_space<vmem>>, vector<1x28x144xbf16>
    %20 = vector.shape_cast %19 : vector<1x28x144xbf16> to vector<28x144xbf16>
    %cst_15 = arith.constant dense<0.000000e+00> : vector<768x144xf32>
    %21 = tpu.matmul %18, %20, %cst_15 {dimension_numbers = #tpu.dot_dimension_numbers<[1], [0], [0], [1], [0, 0, 1, 1], [], []>} : vector<768x28xbf16>, vector<28x144xbf16>, vector<768x144xf32> -> vector<768x144xf32>
    %22 = arith.addf %16, %21 : vector<768x144xf32>
    %c128 = arith.constant 128 : index
    %c0_16 = arith.constant 0 : index
    %23 = vector.load %arg1[%c128, %c0_16] : memref<896x28xf32, #tpu.memory_space<vmem>>, vector<768x28xf32>
    %24 = arith.truncf %23 : vector<768x28xf32> to vector<768x28xbf16>
    %c4 = arith.constant 4 : index
    %c0_17 = arith.constant 0 : index
    %c0_18 = arith.constant 0 : index
    %25 = vector.load %arg2[%c4, %c0_17, %c0_18] : memref<5x28x144xbf16, #tpu.memory_space<vmem>>, vector<1x28x144xbf16>
    %26 = vector.shape_cast %25 : vector<1x28x144xbf16> to vector<28x144xbf16>
    %cst_19 = arith.constant dense<0.000000e+00> : vector<768x144xf32>
    %27 = tpu.matmul %24, %26, %cst_19 {dimension_numbers = #tpu.dot_dimension_numbers<[1], [0], [0], [1], [0, 0, 1, 1], [], []>} : vector<768x28xbf16>, vector<28x144xbf16>, vector<768x144xf32> -> vector<768x144xf32>
    %28 = arith.addf %22, %27 : vector<768x144xf32>
    %c0_20 = arith.constant 0 : index
    %c0_21 = arith.constant 0 : index
    %29 = vector.load %arg3[%c0_20, %c0_21] : memref<1x144xf32, #tpu.memory_space<vmem>>, vector<1x144xf32>
    %30 = vector.broadcast %29 : vector<1x144xf32> to vector<768x144xf32>
    %31 = arith.addf %28, %30 : vector<768x144xf32>
    %cst_22 = arith.constant 0.000000e+00 : f32
    %32 = vector.broadcast %cst_22 : f32 to vector<768x144xf32>
    %33 = arith.maximumf %31, %32 : vector<768x144xf32>
    %34 = vector.extract_strided_slice %33 {offsets = [0, 0], sizes = [32, 144], strides = [1, 1]} : vector<768x144xf32> to vector<32x144xf32>
    %35 = vector.extract_strided_slice %33 {offsets = [32, 0], sizes = [32, 144], strides = [1, 1]} : vector<768x144xf32> to vector<32x144xf32>
    %36 = arith.maximumf %34, %35 : vector<32x144xf32>
    %37 = vector.extract_strided_slice %33 {offsets = [64, 0], sizes = [32, 144], strides = [1, 1]} : vector<768x144xf32> to vector<32x144xf32>
    %38 = vector.extract_strided_slice %33 {offsets = [96, 0], sizes = [32, 144], strides = [1, 1]} : vector<768x144xf32> to vector<32x144xf32>
    %39 = arith.maximumf %37, %38 : vector<32x144xf32>
    %40 = vector.extract_strided_slice %33 {offsets = [128, 0], sizes = [32, 144], strides = [1, 1]} : vector<768x144xf32> to vector<32x144xf32>
    %41 = vector.extract_strided_slice %33 {offsets = [160, 0], sizes = [32, 144], strides = [1, 1]} : vector<768x144xf32> to vector<32x144xf32>
    %42 = arith.maximumf %40, %41 : vector<32x144xf32>
    %43 = vector.extract_strided_slice %33 {offsets = [192, 0], sizes = [32, 144], strides = [1, 1]} : vector<768x144xf32> to vector<32x144xf32>
    %44 = vector.extract_strided_slice %33 {offsets = [224, 0], sizes = [32, 144], strides = [1, 1]} : vector<768x144xf32> to vector<32x144xf32>
    %45 = arith.maximumf %43, %44 : vector<32x144xf32>
    %46 = vector.extract_strided_slice %33 {offsets = [256, 0], sizes = [32, 144], strides = [1, 1]} : vector<768x144xf32> to vector<32x144xf32>
    %47 = vector.extract_strided_slice %33 {offsets = [288, 0], sizes = [32, 144], strides = [1, 1]} : vector<768x144xf32> to vector<32x144xf32>
    %48 = arith.maximumf %46, %47 : vector<32x144xf32>
    %49 = vector.extract_strided_slice %33 {offsets = [320, 0], sizes = [32, 144], strides = [1, 1]} : vector<768x144xf32> to vector<32x144xf32>
    %50 = vector.extract_strided_slice %33 {offsets = [352, 0], sizes = [32, 144], strides = [1, 1]} : vector<768x144xf32> to vector<32x144xf32>
    %51 = arith.maximumf %49, %50 : vector<32x144xf32>
    %52 = vector.extract_strided_slice %33 {offsets = [384, 0], sizes = [32, 144], strides = [1, 1]} : vector<768x144xf32> to vector<32x144xf32>
    %53 = vector.extract_strided_slice %33 {offsets = [416, 0], sizes = [32, 144], strides = [1, 1]} : vector<768x144xf32> to vector<32x144xf32>
    %54 = arith.maximumf %52, %53 : vector<32x144xf32>
    %55 = vector.extract_strided_slice %33 {offsets = [448, 0], sizes = [32, 144], strides = [1, 1]} : vector<768x144xf32> to vector<32x144xf32>
    %56 = vector.extract_strided_slice %33 {offsets = [480, 0], sizes = [32, 144], strides = [1, 1]} : vector<768x144xf32> to vector<32x144xf32>
    %57 = arith.maximumf %55, %56 : vector<32x144xf32>
    %58 = vector.extract_strided_slice %33 {offsets = [512, 0], sizes = [32, 144], strides = [1, 1]} : vector<768x144xf32> to vector<32x144xf32>
    %59 = vector.extract_strided_slice %33 {offsets = [544, 0], sizes = [32, 144], strides = [1, 1]} : vector<768x144xf32> to vector<32x144xf32>
    %60 = arith.maximumf %58, %59 : vector<32x144xf32>
    %61 = vector.extract_strided_slice %33 {offsets = [576, 0], sizes = [32, 144], strides = [1, 1]} : vector<768x144xf32> to vector<32x144xf32>
    %62 = vector.extract_strided_slice %33 {offsets = [608, 0], sizes = [32, 144], strides = [1, 1]} : vector<768x144xf32> to vector<32x144xf32>
    %63 = arith.maximumf %61, %62 : vector<32x144xf32>
    %64 = vector.extract_strided_slice %33 {offsets = [640, 0], sizes = [32, 144], strides = [1, 1]} : vector<768x144xf32> to vector<32x144xf32>
    %65 = vector.extract_strided_slice %33 {offsets = [672, 0], sizes = [32, 144], strides = [1, 1]} : vector<768x144xf32> to vector<32x144xf32>
    %66 = arith.maximumf %64, %65 : vector<32x144xf32>
    %67 = vector.extract_strided_slice %33 {offsets = [704, 0], sizes = [32, 144], strides = [1, 1]} : vector<768x144xf32> to vector<32x144xf32>
    %68 = vector.extract_strided_slice %33 {offsets = [736, 0], sizes = [32, 144], strides = [1, 1]} : vector<768x144xf32> to vector<32x144xf32>
    %69 = arith.maximumf %67, %68 : vector<32x144xf32>
    %70 = tpu.concatenate %36, %39, %42, %45, %48, %51, %54, %57, %60, %63, %66, %69 in 0 : vector<32x144xf32>, vector<32x144xf32>, vector<32x144xf32>, vector<32x144xf32>, vector<32x144xf32>, vector<32x144xf32>, vector<32x144xf32>, vector<32x144xf32>, vector<32x144xf32>, vector<32x144xf32>, vector<32x144xf32>, vector<32x144xf32> -> vector<384x144xf32>
    %71 = arith.truncf %70 : vector<384x144xf32> to vector<384x144xbf16>
    %c0_23 = arith.constant 0 : index
    %c0_24 = arith.constant 0 : index
    %c0_25 = arith.constant 0 : index
    %72 = vector.load %arg4[%c0_23, %c0_24, %c0_25] : memref<2x144x72xbf16, #tpu.memory_space<vmem>>, vector<1x144x72xbf16>
    %73 = vector.shape_cast %72 : vector<1x144x72xbf16> to vector<144x72xbf16>
    %cst_26 = arith.constant dense<0.000000e+00> : vector<384x72xf32>
    %74 = tpu.matmul %71, %73, %cst_26 {dimension_numbers = #tpu.dot_dimension_numbers<[1], [0], [0], [1], [0, 0, 1, 1], [], []>} : vector<384x144xbf16>, vector<144x72xbf16>, vector<384x72xf32> -> vector<384x72xf32>
    %c1_27 = arith.constant 1 : index
    %c0_28 = arith.constant 0 : index
    %c0_29 = arith.constant 0 : index
    %75 = vector.load %arg4[%c1_27, %c0_28, %c0_29] : memref<2x144x72xbf16, #tpu.memory_space<vmem>>, vector<1x144x72xbf16>
    %76 = vector.shape_cast %75 : vector<1x144x72xbf16> to vector<144x72xbf16>
    %cst_30 = arith.constant dense<0.000000e+00> : vector<384x72xf32>
    %77 = tpu.matmul %71, %76, %cst_30 {dimension_numbers = #tpu.dot_dimension_numbers<[1], [0], [0], [1], [0, 0, 1, 1], [], []>} : vector<384x144xbf16>, vector<144x72xbf16>, vector<384x72xf32> -> vector<384x72xf32>
    %78 = arith.maximumf %74, %77 : vector<384x72xf32>
    %79 = vector.extract_strided_slice %78 {offsets = [0, 0], sizes = [256, 72], strides = [1, 1]} : vector<384x72xf32> to vector<256x72xf32>
    %80 = arith.truncf %79 : vector<256x72xf32> to vector<256x72xbf16>
    %c0_31 = arith.constant 0 : index
    %c0_32 = arith.constant 0 : index
    %c0_33 = arith.constant 0 : index
    %81 = vector.load %arg5[%c0_31, %c0_32, %c0_33] : memref<5x72x128xbf16, #tpu.memory_space<vmem>>, vector<1x72x128xbf16>
    %82 = vector.shape_cast %81 : vector<1x72x128xbf16> to vector<72x128xbf16>
    %cst_34 = arith.constant dense<0.000000e+00> : vector<256x128xf32>
    %83 = tpu.matmul %80, %82, %cst_34 {dimension_numbers = #tpu.dot_dimension_numbers<[1], [0], [0], [1], [0, 0, 1, 1], [], []>} : vector<256x72xbf16>, vector<72x128xbf16>, vector<256x128xf32> -> vector<256x128xf32>
    %84 = vector.extract_strided_slice %78 {offsets = [32, 0], sizes = [256, 72], strides = [1, 1]} : vector<384x72xf32> to vector<256x72xf32>
    %85 = arith.truncf %84 : vector<256x72xf32> to vector<256x72xbf16>
    %c1_35 = arith.constant 1 : index
    %c0_36 = arith.constant 0 : index
    %c0_37 = arith.constant 0 : index
    %86 = vector.load %arg5[%c1_35, %c0_36, %c0_37] : memref<5x72x128xbf16, #tpu.memory_space<vmem>>, vector<1x72x128xbf16>
    %87 = vector.shape_cast %86 : vector<1x72x128xbf16> to vector<72x128xbf16>
    %cst_38 = arith.constant dense<0.000000e+00> : vector<256x128xf32>
    %88 = tpu.matmul %85, %87, %cst_38 {dimension_numbers = #tpu.dot_dimension_numbers<[1], [0], [0], [1], [0, 0, 1, 1], [], []>} : vector<256x72xbf16>, vector<72x128xbf16>, vector<256x128xf32> -> vector<256x128xf32>
    %89 = arith.addf %83, %88 : vector<256x128xf32>
    %90 = vector.extract_strided_slice %78 {offsets = [64, 0], sizes = [256, 72], strides = [1, 1]} : vector<384x72xf32> to vector<256x72xf32>
    %91 = arith.truncf %90 : vector<256x72xf32> to vector<256x72xbf16>
    %c2_39 = arith.constant 2 : index
    %c0_40 = arith.constant 0 : index
    %c0_41 = arith.constant 0 : index
    %92 = vector.load %arg5[%c2_39, %c0_40, %c0_41] : memref<5x72x128xbf16, #tpu.memory_space<vmem>>, vector<1x72x128xbf16>
    %93 = vector.shape_cast %92 : vector<1x72x128xbf16> to vector<72x128xbf16>
    %cst_42 = arith.constant dense<0.000000e+00> : vector<256x128xf32>
    %94 = tpu.matmul %91, %93, %cst_42 {dimension_numbers = #tpu.dot_dimension_numbers<[1], [0], [0], [1], [0, 0, 1, 1], [], []>} : vector<256x72xbf16>, vector<72x128xbf16>, vector<256x128xf32> -> vector<256x128xf32>
    %95 = arith.addf %89, %94 : vector<256x128xf32>
    %96 = vector.extract_strided_slice %78 {offsets = [96, 0], sizes = [256, 72], strides = [1, 1]} : vector<384x72xf32> to vector<256x72xf32>
    %97 = arith.truncf %96 : vector<256x72xf32> to vector<256x72xbf16>
    %c3_43 = arith.constant 3 : index
    %c0_44 = arith.constant 0 : index
    %c0_45 = arith.constant 0 : index
    %98 = vector.load %arg5[%c3_43, %c0_44, %c0_45] : memref<5x72x128xbf16, #tpu.memory_space<vmem>>, vector<1x72x128xbf16>
    %99 = vector.shape_cast %98 : vector<1x72x128xbf16> to vector<72x128xbf16>
    %cst_46 = arith.constant dense<0.000000e+00> : vector<256x128xf32>
    %100 = tpu.matmul %97, %99, %cst_46 {dimension_numbers = #tpu.dot_dimension_numbers<[1], [0], [0], [1], [0, 0, 1, 1], [], []>} : vector<256x72xbf16>, vector<72x128xbf16>, vector<256x128xf32> -> vector<256x128xf32>
    %101 = arith.addf %95, %100 : vector<256x128xf32>
    %102 = vector.extract_strided_slice %78 {offsets = [128, 0], sizes = [256, 72], strides = [1, 1]} : vector<384x72xf32> to vector<256x72xf32>
    %103 = arith.truncf %102 : vector<256x72xf32> to vector<256x72xbf16>
    %c4_47 = arith.constant 4 : index
    %c0_48 = arith.constant 0 : index
    %c0_49 = arith.constant 0 : index
    %104 = vector.load %arg5[%c4_47, %c0_48, %c0_49] : memref<5x72x128xbf16, #tpu.memory_space<vmem>>, vector<1x72x128xbf16>
    %105 = vector.shape_cast %104 : vector<1x72x128xbf16> to vector<72x128xbf16>
    %cst_50 = arith.constant dense<0.000000e+00> : vector<256x128xf32>
    %106 = tpu.matmul %103, %105, %cst_50 {dimension_numbers = #tpu.dot_dimension_numbers<[1], [0], [0], [1], [0, 0, 1, 1], [], []>} : vector<256x72xbf16>, vector<72x128xbf16>, vector<256x128xf32> -> vector<256x128xf32>
    %107 = arith.addf %101, %106 : vector<256x128xf32>
    %c0_51 = arith.constant 0 : index
    %c0_52 = arith.constant 0 : index
    %108 = vector.load %arg9[%c0_51, %c0_52] : memref<4x128xf32, #tpu.memory_space<vmem>>, vector<1x128xf32>
    %109 = vector.broadcast %108 : vector<1x128xf32> to vector<256x128xf32>
    %110 = arith.addf %107, %109 : vector<256x128xf32>
    %cst_53 = arith.constant 0.000000e+00 : f32
    %111 = vector.broadcast %cst_53 : f32 to vector<256x128xf32>
    %112 = arith.maximumf %110, %111 : vector<256x128xf32>
    %113 = vector.extract_strided_slice %112 {offsets = [0, 0], sizes = [32, 128], strides = [1, 1]} : vector<256x128xf32> to vector<32x128xf32>
    %114 = vector.extract_strided_slice %112 {offsets = [32, 0], sizes = [32, 128], strides = [1, 1]} : vector<256x128xf32> to vector<32x128xf32>
    %115 = arith.maximumf %113, %114 : vector<32x128xf32>
    %116 = vector.extract_strided_slice %112 {offsets = [64, 0], sizes = [32, 128], strides = [1, 1]} : vector<256x128xf32> to vector<32x128xf32>
    %117 = vector.extract_strided_slice %112 {offsets = [96, 0], sizes = [32, 128], strides = [1, 1]} : vector<256x128xf32> to vector<32x128xf32>
    %118 = arith.maximumf %116, %117 : vector<32x128xf32>
    %119 = vector.extract_strided_slice %112 {offsets = [128, 0], sizes = [32, 128], strides = [1, 1]} : vector<256x128xf32> to vector<32x128xf32>
    %120 = vector.extract_strided_slice %112 {offsets = [160, 0], sizes = [32, 128], strides = [1, 1]} : vector<256x128xf32> to vector<32x128xf32>
    %121 = arith.maximumf %119, %120 : vector<32x128xf32>
    %122 = vector.extract_strided_slice %112 {offsets = [192, 0], sizes = [32, 128], strides = [1, 1]} : vector<256x128xf32> to vector<32x128xf32>
    %123 = vector.extract_strided_slice %112 {offsets = [224, 0], sizes = [32, 128], strides = [1, 1]} : vector<256x128xf32> to vector<32x128xf32>
    %124 = arith.maximumf %122, %123 : vector<32x128xf32>
    %125 = tpu.concatenate %115, %118, %121, %124 in 0 : vector<32x128xf32>, vector<32x128xf32>, vector<32x128xf32>, vector<32x128xf32> -> vector<128x128xf32>
    %126 = arith.truncf %125 : vector<128x128xf32> to vector<128x128xbf16>
    %c0_54 = arith.constant 0 : index
    %c0_55 = arith.constant 0 : index
    %c0_56 = arith.constant 0 : index
    %127 = vector.load %arg6[%c0_54, %c0_55, %c0_56] : memref<2x128x64xbf16, #tpu.memory_space<vmem>>, vector<1x128x64xbf16>
    %128 = vector.shape_cast %127 : vector<1x128x64xbf16> to vector<128x64xbf16>
    %cst_57 = arith.constant dense<0.000000e+00> : vector<128x64xf32>
    %129 = tpu.matmul %126, %128, %cst_57 {dimension_numbers = #tpu.dot_dimension_numbers<[1], [0], [0], [1], [0, 0, 1, 1], [], []>} : vector<128x128xbf16>, vector<128x64xbf16>, vector<128x64xf32> -> vector<128x64xf32>
    %c1_58 = arith.constant 1 : index
    %c0_59 = arith.constant 0 : index
    %c0_60 = arith.constant 0 : index
    %130 = vector.load %arg6[%c1_58, %c0_59, %c0_60] : memref<2x128x64xbf16, #tpu.memory_space<vmem>>, vector<1x128x64xbf16>
    %131 = vector.shape_cast %130 : vector<1x128x64xbf16> to vector<128x64xbf16>
    %cst_61 = arith.constant dense<0.000000e+00> : vector<128x64xf32>
    %132 = tpu.matmul %126, %131, %cst_61 {dimension_numbers = #tpu.dot_dimension_numbers<[1], [0], [0], [1], [0, 0, 1, 1], [], []>} : vector<128x128xbf16>, vector<128x64xbf16>, vector<128x64xf32> -> vector<128x64xf32>
    %133 = arith.maximumf %129, %132 : vector<128x64xf32>
    %134 = vector.extract_strided_slice %133 {offsets = [0, 0], sizes = [32, 64], strides = [1, 1]} : vector<128x64xf32> to vector<32x64xf32>
    %135 = arith.truncf %134 : vector<32x64xf32> to vector<32x64xbf16>
    %c0_62 = arith.constant 0 : index
    %c0_63 = arith.constant 0 : index
    %c0_64 = arith.constant 0 : index
    %136 = vector.load %arg7[%c0_62, %c0_63, %c0_64] : memref<4x64x128xbf16, #tpu.memory_space<vmem>>, vector<1x64x128xbf16>
    %137 = vector.shape_cast %136 : vector<1x64x128xbf16> to vector<64x128xbf16>
    %cst_65 = arith.constant dense<0.000000e+00> : vector<32x128xf32>
    %138 = tpu.matmul %135, %137, %cst_65 {dimension_numbers = #tpu.dot_dimension_numbers<[1], [0], [0], [1], [0, 0, 1, 1], [], []>} : vector<32x64xbf16>, vector<64x128xbf16>, vector<32x128xf32> -> vector<32x128xf32>
    %139 = vector.extract_strided_slice %133 {offsets = [32, 0], sizes = [32, 64], strides = [1, 1]} : vector<128x64xf32> to vector<32x64xf32>
    %140 = arith.truncf %139 : vector<32x64xf32> to vector<32x64xbf16>
    %c1_66 = arith.constant 1 : index
    %c0_67 = arith.constant 0 : index
    %c0_68 = arith.constant 0 : index
    %141 = vector.load %arg7[%c1_66, %c0_67, %c0_68] : memref<4x64x128xbf16, #tpu.memory_space<vmem>>, vector<1x64x128xbf16>
    %142 = vector.shape_cast %141 : vector<1x64x128xbf16> to vector<64x128xbf16>
    %cst_69 = arith.constant dense<0.000000e+00> : vector<32x128xf32>
    %143 = tpu.matmul %140, %142, %cst_69 {dimension_numbers = #tpu.dot_dimension_numbers<[1], [0], [0], [1], [0, 0, 1, 1], [], []>} : vector<32x64xbf16>, vector<64x128xbf16>, vector<32x128xf32> -> vector<32x128xf32>
    %144 = arith.addf %138, %143 : vector<32x128xf32>
    %145 = vector.extract_strided_slice %133 {offsets = [64, 0], sizes = [32, 64], strides = [1, 1]} : vector<128x64xf32> to vector<32x64xf32>
    %146 = arith.truncf %145 : vector<32x64xf32> to vector<32x64xbf16>
    %c2_70 = arith.constant 2 : index
    %c0_71 = arith.constant 0 : index
    %c0_72 = arith.constant 0 : index
    %147 = vector.load %arg7[%c2_70, %c0_71, %c0_72] : memref<4x64x128xbf16, #tpu.memory_space<vmem>>, vector<1x64x128xbf16>
    %148 = vector.shape_cast %147 : vector<1x64x128xbf16> to vector<64x128xbf16>
    %cst_73 = arith.constant dense<0.000000e+00> : vector<32x128xf32>
    %149 = tpu.matmul %146, %148, %cst_73 {dimension_numbers = #tpu.dot_dimension_numbers<[1], [0], [0], [1], [0, 0, 1, 1], [], []>} : vector<32x64xbf16>, vector<64x128xbf16>, vector<32x128xf32> -> vector<32x128xf32>
    %150 = arith.addf %144, %149 : vector<32x128xf32>
    %151 = vector.extract_strided_slice %133 {offsets = [96, 0], sizes = [32, 64], strides = [1, 1]} : vector<128x64xf32> to vector<32x64xf32>
    %152 = arith.truncf %151 : vector<32x64xf32> to vector<32x64xbf16>
    %c3_74 = arith.constant 3 : index
    %c0_75 = arith.constant 0 : index
    %c0_76 = arith.constant 0 : index
    %153 = vector.load %arg7[%c3_74, %c0_75, %c0_76] : memref<4x64x128xbf16, #tpu.memory_space<vmem>>, vector<1x64x128xbf16>
    %154 = vector.shape_cast %153 : vector<1x64x128xbf16> to vector<64x128xbf16>
    %cst_77 = arith.constant dense<0.000000e+00> : vector<32x128xf32>
    %155 = tpu.matmul %152, %154, %cst_77 {dimension_numbers = #tpu.dot_dimension_numbers<[1], [0], [0], [1], [0, 0, 1, 1], [], []>} : vector<32x64xbf16>, vector<64x128xbf16>, vector<32x128xf32> -> vector<32x128xf32>
    %156 = arith.addf %150, %155 : vector<32x128xf32>
    %c1_78 = arith.constant 1 : index
    %c0_79 = arith.constant 0 : index
    %157 = vector.load %arg9[%c1_78, %c0_79] : memref<4x128xf32, #tpu.memory_space<vmem>>, vector<1x128xf32>
    %158 = vector.broadcast %157 : vector<1x128xf32> to vector<32x128xf32>
    %159 = arith.addf %156, %158 : vector<32x128xf32>
    %cst_80 = arith.constant 0.000000e+00 : f32
    %160 = vector.broadcast %cst_80 : f32 to vector<32x128xf32>
    %161 = arith.maximumf %159, %160 : vector<32x128xf32>
    %162 = arith.truncf %161 : vector<32x128xf32> to vector<32x128xbf16>
    %c0_81 = arith.constant 0 : index
    %c0_82 = arith.constant 0 : index
    %c0_83 = arith.constant 0 : index
    %163 = vector.load %arg8[%c0_81, %c0_82, %c0_83] : memref<2x128x128xbf16, #tpu.memory_space<vmem>>, vector<1x128x128xbf16>
    %164 = vector.shape_cast %163 : vector<1x128x128xbf16> to vector<128x128xbf16>
    %cst_84 = arith.constant dense<0.000000e+00> : vector<32x128xf32>
    %165 = tpu.matmul %162, %164, %cst_84 {dimension_numbers = #tpu.dot_dimension_numbers<[1], [0], [0], [1], [0, 0, 1, 1], [], []>} : vector<32x128xbf16>, vector<128x128xbf16>, vector<32x128xf32> -> vector<32x128xf32>
    %c2_85 = arith.constant 2 : index
    %c0_86 = arith.constant 0 : index
    %166 = vector.load %arg9[%c2_85, %c0_86] : memref<4x128xf32, #tpu.memory_space<vmem>>, vector<1x128xf32>
    %167 = vector.broadcast %166 : vector<1x128xf32> to vector<32x128xf32>
    %168 = arith.addf %165, %167 : vector<32x128xf32>
    %cst_87 = arith.constant 0.000000e+00 : f32
    %169 = vector.broadcast %cst_87 : f32 to vector<32x128xf32>
    %170 = arith.maximumf %168, %169 : vector<32x128xf32>
    %171 = arith.truncf %170 : vector<32x128xf32> to vector<32x128xbf16>
    %c1_88 = arith.constant 1 : index
    %c0_89 = arith.constant 0 : index
    %c0_90 = arith.constant 0 : index
    %172 = vector.load %arg8[%c1_88, %c0_89, %c0_90] : memref<2x128x128xbf16, #tpu.memory_space<vmem>>, vector<1x128x128xbf16>
    %173 = vector.shape_cast %172 : vector<1x128x128xbf16> to vector<128x128xbf16>
    %cst_91 = arith.constant dense<0.000000e+00> : vector<32x128xf32>
    %174 = tpu.matmul %171, %173, %cst_91 {dimension_numbers = #tpu.dot_dimension_numbers<[1], [0], [0], [1], [0, 0, 1, 1], [], []>} : vector<32x128xbf16>, vector<128x128xbf16>, vector<32x128xf32> -> vector<32x128xf32>
    %c3_92 = arith.constant 3 : index
    %c0_93 = arith.constant 0 : index
    %175 = vector.load %arg9[%c3_92, %c0_93] : memref<4x128xf32, #tpu.memory_space<vmem>>, vector<1x128xf32>
    %176 = vector.broadcast %175 : vector<1x128xf32> to vector<32x128xf32>
    %177 = arith.addf %174, %176 : vector<32x128xf32>
    %c0_94 = arith.constant 0 : index
    %c0_95 = arith.constant 0 : index
    %178 = vector.load %arg10[%c0_94, %c0_95] : memref<32x128xf32, #tpu.memory_space<vmem>>, vector<32x128xf32>
    tpu.vector_store %arg10[%c0_94, %c0_95], %177 {strides = array<i32>} : memref<32x128xf32, #tpu.memory_space<vmem>>, vector<32x128xf32>,
    return
  }
  func.func @transform_0(%arg0: i32) -> (i32, i32) {
    %c0_i32 = arith.constant 0 : i32
    %c0_i32_0 = arith.constant 0 : i32
    return %arg0, %c0_i32 : i32, i32
  }
  func.func @transform_1(%arg0: i32) -> (i32, i32, i32) {
    %c0_i32 = arith.constant 0 : i32
    %c0_i32_0 = arith.constant 0 : i32
    %c0_i32_1 = arith.constant 0 : i32
    %c0_i32_2 = arith.constant 0 : i32
    return %c0_i32, %c0_i32_0, %c0_i32_1 : i32, i32, i32
  }
  func.func @transform_2(%arg0: i32) -> (i32, i32) {
    %c0_i32 = arith.constant 0 : i32
    %c0_i32_0 = arith.constant 0 : i32
    %c0_i32_1 = arith.constant 0 : i32
    return %c0_i32, %c0_i32_0 : i32, i32
  }
  func.func @transform_3(%arg0: i32) -> (i32, i32, i32) {
    %c0_i32 = arith.constant 0 : i32
    %c0_i32_0 = arith.constant 0 : i32
    %c0_i32_1 = arith.constant 0 : i32
    %c0_i32_2 = arith.constant 0 : i32
    return %c0_i32, %c0_i32_0, %c0_i32_1 : i32, i32, i32
  }
  func.func @transform_4(%arg0: i32) -> (i32, i32, i32) {
    %c0_i32 = arith.constant 0 : i32
    %c0_i32_0 = arith.constant 0 : i32
    %c0_i32_1 = arith.constant 0 : i32
    %c0_i32_2 = arith.constant 0 : i32
    return %c0_i32, %c0_i32_0, %c0_i32_1 : i32, i32, i32
  }
  func.func @transform_5(%arg0: i32) -> (i32, i32, i32) {
    %c0_i32 = arith.constant 0 : i32
    %c0_i32_0 = arith.constant 0 : i32
    %c0_i32_1 = arith.constant 0 : i32
    %c0_i32_2 = arith.constant 0 : i32
    return %c0_i32, %c0_i32_0, %c0_i32_1 : i32, i32, i32
  }
  func.func @transform_6(%arg0: i32) -> (i32, i32, i32) {
    %c0_i32 = arith.constant 0 : i32
    %c0_i32_0 = arith.constant 0 : i32
    %c0_i32_1 = arith.constant 0 : i32
    %c0_i32_2 = arith.constant 0 : i32
    return %c0_i32, %c0_i32_0, %c0_i32_1 : i32, i32, i32
  }
  func.func @transform_7(%arg0: i32) -> (i32, i32, i32) {
    %c0_i32 = arith.constant 0 : i32
    %c0_i32_0 = arith.constant 0 : i32
    %c0_i32_1 = arith.constant 0 : i32
    %c0_i32_2 = arith.constant 0 : i32
    return %c0_i32, %c0_i32_0, %c0_i32_1 : i32, i32, i32
  }
  func.func @transform_8(%arg0: i32) -> (i32, i32) {
    %c0_i32 = arith.constant 0 : i32
    %c0_i32_0 = arith.constant 0 : i32
    %c0_i32_1 = arith.constant 0 : i32
    return %c0_i32, %c0_i32_0 : i32, i32
  }
  func.func @transform_9(%arg0: i32) -> (i32, i32) {
    %c0_i32 = arith.constant 0 : i32
    %c0_i32_0 = arith.constant 0 : i32
    return %arg0, %c0_i32 : i32, i32
  }
}

</mosaic_0001>

<llo_original>
// kernel: lenet_forward.1
$region0: #{lenet_forward.1}
  #allocation0 [shape = 'u32[]', space=smem, size = 0x4, offset = 0x4, fixed_abs, tag = 'smem constant byte address 0x4 - core index']
  #allocation1 [shape = 'u32[144,128]{1,0:T(1,128)}', space=vmem, size = 0x12000, scoped, tag = 'internal scratch']
  %s0 = inlined_call_operand.vmem [shape: f32[1792,28], index: 0, kind: input, shape index: {}]
  %s1 = inlined_call_operand.vmem [shape: bf16[5,28,144], index: 1, kind: input, shape index: {}]
  %s2 = inlined_call_operand.vmem [shape: f32[1,144], index: 2, kind: input, shape index: {}]
  %s3 = inlined_call_operand.vmem [shape: bf16[2,144,72], index: 3, kind: input, shape index: {}]
  %s4 = inlined_call_operand.vmem [shape: bf16[5,72,128], index: 4, kind: input, shape index: {}]
  %s5 = inlined_call_operand.vmem [shape: bf16[2,128,64], index: 5, kind: input, shape index: {}]
  %s6 = inlined_call_operand.vmem [shape: bf16[4,64,128], index: 6, kind: input, shape index: {}]
  %s7 = inlined_call_operand.vmem [shape: bf16[2,128,128], index: 7, kind: input, shape index: {}]
  %s8 = inlined_call_operand.vmem [shape: f32[4,128], index: 8, kind: input, shape index: {}]
  %s9 = inlined_call_operand.vmem [shape: f32[64,128], index: 9, kind: output, shape index: {}]
  %s10 = sld [smem:[#allocation0]]
  $region69: #{lenet_forward.1} parent=0
    _
  %s12 = ssub.s32 1, %s10
  %s13 = scalar_select 0, %s12, %s10
  loop: start=0, step=1, limit=4
  $region2: #{lenet_forward.1} parent=0 // loop_pre_header
    _
  $region3: #{lenet_forward.1} parent=0 // loop_header
    %s15 = sphi 0, %s19
    %p16 = scmp.ge.s32.totalorder %s15, 4
    %s25 = sphi 0, %s27
    %s28 = sphi 0, %s25
    %s29 = sphi 0, %s28
    %s45 = sphi 0, %s29
    %s49 = sphi 0, %s49
    %s51 = sphi 0, %s49
    %s52 = sphi 0, %s51
    %s66 = sphi 0, %s52
    %s70 = sphi 0, %s70
    %s72 = sphi 0, %s70
    %s73 = sphi 0, %s72
    %s87 = sphi 0, %s73
    %s91 = sphi 0, %s91
    %s93 = sphi 0, %s91
    %s94 = sphi 0, %s93
    %s108 = sphi 0, %s94
    %s112 = sphi 0, %s112
    %s114 = sphi 0, %s112
    %s115 = sphi 0, %s114
    %s129 = sphi 0, %s115
    %s133 = sphi 0, %s133
    %s135 = sphi 0, %s133
    %s136 = sphi 0, %s135
    %s150 = sphi 0, %s136
    %s154 = sphi 0, %s154
    %s156 = sphi 0, %s154
    %s157 = sphi 0, %s156
    %s171 = sphi 0, %s157
    %s175 = sphi 0, %s175
    %s177 = sphi 0, %s175
    %s178 = sphi 0, %s177
    %s192 = sphi 0, %s178
    %s196 = sphi 0, %s196
    %s198 = sphi 0, %s196
    %s199 = sphi 0, %s198
    %s213 = sphi 0, %s199
    %s219 = sphi 0, %s221
    %s222 = sphi 0, %s219
    %s223 = sphi 0, %s222
    %s239 = sphi 0, %s223
  $region4: #{lenet_forward.1} parent=0 // loop_header_branch
    %18 = sbr.rel (%p16) target = $region8
  $region5: #{lenet_forward.1} parent=0 // loop_body
    %s20 = ssub.s32 %s15, 1
    %s21 = ssub.s32 %s15, 2
    %s22 = sadd.s32 %s15, 1
    %s23 = ssub.s32 %s15, %s22
    %p24 = scmp.eq.s32.totalorder %s23, 0
    %s26 = sadd.s32 %s25, 1
    %s27 = scalar_select %p24, %s25, %s26
    %p30 = pneg %p24
    %p31 = scmp.eq.s32.totalorder %s15, 1
    %p32 = por %p30, %p31
    %p33 = scmp.ne.s32.totalorder %s25, %s28
    %p34 = scmp.eq.s32.totalorder %s15, 0
    %p35 = por %p33, %p34
    %p36 = scmp.ne.s32.totalorder %s25, %s28
    %p37 = scmp.eq.s32.totalorder %s20, 1
    %p38 = por %p36, %p37
    %p39 = scmp.ne.s32.totalorder %s28, %s29
    %p40 = scmp.eq.s32.totalorder %s20, 0
    %p41 = por %p39, %p40
    %p42 = scmp.ne.s32.totalorder %s28, %s29
    %p43 = scmp.eq.s32.totalorder %s21, 1
    %p44 = por %p42, %p43
    %p46 = scmp.ne.s32.totalorder %s29, %s45
    %p47 = scmp.eq.s32.totalorder %s21, 0
    %p48 = por %p46, %p47
    %s50 = sadd.s32 %s49, 1
    %p53 = scmp.eq.s32.totalorder %s15, 1
    %p54 = scmp.ne.s32.totalorder %s49, %s51
    %p55 = scmp.eq.s32.totalorder %s15, 0
    %p56 = por %p54, %p55
    %p57 = scmp.ne.s32.totalorder %s49, %s51
    %p58 = scmp.eq.s32.totalorder %s20, 1
    %p59 = por %p57, %p58
    %p60 = scmp.ne.s32.totalorder %s51, %s52
    %p61 = scmp.eq.s32.totalorder %s20, 0
    %p62 = por %p60, %p61
    %p63 = scmp.ne.s32.totalorder %s51, %s52
    %p64 = scmp.eq.s32.totalorder %s21, 1
    %p65 = por %p63, %p64
    %p67 = scmp.ne.s32.totalorder %s52, %s66
    %p68 = scmp.eq.s32.totalorder %s21, 0
    %p69 = por %p67, %p68
    %s71 = sadd.s32 %s70, 1
    %p74 = scmp.eq.s32.totalorder %s15, 1
    %p75 = scmp.ne.s32.totalorder %s70, %s72
    %p76 = scmp.eq.s32.totalorder %s15, 0
    %p77 = por %p75, %p76
    %p78 = scmp.ne.s32.totalorder %s70, %s72
    %p79 = scmp.eq.s32.totalorder %s20, 1
    %p80 = por %p78, %p79
    %p81 = scmp.ne.s32.totalorder %s72, %s73
    %p82 = scmp.eq.s32.totalorder %s20, 0
    %p83 = por %p81, %p82
    %p84 = scmp.ne.s32.totalorder %s72, %s73
    %p85 = scmp.eq.s32.totalorder %s21, 1
    %p86 = por %p84, %p85
    %p88 = scmp.ne.s32.totalorder %s73, %s87
    %p89 = scmp.eq.s32.totalorder %s21, 0
    %p90 = por %p88, %p89
    %s92 = sadd.s32 %s91, 1
    %p95 = scmp.eq.s32.totalorder %s15, 1
    %p96 = scmp.ne.s32.totalorder %s91, %s93
    %p97 = scmp.eq.s32.totalorder %s15, 0
    %p98 = por %p96, %p97
    %p99 = scmp.ne.s32.totalorder %s91, %s93
    %p100 = scmp.eq.s32.totalorder %s20, 1
    %p101 = por %p99, %p100
    %p102 = scmp.ne.s32.totalorder %s93, %s94
    %p103 = scmp.eq.s32.totalorder %s20, 0
    %p104 = por %p102, %p103
    %p105 = scmp.ne.s32.totalorder %s93, %s94
    %p106 = scmp.eq.s32.totalorder %s21, 1
    %p107 = por %p105, %p106
    %p109 = scmp.ne.s32.totalorder %s94, %s108
    %p110 = scmp.eq.s32.totalorder %s21, 0
    %p111 = por %p109, %p110
    %s113 = sadd.s32 %s112, 1
    %p116 = scmp.eq.s32.totalorder %s15, 1
    %p117 = scmp.ne.s32.totalorder %s112, %s114
    %p118 = scmp.eq.s32.totalorder %s15, 0
    %p119 = por %p117, %p118
    %p120 = scmp.ne.s32.totalorder %s112, %s114
    %p121 = scmp.eq.s32.totalorder %s20, 1
    %p122 = por %p120, %p121
    %p123 = scmp.ne.s32.totalorder %s114, %s115
    %p124 = scmp.eq.s32.totalorder %s20, 0
    %p125 = por %p123, %p124
    %p126 = scmp.ne.s32.totalorder %s114, %s115
    %p127 = scmp.eq.s32.totalorder %s21, 1
    %p128 = por %p126, %p127
    %p130 = scmp.ne.s32.totalorder %s115, %s129
    %p131 = scmp.eq.s32.totalorder %s21, 0
    %p132 = por %p130, %p131
    %s134 = sadd.s32 %s133, 1
    %p137 = scmp.eq.s32.totalorder %s15, 1
    %p138 = scmp.ne.s32.totalorder %s133, %s135
    %p139 = scmp.eq.s32.totalorder %s15, 0
    %p140 = por %p138, %p139
    %p141 = scmp.ne.s32.totalorder %s133, %s135
    %p142 = scmp.eq.s32.totalorder %s20, 1
    %p143 = por %p141, %p142
    %p144 = scmp.ne.s32.totalorder %s135, %s136
    %p145 = scmp.eq.s32.totalorder %s20, 0
    %p146 = por %p144, %p145
    %p147 = scmp.ne.s32.totalorder %s135, %s136
    %p148 = scmp.eq.s32.totalorder %s21, 1
    %p149 = por %p147, %p148
    %p151 = scmp.ne.s32.totalorder %s136, %s150
    %p152 = scmp.eq.s32.totalorder %s21, 0
    %p153 = por %p151, %p152
    %s155 = sadd.s32 %s154, 1
    %p158 = scmp.eq.s32.totalorder %s15, 1
    %p159 = scmp.ne.s32.totalorder %s154, %s156
    %p160 = scmp.eq.s32.totalorder %s15, 0
    %p161 = por %p159, %p160
    %p162 = scmp.ne.s32.totalorder %s154, %s156
    %p163 = scmp.eq.s32.totalorder %s20, 1
    %p164 = por %p162, %p163
    %p165 = scmp.ne.s32.totalorder %s156, %s157
    %p166 = scmp.eq.s32.totalorder %s20, 0
    %p167 = por %p165, %p166
    %p168 = scmp.ne.s32.totalorder %s156, %s157
    %p169 = scmp.eq.s32.totalorder %s21, 1
    %p170 = por %p168, %p169
    %p172 = scmp.ne.s32.totalorder %s157, %s171
    %p173 = scmp.eq.s32.totalorder %s21, 0
    %p174 = por %p172, %p173
    %s176 = sadd.s32 %s175, 1
    %p179 = scmp.eq.s32.totalorder %s15, 1
    %p180 = scmp.ne.s32.totalorder %s175, %s177
    %p181 = scmp.eq.s32.totalorder %s15, 0
    %p182 = por %p180, %p181
    %p183 = scmp.ne.s32.totalorder %s175, %s177
    %p184 = scmp.eq.s32.totalorder %s20, 1
    %p185 = por %p183, %p184
    %p186 = scmp.ne.s32.totalorder %s177, %s178
    %p187 = scmp.eq.s32.totalorder %s20, 0
    %p188 = por %p186, %p187
    %p189 = scmp.ne.s32.totalorder %s177, %s178
    %p190 = scmp.eq.s32.totalorder %s21, 1
    %p191 = por %p189, %p190
    %p193 = scmp.ne.s32.totalorder %s178, %s192
    %p194 = scmp.eq.s32.totalorder %s21, 0
    %p195 = por %p193, %p194
    %s197 = sadd.s32 %s196, 1
    %p200 = scmp.eq.s32.totalorder %s15, 1
    %p201 = scmp.ne.s32.totalorder %s196, %s198
    %p202 = scmp.eq.s32.totalorder %s15, 0
    %p203 = por %p201, %p202
    %p204 = scmp.ne.s32.totalorder %s196, %s198
    %p205 = scmp.eq.s32.totalorder %s20, 1
    %p206 = por %p204, %p205
    %p207 = scmp.ne.s32.totalorder %s198, %s199
    %p208 = scmp.eq.s32.totalorder %s20, 0
    %p209 = por %p207, %p208
    %p210 = scmp.ne.s32.totalorder %s198, %s199
    %p211 = scmp.eq.s32.totalorder %s21, 1
    %p212 = por %p210, %p211
    %p214 = scmp.ne.s32.totalorder %s199, %s213
    %p215 = scmp.eq.s32.totalorder %s21, 0
    %p216 = por %p214, %p215
    %s217 = ssub.s32 %s15, %s22
    %p218 = scmp.eq.s32.totalorder %s217, 0
    %s220 = sadd.s32 %s219, 1
    %s221 = scalar_select %p218, %s219, %s220
    %p224 = pneg %p218
    %p225 = scmp.eq.s32.totalorder %s15, 1
    %p226 = por %p224, %p225
    %p227 = scmp.ne.s32.totalorder %s219, %s222
    %p228 = scmp.eq.s32.totalorder %s15, 0
    %p229 = por %p227, %p228
    %p230 = scmp.ne.s32.totalorder %s219, %s222
    %p231 = scmp.eq.s32.totalorder %s20, 1
    %p232 = por %p230, %p231
    %p233 = scmp.ne.s32.totalorder %s222, %s223
    %p234 = scmp.eq.s32.totalorder %s20, 0
    %p235 = por %p233, %p234
    %p236 = scmp.ne.s32.totalorder %s222, %s223
    %p237 = scmp.eq.s32.totalorder %s21, 1
    %p238 = por %p236, %p237
    %p240 = scmp.ne.s32.totalorder %s223, %s239
    %p241 = scmp.eq.s32.totalorder %s21, 0
    %p242 = por %p240, %p241
    %p243 = scmp.le.s32.totalorder 1, %s15
    %p244 = scmp.lt.s32.totalorder %s15, 3
    %p245 = pnand %p243, %p244
    %p246 = pneg %p245
    // Predicated region
    $region9: #{lenet_forward.1} parent=5 // pred_check
      _
    $region10: #{lenet_forward.1} parent=5 // pred_check_branch
      %248 = sbr.rel (%p245) target = $region12
    $region11: #{lenet_forward.1} parent=5 // pred_region
      %s249 = ssub.s32 %s15, 1
      // Predicated region
      $region13: #{lenet_forward.1} parent=11 // pred_check
        %p250 = pneg %p62
      $region14: #{lenet_forward.1} parent=11 // pred_check_branch
        %252 = sbr.rel (%p250) target = $region16
      $region15: #{lenet_forward.1} parent=11 // pred_region
        _
      $region16: #{lenet_forward.1} parent=11 // pred_fallthru
        _
      // Predicated region
      $region17: #{lenet_forward.1} parent=11 // pred_check
        %p253 = pneg %p83
      $region18: #{lenet_forward.1} parent=11 // pred_check_branch
        %255 = sbr.rel (%p253) target = $region20
      $region19: #{lenet_forward.1} parent=11 // pred_region
        _
      $region20: #{lenet_forward.1} parent=11 // pred_fallthru
        _
      // Predicated region
      $region21: #{lenet_forward.1} parent=11 // pred_check
        %p256 = pneg %p104
      $region22: #{lenet_forward.1} parent=11 // pred_check_branch
        %258 = sbr.rel (%p256) target = $region24
      $region23: #{lenet_forward.1} parent=11 // pred_region
        _
      $region24: #{lenet_forward.1} parent=11 // pred_fallthru
        _
      // Predicated region
      $region25: #{lenet_forward.1} parent=11 // pred_check
        %p259 = pneg %p125
      $region26: #{lenet_forward.1} parent=11 // pred_check_branch
        %261 = sbr.rel (%p259) target = $region28
      $region27: #{lenet_forward.1} parent=11 // pred_region
        _
      $region28: #{lenet_forward.1} parent=11 // pred_fallthru
        _
      // Predicated region
      $region29: #{lenet_forward.1} parent=11 // pred_check
        %p262 = pneg %p146
      $region30: #{lenet_forward.1} parent=11 // pred_check_branch
        %264 = sbr.rel (%p262) target = $region32
      $region31: #{lenet_forward.1} parent=11 // pred_region
        _
      $region32: #{lenet_forward.1} parent=11 // pred_fallthru
        _
      // Predicated region
      $region33: #{lenet_forward.1} parent=11 // pred_check
        %p265 = pneg %p167
      $region34: #{lenet_forward.1} parent=11 // pred_check_branch
        %267 = sbr.rel (%p265) target = $region36
      $region35: #{lenet_forward.1} parent=11 // pred_region
        _
      $region36: #{lenet_forward.1} parent=11 // pred_fallthru
        _
      // Predicated region
      $region37: #{lenet_forward.1} parent=11 // pred_check
        %p268 = pneg %p188
      $region38: #{lenet_forward.1} parent=11 // pred_check_branch
        %270 = sbr.rel (%p268) target = $region40
      $region39: #{lenet_forward.1} parent=11 // pred_region
        _
      $region40: #{lenet_forward.1} parent=11 // pred_fallthru
        _
      // Predicated region
      $region41: #{lenet_forward.1} parent=11 // pred_check
        %p271 = pneg %p209
      $region42: #{lenet_forward.1} parent=11 // pred_check_branch
        %273 = sbr.rel (%p271) target = $region44
      $region43: #{lenet_forward.1} parent=11 // pred_region
        _
      $region44: #{lenet_forward.1} parent=11 // pred_fallthru
        _
    $region12: #{lenet_forward.1} parent=5 // pred_fallthru
      _
    %p274 = scmp.lt.s32.totalorder %s15, 2
    // Predicated region
    $region45: #{lenet_forward.1} parent=5 // pred_check
      %p275 = pneg %p274
    $region46: #{lenet_forward.1} parent=5 // pred_check_branch
      %277 = sbr.rel (%p275) target = $region48
    $region47: #{lenet_forward.1} parent=5 // pred_region
      // Predicated region
      $region49: #{lenet_forward.1} parent=47 // pred_check
        %p278 = pneg %p35
      $region50: #{lenet_forward.1} parent=47 // pred_check_branch
        %280 = sbr.rel (%p278) target = $region52
      $region51: #{lenet_forward.1} parent=47 // pred_region
        %s281 = smul.u32 112, %s15
        %p282 = scmp.lt.s32.totalorder %s281, 223
        %s283 = scalar_select %p282, %s281, 223
        %s284 = smul.addr %s283, 8
        %s285 = scalar_lea.vmem %s0, %s284
        %s286 = smul.u32 112, %s15
      $region52: #{lenet_forward.1} parent=47 // pred_fallthru
        _
    $region48: #{lenet_forward.1} parent=5 // pred_fallthru
      _
    %p287 = scmp.le.s32.totalorder 1, %s15
    %p288 = scmp.lt.s32.totalorder %s15, 3
    %p289 = pnand %p287, %p288
    %p290 = pneg %p289
    // Predicated region
    $region53: #{lenet_forward.1} parent=5 // pred_check
      _
    $region54: #{lenet_forward.1} parent=5 // pred_check_branch
      %292 = sbr.rel (%p289) target = $region56
    $region55: #{lenet_forward.1} parent=5 // pred_region
      %s293 = ssub.s32 %s15, 1
      %s294 = smul.u32 112, %s20
      %p295 = scmp.lt.s32.totalorder %s294, 223
      %s296 = scalar_select %p295, %s294, 223
      %s297 = smul.addr %s296, 8
      %s298 = scalar_lea.vmem %s0, %s297
      %p299 = pneg %p41
      %p300 = pneg %p38
      %p301 = pneg %p62
      %p302 = pneg %p59
      %p303 = pneg %p83
      %p304 = pneg %p80
      %p305 = pneg %p104
      %p306 = pneg %p101
      %p307 = pneg %p125
      %p308 = pneg %p122
      %p309 = pneg %p146
      %p310 = pneg %p143
      %p311 = pneg %p167
      %p312 = pneg %p164
      %p313 = pneg %p188
      %p314 = pneg %p185
      %p315 = pneg %p209
      %p316 = pneg %p206
      %p317 = pneg %p235
      %p318 = pneg %p232
      %s319 = smul.u32 4, %s20
      %p320 = scmp.lt.s32.totalorder %s319, 7
      %s321 = scalar_select %p320, %s319, 7
      %s322 = smul.addr %s321, 8
      %s323 = scalar_lea.vmem %s9, %s322
      %s324 = smul.u32 112, %s20
      %p325 = scmp.lt.s32.totalorder %s324, 223
      %s326 = scalar_select %p325, %s324, 223
      %s327 = smul.addr %s326, 8
      %s328 = scalar_lea.vmem %s0, %s327
      %s329 = smul.u32 112, %s20
      %s330 = smul.u32 4, %s20
      %p331 = scmp.lt.s32.totalorder %s330, 7
      %s332 = scalar_select %p331, %s330, 7
      %s333 = smul.addr %s332, 8
      %s334 = scalar_lea.vmem %s9, %s333
      %s335 = smul.u32 4, %s20
      %v337 = vld [vmem:[%s328] sm:$0xff]
      %v338 = vld [vmem:[%s328 + $0x8] sm:$0xff]
      %v339 = vld [vmem:[%s328 + $0x10] sm:$0xff]
      %v340 = vld [vmem:[%s328 + $0x18] sm:$0xff]
      %v341 = vld [vmem:[%s328 + $0x20] sm:$0xff]
      %v342 = vld [vmem:[%s328 + $0x28] sm:$0xff]
      %v343 = vld [vmem:[%s328 + $0x30] sm:$0xff]
      %v344 = vld [vmem:[%s328 + $0x38] sm:$0xff]
      %v345 = vld [vmem:[%s328 + $0x40] sm:$0xff]
      %v346 = vld [vmem:[%s328 + $0x48] sm:$0xff]
      %v347 = vld [vmem:[%s328 + $0x50] sm:$0xff]
      %v348 = vld [vmem:[%s328 + $0x58] sm:$0xff]
      %v349 = vld [vmem:[%s328 + $0x60] sm:$0xff]
      %v350 = vld [vmem:[%s328 + $0x68] sm:$0xff]
      %v351 = vld [vmem:[%s328 + $0x70] sm:$0xff]
      %v352 = vld [vmem:[%s328 + $0x78] sm:$0xff]
      %v353 = vld [vmem:[%s328 + $0x80] sm:$0xff]
      %v354 = vld [vmem:[%s328 + $0x88] sm:$0xff]
      %v355 = vld [vmem:[%s328 + $0x90] sm:$0xff]
      %v356 = vld [vmem:[%s328 + $0x98] sm:$0xff]
      %v357 = vld [vmem:[%s328 + $0xa0] sm:$0xff]
      %v358 = vld [vmem:[%s328 + $0xa8] sm:$0xff]
      %v359 = vld [vmem:[%s328 + $0xb0] sm:$0xff]
      %v360 = vld [vmem:[%s328 + $0xb8] sm:$0xff]
      %v361 = vld [vmem:[%s328 + $0xc0] sm:$0xff]
      %v362 = vld [vmem:[%s328 + $0xc8] sm:$0xff]
      %v363 = vld [vmem:[%s328 + $0xd0] sm:$0xff]
      %v364 = vld [vmem:[%s328 + $0xd8] sm:$0xff]
      %v365 = vld [vmem:[%s328 + $0xe0] sm:$0xff]
      %v366 = vld [vmem:[%s328 + $0xe8] sm:$0xff]
      %v367 = vld [vmem:[%s328 + $0xf0] sm:$0xff]
      %v368 = vld [vmem:[%s328 + $0xf8] sm:$0xff]
      %v369 = vld [vmem:[%s328 + $0x100] sm:$0xff]
      %v370 = vld [vmem:[%s328 + $0x108] sm:$0xff]
      %v371 = vld [vmem:[%s328 + $0x110] sm:$0xff]
      %v372 = vld [vmem:[%s328 + $0x118] sm:$0xff]
      %v373 = vld [vmem:[%s328 + $0x120] sm:$0xff]
      %v374 = vld [vmem:[%s328 + $0x128] sm:$0xff]
      %v375 = vld [vmem:[%s328 + $0x130] sm:$0xff]
      %v376 = vld [vmem:[%s328 + $0x138] sm:$0xff]
      %v377 = vld [vmem:[%s328 + $0x140] sm:$0xff]
      %v378 = vld [vmem:[%s328 + $0x148] sm:$0xff]
      %v379 = vld [vmem:[%s328 + $0x150] sm:$0xff]
      %v380 = vld [vmem:[%s328 + $0x158] sm:$0xff]
      %v381 = vld [vmem:[%s328 + $0x160] sm:$0xff]
      %v382 = vld [vmem:[%s328 + $0x168] sm:$0xff]
      %v383 = vld [vmem:[%s328 + $0x170] sm:$0xff]
      %v384 = vld [vmem:[%s328 + $0x178] sm:$0xff]
      %v385 = vld [vmem:[%s328 + $0x180] sm:$0xff]
      %v386 = vld [vmem:[%s328 + $0x188] sm:$0xff]
      %v387 = vld [vmem:[%s328 + $0x190] sm:$0xff]
      %v388 = vld [vmem:[%s328 + $0x198] sm:$0xff]
      %v389 = vld [vmem:[%s328 + $0x1a0] sm:$0xff]
      %v390 = vld [vmem:[%s328 + $0x1a8] sm:$0xff]
      %v391 = vld [vmem:[%s328 + $0x1b0] sm:$0xff]
      %v392 = vld [vmem:[%s328 + $0x1b8] sm:$0xff]
      %v393 = vld [vmem:[%s328 + $0x1c0] sm:$0xff]
      %v394 = vld [vmem:[%s328 + $0x1c8] sm:$0xff]
      %v395 = vld [vmem:[%s328 + $0x1d0] sm:$0xff]
      %v396 = vld [vmem:[%s328 + $0x1d8] sm:$0xff]
      %v397 = vld [vmem:[%s328 + $0x1e0] sm:$0xff]
      %v398 = vld [vmem:[%s328 + $0x1e8] sm:$0xff]
      %v399 = vld [vmem:[%s328 + $0x1f0] sm:$0xff]
      %v400 = vld [vmem:[%s328 + $0x1f8] sm:$0xff]
      %v401 = vld [vmem:[%s328 + $0x200] sm:$0xff]
      %v402 = vld [vmem:[%s328 + $0x208] sm:$0xff]
      %v403 = vld [vmem:[%s328 + $0x210] sm:$0xff]
      %v404 = vld [vmem:[%s328 + $0x218] sm:$0xff]
      %v405 = vld [vmem:[%s328 + $0x220] sm:$0xff]
      %v406 = vld [vmem:[%s328 + $0x228] sm:$0xff]
      %v407 = vld [vmem:[%s328 + $0x230] sm:$0xff]
      %v408 = vld [vmem:[%s328 + $0x238] sm:$0xff]
      %v409 = vld [vmem:[%s328 + $0x240] sm:$0xff]
      %v410 = vld [vmem:[%s328 + $0x248] sm:$0xff]
      %v411 = vld [vmem:[%s328 + $0x250] sm:$0xff]
      %v412 = vld [vmem:[%s328 + $0x258] sm:$0xff]
      %v413 = vld [vmem:[%s328 + $0x260] sm:$0xff]
      %v414 = vld [vmem:[%s328 + $0x268] sm:$0xff]
      %v415 = vld [vmem:[%s328 + $0x270] sm:$0xff]
      %v416 = vld [vmem:[%s328 + $0x278] sm:$0xff]
      %v417 = vld [vmem:[%s328 + $0x280] sm:$0xff]
      %v418 = vld [vmem:[%s328 + $0x288] sm:$0xff]
      %v419 = vld [vmem:[%s328 + $0x290] sm:$0xff]
      %v420 = vld [vmem:[%s328 + $0x298] sm:$0xff]
      %v421 = vld [vmem:[%s328 + $0x2a0] sm:$0xff]
      %v422 = vld [vmem:[%s328 + $0x2a8] sm:$0xff]
      %v423 = vld [vmem:[%s328 + $0x2b0] sm:$0xff]
      %v424 = vld [vmem:[%s328 + $0x2b8] sm:$0xff]
      %v425 = vld [vmem:[%s328 + $0x2c0] sm:$0xff]
      %v426 = vld [vmem:[%s328 + $0x2c8] sm:$0xff]
      %v427 = vld [vmem:[%s328 + $0x2d0] sm:$0xff]
      %v428 = vld [vmem:[%s328 + $0x2d8] sm:$0xff]
      %v429 = vld [vmem:[%s328 + $0x2e0] sm:$0xff]
      %v430 = vld [vmem:[%s328 + $0x2e8] sm:$0xff]
      %v431 = vld [vmem:[%s328 + $0x2f0] sm:$0xff]
      %v432 = vld [vmem:[%s328 + $0x2f8] sm:$0xff]
      %v433 = vpack.c.bf16 %v338, %v337
      %v434 = vpack.c.bf16 %v340, %v339
      %v435 = vpack.c.bf16 %v342, %v341
      %v436 = vpack.c.bf16 %v344, %v343
      %v437 = vpack.c.bf16 %v346, %v345
      %v438 = vpack.c.bf16 %v348, %v347
      %v439 = vpack.c.bf16 %v350, %v349
      %v440 = vpack.c.bf16 %v352, %v351
      %v441 = vpack.c.bf16 %v354, %v353
      %v442 = vpack.c.bf16 %v356, %v355
      %v443 = vpack.c.bf16 %v358, %v357
      %v444 = vpack.c.bf16 %v360, %v359
      %v445 = vpack.c.bf16 %v362, %v361
      %v446 = vpack.c.bf16 %v364, %v363
      %v447 = vpack.c.bf16 %v366, %v365
      %v448 = vpack.c.bf16 %v368, %v367
      %v449 = vpack.c.bf16 %v370, %v369
      %v450 = vpack.c.bf16 %v372, %v371
      %v451 = vpack.c.bf16 %v374, %v373
      %v452 = vpack.c.bf16 %v376, %v375
      %v453 = vpack.c.bf16 %v378, %v377
      %v454 = vpack.c.bf16 %v380, %v379
      %v455 = vpack.c.bf16 %v382, %v381
      %v456 = vpack.c.bf16 %v384, %v383
      %v457 = vpack.c.bf16 %v386, %v385
      %v458 = vpack.c.bf16 %v388, %v387
      %v459 = vpack.c.bf16 %v390, %v389
      %v460 = vpack.c.bf16 %v392, %v391
      %v461 = vpack.c.bf16 %v394, %v393
      %v462 = vpack.c.bf16 %v396, %v395
      %v463 = vpack.c.bf16 %v398, %v397
      %v464 = vpack.c.bf16 %v400, %v399
      %v465 = vpack.c.bf16 %v402, %v401
      %v466 = vpack.c.bf16 %v404, %v403
      %v467 = vpack.c.bf16 %v406, %v405
      %v468 = vpack.c.bf16 %v408, %v407
      %v469 = vpack.c.bf16 %v410, %v409
      %v470 = vpack.c.bf16 %v412, %v411
      %v471 = vpack.c.bf16 %v414, %v413
      %v472 = vpack.c.bf16 %v416, %v415
      %v473 = vpack.c.bf16 %v418, %v417
      %v474 = vpack.c.bf16 %v420, %v419
      %v475 = vpack.c.bf16 %v422, %v421
      %v476 = vpack.c.bf16 %v424, %v423
      %v477 = vpack.c.bf16 %v426, %v425
      %v478 = vpack.c.bf16 %v428, %v427
      %v479 = vpack.c.bf16 %v430, %v429
      %v480 = vpack.c.bf16 %v432, %v431
      %v481 = vld [vmem:[%s1] sm:$0xff]
      %v482 = vld [vmem:[%s1 + $0x8] sm:$0xff]
      %v483 = vld [vmem:[%s1 + $0x10] sm:$0xff]
      %v484 = vld [vmem:[%s1 + $0x18] sm:$0x33]
      %v485 = vld [vmem:[%s328 + $0x300] sm:$0xff]
      %v486 = vld [vmem:[%s328 + $0x308] sm:$0xff]
      %v487 = vld [vmem:[%s328 + $0x310] sm:$0xff]
      %v488 = vld [vmem:[%s328 + $0x318] sm:$0xff]
      %v489 = vpack.c.bf16 %v486, %v485
      %v490 = vpack.c.bf16 %v488, %v487
      %s491 = scalar_lea.vmem %s1, 32
      %v492 = vld [vmem:[%s491] sm:$0xff]
      %v493 = vld [vmem:[%s491 + $0x8] sm:$0xff]
      %v494 = vld [vmem:[%s491 + $0x10] sm:$0xff]
      %v495 = vld [vmem:[%s491 + $0x18] sm:$0x33]
      %v500 = vunpack.c.l.b16 %v492
      %v501 = vunpack.c.h.b16 %v492
      %v502 = vunpack.c.l.b16 %v493
      %v503 = vunpack.c.h.b16 %v493
      %v504 = vunpack.c.l.b16 %v494
      %v505 = vunpack.c.h.b16 %v494
      %v506 = vunpack.c.l.b16 %v495
      %v507 = vunpack.c.h.b16 %v495
      %v508 = vpack.c.b16 %v502, %v500
      %v509 = vpack.c.b16 %v503, %v501
      %v510 = vpack.c.b16 %v506, %v504
      %v511 = vpack.c.b16 %v507, %v505
      %vm514 = vcmask 228352
      %v516 = vsel %vm514, %v435, 0
      %v519 = vsel %vm514, %v436, 0
      %v522 = vsel %vm514, %v437, 0
      %v525 = vsel %vm514, %v438, 0
      %v528 = vsel %vm514, %v439, 0
      %v531 = vsel %vm514, %v440, 0
      %v534 = vsel %vm514, %v441, 0
      %v537 = vsel %vm514, %v442, 0
      %v540 = vsel %vm514, %v443, 0
      %v543 = vsel %vm514, %v444, 0
      %v546 = vsel %vm514, %v445, 0
      %v549 = vsel %vm514, %v446, 0
      %v552 = vsel %vm514, %v447, 0
      %v555 = vsel %vm514, %v448, 0
      %v558 = vsel %vm514, %v449, 0
      %v561 = vsel %vm514, %v450, 0
      %v564 = vsel %vm514, %v451, 0
      %v567 = vsel %vm514, %v452, 0
      %v570 = vsel %vm514, %v453, 0
      %v573 = vsel %vm514, %v454, 0
      %v576 = vsel %vm514, %v455, 0
      %v579 = vsel %vm514, %v456, 0
      %v582 = vsel %vm514, %v457, 0
      %v585 = vsel %vm514, %v458, 0
      %v588 = vsel %vm514, %v459, 0
      %v591 = vsel %vm514, %v460, 0
      %v594 = vsel %vm514, %v461, 0
      %v597 = vsel %vm514, %v462, 0
      %v600 = vsel %vm514, %v463, 0
      %v603 = vsel %vm514, %v464, 0
      %v606 = vsel %vm514, %v465, 0
      %v609 = vsel %vm514, %v466, 0
      %v612 = vsel %vm514, %v467, 0
      %v615 = vsel %vm514, %v468, 0
      %v618 = vsel %vm514, %v469, 0
      %v621 = vsel %vm514, %v470, 0
      %v624 = vsel %vm514, %v471, 0
      %v627 = vsel %vm514, %v472, 0
      %v630 = vsel %vm514, %v473, 0
      %v633 = vsel %vm514, %v474, 0
      %v636 = vsel %vm514, %v475, 0
      %v639 = vsel %vm514, %v476, 0
      %v642 = vsel %vm514, %v477, 0
      %v645 = vsel %vm514, %v478, 0
      %v648 = vsel %vm514, %v479, 0
      %v651 = vsel %vm514, %v480, 0
      %v654 = vsel %vm514, %v489, 0
      %v657 = vsel %vm514, %v490, 0
      %vm659 = vcmask 1045504
      %v661 = vsel %vm659, %v510, 0
      %v664 = vsel %vm659, %v511, 0
      %666 = vmatprep.subr.bf16.mxu0 0
      %667 = vmatpush1.bf16.msra.mxu0 0
      %668 = vmatprep.subr.bf16.mxu0 0
      %669 = vmatpush1.bf16.msra.mxu0 0
      %670 = vmatprep.subr.bf16.mxu0 0
      %671 = vmatpush1.bf16.msra.mxu0 0
      %672 = vmatprep.subr.bf16.mxu0 0
      %673 = vmatpush1.bf16.msra.mxu0 0
      %674 = vmatprep.subr.bf16.mxu0 0
      %675 = vmatpush1.bf16.msra.mxu0 0
      %676 = vmatprep.subr.bf16.mxu0 0
      %677 = vmatpush1.bf16.msra.mxu0 0
      %678 = vmatprep.subr.bf16.mxu0 %v664
      %679 = vmatpush1.bf16.msra.mxu0 %v661
      %680 = vmatprep.subr.bf16.mxu0 %v509
      %681 = vmatpush1.bf16.msra.mxu0 %v508
      %682 = vmatprep.subr.bf16.mxu0 0
      %683 = vmatpush2.bf16.msra.mxu0 0
      %684 = vmatprep.subr.bf16.mxu0 0
      %685 = vmatpush2.bf16.msra.mxu0 0
      %686 = vmatprep.subr.bf16.mxu0 0
      %687 = vmatpush2.bf16.msra.mxu0 0
      %688 = vmatprep.subr.bf16.mxu0 0
      %689 = vmatpush2.bf16.msra.mxu0 0
      %690 = vmatprep.subr.bf16.mxu0 0
      %691 = vmatpush2.bf16.msra.mxu0 0
      %692 = vmatprep.subr.bf16.mxu0 0
      %693 = vmatpush2.bf16.msra.mxu0 0
      %694 = vmatprep.subr.bf16.mxu0 0
      %695 = vmatpush2.bf16.msra.mxu0 0
      %696 = vmatprep.subr.bf16.mxu0 0
      %697 = vmatpush2.bf16.msra.mxu0 0
      %698 = vmatprep.mubr.bf16.mxu0 0
      %699 = vmatmul.mubr.bf16.gmra.mxu0 %v516
      %v700 = vpop.f32.mrf.mxu0
      %v701 = vadd.f32 0.0, %v700
      %v702 = vpop.f32.mrf.mxu0
      %v703 = vadd.f32 0.0, %v702
      %v704 = vpop.f32.mrf.mxu0
      %v705 = vadd.f32 0.0, %v704
      %v706 = vpop.f32.mrf.mxu0
      %v707 = vadd.f32 0.0, %v706
      %708 = vmatprep.mubr.bf16.mxu0 0
      %709 = vmatmul.mubr.bf16.gmra.mxu0 %v519
      %v710 = vpop.f32.mrf.mxu0
      %v711 = vadd.f32 0.0, %v710
      %v712 = vpop.f32.mrf.mxu0
      %v713 = vadd.f32 0.0, %v712
      %v714 = vpop.f32.mrf.mxu0
      %v715 = vadd.f32 0.0, %v714
      %v716 = vpop.f32.mrf.mxu0
      %v717 = vadd.f32 0.0, %v716
      %718 = vmatprep.mubr.bf16.mxu0 0
      %719 = vmatmul.mubr.bf16.gmra.mxu0 %v522
      %v720 = vpop.f32.mrf.mxu0
      %v721 = vadd.f32 0.0, %v720
      %v722 = vpop.f32.mrf.mxu0
      %v723 = vadd.f32 0.0, %v722
      %v724 = vpop.f32.mrf.mxu0
      %v725 = vadd.f32 0.0, %v724
      %v726 = vpop.f32.mrf.mxu0
      %v727 = vadd.f32 0.0, %v726
      %728 = vmatprep.mubr.bf16.mxu0 0
      %729 = vmatmul.mubr.bf16.gmra.mxu0 %v525
      %v730 = vpop.f32.mrf.mxu0
      %v731 = vadd.f32 0.0, %v730
      %v732 = vpop.f32.mrf.mxu0
      %v733 = vadd.f32 0.0, %v732
      %v734 = vpop.f32.mrf.mxu0
      %v735 = vadd.f32 0.0, %v734
      %v736 = vpop.f32.mrf.mxu0
      %v737 = vadd.f32 0.0, %v736
      %738 = vmatprep.mubr.bf16.mxu0 0
      %739 = vmatmul.mubr.bf16.gmra.mxu0 %v528
      %v740 = vpop.f32.mrf.mxu0
      %v741 = vadd.f32 0.0, %v740
      %v742 = vpop.f32.mrf.mxu0
      %v743 = vadd.f32 0.0, %v742
      %v744 = vpop.f32.mrf.mxu0
      %v745 = vadd.f32 0.0, %v744
      %v746 = vpop.f32.mrf.mxu0
      %v747 = vadd.f32 0.0, %v746
      %748 = vmatprep.mubr.bf16.mxu0 0
      %749 = vmatmul.mubr.bf16.gmra.mxu0 %v531
      %v750 = vpop.f32.mrf.mxu0
      %v751 = vadd.f32 0.0, %v750
      %v752 = vpop.f32.mrf.mxu0
      %v753 = vadd.f32 0.0, %v752
      %v754 = vpop.f32.mrf.mxu0
      %v755 = vadd.f32 0.0, %v754
      %v756 = vpop.f32.mrf.mxu0
      %v757 = vadd.f32 0.0, %v756
      %758 = vmatprep.mubr.bf16.mxu0 0
      %759 = vmatmul.mubr.bf16.gmra.mxu0 %v534
      %v760 = vpop.f32.mrf.mxu0
      %v761 = vadd.f32 0.0, %v760
      %v762 = vpop.f32.mrf.mxu0
      %v763 = vadd.f32 0.0, %v762
      %v764 = vpop.f32.mrf.mxu0
      %v765 = vadd.f32 0.0, %v764
      %v766 = vpop.f32.mrf.mxu0
      %v767 = vadd.f32 0.0, %v766
      %768 = vmatprep.mubr.bf16.mxu0 0
      %769 = vmatmul.mubr.bf16.gmra.mxu0 %v537
      %v770 = vpop.f32.mrf.mxu0
      %v771 = vadd.f32 0.0, %v770
      %v772 = vpop.f32.mrf.mxu0
      %v773 = vadd.f32 0.0, %v772
      %v774 = vpop.f32.mrf.mxu0
      %v775 = vadd.f32 0.0, %v774
      %v776 = vpop.f32.mrf.mxu0
      %v777 = vadd.f32 0.0, %v776
      %778 = vmatprep.mubr.bf16.mxu0 0
      %779 = vmatmul.mubr.bf16.gmra.mxu0 %v540
      %v780 = vpop.f32.mrf.mxu0
      %v781 = vadd.f32 0.0, %v780
      %v782 = vpop.f32.mrf.mxu0
      %v783 = vadd.f32 0.0, %v782
      %v784 = vpop.f32.mrf.mxu0
      %v785 = vadd.f32 0.0, %v784
      %v786 = vpop.f32.mrf.mxu0
      %v787 = vadd.f32 0.0, %v786
      %788 = vmatprep.mubr.bf16.mxu0 0
      %789 = vmatmul.mubr.bf16.gmra.mxu0 %v543
      %v790 = vpop.f32.mrf.mxu0
      %v791 = vadd.f32 0.0, %v790
      %v792 = vpop.f32.mrf.mxu0
      %v793 = vadd.f32 0.0, %v792
      %v794 = vpop.f32.mrf.mxu0
      %v795 = vadd.f32 0.0, %v794
      %v796 = vpop.f32.mrf.mxu0
      %v797 = vadd.f32 0.0, %v796
      %798 = vmatprep.mubr.bf16.mxu0 0
      %799 = vmatmul.mubr.bf16.gmra.mxu0 %v546
      %v800 = vpop.f32.mrf.mxu0
      %v801 = vadd.f32 0.0, %v800
      %v802 = vpop.f32.mrf.mxu0
      %v803 = vadd.f32 0.0, %v802
      %v804 = vpop.f32.mrf.mxu0
      %v805 = vadd.f32 0.0, %v804
      %v806 = vpop.f32.mrf.mxu0
      %v807 = vadd.f32 0.0, %v806
      %808 = vmatprep.mubr.bf16.mxu0 0
      %809 = vmatmul.mubr.bf16.gmra.mxu0 %v549
      %v810 = vpop.f32.mrf.mxu0
      %v811 = vadd.f32 0.0, %v810
      %v812 = vpop.f32.mrf.mxu0
      %v813 = vadd.f32 0.0, %v812
      %v814 = vpop.f32.mrf.mxu0
      %v815 = vadd.f32 0.0, %v814
      %v816 = vpop.f32.mrf.mxu0
      %v817 = vadd.f32 0.0, %v816
      %818 = vmatprep.mubr.bf16.mxu0 0
      %819 = vmatmul.mubr.bf16.gmra.mxu0 %v552
      %v820 = vpop.f32.mrf.mxu0
      %v821 = vadd.f32 0.0, %v820
      %v822 = vpop.f32.mrf.mxu0
      %v823 = vadd.f32 0.0, %v822
      %v824 = vpop.f32.mrf.mxu0
      %v825 = vadd.f32 0.0, %v824
      %v826 = vpop.f32.mrf.mxu0
      %v827 = vadd.f32 0.0, %v826
      %828 = vmatprep.mubr.bf16.mxu0 0
      %829 = vmatmul.mubr.bf16.gmra.mxu0 %v555
      %v830 = vpop.f32.mrf.mxu0
      %v831 = vadd.f32 0.0, %v830
      %v832 = vpop.f32.mrf.mxu0
      %v833 = vadd.f32 0.0, %v832
      %v834 = vpop.f32.mrf.mxu0
      %v835 = vadd.f32 0.0, %v834
      %v836 = vpop.f32.mrf.mxu0
      %v837 = vadd.f32 0.0, %v836
      %838 = vmatprep.mubr.bf16.mxu0 0
      %839 = vmatmul.mubr.bf16.gmra.mxu0 %v558
      %v840 = vpop.f32.mrf.mxu0
      %v841 = vadd.f32 0.0, %v840
      %v842 = vpop.f32.mrf.mxu0
      %v843 = vadd.f32 0.0, %v842
      %v844 = vpop.f32.mrf.mxu0
      %v845 = vadd.f32 0.0, %v844
      %v846 = vpop.f32.mrf.mxu0
      %v847 = vadd.f32 0.0, %v846
      %848 = vmatprep.mubr.bf16.mxu0 0
      %849 = vmatmul.mubr.bf16.gmra.mxu0 %v561
      %v850 = vpop.f32.mrf.mxu0
      %v851 = vadd.f32 0.0, %v850
      %v852 = vpop.f32.mrf.mxu0
      %v853 = vadd.f32 0.0, %v852
      %v854 = vpop.f32.mrf.mxu0
      %v855 = vadd.f32 0.0, %v854
      %v856 = vpop.f32.mrf.mxu0
      %v857 = vadd.f32 0.0, %v856
      %858 = vmatprep.mubr.bf16.mxu0 0
      %859 = vmatmul.mubr.bf16.gmra.mxu0 %v564
      %v860 = vpop.f32.mrf.mxu0
      %v861 = vadd.f32 0.0, %v860
      %v862 = vpop.f32.mrf.mxu0
      %v863 = vadd.f32 0.0, %v862
      %v864 = vpop.f32.mrf.mxu0
      %v865 = vadd.f32 0.0, %v864
      %v866 = vpop.f32.mrf.mxu0
      %v867 = vadd.f32 0.0, %v866
      %868 = vmatprep.mubr.bf16.mxu0 0
      %869 = vmatmul.mubr.bf16.gmra.mxu0 %v567
      %v870 = vpop.f32.mrf.mxu0
      %v871 = vadd.f32 0.0, %v870
      %v872 = vpop.f32.mrf.mxu0
      %v873 = vadd.f32 0.0, %v872
      %v874 = vpop.f32.mrf.mxu0
      %v875 = vadd.f32 0.0, %v874
      %v876 = vpop.f32.mrf.mxu0
      %v877 = vadd.f32 0.0, %v876
      %878 = vmatprep.mubr.bf16.mxu0 0
      %879 = vmatmul.mubr.bf16.gmra.mxu0 %v570
      %v880 = vpop.f32.mrf.mxu0
      %v881 = vadd.f32 0.0, %v880
      %v882 = vpop.f32.mrf.mxu0
      %v883 = vadd.f32 0.0, %v882
      %v884 = vpop.f32.mrf.mxu0
      %v885 = vadd.f32 0.0, %v884
      %v886 = vpop.f32.mrf.mxu0
      %v887 = vadd.f32 0.0, %v886
      %888 = vmatprep.mubr.bf16.mxu0 0
      %889 = vmatmul.mubr.bf16.gmra.mxu0 %v573
      %v890 = vpop.f32.mrf.mxu0
      %v891 = vadd.f32 0.0, %v890
      %v892 = vpop.f32.mrf.mxu0
      %v893 = vadd.f32 0.0, %v892
      %v894 = vpop.f32.mrf.mxu0
      %v895 = vadd.f32 0.0, %v894
      %v896 = vpop.f32.mrf.mxu0
      %v897 = vadd.f32 0.0, %v896
      %898 = vmatprep.mubr.bf16.mxu0 0
      %899 = vmatmul.mubr.bf16.gmra.mxu0 %v576
      %v900 = vpop.f32.mrf.mxu0
      %v901 = vadd.f32 0.0, %v900
      %v902 = vpop.f32.mrf.mxu0
      %v903 = vadd.f32 0.0, %v902
      %v904 = vpop.f32.mrf.mxu0
      %v905 = vadd.f32 0.0, %v904
      %v906 = vpop.f32.mrf.mxu0
      %v907 = vadd.f32 0.0, %v906
      %908 = vmatprep.mubr.bf16.mxu0 0
      %909 = vmatmul.mubr.bf16.gmra.mxu0 %v579
      %v910 = vpop.f32.mrf.mxu0
      %v911 = vadd.f32 0.0, %v910
      %v912 = vpop.f32.mrf.mxu0
      %v913 = vadd.f32 0.0, %v912
      %v914 = vpop.f32.mrf.mxu0
      %v915 = vadd.f32 0.0, %v914
      %v916 = vpop.f32.mrf.mxu0
      %v917 = vadd.f32 0.0, %v916
      %918 = vmatprep.mubr.bf16.mxu0 0
      %919 = vmatmul.mubr.bf16.gmra.mxu0 %v582
      %v920 = vpop.f32.mrf.mxu0
      %v921 = vadd.f32 0.0, %v920
      %v922 = vpop.f32.mrf.mxu0
      %v923 = vadd.f32 0.0, %v922
      %v924 = vpop.f32.mrf.mxu0
      %v925 = vadd.f32 0.0, %v924
      %v926 = vpop.f32.mrf.mxu0
      %v927 = vadd.f32 0.0, %v926
      %928 = vmatprep.mubr.bf16.mxu0 0
      %929 = vmatmul.mubr.bf16.gmra.mxu0 %v585
      %v930 = vpop.f32.mrf.mxu0
      %v931 = vadd.f32 0.0, %v930
      %v932 = vpop.f32.mrf.mxu0
      %v933 = vadd.f32 0.0, %v932
      %v934 = vpop.f32.mrf.mxu0
      %v935 = vadd.f32 0.0, %v934
      %v936 = vpop.f32.mrf.mxu0
      %v937 = vadd.f32 0.0, %v936
      %938 = vmatprep.mubr.bf16.mxu0 0
      %939 = vmatmul.mubr.bf16.gmra.mxu0 %v588
      %v940 = vpop.f32.mrf.mxu0
      %v941 = vadd.f32 0.0, %v940
      %v942 = vpop.f32.mrf.mxu0
      %v943 = vadd.f32 0.0, %v942
      %v944 = vpop.f32.mrf.mxu0
      %v945 = vadd.f32 0.0, %v944
      %v946 = vpop.f32.mrf.mxu0
      %v947 = vadd.f32 0.0, %v946
      %948 = vmatprep.mubr.bf16.mxu0 0
      %949 = vmatmul.mubr.bf16.gmra.mxu0 %v591
      %v950 = vpop.f32.mrf.mxu0
      %v951 = vadd.f32 0.0, %v950
      %v952 = vpop.f32.mrf.mxu0
      %v953 = vadd.f32 0.0, %v952
      %v954 = vpop.f32.mrf.mxu0
      %v955 = vadd.f32 0.0, %v954
      %v956 = vpop.f32.mrf.mxu0
      %v957 = vadd.f32 0.0, %v956
      %958 = vmatprep.mubr.bf16.mxu0 0
      %959 = vmatmul.mubr.bf16.gmra.mxu0 %v594
      %v960 = vpop.f32.mrf.mxu0
      %v961 = vadd.f32 0.0, %v960
      %v962 = vpop.f32.mrf.mxu0
      %v963 = vadd.f32 0.0, %v962
      %v964 = vpop.f32.mrf.mxu0
      %v965 = vadd.f32 0.0, %v964
      %v966 = vpop.f32.mrf.mxu0
      %v967 = vadd.f32 0.0, %v966
      %968 = vmatprep.mubr.bf16.mxu0 0
      %969 = vmatmul.mubr.bf16.gmra.mxu0 %v597
      %v970 = vpop.f32.mrf.mxu0
      %v971 = vadd.f32 0.0, %v970
      %v972 = vpop.f32.mrf.mxu0
      %v973 = vadd.f32 0.0, %v972
      %v974 = vpop.f32.mrf.mxu0
      %v975 = vadd.f32 0.0, %v974
      %v976 = vpop.f32.mrf.mxu0
      %v977 = vadd.f32 0.0, %v976
      %978 = vmatprep.mubr.bf16.mxu0 0
      %979 = vmatmul.mubr.bf16.gmra.mxu0 %v600
      %v980 = vpop.f32.mrf.mxu0
      %v981 = vadd.f32 0.0, %v980
      %v982 = vpop.f32.mrf.mxu0
      %v983 = vadd.f32 0.0, %v982
      %v984 = vpop.f32.mrf.mxu0
      %v985 = vadd.f32 0.0, %v984
      %v986 = vpop.f32.mrf.mxu0
      %v987 = vadd.f32 0.0, %v986
      %988 = vmatprep.mubr.bf16.mxu0 0
      %989 = vmatmul.mubr.bf16.gmra.mxu0 %v603
      %v990 = vpop.f32.mrf.mxu0
      %v991 = vadd.f32 0.0, %v990
      %v992 = vpop.f32.mrf.mxu0
      %v993 = vadd.f32 0.0, %v992
      %v994 = vpop.f32.mrf.mxu0
      %v995 = vadd.f32 0.0, %v994
      %v996 = vpop.f32.mrf.mxu0
      %v997 = vadd.f32 0.0, %v996
      %998 = vmatprep.mubr.bf16.mxu0 0
      %999 = vmatmul.mubr.bf16.gmra.mxu0 %v606
      %v1000 = vpop.f32.mrf.mxu0
      %v1001 = vadd.f32 0.0, %v1000
      %v1002 = vpop.f32.mrf.mxu0
      %v1003 = vadd.f32 0.0, %v1002
      %v1004 = vpop.f32.mrf.mxu0
      %v1005 = vadd.f32 0.0, %v1004
      %v1006 = vpop.f32.mrf.mxu0
      %v1007 = vadd.f32 0.0, %v1006
      %1008 = vmatprep.mubr.bf16.mxu0 0
      %1009 = vmatmul.mubr.bf16.gmra.mxu0 %v609
      %v1010 = vpop.f32.mrf.mxu0
      %v1011 = vadd.f32 0.0, %v1010
      %v1012 = vpop.f32.mrf.mxu0
      %v1013 = vadd.f32 0.0, %v1012
      %v1014 = vpop.f32.mrf.mxu0
      %v1015 = vadd.f32 0.0, %v1014
      %v1016 = vpop.f32.mrf.mxu0
      %v1017 = vadd.f32 0.0, %v1016
      %1018 = vmatprep.mubr.bf16.mxu0 0
      %1019 = vmatmul.mubr.bf16.gmra.mxu0 %v612
      %v1020 = vpop.f32.mrf.mxu0
      %v1021 = vadd.f32 0.0, %v1020
      %v1022 = vpop.f32.mrf.mxu0
      %v1023 = vadd.f32 0.0, %v1022
      %v1024 = vpop.f32.mrf.mxu0
      %v1025 = vadd.f32 0.0, %v1024
      %v1026 = vpop.f32.mrf.mxu0
      %v1027 = vadd.f32 0.0, %v1026
      %1028 = vmatprep.mubr.bf16.mxu0 0
      %1029 = vmatmul.mubr.bf16.gmra.mxu0 %v615
      %v1030 = vpop.f32.mrf.mxu0
      %v1031 = vadd.f32 0.0, %v1030
      %v1032 = vpop.f32.mrf.mxu0
      %v1033 = vadd.f32 0.0, %v1032
      %v1034 = vpop.f32.mrf.mxu0
      %v1035 = vadd.f32 0.0, %v1034
      %v1036 = vpop.f32.mrf.mxu0
      %v1037 = vadd.f32 0.0, %v1036
      %1038 = vmatprep.mubr.bf16.mxu0 0
      %1039 = vmatmul.mubr.bf16.gmra.mxu0 %v618
      %v1040 = vpop.f32.mrf.mxu0
      %v1041 = vadd.f32 0.0, %v1040
      %v1042 = vpop.f32.mrf.mxu0
      %v1043 = vadd.f32 0.0, %v1042
      %v1044 = vpop.f32.mrf.mxu0
      %v1045 = vadd.f32 0.0, %v1044
      %v1046 = vpop.f32.mrf.mxu0
      %v1047 = vadd.f32 0.0, %v1046
      %1048 = vmatprep.mubr.bf16.mxu0 0
      %1049 = vmatmul.mubr.bf16.gmra.mxu0 %v621
      %v1050 = vpop.f32.mrf.mxu0
      %v1051 = vadd.f32 0.0, %v1050
      %v1052 = vpop.f32.mrf.mxu0
      %v1053 = vadd.f32 0.0, %v1052
      %v1054 = vpop.f32.mrf.mxu0
      %v1055 = vadd.f32 0.0, %v1054
      %v1056 = vpop.f32.mrf.mxu0
      %v1057 = vadd.f32 0.0, %v1056
      %1058 = vmatprep.mubr.bf16.mxu0 0
      %1059 = vmatmul.mubr.bf16.gmra.mxu0 %v624
      %v1060 = vpop.f32.mrf.mxu0
      %v1061 = vadd.f32 0.0, %v1060
      %v1062 = vpop.f32.mrf.mxu0
      %v1063 = vadd.f32 0.0, %v1062
      %v1064 = vpop.f32.mrf.mxu0
      %v1065 = vadd.f32 0.0, %v1064
      %v1066 = vpop.f32.mrf.mxu0
      %v1067 = vadd.f32 0.0, %v1066
      %1068 = vmatprep.mubr.bf16.mxu0 0
      %1069 = vmatmul.mubr.bf16.gmra.mxu0 %v627
      %v1070 = vpop.f32.mrf.mxu0
      %v1071 = vadd.f32 0.0, %v1070
      %v1072 = vpop.f32.mrf.mxu0
      %v1073 = vadd.f32 0.0, %v1072
      %v1074 = vpop.f32.mrf.mxu0
      %v1075 = vadd.f32 0.0, %v1074
      %v1076 = vpop.f32.mrf.mxu0
      %v1077 = vadd.f32 0.0, %v1076
      %1078 = vmatprep.mubr.bf16.mxu0 0
      %1079 = vmatmul.mubr.bf16.gmra.mxu0 %v630
      %v1080 = vpop.f32.mrf.mxu0
      %v1081 = vadd.f32 0.0, %v1080
      %v1082 = vpop.f32.mrf.mxu0
      %v1083 = vadd.f32 0.0, %v1082
      %v1084 = vpop.f32.mrf.mxu0
      %v1085 = vadd.f32 0.0, %v1084
      %v1086 = vpop.f32.mrf.mxu0
      %v1087 = vadd.f32 0.0, %v1086
      %1088 = vmatprep.mubr.bf16.mxu0 0
      %1089 = vmatmul.mubr.bf16.gmra.mxu0 %v633
      %v1090 = vpop.f32.mrf.mxu0
      %v1091 = vadd.f32 0.0, %v1090
      %v1092 = vpop.f32.mrf.mxu0
      %v1093 = vadd.f32 0.0, %v1092
      %v1094 = vpop.f32.mrf.mxu0
      %v1095 = vadd.f32 0.0, %v1094
      %v1096 = vpop.f32.mrf.mxu0
      %v1097 = vadd.f32 0.0, %v1096
      %1098 = vmatprep.mubr.bf16.mxu0 0
      %1099 = vmatmul.mubr.bf16.gmra.mxu0 %v636
      %v1100 = vpop.f32.mrf.mxu0
      %v1101 = vadd.f32 0.0, %v1100
      %v1102 = vpop.f32.mrf.mxu0
      %v1103 = vadd.f32 0.0, %v1102
      %v1104 = vpop.f32.mrf.mxu0
      %v1105 = vadd.f32 0.0, %v1104
      %v1106 = vpop.f32.mrf.mxu0
      %v1107 = vadd.f32 0.0, %v1106
      %1108 = vmatprep.mubr.bf16.mxu0 0
      %1109 = vmatmul.mubr.bf16.gmra.mxu0 %v639
      %v1110 = vpop.f32.mrf.mxu0
      %v1111 = vadd.f32 0.0, %v1110
      %v1112 = vpop.f32.mrf.mxu0
      %v1113 = vadd.f32 0.0, %v1112
      %v1114 = vpop.f32.mrf.mxu0
      %v1115 = vadd.f32 0.0, %v1114
      %v1116 = vpop.f32.mrf.mxu0
      %v1117 = vadd.f32 0.0, %v1116
      %1118 = vmatprep.mubr.bf16.mxu0 0
      %1119 = vmatmul.mubr.bf16.gmra.mxu0 %v642
      %v1120 = vpop.f32.mrf.mxu0
      %v1121 = vadd.f32 0.0, %v1120
      %v1122 = vpop.f32.mrf.mxu0
      %v1123 = vadd.f32 0.0, %v1122
      %v1124 = vpop.f32.mrf.mxu0
      %v1125 = vadd.f32 0.0, %v1124
      %v1126 = vpop.f32.mrf.mxu0
      %v1127 = vadd.f32 0.0, %v1126
      %1128 = vmatprep.mubr.bf16.mxu0 0
      %1129 = vmatmul.mubr.bf16.gmra.mxu0 %v645
      %v1130 = vpop.f32.mrf.mxu0
      %v1131 = vadd.f32 0.0, %v1130
      %v1132 = vpop.f32.mrf.mxu0
      %v1133 = vadd.f32 0.0, %v1132
      %v1134 = vpop.f32.mrf.mxu0
      %v1135 = vadd.f32 0.0, %v1134
      %v1136 = vpop.f32.mrf.mxu0
      %v1137 = vadd.f32 0.0, %v1136
      %1138 = vmatprep.mubr.bf16.mxu0 0
      %1139 = vmatmul.mubr.bf16.gmra.mxu0 %v648
      %v1140 = vpop.f32.mrf.mxu0
      %v1141 = vadd.f32 0.0, %v1140
      %v1142 = vpop.f32.mrf.mxu0
      %v1143 = vadd.f32 0.0, %v1142
      %v1144 = vpop.f32.mrf.mxu0
      %v1145 = vadd.f32 0.0, %v1144
      %v1146 = vpop.f32.mrf.mxu0
      %v1147 = vadd.f32 0.0, %v1146
      %1148 = vmatprep.mubr.bf16.mxu0 0
      %1149 = vmatmul.mubr.bf16.gmra.mxu0 %v651
      %v1150 = vpop.f32.mrf.mxu0
      %v1151 = vadd.f32 0.0, %v1150
      %v1152 = vpop.f32.mrf.mxu0
      %v1153 = vadd.f32 0.0, %v1152
      %v1154 = vpop.f32.mrf.mxu0
      %v1155 = vadd.f32 0.0, %v1154
      %v1156 = vpop.f32.mrf.mxu0
      %v1157 = vadd.f32 0.0, %v1156
      %1158 = vmatprep.mubr.bf16.mxu0 0
      %1159 = vmatmul.mubr.bf16.gmra.mxu0 %v654
      %v1160 = vpop.f32.mrf.mxu0
      %v1161 = vadd.f32 0.0, %v1160
      %v1162 = vpop.f32.mrf.mxu0
      %v1163 = vadd.f32 0.0, %v1162
      %v1164 = vpop.f32.mrf.mxu0
      %v1165 = vadd.f32 0.0, %v1164
      %v1166 = vpop.f32.mrf.mxu0
      %v1167 = vadd.f32 0.0, %v1166
      %1168 = vmatprep.mubr.bf16.mxu0 0
      %1169 = vmatmul.mubr.bf16.gmra.mxu0 %v657
      %v1170 = vpop.f32.mrf.mxu0
      %v1171 = vadd.f32 0.0, %v1170
      %v1172 = vpop.f32.mrf.mxu0
      %v1173 = vadd.f32 0.0, %v1172
      %v1174 = vpop.f32.mrf.mxu0
      %v1175 = vadd.f32 0.0, %v1174
      %v1176 = vpop.f32.mrf.mxu0
      %v1177 = vadd.f32 0.0, %v1176
      %1178 = vdwg.mxu0
      %v1183 = vunpack.c.l.b16 %v481
      %v1184 = vunpack.c.h.b16 %v481
      %v1185 = vunpack.c.l.b16 %v482
      %v1186 = vunpack.c.h.b16 %v482
      %v1187 = vunpack.c.l.b16 %v483
      %v1188 = vunpack.c.h.b16 %v483
      %v1189 = vunpack.c.l.b16 %v484
      %v1190 = vunpack.c.h.b16 %v484
      %v1191 = vpack.c.b16 %v1185, %v1183
      %v1192 = vpack.c.b16 %v1186, %v1184
      %v1193 = vpack.c.b16 %v1189, %v1187
      %v1194 = vpack.c.b16 %v1190, %v1188
      %v1198 = vsel %vm514, %v433, 0
      %v1201 = vsel %vm514, %v434, 0
      %v1204 = vsel %vm659, %v1193, 0
      %v1207 = vsel %vm659, %v1194, 0
      %1209 = vmatprep.subr.bf16.mxu0 0
      %1210 = vmatpush1.bf16.msra.mxu0 0
      %1211 = vmatprep.subr.bf16.mxu0 0
      %1212 = vmatpush1.bf16.msra.mxu0 0
      %1213 = vmatprep.subr.bf16.mxu0 0
      %1214 = vmatpush1.bf16.msra.mxu0 0
      %1215 = vmatprep.subr.bf16.mxu0 0
      %1216 = vmatpush1.bf16.msra.mxu0 0
      %1217 = vmatprep.subr.bf16.mxu0 0
      %1218 = vmatpush1.bf16.msra.mxu0 0
      %1219 = vmatprep.subr.bf16.mxu0 0
      %1220 = vmatpush1.bf16.msra.mxu0 0
      %1221 = vmatprep.subr.bf16.mxu0 %v1207
      %1222 = vmatpush1.bf16.msra.mxu0 %v1204
      %1223 = vmatprep.subr.bf16.mxu0 %v1192
      %1224 = vmatpush1.bf16.msra.mxu0 %v1191
      %1225 = vmatprep.subr.bf16.mxu0 0
      %1226 = vmatpush2.bf16.msra.mxu0 0
      %1227 = vmatprep.subr.bf16.mxu0 0
      %1228 = vmatpush2.bf16.msra.mxu0 0
      %1229 = vmatprep.subr.bf16.mxu0 0
      %1230 = vmatpush2.bf16.msra.mxu0 0
      %1231 = vmatprep.subr.bf16.mxu0 0
      %1232 = vmatpush2.bf16.msra.mxu0 0
      %1233 = vmatprep.subr.bf16.mxu0 0
      %1234 = vmatpush2.bf16.msra.mxu0 0
      %1235 = vmatprep.subr.bf16.mxu0 0
      %1236 = vmatpush2.bf16.msra.mxu0 0
      %1237 = vmatprep.subr.bf16.mxu0 0
      %1238 = vmatpush2.bf16.msra.mxu0 0
      %1239 = vmatprep.subr.bf16.mxu0 0
      %1240 = vmatpush2.bf16.msra.mxu0 0
      %1241 = vmatprep.mubr.bf16.mxu0 0
      %1242 = vmatmul.mubr.bf16.gmra.mxu0 %v1198
      %v1243 = vpop.f32.mrf.mxu0
      %v1244 = vadd.f32 %v701, %v1243
      %v1245 = vpop.f32.mrf.mxu0
      %v1246 = vadd.f32 %v703, %v1245
      %v1247 = vpop.f32.mrf.mxu0
      %v1248 = vadd.f32 %v705, %v1247
      %v1249 = vpop.f32.mrf.mxu0
      %v1250 = vadd.f32 %v707, %v1249
      %1251 = vmatprep.mubr.bf16.mxu0 0
      %1252 = vmatmul.mubr.bf16.gmra.mxu0 %v1201
      %v1253 = vpop.f32.mrf.mxu0
      %v1254 = vadd.f32 %v711, %v1253
      %v1255 = vpop.f32.mrf.mxu0
      %v1256 = vadd.f32 %v713, %v1255
      %v1257 = vpop.f32.mrf.mxu0
      %v1258 = vadd.f32 %v715, %v1257
      %v1259 = vpop.f32.mrf.mxu0
      %v1260 = vadd.f32 %v717, %v1259
      %1261 = vmatprep.mubr.bf16.mxu0 0
      %1262 = vmatmul.mubr.bf16.gmra.mxu0 %v516
      %v1263 = vpop.f32.mrf.mxu0
      %v1264 = vadd.f32 %v721, %v1263
      %v1265 = vpop.f32.mrf.mxu0
      %v1266 = vadd.f32 %v723, %v1265
      %v1267 = vpop.f32.mrf.mxu0
      %v1268 = vadd.f32 %v725, %v1267
      %v1269 = vpop.f32.mrf.mxu0
      %v1270 = vadd.f32 %v727, %v1269
      %1271 = vmatprep.mubr.bf16.mxu0 0
      %1272 = vmatmul.mubr.bf16.gmra.mxu0 %v519
      %v1273 = vpop.f32.mrf.mxu0
      %v1274 = vadd.f32 %v731, %v1273
      %v1275 = vpop.f32.mrf.mxu0
      %v1276 = vadd.f32 %v733, %v1275
      %v1277 = vpop.f32.mrf.mxu0
      %v1278 = vadd.f32 %v735, %v1277
      %v1279 = vpop.f32.mrf.mxu0
      %v1280 = vadd.f32 %v737, %v1279
      %1281 = vmatprep.mubr.bf16.mxu0 0
      %1282 = vmatmul.mubr.bf16.gmra.mxu0 %v522
      %v1283 = vpop.f32.mrf.mxu0
      %v1284 = vadd.f32 %v741, %v1283
      %v1285 = vpop.f32.mrf.mxu0
      %v1286 = vadd.f32 %v743, %v1285
      %v1287 = vpop.f32.mrf.mxu0
      %v1288 = vadd.f32 %v745, %v1287
      %v1289 = vpop.f32.mrf.mxu0
      %v1290 = vadd.f32 %v747, %v1289
      %1291 = vmatprep.mubr.bf16.mxu0 0
      %1292 = vmatmul.mubr.bf16.gmra.mxu0 %v525
      %v1293 = vpop.f32.mrf.mxu0
      %v1294 = vadd.f32 %v751, %v1293
      %v1295 = vpop.f32.mrf.mxu0
      %v1296 = vadd.f32 %v753, %v1295
      %v1297 = vpop.f32.mrf.mxu0
      %v1298 = vadd.f32 %v755, %v1297
      %v1299 = vpop.f32.mrf.mxu0
      %v1300 = vadd.f32 %v757, %v1299
      %1301 = vmatprep.mubr.bf16.mxu0 0
      %1302 = vmatmul.mubr.bf16.gmra.mxu0 %v528
      %v1303 = vpop.f32.mrf.mxu0
      %v1304 = vadd.f32 %v761, %v1303
      %v1305 = vpop.f32.mrf.mxu0
      %v1306 = vadd.f32 %v763, %v1305
      %v1307 = vpop.f32.mrf.mxu0
      %v1308 = vadd.f32 %v765, %v1307
      %v1309 = vpop.f32.mrf.mxu0
      %v1310 = vadd.f32 %v767, %v1309
      %1311 = vmatprep.mubr.bf16.mxu0 0
      %1312 = vmatmul.mubr.bf16.gmra.mxu0 %v531
      %v1313 = vpop.f32.mrf.mxu0
      %v1314 = vadd.f32 %v771, %v1313
      %v1315 = vpop.f32.mrf.mxu0
      %v1316 = vadd.f32 %v773, %v1315
      %v1317 = vpop.f32.mrf.mxu0
      %v1318 = vadd.f32 %v775, %v1317
      %v1319 = vpop.f32.mrf.mxu0
      %v1320 = vadd.f32 %v777, %v1319
      %1321 = vmatprep.mubr.bf16.mxu0 0
      %1322 = vmatmul.mubr.bf16.gmra.mxu0 %v534
      %v1323 = vpop.f32.mrf.mxu0
      %v1324 = vadd.f32 %v781, %v1323
      %v1325 = vpop.f32.mrf.mxu0
      %v1326 = vadd.f32 %v783, %v1325
      %v1327 = vpop.f32.mrf.mxu0
      %v1328 = vadd.f32 %v785, %v1327
      %v1329 = vpop.f32.mrf.mxu0
      %v1330 = vadd.f32 %v787, %v1329
      %1331 = vmatprep.mubr.bf16.mxu0 0
      %1332 = vmatmul.mubr.bf16.gmra.mxu0 %v537
      %v1333 = vpop.f32.mrf.mxu0
      %v1334 = vadd.f32 %v791, %v1333
      %v1335 = vpop.f32.mrf.mxu0
      %v1336 = vadd.f32 %v793, %v1335
      %v1337 = vpop.f32.mrf.mxu0
      %v1338 = vadd.f32 %v795, %v1337
      %v1339 = vpop.f32.mrf.mxu0
      %v1340 = vadd.f32 %v797, %v1339
      %1341 = vmatprep.mubr.bf16.mxu0 0
      %1342 = vmatmul.mubr.bf16.gmra.mxu0 %v540
      %v1343 = vpop.f32.mrf.mxu0
      %v1344 = vadd.f32 %v801, %v1343
      %v1345 = vpop.f32.mrf.mxu0
      %v1346 = vadd.f32 %v803, %v1345
      %v1347 = vpop.f32.mrf.mxu0
      %v1348 = vadd.f32 %v805, %v1347
      %v1349 = vpop.f32.mrf.mxu0
      %v1350 = vadd.f32 %v807, %v1349
      %1351 = vmatprep.mubr.bf16.mxu0 0
      %1352 = vmatmul.mubr.bf16.gmra.mxu0 %v543
      %v1353 = vpop.f32.mrf.mxu0
      %v1354 = vadd.f32 %v811, %v1353
      %v1355 = vpop.f32.mrf.mxu0
      %v1356 = vadd.f32 %v813, %v1355
      %v1357 = vpop.f32.mrf.mxu0
      %v1358 = vadd.f32 %v815, %v1357
      %v1359 = vpop.f32.mrf.mxu0
      %v1360 = vadd.f32 %v817, %v1359
      %1361 = vmatprep.mubr.bf16.mxu0 0
      %1362 = vmatmul.mubr.bf16.gmra.mxu0 %v546
      %v1363 = vpop.f32.mrf.mxu0
      %v1364 = vadd.f32 %v821, %v1363
      %v1365 = vpop.f32.mrf.mxu0
      %v1366 = vadd.f32 %v823, %v1365
      %v1367 = vpop.f32.mrf.mxu0
      %v1368 = vadd.f32 %v825, %v1367
      %v1369 = vpop.f32.mrf.mxu0
      %v1370 = vadd.f32 %v827, %v1369
      %1371 = vmatprep.mubr.bf16.mxu0 0
      %1372 = vmatmul.mubr.bf16.gmra.mxu0 %v549
      %v1373 = vpop.f32.mrf.mxu0
      %v1374 = vadd.f32 %v831, %v1373
      %v1375 = vpop.f32.mrf.mxu0
      %v1376 = vadd.f32 %v833, %v1375
      %v1377 = vpop.f32.mrf.mxu0
      %v1378 = vadd.f32 %v835, %v1377
      %v1379 = vpop.f32.mrf.mxu0
      %v1380 = vadd.f32 %v837, %v1379
      %1381 = vmatprep.mubr.bf16.mxu0 0
      %1382 = vmatmul.mubr.bf16.gmra.mxu0 %v552
      %v1383 = vpop.f32.mrf.mxu0
      %v1384 = vadd.f32 %v841, %v1383
      %v1385 = vpop.f32.mrf.mxu0
      %v1386 = vadd.f32 %v843, %v1385
      %v1387 = vpop.f32.mrf.mxu0
      %v1388 = vadd.f32 %v845, %v1387
      %v1389 = vpop.f32.mrf.mxu0
      %v1390 = vadd.f32 %v847, %v1389
      %1391 = vmatprep.mubr.bf16.mxu0 0
      %1392 = vmatmul.mubr.bf16.gmra.mxu0 %v555
      %v1393 = vpop.f32.mrf.mxu0
      %v1394 = vadd.f32 %v851, %v1393
      %v1395 = vpop.f32.mrf.mxu0
      %v1396 = vadd.f32 %v853, %v1395
      %v1397 = vpop.f32.mrf.mxu0
      %v1398 = vadd.f32 %v855, %v1397
      %v1399 = vpop.f32.mrf.mxu0
      %v1400 = vadd.f32 %v857, %v1399
      %1401 = vmatprep.mubr.bf16.mxu0 0
      %1402 = vmatmul.mubr.bf16.gmra.mxu0 %v558
      %v1403 = vpop.f32.mrf.mxu0
      %v1404 = vadd.f32 %v861, %v1403
      %v1405 = vpop.f32.mrf.mxu0
      %v1406 = vadd.f32 %v863, %v1405
      %v1407 = vpop.f32.mrf.mxu0
      %v1408 = vadd.f32 %v865, %v1407
      %v1409 = vpop.f32.mrf.mxu0
      %v1410 = vadd.f32 %v867, %v1409
      %1411 = vmatprep.mubr.bf16.mxu0 0
      %1412 = vmatmul.mubr.bf16.gmra.mxu0 %v561
      %v1413 = vpop.f32.mrf.mxu0
      %v1414 = vadd.f32 %v871, %v1413
      %v1415 = vpop.f32.mrf.mxu0
      %v1416 = vadd.f32 %v873, %v1415
      %v1417 = vpop.f32.mrf.mxu0
      %v1418 = vadd.f32 %v875, %v1417
      %v1419 = vpop.f32.mrf.mxu0
      %v1420 = vadd.f32 %v877, %v1419
      %1421 = vmatprep.mubr.bf16.mxu0 0
      %1422 = vmatmul.mubr.bf16.gmra.mxu0 %v564
      %v1423 = vpop.f32.mrf.mxu0
      %v1424 = vadd.f32 %v881, %v1423
      %v1425 = vpop.f32.mrf.mxu0
      %v1426 = vadd.f32 %v883, %v1425
      %v1427 = vpop.f32.mrf.mxu0
      %v1428 = vadd.f32 %v885, %v1427
      %v1429 = vpop.f32.mrf.mxu0
      %v1430 = vadd.f32 %v887, %v1429
      %1431 = vmatprep.mubr.bf16.mxu0 0
      %1432 = vmatmul.mubr.bf16.gmra.mxu0 %v567
      %v1433 = vpop.f32.mrf.mxu0
      %v1434 = vadd.f32 %v891, %v1433
      %v1435 = vpop.f32.mrf.mxu0
      %v1436 = vadd.f32 %v893, %v1435
      %v1437 = vpop.f32.mrf.mxu0
      %v1438 = vadd.f32 %v895, %v1437
      %v1439 = vpop.f32.mrf.mxu0
      %v1440 = vadd.f32 %v897, %v1439
      %1441 = vmatprep.mubr.bf16.mxu0 0
      %1442 = vmatmul.mubr.bf16.gmra.mxu0 %v570
      %v1443 = vpop.f32.mrf.mxu0
      %v1444 = vadd.f32 %v901, %v1443
      %v1445 = vpop.f32.mrf.mxu0
      %v1446 = vadd.f32 %v903, %v1445
      %v1447 = vpop.f32.mrf.mxu0
      %v1448 = vadd.f32 %v905, %v1447
      %v1449 = vpop.f32.mrf.mxu0
      %v1450 = vadd.f32 %v907, %v1449
      %1451 = vmatprep.mubr.bf16.mxu0 0
      %1452 = vmatmul.mubr.bf16.gmra.mxu0 %v573
      %v1453 = vpop.f32.mrf.mxu0
      %v1454 = vadd.f32 %v911, %v1453
      %v1455 = vpop.f32.mrf.mxu0
      %v1456 = vadd.f32 %v913, %v1455
      %v1457 = vpop.f32.mrf.mxu0
      %v1458 = vadd.f32 %v915, %v1457
      %v1459 = vpop.f32.mrf.mxu0
      %v1460 = vadd.f32 %v917, %v1459
      %1461 = vmatprep.mubr.bf16.mxu0 0
      %1462 = vmatmul.mubr.bf16.gmra.mxu0 %v576
      %v1463 = vpop.f32.mrf.mxu0
      %v1464 = vadd.f32 %v921, %v1463
      %v1465 = vpop.f32.mrf.mxu0
      %v1466 = vadd.f32 %v923, %v1465
      %v1467 = vpop.f32.mrf.mxu0
      %v1468 = vadd.f32 %v925, %v1467
      %v1469 = vpop.f32.mrf.mxu0
      %v1470 = vadd.f32 %v927, %v1469
      %1471 = vmatprep.mubr.bf16.mxu0 0
      %1472 = vmatmul.mubr.bf16.gmra.mxu0 %v579
      %v1473 = vpop.f32.mrf.mxu0
      %v1474 = vadd.f32 %v931, %v1473
      %v1475 = vpop.f32.mrf.mxu0
      %v1476 = vadd.f32 %v933, %v1475
      %v1477 = vpop.f32.mrf.mxu0
      %v1478 = vadd.f32 %v935, %v1477
      %v1479 = vpop.f32.mrf.mxu0
      %v1480 = vadd.f32 %v937, %v1479
      %1481 = vmatprep.mubr.bf16.mxu0 0
      %1482 = vmatmul.mubr.bf16.gmra.mxu0 %v582
      %v1483 = vpop.f32.mrf.mxu0
      %v1484 = vadd.f32 %v941, %v1483
      %v1485 = vpop.f32.mrf.mxu0
      %v1486 = vadd.f32 %v943, %v1485
      %v1487 = vpop.f32.mrf.mxu0
      %v1488 = vadd.f32 %v945, %v1487
      %v1489 = vpop.f32.mrf.mxu0
      %v1490 = vadd.f32 %v947, %v1489
      %1491 = vmatprep.mubr.bf16.mxu0 0
      %1492 = vmatmul.mubr.bf16.gmra.mxu0 %v585
      %v1493 = vpop.f32.mrf.mxu0
      %v1494 = vadd.f32 %v951, %v1493
      %v1495 = vpop.f32.mrf.mxu0
      %v1496 = vadd.f32 %v953, %v1495
      %v1497 = vpop.f32.mrf.mxu0
      %v1498 = vadd.f32 %v955, %v1497
      %v1499 = vpop.f32.mrf.mxu0
      %v1500 = vadd.f32 %v957, %v1499
      %1501 = vmatprep.mubr.bf16.mxu0 0
      %1502 = vmatmul.mubr.bf16.gmra.mxu0 %v588
      %v1503 = vpop.f32.mrf.mxu0
      %v1504 = vadd.f32 %v961, %v1503
      %v1505 = vpop.f32.mrf.mxu0
      %v1506 = vadd.f32 %v963, %v1505
      %v1507 = vpop.f32.mrf.mxu0
      %v1508 = vadd.f32 %v965, %v1507
      %v1509 = vpop.f32.mrf.mxu0
      %v1510 = vadd.f32 %v967, %v1509
      %1511 = vmatprep.mubr.bf16.mxu0 0
      %1512 = vmatmul.mubr.bf16.gmra.mxu0 %v591
      %v1513 = vpop.f32.mrf.mxu0
      %v1514 = vadd.f32 %v971, %v1513
      %v1515 = vpop.f32.mrf.mxu0
      %v1516 = vadd.f32 %v973, %v1515
      %v1517 = vpop.f32.mrf.mxu0
      %v1518 = vadd.f32 %v975, %v1517
      %v1519 = vpop.f32.mrf.mxu0
      %v1520 = vadd.f32 %v977, %v1519
      %1521 = vmatprep.mubr.bf16.mxu0 0
      %1522 = vmatmul.mubr.bf16.gmra.mxu0 %v594
      %v1523 = vpop.f32.mrf.mxu0
      %v1524 = vadd.f32 %v981, %v1523
      %v1525 = vpop.f32.mrf.mxu0
      %v1526 = vadd.f32 %v983, %v1525
      %v1527 = vpop.f32.mrf.mxu0
      %v1528 = vadd.f32 %v985, %v1527
      %v1529 = vpop.f32.mrf.mxu0
      %v1530 = vadd.f32 %v987, %v1529
      %1531 = vmatprep.mubr.bf16.mxu0 0
      %1532 = vmatmul.mubr.bf16.gmra.mxu0 %v597
      %v1533 = vpop.f32.mrf.mxu0
      %v1534 = vadd.f32 %v991, %v1533
      %v1535 = vpop.f32.mrf.mxu0
      %v1536 = vadd.f32 %v993, %v1535
      %v1537 = vpop.f32.mrf.mxu0
      %v1538 = vadd.f32 %v995, %v1537
      %v1539 = vpop.f32.mrf.mxu0
      %v1540 = vadd.f32 %v997, %v1539
      %1541 = vmatprep.mubr.bf16.mxu0 0
      %1542 = vmatmul.mubr.bf16.gmra.mxu0 %v600
      %v1543 = vpop.f32.mrf.mxu0
      %v1544 = vadd.f32 %v1001, %v1543
      %v1545 = vpop.f32.mrf.mxu0
      %v1546 = vadd.f32 %v1003, %v1545
      %v1547 = vpop.f32.mrf.mxu0
      %v1548 = vadd.f32 %v1005, %v1547
      %v1549 = vpop.f32.mrf.mxu0
      %v1550 = vadd.f32 %v1007, %v1549
      %1551 = vmatprep.mubr.bf16.mxu0 0
      %1552 = vmatmul.mubr.bf16.gmra.mxu0 %v603
      %v1553 = vpop.f32.mrf.mxu0
      %v1554 = vadd.f32 %v1011, %v1553
      %v1555 = vpop.f32.mrf.mxu0
      %v1556 = vadd.f32 %v1013, %v1555
      %v1557 = vpop.f32.mrf.mxu0
      %v1558 = vadd.f32 %v1015, %v1557
      %v1559 = vpop.f32.mrf.mxu0
      %v1560 = vadd.f32 %v1017, %v1559
      %1561 = vmatprep.mubr.bf16.mxu0 0
      %1562 = vmatmul.mubr.bf16.gmra.mxu0 %v606
      %v1563 = vpop.f32.mrf.mxu0
      %v1564 = vadd.f32 %v1021, %v1563
      %v1565 = vpop.f32.mrf.mxu0
      %v1566 = vadd.f32 %v1023, %v1565
      %v1567 = vpop.f32.mrf.mxu0
      %v1568 = vadd.f32 %v1025, %v1567
      %v1569 = vpop.f32.mrf.mxu0
      %v1570 = vadd.f32 %v1027, %v1569
      %1571 = vmatprep.mubr.bf16.mxu0 0
      %1572 = vmatmul.mubr.bf16.gmra.mxu0 %v609
      %v1573 = vpop.f32.mrf.mxu0
      %v1574 = vadd.f32 %v1031, %v1573
      %v1575 = vpop.f32.mrf.mxu0
      %v1576 = vadd.f32 %v1033, %v1575
      %v1577 = vpop.f32.mrf.mxu0
      %v1578 = vadd.f32 %v1035, %v1577
      %v1579 = vpop.f32.mrf.mxu0
      %v1580 = vadd.f32 %v1037, %v1579
      %1581 = vmatprep.mubr.bf16.mxu0 0
      %1582 = vmatmul.mubr.bf16.gmra.mxu0 %v612
      %v1583 = vpop.f32.mrf.mxu0
      %v1584 = vadd.f32 %v1041, %v1583
      %v1585 = vpop.f32.mrf.mxu0
      %v1586 = vadd.f32 %v1043, %v1585
      %v1587 = vpop.f32.mrf.mxu0
      %v1588 = vadd.f32 %v1045, %v1587
      %v1589 = vpop.f32.mrf.mxu0
      %v1590 = vadd.f32 %v1047, %v1589
      %1591 = vmatprep.mubr.bf16.mxu0 0
      %1592 = vmatmul.mubr.bf16.gmra.mxu0 %v615
      %v1593 = vpop.f32.mrf.mxu0
      %v1594 = vadd.f32 %v1051, %v1593
      %v1595 = vpop.f32.mrf.mxu0
      %v1596 = vadd.f32 %v1053, %v1595
      %v1597 = vpop.f32.mrf.mxu0
      %v1598 = vadd.f32 %v1055, %v1597
      %v1599 = vpop.f32.mrf.mxu0
      %v1600 = vadd.f32 %v1057, %v1599
      %1601 = vmatprep.mubr.bf16.mxu0 0
      %1602 = vmatmul.mubr.bf16.gmra.mxu0 %v618
      %v1603 = vpop.f32.mrf.mxu0
      %v1604 = vadd.f32 %v1061, %v1603
      %v1605 = vpop.f32.mrf.mxu0
      %v1606 = vadd.f32 %v1063, %v1605
      %v1607 = vpop.f32.mrf.mxu0
      %v1608 = vadd.f32 %v1065, %v1607
      %v1609 = vpop.f32.mrf.mxu0
      %v1610 = vadd.f32 %v1067, %v1609
      %1611 = vmatprep.mubr.bf16.mxu0 0
      %1612 = vmatmul.mubr.bf16.gmra.mxu0 %v621
      %v1613 = vpop.f32.mrf.mxu0
      %v1614 = vadd.f32 %v1071, %v1613
      %v1615 = vpop.f32.mrf.mxu0
      %v1616 = vadd.f32 %v1073, %v1615
      %v1617 = vpop.f32.mrf.mxu0
      %v1618 = vadd.f32 %v1075, %v1617
      %v1619 = vpop.f32.mrf.mxu0
      %v1620 = vadd.f32 %v1077, %v1619
      %1621 = vmatprep.mubr.bf16.mxu0 0
      %1622 = vmatmul.mubr.bf16.gmra.mxu0 %v624
      %v1623 = vpop.f32.mrf.mxu0
      %v1624 = vadd.f32 %v1081, %v1623
      %v1625 = vpop.f32.mrf.mxu0
      %v1626 = vadd.f32 %v1083, %v1625
      %v1627 = vpop.f32.mrf.mxu0
      %v1628 = vadd.f32 %v1085, %v1627
      %v1629 = vpop.f32.mrf.mxu0
      %v1630 = vadd.f32 %v1087, %v1629
      %1631 = vmatprep.mubr.bf16.mxu0 0
      %1632 = vmatmul.mubr.bf16.gmra.mxu0 %v627
      %v1633 = vpop.f32.mrf.mxu0
      %v1634 = vadd.f32 %v1091, %v1633
      %v1635 = vpop.f32.mrf.mxu0
      %v1636 = vadd.f32 %v1093, %v1635
      %v1637 = vpop.f32.mrf.mxu0
      %v1638 = vadd.f32 %v1095, %v1637
      %v1639 = vpop.f32.mrf.mxu0
      %v1640 = vadd.f32 %v1097, %v1639
      %1641 = vmatprep.mubr.bf16.mxu0 0
      %1642 = vmatmul.mubr.bf16.gmra.mxu0 %v630
      %v1643 = vpop.f32.mrf.mxu0
      %v1644 = vadd.f32 %v1101, %v1643
      %v1645 = vpop.f32.mrf.mxu0
      %v1646 = vadd.f32 %v1103, %v1645
      %v1647 = vpop.f32.mrf.mxu0
      %v1648 = vadd.f32 %v1105, %v1647
      %v1649 = vpop.f32.mrf.mxu0
      %v1650 = vadd.f32 %v1107, %v1649
      %1651 = vmatprep.mubr.bf16.mxu0 0
      %1652 = vmatmul.mubr.bf16.gmra.mxu0 %v633
      %v1653 = vpop.f32.mrf.mxu0
      %v1654 = vadd.f32 %v1111, %v1653
      %v1655 = vpop.f32.mrf.mxu0
      %v1656 = vadd.f32 %v1113, %v1655
      %v1657 = vpop.f32.mrf.mxu0
      %v1658 = vadd.f32 %v1115, %v1657
      %v1659 = vpop.f32.mrf.mxu0
      %v1660 = vadd.f32 %v1117, %v1659
      %1661 = vmatprep.mubr.bf16.mxu0 0
      %1662 = vmatmul.mubr.bf16.gmra.mxu0 %v636
      %v1663 = vpop.f32.mrf.mxu0
      %v1664 = vadd.f32 %v1121, %v1663
      %v1665 = vpop.f32.mrf.mxu0
      %v1666 = vadd.f32 %v1123, %v1665
      %v1667 = vpop.f32.mrf.mxu0
      %v1668 = vadd.f32 %v1125, %v1667
      %v1669 = vpop.f32.mrf.mxu0
      %v1670 = vadd.f32 %v1127, %v1669
      %1671 = vmatprep.mubr.bf16.mxu0 0
      %1672 = vmatmul.mubr.bf16.gmra.mxu0 %v639
      %v1673 = vpop.f32.mrf.mxu0
      %v1674 = vadd.f32 %v1131, %v1673
      %v1675 = vpop.f32.mrf.mxu0
      %v1676 = vadd.f32 %v1133, %v1675
      %v1677 = vpop.f32.mrf.mxu0
      %v1678 = vadd.f32 %v1135, %v1677
      %v1679 = vpop.f32.mrf.mxu0
      %v1680 = vadd.f32 %v1137, %v1679
      %1681 = vmatprep.mubr.bf16.mxu0 0
      %1682 = vmatmul.mubr.bf16.gmra.mxu0 %v642
      %v1683 = vpop.f32.mrf.mxu0
      %v1684 = vadd.f32 %v1141, %v1683
      %v1685 = vpop.f32.mrf.mxu0
      %v1686 = vadd.f32 %v1143, %v1685
      %v1687 = vpop.f32.mrf.mxu0
      %v1688 = vadd.f32 %v1145, %v1687
      %v1689 = vpop.f32.mrf.mxu0
      %v1690 = vadd.f32 %v1147, %v1689
      %1691 = vmatprep.mubr.bf16.mxu0 0
      %1692 = vmatmul.mubr.bf16.gmra.mxu0 %v645
      %v1693 = vpop.f32.mrf.mxu0
      %v1694 = vadd.f32 %v1151, %v1693
      %v1695 = vpop.f32.mrf.mxu0
      %v1696 = vadd.f32 %v1153, %v1695
      %v1697 = vpop.f32.mrf.mxu0
      %v1698 = vadd.f32 %v1155, %v1697
      %v1699 = vpop.f32.mrf.mxu0
      %v1700 = vadd.f32 %v1157, %v1699
      %1701 = vmatprep.mubr.bf16.mxu0 0
      %1702 = vmatmul.mubr.bf16.gmra.mxu0 %v648
      %v1703 = vpop.f32.mrf.mxu0
      %v1704 = vadd.f32 %v1161, %v1703
      %v1705 = vpop.f32.mrf.mxu0
      %v1706 = vadd.f32 %v1163, %v1705
      %v1707 = vpop.f32.mrf.mxu0
      %v1708 = vadd.f32 %v1165, %v1707
      %v1709 = vpop.f32.mrf.mxu0
      %v1710 = vadd.f32 %v1167, %v1709
      %1711 = vmatprep.mubr.bf16.mxu0 0
      %1712 = vmatmul.mubr.bf16.gmra.mxu0 %v651
      %v1713 = vpop.f32.mrf.mxu0
      %v1714 = vadd.f32 %v1171, %v1713
      %v1715 = vpop.f32.mrf.mxu0
      %v1716 = vadd.f32 %v1173, %v1715
      %v1717 = vpop.f32.mrf.mxu0
      %v1718 = vadd.f32 %v1175, %v1717
      %v1719 = vpop.f32.mrf.mxu0
      %v1720 = vadd.f32 %v1177, %v1719
      %1721 = vdwg.mxu0
      %v1722 = vld [vmem:[%s328 + $0x40] sm:$0xff]
      %v1723 = vld [vmem:[%s328 + $0x48] sm:$0xff]
      %v1724 = vld [vmem:[%s328 + $0x50] sm:$0xff]
      %v1725 = vld [vmem:[%s328 + $0x58] sm:$0xff]
      %v1726 = vld [vmem:[%s328 + $0x60] sm:$0xff]
      %v1727 = vld [vmem:[%s328 + $0x68] sm:$0xff]
      %v1728 = vld [vmem:[%s328 + $0x70] sm:$0xff]
      %v1729 = vld [vmem:[%s328 + $0x78] sm:$0xff]
      %v1730 = vld [vmem:[%s328 + $0x80] sm:$0xff]
      %v1731 = vld [vmem:[%s328 + $0x88] sm:$0xff]
      %v1732 = vld [vmem:[%s328 + $0x90] sm:$0xff]
      %v1733 = vld [vmem:[%s328 + $0x98] sm:$0xff]
      %v1734 = vld [vmem:[%s328 + $0xa0] sm:$0xff]
      %v1735 = vld [vmem:[%s328 + $0xa8] sm:$0xff]
      %v1736 = vld [vmem:[%s328 + $0xb0] sm:$0xff]
      %v1737 = vld [vmem:[%s328 + $0xb8] sm:$0xff]
      %v1738 = vld [vmem:[%s328 + $0xc0] sm:$0xff]
      %v1739 = vld [vmem:[%s328 + $0xc8] sm:$0xff]
      %v1740 = vld [vmem:[%s328 + $0xd0] sm:$0xff]
      %v1741 = vld [vmem:[%s328 + $0xd8] sm:$0xff]
      %v1742 = vld [vmem:[%s328 + $0xe0] sm:$0xff]
      %v1743 = vld [vmem:[%s328 + $0xe8] sm:$0xff]
      %v1744 = vld [vmem:[%s328 + $0xf0] sm:$0xff]
      %v1745 = vld [vmem:[%s328 + $0xf8] sm:$0xff]
      %v1746 = vld [vmem:[%s328 + $0x100] sm:$0xff]
      %v1747 = vld [vmem:[%s328 + $0x108] sm:$0xff]
      %v1748 = vld [vmem:[%s328 + $0x110] sm:$0xff]
      %v1749 = vld [vmem:[%s328 + $0x118] sm:$0xff]
      %v1750 = vld [vmem:[%s328 + $0x120] sm:$0xff]
      %v1751 = vld [vmem:[%s328 + $0x128] sm:$0xff]
      %v1752 = vld [vmem:[%s328 + $0x130] sm:$0xff]
      %v1753 = vld [vmem:[%s328 + $0x138] sm:$0xff]
      %v1754 = vld [vmem:[%s328 + $0x140] sm:$0xff]
      %v1755 = vld [vmem:[%s328 + $0x148] sm:$0xff]
      %v1756 = vld [vmem:[%s328 + $0x150] sm:$0xff]
      %v1757 = vld [vmem:[%s328 + $0x158] sm:$0xff]
      %v1758 = vld [vmem:[%s328 + $0x160] sm:$0xff]
      %v1759 = vld [vmem:[%s328 + $0x168] sm:$0xff]
      %v1760 = vld [vmem:[%s328 + $0x170] sm:$0xff]
      %v1761 = vld [vmem:[%s328 + $0x178] sm:$0xff]
      %v1762 = vld [vmem:[%s328 + $0x180] sm:$0xff]
      %v1763 = vld [vmem:[%s328 + $0x188] sm:$0xff]
      %v1764 = vld [vmem:[%s328 + $0x190] sm:$0xff]
      %v1765 = vld [vmem:[%s328 + $0x198] sm:$0xff]
      %v1766 = vld [vmem:[%s328 + $0x1a0] sm:$0xff]
      %v1767 = vld [vmem:[%s328 + $0x1a8] sm:$0xff]
      %v1768 = vld [vmem:[%s328 + $0x1b0] sm:$0xff]
      %v1769 = vld [vmem:[%s328 + $0x1b8] sm:$0xff]
      %v1770 = vld [vmem:[%s328 + $0x1c0] sm:$0xff]
      %v1771 = vld [vmem:[%s328 + $0x1c8] sm:$0xff]
      %v1772 = vld [vmem:[%s328 + $0x1d0] sm:$0xff]
      %v1773 = vld [vmem:[%s328 + $0x1d8] sm:$0xff]
      %v1774 = vld [vmem:[%s328 + $0x1e0] sm:$0xff]
      %v1775 = vld [vmem:[%s328 + $0x1e8] sm:$0xff]
      %v1776 = vld [vmem:[%s328 + $0x1f0] sm:$0xff]
      %v1777 = vld [vmem:[%s328 + $0x1f8] sm:$0xff]
      %v1778 = vld [vmem:[%s328 + $0x200] sm:$0xff]
      %v1779 = vld [vmem:[%s328 + $0x208] sm:$0xff]
      %v1780 = vld [vmem:[%s328 + $0x210] sm:$0xff]
      %v1781 = vld [vmem:[%s328 + $0x218] sm:$0xff]
      %v1782 = vld [vmem:[%s328 + $0x220] sm:$0xff]
      %v1783 = vld [vmem:[%s328 + $0x228] sm:$0xff]
      %v1784 = vld [vmem:[%s328 + $0x230] sm:$0xff]
      %v1785 = vld [vmem:[%s328 + $0x238] sm:$0xff]
      %v1786 = vld [vmem:[%s328 + $0x240] sm:$0xff]
      %v1787 = vld [vmem:[%s328 + $0x248] sm:$0xff]
      %v1788 = vld [vmem:[%s328 + $0x250] sm:$0xff]
      %v1789 = vld [vmem:[%s328 + $0x258] sm:$0xff]
      %v1790 = vld [vmem:[%s328 + $0x260] sm:$0xff]
      %v1791 = vld [vmem:[%s328 + $0x268] sm:$0xff]
      %v1792 = vld [vmem:[%s328 + $0x270] sm:$0xff]
      %v1793 = vld [vmem:[%s328 + $0x278] sm:$0xff]
      %v1794 = vld [vmem:[%s328 + $0x280] sm:$0xff]
      %v1795 = vld [vmem:[%s328 + $0x288] sm:$0xff]
      %v1796 = vld [vmem:[%s328 + $0x290] sm:$0xff]
      %v1797 = vld [vmem:[%s328 + $0x298] sm:$0xff]
      %v1798 = vld [vmem:[%s328 + $0x2a0] sm:$0xff]
      %v1799 = vld [vmem:[%s328 + $0x2a8] sm:$0xff]
      %v1800 = vld [vmem:[%s328 + $0x2b0] sm:$0xff]
      %v1801 = vld [vmem:[%s328 + $0x2b8] sm:$0xff]
      %v1802 = vld [vmem:[%s328 + $0x2c0] sm:$0xff]
      %v1803 = vld [vmem:[%s328 + $0x2c8] sm:$0xff]
      %v1804 = vld [vmem:[%s328 + $0x2d0] sm:$0xff]
      %v1805 = vld [vmem:[%s328 + $0x2d8] sm:$0xff]
      %v1806 = vld [vmem:[%s328 + $0x2e0] sm:$0xff]
      %v1807 = vld [vmem:[%s328 + $0x2e8] sm:$0xff]
      %v1808 = vld [vmem:[%s328 + $0x2f0] sm:$0xff]
      %v1809 = vld [vmem:[%s328 + $0x2f8] sm:$0xff]
      %v1810 = vld [vmem:[%s328 + $0x300] sm:$0xff]
      %v1811 = vld [vmem:[%s328 + $0x308] sm:$0xff]
      %v1812 = vld [vmem:[%s328 + $0x310] sm:$0xff]
      %v1813 = vld [vmem:[%s328 + $0x318] sm:$0xff]
      %v1814 = vld [vmem:[%s328 + $0x320] sm:$0xff]
      %v1815 = vld [vmem:[%s328 + $0x328] sm:$0xff]
      %v1816 = vld [vmem:[%s328 + $0x330] sm:$0xff]
      %v1817 = vld [vmem:[%s328 + $0x338] sm:$0xff]
      %v1818 = vpack.c.bf16 %v1723, %v1722
      %v1819 = vpack.c.bf16 %v1725, %v1724
      %v1820 = vpack.c.bf16 %v1727, %v1726
      %v1821 = vpack.c.bf16 %v1729, %v1728
      %v1822 = vpack.c.bf16 %v1731, %v1730
      %v1823 = vpack.c.bf16 %v1733, %v1732
      %v1824 = vpack.c.bf16 %v1735, %v1734
      %v1825 = vpack.c.bf16 %v1737, %v1736
      %v1826 = vpack.c.bf16 %v1739, %v1738
      %v1827 = vpack.c.bf16 %v1741, %v1740
      %v1828 = vpack.c.bf16 %v1743, %v1742
      %v1829 = vpack.c.bf16 %v1745, %v1744
      %v1830 = vpack.c.bf16 %v1747, %v1746
      %v1831 = vpack.c.bf16 %v1749, %v1748
      %v1832 = vpack.c.bf16 %v1751, %v1750
      %v1833 = vpack.c.bf16 %v1753, %v1752
      %v1834 = vpack.c.bf16 %v1755, %v1754
      %v1835 = vpack.c.bf16 %v1757, %v1756
      %v1836 = vpack.c.bf16 %v1759, %v1758
      %v1837 = vpack.c.bf16 %v1761, %v1760
      %v1838 = vpack.c.bf16 %v1763, %v1762
      %v1839 = vpack.c.bf16 %v1765, %v1764
      %v1840 = vpack.c.bf16 %v1767, %v1766
      %v1841 = vpack.c.bf16 %v1769, %v1768
      %v1842 = vpack.c.bf16 %v1771, %v1770
      %v1843 = vpack.c.bf16 %v1773, %v1772
      %v1844 = vpack.c.bf16 %v1775, %v1774
      %v1845 = vpack.c.bf16 %v1777, %v1776
      %v1846 = vpack.c.bf16 %v1779, %v1778
      %v1847 = vpack.c.bf16 %v1781, %v1780
      %v1848 = vpack.c.bf16 %v1783, %v1782
      %v1849 = vpack.c.bf16 %v1785, %v1784
      %v1850 = vpack.c.bf16 %v1787, %v1786
      %v1851 = vpack.c.bf16 %v1789, %v1788
      %v1852 = vpack.c.bf16 %v1791, %v1790
      %v1853 = vpack.c.bf16 %v1793, %v1792
      %v1854 = vpack.c.bf16 %v1795, %v1794
      %v1855 = vpack.c.bf16 %v1797, %v1796
      %v1856 = vpack.c.bf16 %v1799, %v1798
      %v1857 = vpack.c.bf16 %v1801, %v1800
      %v1858 = vpack.c.bf16 %v1803, %v1802
      %v1859 = vpack.c.bf16 %v1805, %v1804
      %v1860 = vpack.c.bf16 %v1807, %v1806
      %v1861 = vpack.c.bf16 %v1809, %v1808
      %v1862 = vpack.c.bf16 %v1811, %v1810
      %v1863 = vpack.c.bf16 %v1813, %v1812
      %v1864 = vpack.c.bf16 %v1815, %v1814
      %v1865 = vpack.c.bf16 %v1817, %v1816
      %s1866 = scalar_lea.vmem %s1, 64
      %v1867 = vld [vmem:[%s1866] sm:$0xff]
      %v1868 = vld [vmem:[%s1866 + $0x8] sm:$0xff]
      %v1869 = vld [vmem:[%s1866 + $0x10] sm:$0xff]
      %v1870 = vld [vmem:[%s1866 + $0x18] sm:$0x33]
      %v1875 = vunpack.c.l.b16 %v1867
      %v1876 = vunpack.c.h.b16 %v1867
      %v1877 = vunpack.c.l.b16 %v1868
      %v1878 = vunpack.c.h.b16 %v1868
      %v1879 = vunpack.c.l.b16 %v1869
      %v1880 = vunpack.c.h.b16 %v1869
      %v1881 = vunpack.c.l.b16 %v1870
      %v1882 = vunpack.c.h.b16 %v1870
      %v1883 = vpack.c.b16 %v1877, %v1875
      %v1884 = vpack.c.b16 %v1878, %v1876
      %v1885 = vpack.c.b16 %v1881, %v1879
      %v1886 = vpack.c.b16 %v1882, %v1880
      %v1890 = vsel %vm514, %v1818, 0
      %v1893 = vsel %vm514, %v1819, 0
      %v1896 = vsel %vm514, %v1820, 0
      %v1899 = vsel %vm514, %v1821, 0
      %v1902 = vsel %vm514, %v1822, 0
      %v1905 = vsel %vm514, %v1823, 0
      %v1908 = vsel %vm514, %v1824, 0
      %v1911 = vsel %vm514, %v1825, 0
      %v1914 = vsel %vm514, %v1826, 0
      %v1917 = vsel %vm514, %v1827, 0
      %v1920 = vsel %vm514, %v1828, 0
      %v1923 = vsel %vm514, %v1829, 0
      %v1926 = vsel %vm514, %v1830, 0
      %v1929 = vsel %vm514, %v1831, 0
      %v1932 = vsel %vm514, %v1832, 0
      %v1935 = vsel %vm514, %v1833, 0
      %v1938 = vsel %vm514, %v1834, 0
      %v1941 = vsel %vm514, %v1835, 0
      %v1944 = vsel %vm514, %v1836, 0
      %v1947 = vsel %vm514, %v1837, 0
      %v1950 = vsel %vm514, %v1838, 0
      %v1953 = vsel %vm514, %v1839, 0
      %v1956 = vsel %vm514, %v1840, 0
      %v1959 = vsel %vm514, %v1841, 0
      %v1962 = vsel %vm514, %v1842, 0
      %v1965 = vsel %vm514, %v1843, 0
      %v1968 = vsel %vm514, %v1844, 0
      %v1971 = vsel %vm514, %v1845, 0
      %v1974 = vsel %vm514, %v1846, 0
      %v1977 = vsel %vm514, %v1847, 0
      %v1980 = vsel %vm514, %v1848, 0
      %v1983 = vsel %vm514, %v1849, 0
      %v1986 = vsel %vm514, %v1850, 0
      %v1989 = vsel %vm514, %v1851, 0
      %v1992 = vsel %vm514, %v1852, 0
      %v1995 = vsel %vm514, %v1853, 0
      %v1998 = vsel %vm514, %v1854, 0
      %v2001 = vsel %vm514, %v1855, 0
      %v2004 = vsel %vm514, %v1856, 0
      %v2007 = vsel %vm514, %v1857, 0
      %v2010 = vsel %vm514, %v1858, 0
      %v2013 = vsel %vm514, %v1859, 0
      %v2016 = vsel %vm514, %v1860, 0
      %v2019 = vsel %vm514, %v1861, 0
      %v2022 = vsel %vm514, %v1862, 0
      %v2025 = vsel %vm514, %v1863, 0
      %v2028 = vsel %vm514, %v1864, 0
      %v2031 = vsel %vm514, %v1865, 0
      %v2034 = vsel %vm659, %v1885, 0
      %v2037 = vsel %vm659, %v1886, 0
      %2039 = vmatprep.subr.bf16.mxu0 0
      %2040 = vmatpush1.bf16.msra.mxu0 0
      %2041 = vmatprep.subr.bf16.mxu0 0
      %2042 = vmatpush1.bf16.msra.mxu0 0
      %2043 = vmatprep.subr.bf16.mxu0 0
      %2044 = vmatpush1.bf16.msra.mxu0 0
      %2045 = vmatprep.subr.bf16.mxu0 0
      %2046 = vmatpush1.bf16.msra.mxu0 0
      %2047 = vmatprep.subr.bf16.mxu0 0
      %2048 = vmatpush1.bf16.msra.mxu0 0
      %2049 = vmatprep.subr.bf16.mxu0 0
      %2050 = vmatpush1.bf16.msra.mxu0 0
      %2051 = vmatprep.subr.bf16.mxu0 %v2037
      %2052 = vmatpush1.bf16.msra.mxu0 %v2034
      %2053 = vmatprep.subr.bf16.mxu0 %v1884
      %2054 = vmatpush1.bf16.msra.mxu0 %v1883
      %2055 = vmatprep.subr.bf16.mxu0 0
      %2056 = vmatpush2.bf16.msra.mxu0 0
      %2057 = vmatprep.subr.bf16.mxu0 0
      %2058 = vmatpush2.bf16.msra.mxu0 0
      %2059 = vmatprep.subr.bf16.mxu0 0
      %2060 = vmatpush2.bf16.msra.mxu0 0
      %2061 = vmatprep.subr.bf16.mxu0 0
      %2062 = vmatpush2.bf16.msra.mxu0 0
      %2063 = vmatprep.subr.bf16.mxu0 0
      %2064 = vmatpush2.bf16.msra.mxu0 0
      %2065 = vmatprep.subr.bf16.mxu0 0
      %2066 = vmatpush2.bf16.msra.mxu0 0
      %2067 = vmatprep.subr.bf16.mxu0 0
      %2068 = vmatpush2.bf16.msra.mxu0 0
      %2069 = vmatprep.subr.bf16.mxu0 0
      %2070 = vmatpush2.bf16.msra.mxu0 0
      %2071 = vmatprep.mubr.bf16.mxu0 0
      %2072 = vmatmul.mubr.bf16.gmra.mxu0 %v1890
      %v2073 = vpop.f32.mrf.mxu0
      %v2074 = vadd.f32 0.0, %v2073
      %v2075 = vpop.f32.mrf.mxu0
      %v2076 = vadd.f32 0.0, %v2075
      %v2077 = vpop.f32.mrf.mxu0
      %v2078 = vadd.f32 0.0, %v2077
      %v2079 = vpop.f32.mrf.mxu0
      %v2080 = vadd.f32 0.0, %v2079
      %2081 = vmatprep.mubr.bf16.mxu0 0
      %2082 = vmatmul.mubr.bf16.gmra.mxu0 %v1893
      %v2083 = vpop.f32.mrf.mxu0
      %v2084 = vadd.f32 0.0, %v2083
      %v2085 = vpop.f32.mrf.mxu0
      %v2086 = vadd.f32 0.0, %v2085
      %v2087 = vpop.f32.mrf.mxu0
      %v2088 = vadd.f32 0.0, %v2087
      %v2089 = vpop.f32.mrf.mxu0
      %v2090 = vadd.f32 0.0, %v2089
      %2091 = vmatprep.mubr.bf16.mxu0 0
      %2092 = vmatmul.mubr.bf16.gmra.mxu0 %v1896
      %v2093 = vpop.f32.mrf.mxu0
      %v2094 = vadd.f32 0.0, %v2093
      %v2095 = vpop.f32.mrf.mxu0
      %v2096 = vadd.f32 0.0, %v2095
      %v2097 = vpop.f32.mrf.mxu0
      %v2098 = vadd.f32 0.0, %v2097
      %v2099 = vpop.f32.mrf.mxu0
      %v2100 = vadd.f32 0.0, %v2099
      %2101 = vmatprep.mubr.bf16.mxu0 0
      %2102 = vmatmul.mubr.bf16.gmra.mxu0 %v1899
      %v2103 = vpop.f32.mrf.mxu0
      %v2104 = vadd.f32 0.0, %v2103
      %v2105 = vpop.f32.mrf.mxu0
      %v2106 = vadd.f32 0.0, %v2105
      %v2107 = vpop.f32.mrf.mxu0
      %v2108 = vadd.f32 0.0, %v2107
      %v2109 = vpop.f32.mrf.mxu0
      %v2110 = vadd.f32 0.0, %v2109
      %2111 = vmatprep.mubr.bf16.mxu0 0
      %2112 = vmatmul.mubr.bf16.gmra.mxu0 %v1902
      %v2113 = vpop.f32.mrf.mxu0
      %v2114 = vadd.f32 0.0, %v2113
      %v2115 = vpop.f32.mrf.mxu0
      %v2116 = vadd.f32 0.0, %v2115
      %v2117 = vpop.f32.mrf.mxu0
      %v2118 = vadd.f32 0.0, %v2117
      %v2119 = vpop.f32.mrf.mxu0
      %v2120 = vadd.f32 0.0, %v2119
      %2121 = vmatprep.mubr.bf16.mxu0 0
      %2122 = vmatmul.mubr.bf16.gmra.mxu0 %v1905
      %v2123 = vpop.f32.mrf.mxu0
      %v2124 = vadd.f32 0.0, %v2123
      %v2125 = vpop.f32.mrf.mxu0
      %v2126 = vadd.f32 0.0, %v2125
      %v2127 = vpop.f32.mrf.mxu0
      %v2128 = vadd.f32 0.0, %v2127
      %v2129 = vpop.f32.mrf.mxu0
      %v2130 = vadd.f32 0.0, %v2129
      %2131 = vmatprep.mubr.bf16.mxu0 0
      %2132 = vmatmul.mubr.bf16.gmra.mxu0 %v1908
      %v2133 = vpop.f32.mrf.mxu0
      %v2134 = vadd.f32 0.0, %v2133
      %v2135 = vpop.f32.mrf.mxu0
      %v2136 = vadd.f32 0.0, %v2135
      %v2137 = vpop.f32.mrf.mxu0
      %v2138 = vadd.f32 0.0, %v2137
      %v2139 = vpop.f32.mrf.mxu0
      %v2140 = vadd.f32 0.0, %v2139
      %2141 = vmatprep.mubr.bf16.mxu0 0
      %2142 = vmatmul.mubr.bf16.gmra.mxu0 %v1911
      %v2143 = vpop.f32.mrf.mxu0
      %v2144 = vadd.f32 0.0, %v2143
      %v2145 = vpop.f32.mrf.mxu0
      %v2146 = vadd.f32 0.0, %v2145
      %v2147 = vpop.f32.mrf.mxu0
      %v2148 = vadd.f32 0.0, %v2147
      %v2149 = vpop.f32.mrf.mxu0
      %v2150 = vadd.f32 0.0, %v2149
      %2151 = vmatprep.mubr.bf16.mxu0 0
      %2152 = vmatmul.mubr.bf16.gmra.mxu0 %v1914
      %v2153 = vpop.f32.mrf.mxu0
      %v2154 = vadd.f32 0.0, %v2153
      %v2155 = vpop.f32.mrf.mxu0
      %v2156 = vadd.f32 0.0, %v2155
      %v2157 = vpop.f32.mrf.mxu0
      %v2158 = vadd.f32 0.0, %v2157
      %v2159 = vpop.f32.mrf.mxu0
      %v2160 = vadd.f32 0.0, %v2159
      %2161 = vmatprep.mubr.bf16.mxu0 0
      %2162 = vmatmul.mubr.bf16.gmra.mxu0 %v1917
      %v2163 = vpop.f32.mrf.mxu0
      %v2164 = vadd.f32 0.0, %v2163
      %v2165 = vpop.f32.mrf.mxu0
      %v2166 = vadd.f32 0.0, %v2165
      %v2167 = vpop.f32.mrf.mxu0
      %v2168 = vadd.f32 0.0, %v2167
      %v2169 = vpop.f32.mrf.mxu0
      %v2170 = vadd.f32 0.0, %v2169
      %2171 = vmatprep.mubr.bf16.mxu0 0
      %2172 = vmatmul.mubr.bf16.gmra.mxu0 %v1920
      %v2173 = vpop.f32.mrf.mxu0
      %v2174 = vadd.f32 0.0, %v2173
      %v2175 = vpop.f32.mrf.mxu0
      %v2176 = vadd.f32 0.0, %v2175
      %v2177 = vpop.f32.mrf.mxu0
      %v2178 = vadd.f32 0.0, %v2177
      %v2179 = vpop.f32.mrf.mxu0
      %v2180 = vadd.f32 0.0, %v2179
      %2181 = vmatprep.mubr.bf16.mxu0 0
      %2182 = vmatmul.mubr.bf16.gmra.mxu0 %v1923
      %v2183 = vpop.f32.mrf.mxu0
      %v2184 = vadd.f32 0.0, %v2183
      %v2185 = vpop.f32.mrf.mxu0
      %v2186 = vadd.f32 0.0, %v2185
      %v2187 = vpop.f32.mrf.mxu0
      %v2188 = vadd.f32 0.0, %v2187
      %v2189 = vpop.f32.mrf.mxu0
      %v2190 = vadd.f32 0.0, %v2189
      %2191 = vmatprep.mubr.bf16.mxu0 0
      %2192 = vmatmul.mubr.bf16.gmra.mxu0 %v1926
      %v2193 = vpop.f32.mrf.mxu0
      %v2194 = vadd.f32 0.0, %v2193
      %v2195 = vpop.f32.mrf.mxu0
      %v2196 = vadd.f32 0.0, %v2195
      %v2197 = vpop.f32.mrf.mxu0
      %v2198 = vadd.f32 0.0, %v2197
      %v2199 = vpop.f32.mrf.mxu0
      %v2200 = vadd.f32 0.0, %v2199
      %2201 = vmatprep.mubr.bf16.mxu0 0
      %2202 = vmatmul.mubr.bf16.gmra.mxu0 %v1929
      %v2203 = vpop.f32.mrf.mxu0
      %v2204 = vadd.f32 0.0, %v2203
      %v2205 = vpop.f32.mrf.mxu0
      %v2206 = vadd.f32 0.0, %v2205
      %v2207 = vpop.f32.mrf.mxu0
      %v2208 = vadd.f32 0.0, %v2207
      %v2209 = vpop.f32.mrf.mxu0
      %v2210 = vadd.f32 0.0, %v2209
      %2211 = vmatprep.mubr.bf16.mxu0 0
      %2212 = vmatmul.mubr.bf16.gmra.mxu0 %v1932
      %v2213 = vpop.f32.mrf.mxu0
      %v2214 = vadd.f32 0.0, %v2213
      %v2215 = vpop.f32.mrf.mxu0
      %v2216 = vadd.f32 0.0, %v2215
      %v2217 = vpop.f32.mrf.mxu0
      %v2218 = vadd.f32 0.0, %v2217
      %v2219 = vpop.f32.mrf.mxu0
      %v2220 = vadd.f32 0.0, %v2219
      %2221 = vmatprep.mubr.bf16.mxu0 0
      %2222 = vmatmul.mubr.bf16.gmra.mxu0 %v1935
      %v2223 = vpop.f32.mrf.mxu0
      %v2224 = vadd.f32 0.0, %v2223
      %v2225 = vpop.f32.mrf.mxu0
      %v2226 = vadd.f32 0.0, %v2225
      %v2227 = vpop.f32.mrf.mxu0
      %v2228 = vadd.f32 0.0, %v2227
      %v2229 = vpop.f32.mrf.mxu0
      %v2230 = vadd.f32 0.0, %v2229
      %2231 = vmatprep.mubr.bf16.mxu0 0
      %2232 = vmatmul.mubr.bf16.gmra.mxu0 %v1938
      %v2233 = vpop.f32.mrf.mxu0
      %v2234 = vadd.f32 0.0, %v2233
      %v2235 = vpop.f32.mrf.mxu0
      %v2236 = vadd.f32 0.0, %v2235
      %v2237 = vpop.f32.mrf.mxu0
      %v2238 = vadd.f32 0.0, %v2237
      %v2239 = vpop.f32.mrf.mxu0
      %v2240 = vadd.f32 0.0, %v2239
      %2241 = vmatprep.mubr.bf16.mxu0 0
      %2242 = vmatmul.mubr.bf16.gmra.mxu0 %v1941
      %v2243 = vpop.f32.mrf.mxu0
      %v2244 = vadd.f32 0.0, %v2243
      %v2245 = vpop.f32.mrf.mxu0
      %v2246 = vadd.f32 0.0, %v2245
      %v2247 = vpop.f32.mrf.mxu0
      %v2248 = vadd.f32 0.0, %v2247
      %v2249 = vpop.f32.mrf.mxu0
      %v2250 = vadd.f32 0.0, %v2249
      %2251 = vmatprep.mubr.bf16.mxu0 0
      %2252 = vmatmul.mubr.bf16.gmra.mxu0 %v1944
      %v2253 = vpop.f32.mrf.mxu0
      %v2254 = vadd.f32 0.0, %v2253
      %v2255 = vpop.f32.mrf.mxu0
      %v2256 = vadd.f32 0.0, %v2255
      %v2257 = vpop.f32.mrf.mxu0
      %v2258 = vadd.f32 0.0, %v2257
      %v2259 = vpop.f32.mrf.mxu0
      %v2260 = vadd.f32 0.0, %v2259
      %2261 = vmatprep.mubr.bf16.mxu0 0
      %2262 = vmatmul.mubr.bf16.gmra.mxu0 %v1947
      %v2263 = vpop.f32.mrf.mxu0
      %v2264 = vadd.f32 0.0, %v2263
      %v2265 = vpop.f32.mrf.mxu0
      %v2266 = vadd.f32 0.0, %v2265
      %v2267 = vpop.f32.mrf.mxu0
      %v2268 = vadd.f32 0.0, %v2267
      %v2269 = vpop.f32.mrf.mxu0
      %v2270 = vadd.f32 0.0, %v2269
      %2271 = vmatprep.mubr.bf16.mxu0 0
      %2272 = vmatmul.mubr.bf16.gmra.mxu0 %v1950
      %v2273 = vpop.f32.mrf.mxu0
      %v2274 = vadd.f32 0.0, %v2273
      %v2275 = vpop.f32.mrf.mxu0
      %v2276 = vadd.f32 0.0, %v2275
      %v2277 = vpop.f32.mrf.mxu0
      %v2278 = vadd.f32 0.0, %v2277
      %v2279 = vpop.f32.mrf.mxu0
      %v2280 = vadd.f32 0.0, %v2279
      %2281 = vmatprep.mubr.bf16.mxu0 0
      %2282 = vmatmul.mubr.bf16.gmra.mxu0 %v1953
      %v2283 = vpop.f32.mrf.mxu0
      %v2284 = vadd.f32 0.0, %v2283
      %v2285 = vpop.f32.mrf.mxu0
      %v2286 = vadd.f32 0.0, %v2285
      %v2287 = vpop.f32.mrf.mxu0
      %v2288 = vadd.f32 0.0, %v2287
      %v2289 = vpop.f32.mrf.mxu0
      %v2290 = vadd.f32 0.0, %v2289
      %2291 = vmatprep.mubr.bf16.mxu0 0
      %2292 = vmatmul.mubr.bf16.gmra.mxu0 %v1956
      %v2293 = vpop.f32.mrf.mxu0
      %v2294 = vadd.f32 0.0, %v2293
      %v2295 = vpop.f32.mrf.mxu0
      %v2296 = vadd.f32 0.0, %v2295
      %v2297 = vpop.f32.mrf.mxu0
      %v2298 = vadd.f32 0.0, %v2297
      %v2299 = vpop.f32.mrf.mxu0
      %v2300 = vadd.f32 0.0, %v2299
      %2301 = vmatprep.mubr.bf16.mxu0 0
      %2302 = vmatmul.mubr.bf16.gmra.mxu0 %v1959
      %v2303 = vpop.f32.mrf.mxu0
      %v2304 = vadd.f32 0.0, %v2303
      %v2305 = vpop.f32.mrf.mxu0
      %v2306 = vadd.f32 0.0, %v2305
      %v2307 = vpop.f32.mrf.mxu0
      %v2308 = vadd.f32 0.0, %v2307
      %v2309 = vpop.f32.mrf.mxu0
      %v2310 = vadd.f32 0.0, %v2309
      %2311 = vmatprep.mubr.bf16.mxu0 0
      %2312 = vmatmul.mubr.bf16.gmra.mxu0 %v1962
      %v2313 = vpop.f32.mrf.mxu0
      %v2314 = vadd.f32 0.0, %v2313
      %v2315 = vpop.f32.mrf.mxu0
      %v2316 = vadd.f32 0.0, %v2315
      %v2317 = vpop.f32.mrf.mxu0
      %v2318 = vadd.f32 0.0, %v2317
      %v2319 = vpop.f32.mrf.mxu0
      %v2320 = vadd.f32 0.0, %v2319
      %2321 = vmatprep.mubr.bf16.mxu0 0
      %2322 = vmatmul.mubr.bf16.gmra.mxu0 %v1965
      %v2323 = vpop.f32.mrf.mxu0
      %v2324 = vadd.f32 0.0, %v2323
      %v2325 = vpop.f32.mrf.mxu0
      %v2326 = vadd.f32 0.0, %v2325
      %v2327 = vpop.f32.mrf.mxu0
      %v2328 = vadd.f32 0.0, %v2327
      %v2329 = vpop.f32.mrf.mxu0
      %v2330 = vadd.f32 0.0, %v2329
      %2331 = vmatprep.mubr.bf16.mxu0 0
      %2332 = vmatmul.mubr.bf16.gmra.mxu0 %v1968
      %v2333 = vpop.f32.mrf.mxu0
      %v2334 = vadd.f32 0.0, %v2333
      %v2335 = vpop.f32.mrf.mxu0
      %v2336 = vadd.f32 0.0, %v2335
      %v2337 = vpop.f32.mrf.mxu0
      %v2338 = vadd.f32 0.0, %v2337
      %v2339 = vpop.f32.mrf.mxu0
      %v2340 = vadd.f32 0.0, %v2339
      %2341 = vmatprep.mubr.bf16.mxu0 0
      %2342 = vmatmul.mubr.bf16.gmra.mxu0 %v1971
      %v2343 = vpop.f32.mrf.mxu0
      %v2344 = vadd.f32 0.0, %v2343
      %v2345 = vpop.f32.mrf.mxu0
      %v2346 = vadd.f32 0.0, %v2345
      %v2347 = vpop.f32.mrf.mxu0
      %v2348 = vadd.f32 0.0, %v2347
      %v2349 = vpop.f32.mrf.mxu0
      %v2350 = vadd.f32 0.0, %v2349
      %2351 = vmatprep.mubr.bf16.mxu0 0
      %2352 = vmatmul.mubr.bf16.gmra.mxu0 %v1974
      %v2353 = vpop.f32.mrf.mxu0
      %v2354 = vadd.f32 0.0, %v2353
      %v2355 = vpop.f32.mrf.mxu0
      %v2356 = vadd.f32 0.0, %v2355
      %v2357 = vpop.f32.mrf.mxu0
      %v2358 = vadd.f32 0.0, %v2357
      %v2359 = vpop.f32.mrf.mxu0
      %v2360 = vadd.f32 0.0, %v2359
      %2361 = vmatprep.mubr.bf16.mxu0 0
      %2362 = vmatmul.mubr.bf16.gmra.mxu0 %v1977
      %v2363 = vpop.f32.mrf.mxu0
      %v2364 = vadd.f32 0.0, %v2363
      %v2365 = vpop.f32.mrf.mxu0
      %v2366 = vadd.f32 0.0, %v2365
      %v2367 = vpop.f32.mrf.mxu0
      %v2368 = vadd.f32 0.0, %v2367
      %v2369 = vpop.f32.mrf.mxu0
      %v2370 = vadd.f32 0.0, %v2369
      %2371 = vmatprep.mubr.bf16.mxu0 0
      %2372 = vmatmul.mubr.bf16.gmra.mxu0 %v1980
      %v2373 = vpop.f32.mrf.mxu0
      %v2374 = vadd.f32 0.0, %v2373
      %v2375 = vpop.f32.mrf.mxu0
      %v2376 = vadd.f32 0.0, %v2375
      %v2377 = vpop.f32.mrf.mxu0
      %v2378 = vadd.f32 0.0, %v2377
      %v2379 = vpop.f32.mrf.mxu0
      %v2380 = vadd.f32 0.0, %v2379
      %2381 = vmatprep.mubr.bf16.mxu0 0
      %2382 = vmatmul.mubr.bf16.gmra.mxu0 %v1983
      %v2383 = vpop.f32.mrf.mxu0
      %v2384 = vadd.f32 0.0, %v2383
      %v2385 = vpop.f32.mrf.mxu0
      %v2386 = vadd.f32 0.0, %v2385
      %v2387 = vpop.f32.mrf.mxu0
      %v2388 = vadd.f32 0.0, %v2387
      %v2389 = vpop.f32.mrf.mxu0
      %v2390 = vadd.f32 0.0, %v2389
      %2391 = vmatprep.mubr.bf16.mxu0 0
      %2392 = vmatmul.mubr.bf16.gmra.mxu0 %v1986
      %v2393 = vpop.f32.mrf.mxu0
      %v2394 = vadd.f32 0.0, %v2393
      %v2395 = vpop.f32.mrf.mxu0
      %v2396 = vadd.f32 0.0, %v2395
      %v2397 = vpop.f32.mrf.mxu0
      %v2398 = vadd.f32 0.0, %v2397
      %v2399 = vpop.f32.mrf.mxu0
      %v2400 = vadd.f32 0.0, %v2399
      %2401 = vmatprep.mubr.bf16.mxu0 0
      %2402 = vmatmul.mubr.bf16.gmra.mxu0 %v1989
      %v2403 = vpop.f32.mrf.mxu0
      %v2404 = vadd.f32 0.0, %v2403
      %v2405 = vpop.f32.mrf.mxu0
      %v2406 = vadd.f32 0.0, %v2405
      %v2407 = vpop.f32.mrf.mxu0
      %v2408 = vadd.f32 0.0, %v2407
      %v2409 = vpop.f32.mrf.mxu0
      %v2410 = vadd.f32 0.0, %v2409
      %2411 = vmatprep.mubr.bf16.mxu0 0
      %2412 = vmatmul.mubr.bf16.gmra.mxu0 %v1992
      %v2413 = vpop.f32.mrf.mxu0
      %v2414 = vadd.f32 0.0, %v2413
      %v2415 = vpop.f32.mrf.mxu0
      %v2416 = vadd.f32 0.0, %v2415
      %v2417 = vpop.f32.mrf.mxu0
      %v2418 = vadd.f32 0.0, %v2417
      %v2419 = vpop.f32.mrf.mxu0
      %v2420 = vadd.f32 0.0, %v2419
      %2421 = vmatprep.mubr.bf16.mxu0 0
      %2422 = vmatmul.mubr.bf16.gmra.mxu0 %v1995
      %v2423 = vpop.f32.mrf.mxu0
      %v2424 = vadd.f32 0.0, %v2423
      %v2425 = vpop.f32.mrf.mxu0
      %v2426 = vadd.f32 0.0, %v2425
      %v2427 = vpop.f32.mrf.mxu0
      %v2428 = vadd.f32 0.0, %v2427
      %v2429 = vpop.f32.mrf.mxu0
      %v2430 = vadd.f32 0.0, %v2429
      %2431 = vmatprep.mubr.bf16.mxu0 0
      %2432 = vmatmul.mubr.bf16.gmra.mxu0 %v1998
      %v2433 = vpop.f32.mrf.mxu0
      %v2434 = vadd.f32 0.0, %v2433
      %v2435 = vpop.f32.mrf.mxu0
      %v2436 = vadd.f32 0.0, %v2435
      %v2437 = vpop.f32.mrf.mxu0
      %v2438 = vadd.f32 0.0, %v2437
      %v2439 = vpop.f32.mrf.mxu0
      %v2440 = vadd.f32 0.0, %v2439
      %2441 = vmatprep.mubr.bf16.mxu0 0
      %2442 = vmatmul.mubr.bf16.gmra.mxu0 %v2001
      %v2443 = vpop.f32.mrf.mxu0
      %v2444 = vadd.f32 0.0, %v2443
      %v2445 = vpop.f32.mrf.mxu0
      %v2446 = vadd.f32 0.0, %v2445
      %v2447 = vpop.f32.mrf.mxu0
      %v2448 = vadd.f32 0.0, %v2447
      %v2449 = vpop.f32.mrf.mxu0
      %v2450 = vadd.f32 0.0, %v2449
      %2451 = vmatprep.mubr.bf16.mxu0 0
      %2452 = vmatmul.mubr.bf16.gmra.mxu0 %v2004
      %v2453 = vpop.f32.mrf.mxu0
      %v2454 = vadd.f32 0.0, %v2453
      %v2455 = vpop.f32.mrf.mxu0
      %v2456 = vadd.f32 0.0, %v2455
      %v2457 = vpop.f32.mrf.mxu0
      %v2458 = vadd.f32 0.0, %v2457
      %v2459 = vpop.f32.mrf.mxu0
      %v2460 = vadd.f32 0.0, %v2459
      %2461 = vmatprep.mubr.bf16.mxu0 0
      %2462 = vmatmul.mubr.bf16.gmra.mxu0 %v2007
      %v2463 = vpop.f32.mrf.mxu0
      %v2464 = vadd.f32 0.0, %v2463
      %v2465 = vpop.f32.mrf.mxu0
      %v2466 = vadd.f32 0.0, %v2465
      %v2467 = vpop.f32.mrf.mxu0
      %v2468 = vadd.f32 0.0, %v2467
      %v2469 = vpop.f32.mrf.mxu0
      %v2470 = vadd.f32 0.0, %v2469
      %2471 = vmatprep.mubr.bf16.mxu0 0
      %2472 = vmatmul.mubr.bf16.gmra.mxu0 %v2010
      %v2473 = vpop.f32.mrf.mxu0
      %v2474 = vadd.f32 0.0, %v2473
      %v2475 = vpop.f32.mrf.mxu0
      %v2476 = vadd.f32 0.0, %v2475
      %v2477 = vpop.f32.mrf.mxu0
      %v2478 = vadd.f32 0.0, %v2477
      %v2479 = vpop.f32.mrf.mxu0
      %v2480 = vadd.f32 0.0, %v2479
      %2481 = vmatprep.mubr.bf16.mxu0 0
      %2482 = vmatmul.mubr.bf16.gmra.mxu0 %v2013
      %v2483 = vpop.f32.mrf.mxu0
      %v2484 = vadd.f32 0.0, %v2483
      %v2485 = vpop.f32.mrf.mxu0
      %v2486 = vadd.f32 0.0, %v2485
      %v2487 = vpop.f32.mrf.mxu0
      %v2488 = vadd.f32 0.0, %v2487
      %v2489 = vpop.f32.mrf.mxu0
      %v2490 = vadd.f32 0.0, %v2489
      %2491 = vmatprep.mubr.bf16.mxu0 0
      %2492 = vmatmul.mubr.bf16.gmra.mxu0 %v2016
      %v2493 = vpop.f32.mrf.mxu0
      %v2494 = vadd.f32 0.0, %v2493
      %v2495 = vpop.f32.mrf.mxu0
      %v2496 = vadd.f32 0.0, %v2495
      %v2497 = vpop.f32.mrf.mxu0
      %v2498 = vadd.f32 0.0, %v2497
      %v2499 = vpop.f32.mrf.mxu0
      %v2500 = vadd.f32 0.0, %v2499
      %2501 = vmatprep.mubr.bf16.mxu0 0
      %2502 = vmatmul.mubr.bf16.gmra.mxu0 %v2019
      %v2503 = vpop.f32.mrf.mxu0
      %v2504 = vadd.f32 0.0, %v2503
      %v2505 = vpop.f32.mrf.mxu0
      %v2506 = vadd.f32 0.0, %v2505
      %v2507 = vpop.f32.mrf.mxu0
      %v2508 = vadd.f32 0.0, %v2507
      %v2509 = vpop.f32.mrf.mxu0
      %v2510 = vadd.f32 0.0, %v2509
      %2511 = vmatprep.mubr.bf16.mxu0 0
      %2512 = vmatmul.mubr.bf16.gmra.mxu0 %v2022
      %v2513 = vpop.f32.mrf.mxu0
      %v2514 = vadd.f32 0.0, %v2513
      %v2515 = vpop.f32.mrf.mxu0
      %v2516 = vadd.f32 0.0, %v2515
      %v2517 = vpop.f32.mrf.mxu0
      %v2518 = vadd.f32 0.0, %v2517
      %v2519 = vpop.f32.mrf.mxu0
      %v2520 = vadd.f32 0.0, %v2519
      %2521 = vmatprep.mubr.bf16.mxu0 0
      %2522 = vmatmul.mubr.bf16.gmra.mxu0 %v2025
      %v2523 = vpop.f32.mrf.mxu0
      %v2524 = vadd.f32 0.0, %v2523
      %v2525 = vpop.f32.mrf.mxu0
      %v2526 = vadd.f32 0.0, %v2525
      %v2527 = vpop.f32.mrf.mxu0
      %v2528 = vadd.f32 0.0, %v2527
      %v2529 = vpop.f32.mrf.mxu0
      %v2530 = vadd.f32 0.0, %v2529
      %2531 = vmatprep.mubr.bf16.mxu0 0
      %2532 = vmatmul.mubr.bf16.gmra.mxu0 %v2028
      %v2533 = vpop.f32.mrf.mxu0
      %v2534 = vadd.f32 0.0, %v2533
      %v2535 = vpop.f32.mrf.mxu0
      %v2536 = vadd.f32 0.0, %v2535
      %v2537 = vpop.f32.mrf.mxu0
      %v2538 = vadd.f32 0.0, %v2537
      %v2539 = vpop.f32.mrf.mxu0
      %v2540 = vadd.f32 0.0, %v2539
      %2541 = vmatprep.mubr.bf16.mxu0 0
      %2542 = vmatmul.mubr.bf16.gmra.mxu0 %v2031
      %v2543 = vpop.f32.mrf.mxu0
      %v2544 = vadd.f32 0.0, %v2543
      %v2545 = vpop.f32.mrf.mxu0
      %v2546 = vadd.f32 0.0, %v2545
      %v2547 = vpop.f32.mrf.mxu0
      %v2548 = vadd.f32 0.0, %v2547
      %v2549 = vpop.f32.mrf.mxu0
      %v2550 = vadd.f32 0.0, %v2549
      %2551 = vdwg.mxu0
      %v2552 = vadd.f32 %v1244, %v2074
      %v2553 = vadd.f32 %v1246, %v2076
      %v2554 = vadd.f32 %v1248, %v2078
      %v2555 = vadd.f32 %v1250, %v2080
      %v2556 = vadd.f32 %v1254, %v2084
      %v2557 = vadd.f32 %v1256, %v2086
      %v2558 = vadd.f32 %v1258, %v2088
      %v2559 = vadd.f32 %v1260, %v2090
      %v2560 = vadd.f32 %v1264, %v2094
      %v2561 = vadd.f32 %v1266, %v2096
      %v2562 = vadd.f32 %v1268, %v2098
      %v2563 = vadd.f32 %v1270, %v2100
      %v2564 = vadd.f32 %v1274, %v2104
      %v2565 = vadd.f32 %v1276, %v2106
      %v2566 = vadd.f32 %v1278, %v2108
      %v2567 = vadd.f32 %v1280, %v2110
      %v2568 = vadd.f32 %v1284, %v2114
      %v2569 = vadd.f32 %v1286, %v2116
      %v2570 = vadd.f32 %v1288, %v2118
      %v2571 = vadd.f32 %v1290, %v2120
      %v2572 = vadd.f32 %v1294, %v2124
      %v2573 = vadd.f32 %v1296, %v2126
      %v2574 = vadd.f32 %v1298, %v2128
      %v2575 = vadd.f32 %v1300, %v2130
      %v2576 = vadd.f32 %v1304, %v2134
      %v2577 = vadd.f32 %v1306, %v2136
      %v2578 = vadd.f32 %v1308, %v2138
      %v2579 = vadd.f32 %v1310, %v2140
      %v2580 = vadd.f32 %v1314, %v2144
      %v2581 = vadd.f32 %v1316, %v2146
      %v2582 = vadd.f32 %v1318, %v2148
      %v2583 = vadd.f32 %v1320, %v2150
      %v2584 = vadd.f32 %v1324, %v2154
      %v2585 = vadd.f32 %v1326, %v2156
      %v2586 = vadd.f32 %v1328, %v2158
      %v2587 = vadd.f32 %v1330, %v2160
      %v2588 = vadd.f32 %v1334, %v2164
      %v2589 = vadd.f32 %v1336, %v2166
      %v2590 = vadd.f32 %v1338, %v2168
      %v2591 = vadd.f32 %v1340, %v2170
      %v2592 = vadd.f32 %v1344, %v2174
      %v2593 = vadd.f32 %v1346, %v2176
      %v2594 = vadd.f32 %v1348, %v2178
      %v2595 = vadd.f32 %v1350, %v2180
      %v2596 = vadd.f32 %v1354, %v2184
      %v2597 = vadd.f32 %v1356, %v2186
      %v2598 = vadd.f32 %v1358, %v2188
      %v2599 = vadd.f32 %v1360, %v2190
      %v2600 = vadd.f32 %v1364, %v2194
      %v2601 = vadd.f32 %v1366, %v2196
      %v2602 = vadd.f32 %v1368, %v2198
      %v2603 = vadd.f32 %v1370, %v2200
      %v2604 = vadd.f32 %v1374, %v2204
      %v2605 = vadd.f32 %v1376, %v2206
      %v2606 = vadd.f32 %v1378, %v2208
      %v2607 = vadd.f32 %v1380, %v2210
      %v2608 = vadd.f32 %v1384, %v2214
      %v2609 = vadd.f32 %v1386, %v2216
      %v2610 = vadd.f32 %v1388, %v2218
      %v2611 = vadd.f32 %v1390, %v2220
      %v2612 = vadd.f32 %v1394, %v2224
      %v2613 = vadd.f32 %v1396, %v2226
      %v2614 = vadd.f32 %v1398, %v2228
      %v2615 = vadd.f32 %v1400, %v2230
      %v2616 = vadd.f32 %v1404, %v2234
      %v2617 = vadd.f32 %v1406, %v2236
      %v2618 = vadd.f32 %v1408, %v2238
      %v2619 = vadd.f32 %v1410, %v2240
      %v2620 = vadd.f32 %v1414, %v2244
      %v2621 = vadd.f32 %v1416, %v2246
      %v2622 = vadd.f32 %v1418, %v2248
      %v2623 = vadd.f32 %v1420, %v2250
      %v2624 = vadd.f32 %v1424, %v2254
      %v2625 = vadd.f32 %v1426, %v2256
      %v2626 = vadd.f32 %v1428, %v2258
      %v2627 = vadd.f32 %v1430, %v2260
      %v2628 = vadd.f32 %v1434, %v2264
      %v2629 = vadd.f32 %v1436, %v2266
      %v2630 = vadd.f32 %v1438, %v2268
      %v2631 = vadd.f32 %v1440, %v2270
      %v2632 = vadd.f32 %v1444, %v2274
      %v2633 = vadd.f32 %v1446, %v2276
      %v2634 = vadd.f32 %v1448, %v2278
      %v2635 = vadd.f32 %v1450, %v2280
      %v2636 = vadd.f32 %v1454, %v2284
      %v2637 = vadd.f32 %v1456, %v2286
      %v2638 = vadd.f32 %v1458, %v2288
      %v2639 = vadd.f32 %v1460, %v2290
      %v2640 = vadd.f32 %v1464, %v2294
      %v2641 = vadd.f32 %v1466, %v2296
      %v2642 = vadd.f32 %v1468, %v2298
      %v2643 = vadd.f32 %v1470, %v2300
      %v2644 = vadd.f32 %v1474, %v2304
      %v2645 = vadd.f32 %v1476, %v2306
      %v2646 = vadd.f32 %v1478, %v2308
      %v2647 = vadd.f32 %v1480, %v2310
      %v2648 = vadd.f32 %v1484, %v2314
      %v2649 = vadd.f32 %v1486, %v2316
      %v2650 = vadd.f32 %v1488, %v2318
      %v2651 = vadd.f32 %v1490, %v2320
      %v2652 = vadd.f32 %v1494, %v2324
      %v2653 = vadd.f32 %v1496, %v2326
      %v2654 = vadd.f32 %v1498, %v2328
      %v2655 = vadd.f32 %v1500, %v2330
      %v2656 = vadd.f32 %v1504, %v2334
      %v2657 = vadd.f32 %v1506, %v2336
      %v2658 = vadd.f32 %v1508, %v2338
      %v2659 = vadd.f32 %v1510, %v2340
      %v2660 = vadd.f32 %v1514, %v2344
      %v2661 = vadd.f32 %v1516, %v2346
      %v2662 = vadd.f32 %v1518, %v2348
      %v2663 = vadd.f32 %v1520, %v2350
      %v2664 = vadd.f32 %v1524, %v2354
      %v2665 = vadd.f32 %v1526, %v2356
      %v2666 = vadd.f32 %v1528, %v2358
      %v2667 = vadd.f32 %v1530, %v2360
      %v2668 = vadd.f32 %v1534, %v2364
      %v2669 = vadd.f32 %v1536, %v2366
      %v2670 = vadd.f32 %v1538, %v2368
      %v2671 = vadd.f32 %v1540, %v2370
      %v2672 = vadd.f32 %v1544, %v2374
      %v2673 = vadd.f32 %v1546, %v2376
      %v2674 = vadd.f32 %v1548, %v2378
      %v2675 = vadd.f32 %v1550, %v2380
      %v2676 = vadd.f32 %v1554, %v2384
      %v2677 = vadd.f32 %v1556, %v2386
      %v2678 = vadd.f32 %v1558, %v2388
      %v2679 = vadd.f32 %v1560, %v2390
      %v2680 = vadd.f32 %v1564, %v2394
      %v2681 = vadd.f32 %v1566, %v2396
      %v2682 = vadd.f32 %v1568, %v2398
      %v2683 = vadd.f32 %v1570, %v2400
      %v2684 = vadd.f32 %v1574, %v2404
      %v2685 = vadd.f32 %v1576, %v2406
      %v2686 = vadd.f32 %v1578, %v2408
      %v2687 = vadd.f32 %v1580, %v2410
      %v2688 = vadd.f32 %v1584, %v2414
      %v2689 = vadd.f32 %v1586, %v2416
      %v2690 = vadd.f32 %v1588, %v2418
      %v2691 = vadd.f32 %v1590, %v2420
      %v2692 = vadd.f32 %v1594, %v2424
      %v2693 = vadd.f32 %v1596, %v2426
      %v2694 = vadd.f32 %v1598, %v2428
      %v2695 = vadd.f32 %v1600, %v2430
      %v2696 = vadd.f32 %v1604, %v2434
      %v2697 = vadd.f32 %v1606, %v2436
      %v2698 = vadd.f32 %v1608, %v2438
      %v2699 = vadd.f32 %v1610, %v2440
      %v2700 = vadd.f32 %v1614, %v2444
      %v2701 = vadd.f32 %v1616, %v2446
      %v2702 = vadd.f32 %v1618, %v2448
      %v2703 = vadd.f32 %v1620, %v2450
      %v2704 = vadd.f32 %v1624, %v2454
      %v2705 = vadd.f32 %v1626, %v2456
      %v2706 = vadd.f32 %v1628, %v2458
      %v2707 = vadd.f32 %v1630, %v2460
      %v2708 = vadd.f32 %v1634, %v2464
      %v2709 = vadd.f32 %v1636, %v2466
      %v2710 = vadd.f32 %v1638, %v2468
      %v2711 = vadd.f32 %v1640, %v2470
      %v2712 = vadd.f32 %v1644, %v2474
      %v2713 = vadd.f32 %v1646, %v2476
      %v2714 = vadd.f32 %v1648, %v2478
      %v2715 = vadd.f32 %v1650, %v2480
      %v2716 = vadd.f32 %v1654, %v2484
      %v2717 = vadd.f32 %v1656, %v2486
      %v2718 = vadd.f32 %v1658, %v2488
      %v2719 = vadd.f32 %v1660, %v2490
      %v2720 = vadd.f32 %v1664, %v2494
      %v2721 = vadd.f32 %v1666, %v2496
      %v2722 = vadd.f32 %v1668, %v2498
      %v2723 = vadd.f32 %v1670, %v2500
      %v2724 = vadd.f32 %v1674, %v2504
      %v2725 = vadd.f32 %v1676, %v2506
      %v2726 = vadd.f32 %v1678, %v2508
      %v2727 = vadd.f32 %v1680, %v2510
      %v2728 = vadd.f32 %v1684, %v2514
      %v2729 = vadd.f32 %v1686, %v2516
      %v2730 = vadd.f32 %v1688, %v2518
      %v2731 = vadd.f32 %v1690, %v2520
      %v2732 = vadd.f32 %v1694, %v2524
      %v2733 = vadd.f32 %v1696, %v2526
      %v2734 = vadd.f32 %v1698, %v2528
      %v2735 = vadd.f32 %v1700, %v2530
      %v2736 = vadd.f32 %v1704, %v2534
      %v2737 = vadd.f32 %v1706, %v2536
      %v2738 = vadd.f32 %v1708, %v2538
      %v2739 = vadd.f32 %v1710, %v2540
      %v2740 = vadd.f32 %v1714, %v2544
      %v2741 = vadd.f32 %v1716, %v2546
      %v2742 = vadd.f32 %v1718, %v2548
      %v2743 = vadd.f32 %v1720, %v2550
      %v2744 = vld [vmem:[%s328 + $0x60] sm:$0xff]
      %v2745 = vld [vmem:[%s328 + $0x68] sm:$0xff]
      %v2746 = vld [vmem:[%s328 + $0x70] sm:$0xff]
      %v2747 = vld [vmem:[%s328 + $0x78] sm:$0xff]
      %v2748 = vld [vmem:[%s328 + $0x80] sm:$0xff]
      %v2749 = vld [vmem:[%s328 + $0x88] sm:$0xff]
      %v2750 = vld [vmem:[%s328 + $0x90] sm:$0xff]
      %v2751 = vld [vmem:[%s328 + $0x98] sm:$0xff]
      %v2752 = vld [vmem:[%s328 + $0xa0] sm:$0xff]
      %v2753 = vld [vmem:[%s328 + $0xa8] sm:$0xff]
      %v2754 = vld [vmem:[%s328 + $0xb0] sm:$0xff]
      %v2755 = vld [vmem:[%s328 + $0xb8] sm:$0xff]
      %v2756 = vld [vmem:[%s328 + $0xc0] sm:$0xff]
      %v2757 = vld [vmem:[%s328 + $0xc8] sm:$0xff]
      %v2758 = vld [vmem:[%s328 + $0xd0] sm:$0xff]
      %v2759 = vld [vmem:[%s328 + $0xd8] sm:$0xff]
      %v2760 = vld [vmem:[%s328 + $0xe0] sm:$0xff]
      %v2761 = vld [vmem:[%s328 + $0xe8] sm:$0xff]
      %v2762 = vld [vmem:[%s328 + $0xf0] sm:$0xff]
      %v2763 = vld [vmem:[%s328 + $0xf8] sm:$0xff]
      %v2764 = vld [vmem:[%s328 + $0x100] sm:$0xff]
      %v2765 = vld [vmem:[%s328 + $0x108] sm:$0xff]
      %v2766 = vld [vmem:[%s328 + $0x110] sm:$0xff]
      %v2767 = vld [vmem:[%s328 + $0x118] sm:$0xff]
      %v2768 = vld [vmem:[%s328 + $0x120] sm:$0xff]
      %v2769 = vld [vmem:[%s328 + $0x128] sm:$0xff]
      %v2770 = vld [vmem:[%s328 + $0x130] sm:$0xff]
      %v2771 = vld [vmem:[%s328 + $0x138] sm:$0xff]
      %v2772 = vld [vmem:[%s328 + $0x140] sm:$0xff]
      %v2773 = vld [vmem:[%s328 + $0x148] sm:$0xff]
      %v2774 = vld [vmem:[%s328 + $0x150] sm:$0xff]
      %v2775 = vld [vmem:[%s328 + $0x158] sm:$0xff]
      %v2776 = vld [vmem:[%s328 + $0x160] sm:$0xff]
      %v2777 = vld [vmem:[%s328 + $0x168] sm:$0xff]
      %v2778 = vld [vmem:[%s328 + $0x170] sm:$0xff]
      %v2779 = vld [vmem:[%s328 + $0x178] sm:$0xff]
      %v2780 = vld [vmem:[%s328 + $0x180] sm:$0xff]
      %v2781 = vld [vmem:[%s328 + $0x188] sm:$0xff]
      %v2782 = vld [vmem:[%s328 + $0x190] sm:$0xff]
      %v2783 = vld [vmem:[%s328 + $0x198] sm:$0xff]
      %v2784 = vld [vmem:[%s328 + $0x1a0] sm:$0xff]
      %v2785 = vld [vmem:[%s328 + $0x1a8] sm:$0xff]
      %v2786 = vld [vmem:[%s328 + $0x1b0] sm:$0xff]
      %v2787 = vld [vmem:[%s328 + $0x1b8] sm:$0xff]
      %v2788 = vld [vmem:[%s328 + $0x1c0] sm:$0xff]
      %v2789 = vld [vmem:[%s328 + $0x1c8] sm:$0xff]
      %v2790 = vld [vmem:[%s328 + $0x1d0] sm:$0xff]
      %v2791 = vld [vmem:[%s328 + $0x1d8] sm:$0xff]
      %v2792 = vld [vmem:[%s328 + $0x1e0] sm:$0xff]
      %v2793 = vld [vmem:[%s328 + $0x1e8] sm:$0xff]
      %v2794 = vld [vmem:[%s328 + $0x1f0] sm:$0xff]
      %v2795 = vld [vmem:[%s328 + $0x1f8] sm:$0xff]
      %v2796 = vld [vmem:[%s328 + $0x200] sm:$0xff]
      %v2797 = vld [vmem:[%s328 + $0x208] sm:$0xff]
      %v2798 = vld [vmem:[%s328 + $0x210] sm:$0xff]
      %v2799 = vld [vmem:[%s328 + $0x218] sm:$0xff]
      %v2800 = vld [vmem:[%s328 + $0x220] sm:$0xff]
      %v2801 = vld [vmem:[%s328 + $0x228] sm:$0xff]
      %v2802 = vld [vmem:[%s328 + $0x230] sm:$0xff]
      %v2803 = vld [vmem:[%s328 + $0x238] sm:$0xff]
      %v2804 = vld [vmem:[%s328 + $0x240] sm:$0xff]
      %v2805 = vld [vmem:[%s328 + $0x248] sm:$0xff]
      %v2806 = vld [vmem:[%s328 + $0x250] sm:$0xff]
      %v2807 = vld [vmem:[%s328 + $0x258] sm:$0xff]
      %v2808 = vld [vmem:[%s328 + $0x260] sm:$0xff]
      %v2809 = vld [vmem:[%s328 + $0x268] sm:$0xff]
      %v2810 = vld [vmem:[%s328 + $0x270] sm:$0xff]
      %v2811 = vld [vmem:[%s328 + $0x278] sm:$0xff]
      %v2812 = vld [vmem:[%s328 + $0x280] sm:$0xff]
      %v2813 = vld [vmem:[%s328 + $0x288] sm:$0xff]
      %v2814 = vld [vmem:[%s328 + $0x290] sm:$0xff]
      %v2815 = vld [vmem:[%s328 + $0x298] sm:$0xff]
      %v2816 = vld [vmem:[%s328 + $0x2a0] sm:$0xff]
      %v2817 = vld [vmem:[%s328 + $0x2a8] sm:$0xff]
      %v2818 = vld [vmem:[%s328 + $0x2b0] sm:$0xff]
      %v2819 = vld [vmem:[%s328 + $0x2b8] sm:$0xff]
      %v2820 = vld [vmem:[%s328 + $0x2c0] sm:$0xff]
      %v2821 = vld [vmem:[%s328 + $0x2c8] sm:$0xff]
      %v2822 = vld [vmem:[%s328 + $0x2d0] sm:$0xff]
      %v2823 = vld [vmem:[%s328 + $0x2d8] sm:$0xff]
      %v2824 = vld [vmem:[%s328 + $0x2e0] sm:$0xff]
      %v2825 = vld [vmem:[%s328 + $0x2e8] sm:$0xff]
      %v2826 = vld [vmem:[%s328 + $0x2f0] sm:$0xff]
      %v2827 = vld [vmem:[%s328 + $0x2f8] sm:$0xff]
      %v2828 = vld [vmem:[%s328 + $0x300] sm:$0xff]
      %v2829 = vld [vmem:[%s328 + $0x308] sm:$0xff]
      %v2830 = vld [vmem:[%s328 + $0x310] sm:$0xff]
      %v2831 = vld [vmem:[%s328 + $0x318] sm:$0xff]
      %v2832 = vld [vmem:[%s328 + $0x320] sm:$0xff]
      %v2833 = vld [vmem:[%s328 + $0x328] sm:$0xff]
      %v2834 = vld [vmem:[%s328 + $0x330] sm:$0xff]
      %v2835 = vld [vmem:[%s328 + $0x338] sm:$0xff]
      %v2836 = vld [vmem:[%s328 + $0x340] sm:$0xff]
      %v2837 = vld [vmem:[%s328 + $0x348] sm:$0xff]
      %v2838 = vld [vmem:[%s328 + $0x350] sm:$0xff]
      %v2839 = vld [vmem:[%s328 + $0x358] sm:$0xff]
      %v2840 = vpack.c.bf16 %v2745, %v2744
      %v2841 = vpack.c.bf16 %v2747, %v2746
      %v2842 = vpack.c.bf16 %v2749, %v2748
      %v2843 = vpack.c.bf16 %v2751, %v2750
      %v2844 = vpack.c.bf16 %v2753, %v2752
      %v2845 = vpack.c.bf16 %v2755, %v2754
      %v2846 = vpack.c.bf16 %v2757, %v2756
      %v2847 = vpack.c.bf16 %v2759, %v2758
      %v2848 = vpack.c.bf16 %v2761, %v2760
      %v2849 = vpack.c.bf16 %v2763, %v2762
      %v2850 = vpack.c.bf16 %v2765, %v2764
      %v2851 = vpack.c.bf16 %v2767, %v2766
      %v2852 = vpack.c.bf16 %v2769, %v2768
      %v2853 = vpack.c.bf16 %v2771, %v2770
      %v2854 = vpack.c.bf16 %v2773, %v2772
      %v2855 = vpack.c.bf16 %v2775, %v2774
      %v2856 = vpack.c.bf16 %v2777, %v2776
      %v2857 = vpack.c.bf16 %v2779, %v2778
      %v2858 = vpack.c.bf16 %v2781, %v2780
      %v2859 = vpack.c.bf16 %v2783, %v2782
      %v2860 = vpack.c.bf16 %v2785, %v2784
      %v2861 = vpack.c.bf16 %v2787, %v2786
      %v2862 = vpack.c.bf16 %v2789, %v2788
      %v2863 = vpack.c.bf16 %v2791, %v2790
      %v2864 = vpack.c.bf16 %v2793, %v2792
      %v2865 = vpack.c.bf16 %v2795, %v2794
      %v2866 = vpack.c.bf16 %v2797, %v2796
      %v2867 = vpack.c.bf16 %v2799, %v2798
      %v2868 = vpack.c.bf16 %v2801, %v2800
      %v2869 = vpack.c.bf16 %v2803, %v2802
      %v2870 = vpack.c.bf16 %v2805, %v2804
      %v2871 = vpack.c.bf16 %v2807, %v2806
      %v2872 = vpack.c.bf16 %v2809, %v2808
      %v2873 = vpack.c.bf16 %v2811, %v2810
      %v2874 = vpack.c.bf16 %v2813, %v2812
      %v2875 = vpack.c.bf16 %v2815, %v2814
      %v2876 = vpack.c.bf16 %v2817, %v2816
      %v2877 = vpack.c.bf16 %v2819, %v2818
      %v2878 = vpack.c.bf16 %v2821, %v2820
      %v2879 = vpack.c.bf16 %v2823, %v2822
      %v2880 = vpack.c.bf16 %v2825, %v2824
      %v2881 = vpack.c.bf16 %v2827, %v2826
      %v2882 = vpack.c.bf16 %v2829, %v2828
      %v2883 = vpack.c.bf16 %v2831, %v2830
      %v2884 = vpack.c.bf16 %v2833, %v2832
      %v2885 = vpack.c.bf16 %v2835, %v2834
      %v2886 = vpack.c.bf16 %v2837, %v2836
      %v2887 = vpack.c.bf16 %v2839, %v2838
      %s2888 = scalar_lea.vmem %s1, 96
      %v2889 = vld [vmem:[%s2888] sm:$0xff]
      %v2890 = vld [vmem:[%s2888 + $0x8] sm:$0xff]
      %v2891 = vld [vmem:[%s2888 + $0x10] sm:$0xff]
      %v2892 = vld [vmem:[%s2888 + $0x18] sm:$0x33]
      %v2897 = vunpack.c.l.b16 %v2889
      %v2898 = vunpack.c.h.b16 %v2889
      %v2899 = vunpack.c.l.b16 %v2890
      %v2900 = vunpack.c.h.b16 %v2890
      %v2901 = vunpack.c.l.b16 %v2891
      %v2902 = vunpack.c.h.b16 %v2891
      %v2903 = vunpack.c.l.b16 %v2892
      %v2904 = vunpack.c.h.b16 %v2892
      %v2905 = vpack.c.b16 %v2899, %v2897
      %v2906 = vpack.c.b16 %v2900, %v2898
      %v2907 = vpack.c.b16 %v2903, %v2901
      %v2908 = vpack.c.b16 %v2904, %v2902
      %v2912 = vsel %vm514, %v2840, 0
      %v2915 = vsel %vm514, %v2841, 0
      %v2918 = vsel %vm514, %v2842, 0
      %v2921 = vsel %vm514, %v2843, 0
      %v2924 = vsel %vm514, %v2844, 0
      %v2927 = vsel %vm514, %v2845, 0
      %v2930 = vsel %vm514, %v2846, 0
      %v2933 = vsel %vm514, %v2847, 0
      %v2936 = vsel %vm514, %v2848, 0
      %v2939 = vsel %vm514, %v2849, 0
      %v2942 = vsel %vm514, %v2850, 0
      %v2945 = vsel %vm514, %v2851, 0
      %v2948 = vsel %vm514, %v2852, 0
      %v2951 = vsel %vm514, %v2853, 0
      %v2954 = vsel %vm514, %v2854, 0
      %v2957 = vsel %vm514, %v2855, 0
      %v2960 = vsel %vm514, %v2856, 0
      %v2963 = vsel %vm514, %v2857, 0
      %v2966 = vsel %vm514, %v2858, 0
      %v2969 = vsel %vm514, %v2859, 0
      %v2972 = vsel %vm514, %v2860, 0
      %v2975 = vsel %vm514, %v2861, 0
      %v2978 = vsel %vm514, %v2862, 0
      %v2981 = vsel %vm514, %v2863, 0
      %v2984 = vsel %vm514, %v2864, 0
      %v2987 = vsel %vm514, %v2865, 0
      %v2990 = vsel %vm514, %v2866, 0
      %v2993 = vsel %vm514, %v2867, 0
      %v2996 = vsel %vm514, %v2868, 0
      %v2999 = vsel %vm514, %v2869, 0
      %v3002 = vsel %vm514, %v2870, 0
      %v3005 = vsel %vm514, %v2871, 0
      %v3008 = vsel %vm514, %v2872, 0
      %v3011 = vsel %vm514, %v2873, 0
      %v3014 = vsel %vm514, %v2874, 0
      %v3017 = vsel %vm514, %v2875, 0
      %v3020 = vsel %vm514, %v2876, 0
      %v3023 = vsel %vm514, %v2877, 0
      %v3026 = vsel %vm514, %v2878, 0
      %v3029 = vsel %vm514, %v2879, 0
      %v3032 = vsel %vm514, %v2880, 0
      %v3035 = vsel %vm514, %v2881, 0
      %v3038 = vsel %vm514, %v2882, 0
      %v3041 = vsel %vm514, %v2883, 0
      %v3044 = vsel %vm514, %v2884, 0
      %v3047 = vsel %vm514, %v2885, 0
      %v3050 = vsel %vm514, %v2886, 0
      %v3053 = vsel %vm514, %v2887, 0
      %v3056 = vsel %vm659, %v2907, 0
      %v3059 = vsel %vm659, %v2908, 0
      %3061 = vmatprep.subr.bf16.mxu0 0
      %3062 = vmatpush1.bf16.msra.mxu0 0
      %3063 = vmatprep.subr.bf16.mxu0 0
      %3064 = vmatpush1.bf16.msra.mxu0 0
      %3065 = vmatprep.subr.bf16.mxu0 0
      %3066 = vmatpush1.bf16.msra.mxu0 0
      %3067 = vmatprep.subr.bf16.mxu0 0
      %3068 = vmatpush1.bf16.msra.mxu0 0
      %3069 = vmatprep.subr.bf16.mxu0 0
      %3070 = vmatpush1.bf16.msra.mxu0 0
      %3071 = vmatprep.subr.bf16.mxu0 0
      %3072 = vmatpush1.bf16.msra.mxu0 0
      %3073 = vmatprep.subr.bf16.mxu0 %v3059
      %3074 = vmatpush1.bf16.msra.mxu0 %v3056
      %3075 = vmatprep.subr.bf16.mxu0 %v2906
      %3076 = vmatpush1.bf16.msra.mxu0 %v2905
      %3077 = vmatprep.subr.bf16.mxu0 0
      %3078 = vmatpush2.bf16.msra.mxu0 0
      %3079 = vmatprep.subr.bf16.mxu0 0
      %3080 = vmatpush2.bf16.msra.mxu0 0
      %3081 = vmatprep.subr.bf16.mxu0 0
      %3082 = vmatpush2.bf16.msra.mxu0 0
      %3083 = vmatprep.subr.bf16.mxu0 0
      %3084 = vmatpush2.bf16.msra.mxu0 0
      %3085 = vmatprep.subr.bf16.mxu0 0
      %3086 = vmatpush2.bf16.msra.mxu0 0
      %3087 = vmatprep.subr.bf16.mxu0 0
      %3088 = vmatpush2.bf16.msra.mxu0 0
      %3089 = vmatprep.subr.bf16.mxu0 0
      %3090 = vmatpush2.bf16.msra.mxu0 0
      %3091 = vmatprep.subr.bf16.mxu0 0
      %3092 = vmatpush2.bf16.msra.mxu0 0
      %3093 = vmatprep.mubr.bf16.mxu0 0
      %3094 = vmatmul.mubr.bf16.gmra.mxu0 %v2912
      %v3095 = vpop.f32.mrf.mxu0
      %v3096 = vadd.f32 0.0, %v3095
      %v3097 = vpop.f32.mrf.mxu0
      %v3098 = vadd.f32 0.0, %v3097
      %v3099 = vpop.f32.mrf.mxu0
      %v3100 = vadd.f32 0.0, %v3099
      %v3101 = vpop.f32.mrf.mxu0
      %v3102 = vadd.f32 0.0, %v3101
      %3103 = vmatprep.mubr.bf16.mxu0 0
      %3104 = vmatmul.mubr.bf16.gmra.mxu0 %v2915
      %v3105 = vpop.f32.mrf.mxu0
      %v3106 = vadd.f32 0.0, %v3105
      %v3107 = vpop.f32.mrf.mxu0
      %v3108 = vadd.f32 0.0, %v3107
      %v3109 = vpop.f32.mrf.mxu0
      %v3110 = vadd.f32 0.0, %v3109
      %v3111 = vpop.f32.mrf.mxu0
      %v3112 = vadd.f32 0.0, %v3111
      %3113 = vmatprep.mubr.bf16.mxu0 0
      %3114 = vmatmul.mubr.bf16.gmra.mxu0 %v2918
      %v3115 = vpop.f32.mrf.mxu0
      %v3116 = vadd.f32 0.0, %v3115
      %v3117 = vpop.f32.mrf.mxu0
      %v3118 = vadd.f32 0.0, %v3117
      %v3119 = vpop.f32.mrf.mxu0
      %v3120 = vadd.f32 0.0, %v3119
      %v3121 = vpop.f32.mrf.mxu0
      %v3122 = vadd.f32 0.0, %v3121
      %3123 = vmatprep.mubr.bf16.mxu0 0
      %3124 = vmatmul.mubr.bf16.gmra.mxu0 %v2921
      %v3125 = vpop.f32.mrf.mxu0
      %v3126 = vadd.f32 0.0, %v3125
      %v3127 = vpop.f32.mrf.mxu0
      %v3128 = vadd.f32 0.0, %v3127
      %v3129 = vpop.f32.mrf.mxu0
      %v3130 = vadd.f32 0.0, %v3129
      %v3131 = vpop.f32.mrf.mxu0
      %v3132 = vadd.f32 0.0, %v3131
      %3133 = vmatprep.mubr.bf16.mxu0 0
      %3134 = vmatmul.mubr.bf16.gmra.mxu0 %v2924
      %v3135 = vpop.f32.mrf.mxu0
      %v3136 = vadd.f32 0.0, %v3135
      %v3137 = vpop.f32.mrf.mxu0
      %v3138 = vadd.f32 0.0, %v3137
      %v3139 = vpop.f32.mrf.mxu0
      %v3140 = vadd.f32 0.0, %v3139
      %v3141 = vpop.f32.mrf.mxu0
      %v3142 = vadd.f32 0.0, %v3141
      %3143 = vmatprep.mubr.bf16.mxu0 0
      %3144 = vmatmul.mubr.bf16.gmra.mxu0 %v2927
      %v3145 = vpop.f32.mrf.mxu0
      %v3146 = vadd.f32 0.0, %v3145
      %v3147 = vpop.f32.mrf.mxu0
      %v3148 = vadd.f32 0.0, %v3147
      %v3149 = vpop.f32.mrf.mxu0
      %v3150 = vadd.f32 0.0, %v3149
      %v3151 = vpop.f32.mrf.mxu0
      %v3152 = vadd.f32 0.0, %v3151
      %3153 = vmatprep.mubr.bf16.mxu0 0
      %3154 = vmatmul.mubr.bf16.gmra.mxu0 %v2930
      %v3155 = vpop.f32.mrf.mxu0
      %v3156 = vadd.f32 0.0, %v3155
      %v3157 = vpop.f32.mrf.mxu0
      %v3158 = vadd.f32 0.0, %v3157
      %v3159 = vpop.f32.mrf.mxu0
      %v3160 = vadd.f32 0.0, %v3159
      %v3161 = vpop.f32.mrf.mxu0
      %v3162 = vadd.f32 0.0, %v3161
      %3163 = vmatprep.mubr.bf16.mxu0 0
      %3164 = vmatmul.mubr.bf16.gmra.mxu0 %v2933
      %v3165 = vpop.f32.mrf.mxu0
      %v3166 = vadd.f32 0.0, %v3165
      %v3167 = vpop.f32.mrf.mxu0
      %v3168 = vadd.f32 0.0, %v3167
      %v3169 = vpop.f32.mrf.mxu0
      %v3170 = vadd.f32 0.0, %v3169
      %v3171 = vpop.f32.mrf.mxu0
      %v3172 = vadd.f32 0.0, %v3171
      %3173 = vmatprep.mubr.bf16.mxu0 0
      %3174 = vmatmul.mubr.bf16.gmra.mxu0 %v2936
      %v3175 = vpop.f32.mrf.mxu0
      %v3176 = vadd.f32 0.0, %v3175
      %v3177 = vpop.f32.mrf.mxu0
      %v3178 = vadd.f32 0.0, %v3177
      %v3179 = vpop.f32.mrf.mxu0
      %v3180 = vadd.f32 0.0, %v3179
      %v3181 = vpop.f32.mrf.mxu0
      %v3182 = vadd.f32 0.0, %v3181
      %3183 = vmatprep.mubr.bf16.mxu0 0
      %3184 = vmatmul.mubr.bf16.gmra.mxu0 %v2939
      %v3185 = vpop.f32.mrf.mxu0
      %v3186 = vadd.f32 0.0, %v3185
      %v3187 = vpop.f32.mrf.mxu0
      %v3188 = vadd.f32 0.0, %v3187
      %v3189 = vpop.f32.mrf.mxu0
      %v3190 = vadd.f32 0.0, %v3189
      %v3191 = vpop.f32.mrf.mxu0
      %v3192 = vadd.f32 0.0, %v3191
      %3193 = vmatprep.mubr.bf16.mxu0 0
      %3194 = vmatmul.mubr.bf16.gmra.mxu0 %v2942
      %v3195 = vpop.f32.mrf.mxu0
      %v3196 = vadd.f32 0.0, %v3195
      %v3197 = vpop.f32.mrf.mxu0
      %v3198 = vadd.f32 0.0, %v3197
      %v3199 = vpop.f32.mrf.mxu0
      %v3200 = vadd.f32 0.0, %v3199
      %v3201 = vpop.f32.mrf.mxu0
      %v3202 = vadd.f32 0.0, %v3201
      %3203 = vmatprep.mubr.bf16.mxu0 0
      %3204 = vmatmul.mubr.bf16.gmra.mxu0 %v2945
      %v3205 = vpop.f32.mrf.mxu0
      %v3206 = vadd.f32 0.0, %v3205
      %v3207 = vpop.f32.mrf.mxu0
      %v3208 = vadd.f32 0.0, %v3207
      %v3209 = vpop.f32.mrf.mxu0
      %v3210 = vadd.f32 0.0, %v3209
      %v3211 = vpop.f32.mrf.mxu0
      %v3212 = vadd.f32 0.0, %v3211
      %3213 = vmatprep.mubr.bf16.mxu0 0
      %3214 = vmatmul.mubr.bf16.gmra.mxu0 %v2948
      %v3215 = vpop.f32.mrf.mxu0
      %v3216 = vadd.f32 0.0, %v3215
      %v3217 = vpop.f32.mrf.mxu0
      %v3218 = vadd.f32 0.0, %v3217
      %v3219 = vpop.f32.mrf.mxu0
      %v3220 = vadd.f32 0.0, %v3219
      %v3221 = vpop.f32.mrf.mxu0
      %v3222 = vadd.f32 0.0, %v3221
      %3223 = vmatprep.mubr.bf16.mxu0 0
      %3224 = vmatmul.mubr.bf16.gmra.mxu0 %v2951
      %v3225 = vpop.f32.mrf.mxu0
      %v3226 = vadd.f32 0.0, %v3225
      %v3227 = vpop.f32.mrf.mxu0
      %v3228 = vadd.f32 0.0, %v3227
      %v3229 = vpop.f32.mrf.mxu0
      %v3230 = vadd.f32 0.0, %v3229
      %v3231 = vpop.f32.mrf.mxu0
      %v3232 = vadd.f32 0.0, %v3231
      %3233 = vmatprep.mubr.bf16.mxu0 0
      %3234 = vmatmul.mubr.bf16.gmra.mxu0 %v2954
      %v3235 = vpop.f32.mrf.mxu0
      %v3236 = vadd.f32 0.0, %v3235
      %v3237 = vpop.f32.mrf.mxu0
      %v3238 = vadd.f32 0.0, %v3237
      %v3239 = vpop.f32.mrf.mxu0
      %v3240 = vadd.f32 0.0, %v3239
      %v3241 = vpop.f32.mrf.mxu0
      %v3242 = vadd.f32 0.0, %v3241
      %3243 = vmatprep.mubr.bf16.mxu0 0
      %3244 = vmatmul.mubr.bf16.gmra.mxu0 %v2957
      %v3245 = vpop.f32.mrf.mxu0
      %v3246 = vadd.f32 0.0, %v3245
      %v3247 = vpop.f32.mrf.mxu0
      %v3248 = vadd.f32 0.0, %v3247
      %v3249 = vpop.f32.mrf.mxu0
      %v3250 = vadd.f32 0.0, %v3249
      %v3251 = vpop.f32.mrf.mxu0
      %v3252 = vadd.f32 0.0, %v3251
      %3253 = vmatprep.mubr.bf16.mxu0 0
      %3254 = vmatmul.mubr.bf16.gmra.mxu0 %v2960
      %v3255 = vpop.f32.mrf.mxu0
      %v3256 = vadd.f32 0.0, %v3255
      %v3257 = vpop.f32.mrf.mxu0
      %v3258 = vadd.f32 0.0, %v3257
      %v3259 = vpop.f32.mrf.mxu0
      %v3260 = vadd.f32 0.0, %v3259
      %v3261 = vpop.f32.mrf.mxu0
      %v3262 = vadd.f32 0.0, %v3261
      %3263 = vmatprep.mubr.bf16.mxu0 0
      %3264 = vmatmul.mubr.bf16.gmra.mxu0 %v2963
      %v3265 = vpop.f32.mrf.mxu0
      %v3266 = vadd.f32 0.0, %v3265
      %v3267 = vpop.f32.mrf.mxu0
      %v3268 = vadd.f32 0.0, %v3267
      %v3269 = vpop.f32.mrf.mxu0
      %v3270 = vadd.f32 0.0, %v3269
      %v3271 = vpop.f32.mrf.mxu0
      %v3272 = vadd.f32 0.0, %v3271
      %3273 = vmatprep.mubr.bf16.mxu0 0
      %3274 = vmatmul.mubr.bf16.gmra.mxu0 %v2966
      %v3275 = vpop.f32.mrf.mxu0
      %v3276 = vadd.f32 0.0, %v3275
      %v3277 = vpop.f32.mrf.mxu0
      %v3278 = vadd.f32 0.0, %v3277
      %v3279 = vpop.f32.mrf.mxu0
      %v3280 = vadd.f32 0.0, %v3279
      %v3281 = vpop.f32.mrf.mxu0
      %v3282 = vadd.f32 0.0, %v3281
      %3283 = vmatprep.mubr.bf16.mxu0 0
      %3284 = vmatmul.mubr.bf16.gmra.mxu0 %v2969
      %v3285 = vpop.f32.mrf.mxu0
      %v3286 = vadd.f32 0.0, %v3285
      %v3287 = vpop.f32.mrf.mxu0
      %v3288 = vadd.f32 0.0, %v3287
      %v3289 = vpop.f32.mrf.mxu0
      %v3290 = vadd.f32 0.0, %v3289
      %v3291 = vpop.f32.mrf.mxu0
      %v3292 = vadd.f32 0.0, %v3291
      %3293 = vmatprep.mubr.bf16.mxu0 0
      %3294 = vmatmul.mubr.bf16.gmra.mxu0 %v2972
      %v3295 = vpop.f32.mrf.mxu0
      %v3296 = vadd.f32 0.0, %v3295
      %v3297 = vpop.f32.mrf.mxu0
      %v3298 = vadd.f32 0.0, %v3297
      %v3299 = vpop.f32.mrf.mxu0
      %v3300 = vadd.f32 0.0, %v3299
      %v3301 = vpop.f32.mrf.mxu0
      %v3302 = vadd.f32 0.0, %v3301
      %3303 = vmatprep.mubr.bf16.mxu0 0
      %3304 = vmatmul.mubr.bf16.gmra.mxu0 %v2975
      %v3305 = vpop.f32.mrf.mxu0
      %v3306 = vadd.f32 0.0, %v3305
      %v3307 = vpop.f32.mrf.mxu0
      %v3308 = vadd.f32 0.0, %v3307
      %v3309 = vpop.f32.mrf.mxu0
      %v3310 = vadd.f32 0.0, %v3309
      %v3311 = vpop.f32.mrf.mxu0
      %v3312 = vadd.f32 0.0, %v3311
      %3313 = vmatprep.mubr.bf16.mxu0 0
      %3314 = vmatmul.mubr.bf16.gmra.mxu0 %v2978
      %v3315 = vpop.f32.mrf.mxu0
      %v3316 = vadd.f32 0.0, %v3315
      %v3317 = vpop.f32.mrf.mxu0
      %v3318 = vadd.f32 0.0, %v3317
      %v3319 = vpop.f32.mrf.mxu0
      %v3320 = vadd.f32 0.0, %v3319
      %v3321 = vpop.f32.mrf.mxu0
      %v3322 = vadd.f32 0.0, %v3321
      %3323 = vmatprep.mubr.bf16.mxu0 0
      %3324 = vmatmul.mubr.bf16.gmra.mxu0 %v2981
      %v3325 = vpop.f32.mrf.mxu0
      %v3326 = vadd.f32 0.0, %v3325
      %v3327 = vpop.f32.mrf.mxu0
      %v3328 = vadd.f32 0.0, %v3327
      %v3329 = vpop.f32.mrf.mxu0
      %v3330 = vadd.f32 0.0, %v3329
      %v3331 = vpop.f32.mrf.mxu0
      %v3332 = vadd.f32 0.0, %v3331
      %3333 = vmatprep.mubr.bf16.mxu0 0
      %3334 = vmatmul.mubr.bf16.gmra.mxu0 %v2984
      %v3335 = vpop.f32.mrf.mxu0
      %v3336 = vadd.f32 0.0, %v3335
      %v3337 = vpop.f32.mrf.mxu0
      %v3338 = vadd.f32 0.0, %v3337
      %v3339 = vpop.f32.mrf.mxu0
      %v3340 = vadd.f32 0.0, %v3339
      %v3341 = vpop.f32.mrf.mxu0
      %v3342 = vadd.f32 0.0, %v3341
      %3343 = vmatprep.mubr.bf16.mxu0 0
      %3344 = vmatmul.mubr.bf16.gmra.mxu0 %v2987
      %v3345 = vpop.f32.mrf.mxu0
      %v3346 = vadd.f32 0.0, %v3345
      %v3347 = vpop.f32.mrf.mxu0
      %v3348 = vadd.f32 0.0, %v3347
      %v3349 = vpop.f32.mrf.mxu0
      %v3350 = vadd.f32 0.0, %v3349
      %v3351 = vpop.f32.mrf.mxu0
      %v3352 = vadd.f32 0.0, %v3351
      %3353 = vmatprep.mubr.bf16.mxu0 0
      %3354 = vmatmul.mubr.bf16.gmra.mxu0 %v2990
      %v3355 = vpop.f32.mrf.mxu0
      %v3356 = vadd.f32 0.0, %v3355
      %v3357 = vpop.f32.mrf.mxu0
      %v3358 = vadd.f32 0.0, %v3357
      %v3359 = vpop.f32.mrf.mxu0
      %v3360 = vadd.f32 0.0, %v3359
      %v3361 = vpop.f32.mrf.mxu0
      %v3362 = vadd.f32 0.0, %v3361
      %3363 = vmatprep.mubr.bf16.mxu0 0
      %3364 = vmatmul.mubr.bf16.gmra.mxu0 %v2993
      %v3365 = vpop.f32.mrf.mxu0
      %v3366 = vadd.f32 0.0, %v3365
      %v3367 = vpop.f32.mrf.mxu0
      %v3368 = vadd.f32 0.0, %v3367
      %v3369 = vpop.f32.mrf.mxu0
      %v3370 = vadd.f32 0.0, %v3369
      %v3371 = vpop.f32.mrf.mxu0
      %v3372 = vadd.f32 0.0, %v3371
      %3373 = vmatprep.mubr.bf16.mxu0 0
      %3374 = vmatmul.mubr.bf16.gmra.mxu0 %v2996
      %v3375 = vpop.f32.mrf.mxu0
      %v3376 = vadd.f32 0.0, %v3375
      %v3377 = vpop.f32.mrf.mxu0
      %v3378 = vadd.f32 0.0, %v3377
      %v3379 = vpop.f32.mrf.mxu0
      %v3380 = vadd.f32 0.0, %v3379
      %v3381 = vpop.f32.mrf.mxu0
      %v3382 = vadd.f32 0.0, %v3381
      %3383 = vmatprep.mubr.bf16.mxu0 0
      %3384 = vmatmul.mubr.bf16.gmra.mxu0 %v2999
      %v3385 = vpop.f32.mrf.mxu0
      %v3386 = vadd.f32 0.0, %v3385
      %v3387 = vpop.f32.mrf.mxu0
      %v3388 = vadd.f32 0.0, %v3387
      %v3389 = vpop.f32.mrf.mxu0
      %v3390 = vadd.f32 0.0, %v3389
      %v3391 = vpop.f32.mrf.mxu0
      %v3392 = vadd.f32 0.0, %v3391
      %3393 = vmatprep.mubr.bf16.mxu0 0
      %3394 = vmatmul.mubr.bf16.gmra.mxu0 %v3002
      %v3395 = vpop.f32.mrf.mxu0
      %v3396 = vadd.f32 0.0, %v3395
      %v3397 = vpop.f32.mrf.mxu0
      %v3398 = vadd.f32 0.0, %v3397
      %v3399 = vpop.f32.mrf.mxu0
      %v3400 = vadd.f32 0.0, %v3399
      %v3401 = vpop.f32.mrf.mxu0
      %v3402 = vadd.f32 0.0, %v3401
      %3403 = vmatprep.mubr.bf16.mxu0 0
      %3404 = vmatmul.mubr.bf16.gmra.mxu0 %v3005
      %v3405 = vpop.f32.mrf.mxu0
      %v3406 = vadd.f32 0.0, %v3405
      %v3407 = vpop.f32.mrf.mxu0
      %v3408 = vadd.f32 0.0, %v3407
      %v3409 = vpop.f32.mrf.mxu0
      %v3410 = vadd.f32 0.0, %v3409
      %v3411 = vpop.f32.mrf.mxu0
      %v3412 = vadd.f32 0.0, %v3411
      %3413 = vmatprep.mubr.bf16.mxu0 0
      %3414 = vmatmul.mubr.bf16.gmra.mxu0 %v3008
      %v3415 = vpop.f32.mrf.mxu0
      %v3416 = vadd.f32 0.0, %v3415
      %v3417 = vpop.f32.mrf.mxu0
      %v3418 = vadd.f32 0.0, %v3417
      %v3419 = vpop.f32.mrf.mxu0
      %v3420 = vadd.f32 0.0, %v3419
      %v3421 = vpop.f32.mrf.mxu0
      %v3422 = vadd.f32 0.0, %v3421
      %3423 = vmatprep.mubr.bf16.mxu0 0
      %3424 = vmatmul.mubr.bf16.gmra.mxu0 %v3011
      %v3425 = vpop.f32.mrf.mxu0
      %v3426 = vadd.f32 0.0, %v3425
      %v3427 = vpop.f32.mrf.mxu0
      %v3428 = vadd.f32 0.0, %v3427
      %v3429 = vpop.f32.mrf.mxu0
      %v3430 = vadd.f32 0.0, %v3429
      %v3431 = vpop.f32.mrf.mxu0
      %v3432 = vadd.f32 0.0, %v3431
      %3433 = vmatprep.mubr.bf16.mxu0 0
      %3434 = vmatmul.mubr.bf16.gmra.mxu0 %v3014
      %v3435 = vpop.f32.mrf.mxu0
      %v3436 = vadd.f32 0.0, %v3435
      %v3437 = vpop.f32.mrf.mxu0
      %v3438 = vadd.f32 0.0, %v3437
      %v3439 = vpop.f32.mrf.mxu0
      %v3440 = vadd.f32 0.0, %v3439
      %v3441 = vpop.f32.mrf.mxu0
      %v3442 = vadd.f32 0.0, %v3441
      %3443 = vmatprep.mubr.bf16.mxu0 0
      %3444 = vmatmul.mubr.bf16.gmra.mxu0 %v3017
      %v3445 = vpop.f32.mrf.mxu0
      %v3446 = vadd.f32 0.0, %v3445
      %v3447 = vpop.f32.mrf.mxu0
      %v3448 = vadd.f32 0.0, %v3447
      %v3449 = vpop.f32.mrf.mxu0
      %v3450 = vadd.f32 0.0, %v3449
      %v3451 = vpop.f32.mrf.mxu0
      %v3452 = vadd.f32 0.0, %v3451
      %3453 = vmatprep.mubr.bf16.mxu0 0
      %3454 = vmatmul.mubr.bf16.gmra.mxu0 %v3020
      %v3455 = vpop.f32.mrf.mxu0
      %v3456 = vadd.f32 0.0, %v3455
      %v3457 = vpop.f32.mrf.mxu0
      %v3458 = vadd.f32 0.0, %v3457
      %v3459 = vpop.f32.mrf.mxu0
      %v3460 = vadd.f32 0.0, %v3459
      %v3461 = vpop.f32.mrf.mxu0
      %v3462 = vadd.f32 0.0, %v3461
      %3463 = vmatprep.mubr.bf16.mxu0 0
      %3464 = vmatmul.mubr.bf16.gmra.mxu0 %v3023
      %v3465 = vpop.f32.mrf.mxu0
      %v3466 = vadd.f32 0.0, %v3465
      %v3467 = vpop.f32.mrf.mxu0
      %v3468 = vadd.f32 0.0, %v3467
      %v3469 = vpop.f32.mrf.mxu0
      %v3470 = vadd.f32 0.0, %v3469
      %v3471 = vpop.f32.mrf.mxu0
      %v3472 = vadd.f32 0.0, %v3471
      %3473 = vmatprep.mubr.bf16.mxu0 0
      %3474 = vmatmul.mubr.bf16.gmra.mxu0 %v3026
      %v3475 = vpop.f32.mrf.mxu0
      %v3476 = vadd.f32 0.0, %v3475
      %v3477 = vpop.f32.mrf.mxu0
      %v3478 = vadd.f32 0.0, %v3477
      %v3479 = vpop.f32.mrf.mxu0
      %v3480 = vadd.f32 0.0, %v3479
      %v3481 = vpop.f32.mrf.mxu0
      %v3482 = vadd.f32 0.0, %v3481
      %3483 = vmatprep.mubr.bf16.mxu0 0
      %3484 = vmatmul.mubr.bf16.gmra.mxu0 %v3029
      %v3485 = vpop.f32.mrf.mxu0
      %v3486 = vadd.f32 0.0, %v3485
      %v3487 = vpop.f32.mrf.mxu0
      %v3488 = vadd.f32 0.0, %v3487
      %v3489 = vpop.f32.mrf.mxu0
      %v3490 = vadd.f32 0.0, %v3489
      %v3491 = vpop.f32.mrf.mxu0
      %v3492 = vadd.f32 0.0, %v3491
      %3493 = vmatprep.mubr.bf16.mxu0 0
      %3494 = vmatmul.mubr.bf16.gmra.mxu0 %v3032
      %v3495 = vpop.f32.mrf.mxu0
      %v3496 = vadd.f32 0.0, %v3495
      %v3497 = vpop.f32.mrf.mxu0
      %v3498 = vadd.f32 0.0, %v3497
      %v3499 = vpop.f32.mrf.mxu0
      %v3500 = vadd.f32 0.0, %v3499
      %v3501 = vpop.f32.mrf.mxu0
      %v3502 = vadd.f32 0.0, %v3501
      %3503 = vmatprep.mubr.bf16.mxu0 0
      %3504 = vmatmul.mubr.bf16.gmra.mxu0 %v3035
      %v3505 = vpop.f32.mrf.mxu0
      %v3506 = vadd.f32 0.0, %v3505
      %v3507 = vpop.f32.mrf.mxu0
      %v3508 = vadd.f32 0.0, %v3507
      %v3509 = vpop.f32.mrf.mxu0
      %v3510 = vadd.f32 0.0, %v3509
      %v3511 = vpop.f32.mrf.mxu0
      %v3512 = vadd.f32 0.0, %v3511
      %3513 = vmatprep.mubr.bf16.mxu0 0
      %3514 = vmatmul.mubr.bf16.gmra.mxu0 %v3038
      %v3515 = vpop.f32.mrf.mxu0
      %v3516 = vadd.f32 0.0, %v3515
      %v3517 = vpop.f32.mrf.mxu0
      %v3518 = vadd.f32 0.0, %v3517
      %v3519 = vpop.f32.mrf.mxu0
      %v3520 = vadd.f32 0.0, %v3519
      %v3521 = vpop.f32.mrf.mxu0
      %v3522 = vadd.f32 0.0, %v3521
      %3523 = vmatprep.mubr.bf16.mxu0 0
      %3524 = vmatmul.mubr.bf16.gmra.mxu0 %v3041
      %v3525 = vpop.f32.mrf.mxu0
      %v3526 = vadd.f32 0.0, %v3525
      %v3527 = vpop.f32.mrf.mxu0
      %v3528 = vadd.f32 0.0, %v3527
      %v3529 = vpop.f32.mrf.mxu0
      %v3530 = vadd.f32 0.0, %v3529
      %v3531 = vpop.f32.mrf.mxu0
      %v3532 = vadd.f32 0.0, %v3531
      %3533 = vmatprep.mubr.bf16.mxu0 0
      %3534 = vmatmul.mubr.bf16.gmra.mxu0 %v3044
      %v3535 = vpop.f32.mrf.mxu0
      %v3536 = vadd.f32 0.0, %v3535
      %v3537 = vpop.f32.mrf.mxu0
      %v3538 = vadd.f32 0.0, %v3537
      %v3539 = vpop.f32.mrf.mxu0
      %v3540 = vadd.f32 0.0, %v3539
      %v3541 = vpop.f32.mrf.mxu0
      %v3542 = vadd.f32 0.0, %v3541
      %3543 = vmatprep.mubr.bf16.mxu0 0
      %3544 = vmatmul.mubr.bf16.gmra.mxu0 %v3047
      %v3545 = vpop.f32.mrf.mxu0
      %v3546 = vadd.f32 0.0, %v3545
      %v3547 = vpop.f32.mrf.mxu0
      %v3548 = vadd.f32 0.0, %v3547
      %v3549 = vpop.f32.mrf.mxu0
      %v3550 = vadd.f32 0.0, %v3549
      %v3551 = vpop.f32.mrf.mxu0
      %v3552 = vadd.f32 0.0, %v3551
      %3553 = vmatprep.mubr.bf16.mxu0 0
      %3554 = vmatmul.mubr.bf16.gmra.mxu0 %v3050
      %v3555 = vpop.f32.mrf.mxu0
      %v3556 = vadd.f32 0.0, %v3555
      %v3557 = vpop.f32.mrf.mxu0
      %v3558 = vadd.f32 0.0, %v3557
      %v3559 = vpop.f32.mrf.mxu0
      %v3560 = vadd.f32 0.0, %v3559
      %v3561 = vpop.f32.mrf.mxu0
      %v3562 = vadd.f32 0.0, %v3561
      %3563 = vmatprep.mubr.bf16.mxu0 0
      %3564 = vmatmul.mubr.bf16.gmra.mxu0 %v3053
      %v3565 = vpop.f32.mrf.mxu0
      %v3566 = vadd.f32 0.0, %v3565
      %v3567 = vpop.f32.mrf.mxu0
      %v3568 = vadd.f32 0.0, %v3567
      %v3569 = vpop.f32.mrf.mxu0
      %v3570 = vadd.f32 0.0, %v3569
      %v3571 = vpop.f32.mrf.mxu0
      %v3572 = vadd.f32 0.0, %v3571
      %3573 = vdwg.mxu0
      %v3574 = vadd.f32 %v2552, %v3096
      %v3575 = vadd.f32 %v2553, %v3098
      %v3576 = vadd.f32 %v2554, %v3100
      %v3577 = vadd.f32 %v2555, %v3102
      %v3578 = vadd.f32 %v2556, %v3106
      %v3579 = vadd.f32 %v2557, %v3108
      %v3580 = vadd.f32 %v2558, %v3110
      %v3581 = vadd.f32 %v2559, %v3112
      %v3582 = vadd.f32 %v2560, %v3116
      %v3583 = vadd.f32 %v2561, %v3118
      %v3584 = vadd.f32 %v2562, %v3120
      %v3585 = vadd.f32 %v2563, %v3122
      %v3586 = vadd.f32 %v2564, %v3126
      %v3587 = vadd.f32 %v2565, %v3128
      %v3588 = vadd.f32 %v2566, %v3130
      %v3589 = vadd.f32 %v2567, %v3132
      %v3590 = vadd.f32 %v2568, %v3136
      %v3591 = vadd.f32 %v2569, %v3138
      %v3592 = vadd.f32 %v2570, %v3140
      %v3593 = vadd.f32 %v2571, %v3142
      %v3594 = vadd.f32 %v2572, %v3146
      %v3595 = vadd.f32 %v2573, %v3148
      %v3596 = vadd.f32 %v2574, %v3150
      %v3597 = vadd.f32 %v2575, %v3152
      %v3598 = vadd.f32 %v2576, %v3156
      %v3599 = vadd.f32 %v2577, %v3158
      %v3600 = vadd.f32 %v2578, %v3160
      %v3601 = vadd.f32 %v2579, %v3162
      %v3602 = vadd.f32 %v2580, %v3166
      %v3603 = vadd.f32 %v2581, %v3168
      %v3604 = vadd.f32 %v2582, %v3170
      %v3605 = vadd.f32 %v2583, %v3172
      %v3606 = vadd.f32 %v2584, %v3176
      %v3607 = vadd.f32 %v2585, %v3178
      %v3608 = vadd.f32 %v2586, %v3180
      %v3609 = vadd.f32 %v2587, %v3182
      %v3610 = vadd.f32 %v2588, %v3186
      %v3611 = vadd.f32 %v2589, %v3188
      %v3612 = vadd.f32 %v2590, %v3190
      %v3613 = vadd.f32 %v2591, %v3192
      %v3614 = vadd.f32 %v2592, %v3196
      %v3615 = vadd.f32 %v2593, %v3198
      %v3616 = vadd.f32 %v2594, %v3200
      %v3617 = vadd.f32 %v2595, %v3202
      %v3618 = vadd.f32 %v2596, %v3206
      %v3619 = vadd.f32 %v2597, %v3208
      %v3620 = vadd.f32 %v2598, %v3210
      %v3621 = vadd.f32 %v2599, %v3212
      %v3622 = vadd.f32 %v2600, %v3216
      %v3623 = vadd.f32 %v2601, %v3218
      %v3624 = vadd.f32 %v2602, %v3220
      %v3625 = vadd.f32 %v2603, %v3222
      %v3626 = vadd.f32 %v2604, %v3226
      %v3627 = vadd.f32 %v2605, %v3228
      %v3628 = vadd.f32 %v2606, %v3230
      %v3629 = vadd.f32 %v2607, %v3232
      %v3630 = vadd.f32 %v2608, %v3236
      %v3631 = vadd.f32 %v2609, %v3238
      %v3632 = vadd.f32 %v2610, %v3240
      %v3633 = vadd.f32 %v2611, %v3242
      %v3634 = vadd.f32 %v2612, %v3246
      %v3635 = vadd.f32 %v2613, %v3248
      %v3636 = vadd.f32 %v2614, %v3250
      %v3637 = vadd.f32 %v2615, %v3252
      %v3638 = vadd.f32 %v2616, %v3256
      %v3639 = vadd.f32 %v2617, %v3258
      %v3640 = vadd.f32 %v2618, %v3260
      %v3641 = vadd.f32 %v2619, %v3262
      %v3642 = vadd.f32 %v2620, %v3266
      %v3643 = vadd.f32 %v2621, %v3268
      %v3644 = vadd.f32 %v2622, %v3270
      %v3645 = vadd.f32 %v2623, %v3272
      %v3646 = vadd.f32 %v2624, %v3276
      %v3647 = vadd.f32 %v2625, %v3278
      %v3648 = vadd.f32 %v2626, %v3280
      %v3649 = vadd.f32 %v2627, %v3282
      %v3650 = vadd.f32 %v2628, %v3286
      %v3651 = vadd.f32 %v2629, %v3288
      %v3652 = vadd.f32 %v2630, %v3290
      %v3653 = vadd.f32 %v2631, %v3292
      %v3654 = vadd.f32 %v2632, %v3296
      %v3655 = vadd.f32 %v2633, %v3298
      %v3656 = vadd.f32 %v2634, %v3300
      %v3657 = vadd.f32 %v2635, %v3302
      %v3658 = vadd.f32 %v2636, %v3306
      %v3659 = vadd.f32 %v2637, %v3308
      %v3660 = vadd.f32 %v2638, %v3310
      %v3661 = vadd.f32 %v2639, %v3312
      %v3662 = vadd.f32 %v2640, %v3316
      %v3663 = vadd.f32 %v2641, %v3318
      %v3664 = vadd.f32 %v2642, %v3320
      %v3665 = vadd.f32 %v2643, %v3322
      %v3666 = vadd.f32 %v2644, %v3326
      %v3667 = vadd.f32 %v2645, %v3328
      %v3668 = vadd.f32 %v2646, %v3330
      %v3669 = vadd.f32 %v2647, %v3332
      %v3670 = vadd.f32 %v2648, %v3336
      %v3671 = vadd.f32 %v2649, %v3338
      %v3672 = vadd.f32 %v2650, %v3340
      %v3673 = vadd.f32 %v2651, %v3342
      %v3674 = vadd.f32 %v2652, %v3346
      %v3675 = vadd.f32 %v2653, %v3348
      %v3676 = vadd.f32 %v2654, %v3350
      %v3677 = vadd.f32 %v2655, %v3352
      %v3678 = vadd.f32 %v2656, %v3356
      %v3679 = vadd.f32 %v2657, %v3358
      %v3680 = vadd.f32 %v2658, %v3360
      %v3681 = vadd.f32 %v2659, %v3362
      %v3682 = vadd.f32 %v2660, %v3366
      %v3683 = vadd.f32 %v2661, %v3368
      %v3684 = vadd.f32 %v2662, %v3370
      %v3685 = vadd.f32 %v2663, %v3372
      %v3686 = vadd.f32 %v2664, %v3376
      %v3687 = vadd.f32 %v2665, %v3378
      %v3688 = vadd.f32 %v2666, %v3380
      %v3689 = vadd.f32 %v2667, %v3382
      %v3690 = vadd.f32 %v2668, %v3386
      %v3691 = vadd.f32 %v2669, %v3388
      %v3692 = vadd.f32 %v2670, %v3390
      %v3693 = vadd.f32 %v2671, %v3392
      %v3694 = vadd.f32 %v2672, %v3396
      %v3695 = vadd.f32 %v2673, %v3398
      %v3696 = vadd.f32 %v2674, %v3400
      %v3697 = vadd.f32 %v2675, %v3402
      %v3698 = vadd.f32 %v2676, %v3406
      %v3699 = vadd.f32 %v2677, %v3408
      %v3700 = vadd.f32 %v2678, %v3410
      %v3701 = vadd.f32 %v2679, %v3412
      %v3702 = vadd.f32 %v2680, %v3416
      %v3703 = vadd.f32 %v2681, %v3418
      %v3704 = vadd.f32 %v2682, %v3420
      %v3705 = vadd.f32 %v2683, %v3422
      %v3706 = vadd.f32 %v2684, %v3426
      %v3707 = vadd.f32 %v2685, %v3428
      %v3708 = vadd.f32 %v2686, %v3430
      %v3709 = vadd.f32 %v2687, %v3432
      %v3710 = vadd.f32 %v2688, %v3436
      %v3711 = vadd.f32 %v2689, %v3438
      %v3712 = vadd.f32 %v2690, %v3440
      %v3713 = vadd.f32 %v2691, %v3442
      %v3714 = vadd.f32 %v2692, %v3446
      %v3715 = vadd.f32 %v2693, %v3448
      %v3716 = vadd.f32 %v2694, %v3450
      %v3717 = vadd.f32 %v2695, %v3452
      %v3718 = vadd.f32 %v2696, %v3456
      %v3719 = vadd.f32 %v2697, %v3458
      %v3720 = vadd.f32 %v2698, %v3460
      %v3721 = vadd.f32 %v2699, %v3462
      %v3722 = vadd.f32 %v2700, %v3466
      %v3723 = vadd.f32 %v2701, %v3468
      %v3724 = vadd.f32 %v2702, %v3470
      %v3725 = vadd.f32 %v2703, %v3472
      %v3726 = vadd.f32 %v2704, %v3476
      %v3727 = vadd.f32 %v2705, %v3478
      %v3728 = vadd.f32 %v2706, %v3480
      %v3729 = vadd.f32 %v2707, %v3482
      %v3730 = vadd.f32 %v2708, %v3486
      %v3731 = vadd.f32 %v2709, %v3488
      %v3732 = vadd.f32 %v2710, %v3490
      %v3733 = vadd.f32 %v2711, %v3492
      %v3734 = vadd.f32 %v2712, %v3496
      %v3735 = vadd.f32 %v2713, %v3498
      %v3736 = vadd.f32 %v2714, %v3500
      %v3737 = vadd.f32 %v2715, %v3502
      %v3738 = vadd.f32 %v2716, %v3506
      %v3739 = vadd.f32 %v2717, %v3508
      %v3740 = vadd.f32 %v2718, %v3510
      %v3741 = vadd.f32 %v2719, %v3512
      %v3742 = vadd.f32 %v2720, %v3516
      %v3743 = vadd.f32 %v2721, %v3518
      %v3744 = vadd.f32 %v2722, %v3520
      %v3745 = vadd.f32 %v2723, %v3522
      %v3746 = vadd.f32 %v2724, %v3526
      %v3747 = vadd.f32 %v2725, %v3528
      %v3748 = vadd.f32 %v2726, %v3530
      %v3749 = vadd.f32 %v2727, %v3532
      %v3750 = vadd.f32 %v2728, %v3536
      %v3751 = vadd.f32 %v2729, %v3538
      %v3752 = vadd.f32 %v2730, %v3540
      %v3753 = vadd.f32 %v2731, %v3542
      %v3754 = vadd.f32 %v2732, %v3546
      %v3755 = vadd.f32 %v2733, %v3548
      %v3756 = vadd.f32 %v2734, %v3550
      %v3757 = vadd.f32 %v2735, %v3552
      %v3758 = vadd.f32 %v2736, %v3556
      %v3759 = vadd.f32 %v2737, %v3558
      %v3760 = vadd.f32 %v2738, %v3560
      %v3761 = vadd.f32 %v2739, %v3562
      %v3762 = vadd.f32 %v2740, %v3566
      %v3763 = vadd.f32 %v2741, %v3568
      %v3764 = vadd.f32 %v2742, %v3570
      %v3765 = vadd.f32 %v2743, %v3572
      %v3766 = vld [vmem:[%s328 + $0x80] sm:$0xff]
      %v3767 = vld [vmem:[%s328 + $0x88] sm:$0xff]
      %v3768 = vld [vmem:[%s328 + $0x90] sm:$0xff]
      %v3769 = vld [vmem:[%s328 + $0x98] sm:$0xff]
      %v3770 = vld [vmem:[%s328 + $0xa0] sm:$0xff]
      %v3771 = vld [vmem:[%s328 + $0xa8] sm:$0xff]
      %v3772 = vld [vmem:[%s328 + $0xb0] sm:$0xff]
      %v3773 = vld [vmem:[%s328 + $0xb8] sm:$0xff]
      %v3774 = vld [vmem:[%s328 + $0xc0] sm:$0xff]
      %v3775 = vld [vmem:[%s328 + $0xc8] sm:$0xff]
      %v3776 = vld [vmem:[%s328 + $0xd0] sm:$0xff]
      %v3777 = vld [vmem:[%s328 + $0xd8] sm:$0xff]
      %v3778 = vld [vmem:[%s328 + $0xe0] sm:$0xff]
      %v3779 = vld [vmem:[%s328 + $0xe8] sm:$0xff]
      %v3780 = vld [vmem:[%s328 + $0xf0] sm:$0xff]
      %v3781 = vld [vmem:[%s328 + $0xf8] sm:$0xff]
      %v3782 = vld [vmem:[%s328 + $0x100] sm:$0xff]
      %v3783 = vld [vmem:[%s328 + $0x108] sm:$0xff]
      %v3784 = vld [vmem:[%s328 + $0x110] sm:$0xff]
      %v3785 = vld [vmem:[%s328 + $0x118] sm:$0xff]
      %v3786 = vld [vmem:[%s328 + $0x120] sm:$0xff]
      %v3787 = vld [vmem:[%s328 + $0x128] sm:$0xff]
      %v3788 = vld [vmem:[%s328 + $0x130] sm:$0xff]
      %v3789 = vld [vmem:[%s328 + $0x138] sm:$0xff]
      %v3790 = vld [vmem:[%s328 + $0x140] sm:$0xff]
      %v3791 = vld [vmem:[%s328 + $0x148] sm:$0xff]
      %v3792 = vld [vmem:[%s328 + $0x150] sm:$0xff]
      %v3793 = vld [vmem:[%s328 + $0x158] sm:$0xff]
      %v3794 = vld [vmem:[%s328 + $0x160] sm:$0xff]
      %v3795 = vld [vmem:[%s328 + $0x168] sm:$0xff]
      %v3796 = vld [vmem:[%s328 + $0x170] sm:$0xff]
      %v3797 = vld [vmem:[%s328 + $0x178] sm:$0xff]
      %v3798 = vld [vmem:[%s328 + $0x180] sm:$0xff]
      %v3799 = vld [vmem:[%s328 + $0x188] sm:$0xff]
      %v3800 = vld [vmem:[%s328 + $0x190] sm:$0xff]
      %v3801 = vld [vmem:[%s328 + $0x198] sm:$0xff]
      %v3802 = vld [vmem:[%s328 + $0x1a0] sm:$0xff]
      %v3803 = vld [vmem:[%s328 + $0x1a8] sm:$0xff]
      %v3804 = vld [vmem:[%s328 + $0x1b0] sm:$0xff]
      %v3805 = vld [vmem:[%s328 + $0x1b8] sm:$0xff]
      %v3806 = vld [vmem:[%s328 + $0x1c0] sm:$0xff]
      %v3807 = vld [vmem:[%s328 + $0x1c8] sm:$0xff]
      %v3808 = vld [vmem:[%s328 + $0x1d0] sm:$0xff]
      %v3809 = vld [vmem:[%s328 + $0x1d8] sm:$0xff]
      %v3810 = vld [vmem:[%s328 + $0x1e0] sm:$0xff]
      %v3811 = vld [vmem:[%s328 + $0x1e8] sm:$0xff]
      %v3812 = vld [vmem:[%s328 + $0x1f0] sm:$0xff]
      %v3813 = vld [vmem:[%s328 + $0x1f8] sm:$0xff]
      %v3814 = vld [vmem:[%s328 + $0x200] sm:$0xff]
      %v3815 = vld [vmem:[%s328 + $0x208] sm:$0xff]
      %v3816 = vld [vmem:[%s328 + $0x210] sm:$0xff]
      %v3817 = vld [vmem:[%s328 + $0x218] sm:$0xff]
      %v3818 = vld [vmem:[%s328 + $0x220] sm:$0xff]
      %v3819 = vld [vmem:[%s328 + $0x228] sm:$0xff]
      %v3820 = vld [vmem:[%s328 + $0x230] sm:$0xff]
      %v3821 = vld [vmem:[%s328 + $0x238] sm:$0xff]
      %v3822 = vld [vmem:[%s328 + $0x240] sm:$0xff]
      %v3823 = vld [vmem:[%s328 + $0x248] sm:$0xff]
      %v3824 = vld [vmem:[%s328 + $0x250] sm:$0xff]
      %v3825 = vld [vmem:[%s328 + $0x258] sm:$0xff]
      %v3826 = vld [vmem:[%s328 + $0x260] sm:$0xff]
      %v3827 = vld [vmem:[%s328 + $0x268] sm:$0xff]
      %v3828 = vld [vmem:[%s328 + $0x270] sm:$0xff]
      %v3829 = vld [vmem:[%s328 + $0x278] sm:$0xff]
      %v3830 = vld [vmem:[%s328 + $0x280] sm:$0xff]
      %v3831 = vld [vmem:[%s328 + $0x288] sm:$0xff]
      %v3832 = vld [vmem:[%s328 + $0x290] sm:$0xff]
      %v3833 = vld [vmem:[%s328 + $0x298] sm:$0xff]
      %v3834 = vld [vmem:[%s328 + $0x2a0] sm:$0xff]
      %v3835 = vld [vmem:[%s328 + $0x2a8] sm:$0xff]
      %v3836 = vld [vmem:[%s328 + $0x2b0] sm:$0xff]
      %v3837 = vld [vmem:[%s328 + $0x2b8] sm:$0xff]
      %v3838 = vld [vmem:[%s328 + $0x2c0] sm:$0xff]
      %v3839 = vld [vmem:[%s328 + $0x2c8] sm:$0xff]
      %v3840 = vld [vmem:[%s328 + $0x2d0] sm:$0xff]
      %v3841 = vld [vmem:[%s328 + $0x2d8] sm:$0xff]
      %v3842 = vld [vmem:[%s328 + $0x2e0] sm:$0xff]
      %v3843 = vld [vmem:[%s328 + $0x2e8] sm:$0xff]
      %v3844 = vld [vmem:[%s328 + $0x2f0] sm:$0xff]
      %v3845 = vld [vmem:[%s328 + $0x2f8] sm:$0xff]
      %v3846 = vld [vmem:[%s328 + $0x300] sm:$0xff]
      %v3847 = vld [vmem:[%s328 + $0x308] sm:$0xff]
      %v3848 = vld [vmem:[%s328 + $0x310] sm:$0xff]
      %v3849 = vld [vmem:[%s328 + $0x318] sm:$0xff]
      %v3850 = vld [vmem:[%s328 + $0x320] sm:$0xff]
      %v3851 = vld [vmem:[%s328 + $0x328] sm:$0xff]
      %v3852 = vld [vmem:[%s328 + $0x330] sm:$0xff]
      %v3853 = vld [vmem:[%s328 + $0x338] sm:$0xff]
      %v3854 = vld [vmem:[%s328 + $0x340] sm:$0xff]
      %v3855 = vld [vmem:[%s328 + $0x348] sm:$0xff]
      %v3856 = vld [vmem:[%s328 + $0x350] sm:$0xff]
      %v3857 = vld [vmem:[%s328 + $0x358] sm:$0xff]
      %v3858 = vld [vmem:[%s328 + $0x360] sm:$0xff]
      %v3859 = vld [vmem:[%s328 + $0x368] sm:$0xff]
      %v3860 = vld [vmem:[%s328 + $0x370] sm:$0xff]
      %v3861 = vld [vmem:[%s328 + $0x378] sm:$0xff]
      %v3862 = vpack.c.bf16 %v3767, %v3766
      %v3863 = vpack.c.bf16 %v3769, %v3768
      %v3864 = vpack.c.bf16 %v3771, %v3770
      %v3865 = vpack.c.bf16 %v3773, %v3772
      %v3866 = vpack.c.bf16 %v3775, %v3774
      %v3867 = vpack.c.bf16 %v3777, %v3776
      %v3868 = vpack.c.bf16 %v3779, %v3778
      %v3869 = vpack.c.bf16 %v3781, %v3780
      %v3870 = vpack.c.bf16 %v3783, %v3782
      %v3871 = vpack.c.bf16 %v3785, %v3784
      %v3872 = vpack.c.bf16 %v3787, %v3786
      %v3873 = vpack.c.bf16 %v3789, %v3788
      %v3874 = vpack.c.bf16 %v3791, %v3790
      %v3875 = vpack.c.bf16 %v3793, %v3792
      %v3876 = vpack.c.bf16 %v3795, %v3794
      %v3877 = vpack.c.bf16 %v3797, %v3796
      %v3878 = vpack.c.bf16 %v3799, %v3798
      %v3879 = vpack.c.bf16 %v3801, %v3800
      %v3880 = vpack.c.bf16 %v3803, %v3802
      %v3881 = vpack.c.bf16 %v3805, %v3804
      %v3882 = vpack.c.bf16 %v3807, %v3806
      %v3883 = vpack.c.bf16 %v3809, %v3808
      %v3884 = vpack.c.bf16 %v3811, %v3810
      %v3885 = vpack.c.bf16 %v3813, %v3812
      %v3886 = vpack.c.bf16 %v3815, %v3814
      %v3887 = vpack.c.bf16 %v3817, %v3816
      %v3888 = vpack.c.bf16 %v3819, %v3818
      %v3889 = vpack.c.bf16 %v3821, %v3820
      %v3890 = vpack.c.bf16 %v3823, %v3822
      %v3891 = vpack.c.bf16 %v3825, %v3824
      %v3892 = vpack.c.bf16 %v3827, %v3826
      %v3893 = vpack.c.bf16 %v3829, %v3828
      %v3894 = vpack.c.bf16 %v3831, %v3830
      %v3895 = vpack.c.bf16 %v3833, %v3832
      %v3896 = vpack.c.bf16 %v3835, %v3834
      %v3897 = vpack.c.bf16 %v3837, %v3836
      %v3898 = vpack.c.bf16 %v3839, %v3838
      %v3899 = vpack.c.bf16 %v3841, %v3840
      %v3900 = vpack.c.bf16 %v3843, %v3842
      %v3901 = vpack.c.bf16 %v3845, %v3844
      %v3902 = vpack.c.bf16 %v3847, %v3846
      %v3903 = vpack.c.bf16 %v3849, %v3848
      %v3904 = vpack.c.bf16 %v3851, %v3850
      %v3905 = vpack.c.bf16 %v3853, %v3852
      %v3906 = vpack.c.bf16 %v3855, %v3854
      %v3907 = vpack.c.bf16 %v3857, %v3856
      %v3908 = vpack.c.bf16 %v3859, %v3858
      %v3909 = vpack.c.bf16 %v3861, %v3860
      %s3910 = scalar_lea.vmem %s1, 128
      %v3911 = vld [vmem:[%s3910] sm:$0xff]
      %v3912 = vld [vmem:[%s3910 + $0x8] sm:$0xff]
      %v3913 = vld [vmem:[%s3910 + $0x10] sm:$0xff]
      %v3914 = vld [vmem:[%s3910 + $0x18] sm:$0x33]
      %v3919 = vunpack.c.l.b16 %v3911
      %v3920 = vunpack.c.h.b16 %v3911
      %v3921 = vunpack.c.l.b16 %v3912
      %v3922 = vunpack.c.h.b16 %v3912
      %v3923 = vunpack.c.l.b16 %v3913
      %v3924 = vunpack.c.h.b16 %v3913
      %v3925 = vunpack.c.l.b16 %v3914
      %v3926 = vunpack.c.h.b16 %v3914
      %v3927 = vpack.c.b16 %v3921, %v3919
      %v3928 = vpack.c.b16 %v3922, %v3920
      %v3929 = vpack.c.b16 %v3925, %v3923
      %v3930 = vpack.c.b16 %v3926, %v3924
      %v3934 = vsel %vm514, %v3862, 0
      %v3937 = vsel %vm514, %v3863, 0
      %v3940 = vsel %vm514, %v3864, 0
      %v3943 = vsel %vm514, %v3865, 0
      %v3946 = vsel %vm514, %v3866, 0
      %v3949 = vsel %vm514, %v3867, 0
      %v3952 = vsel %vm514, %v3868, 0
      %v3955 = vsel %vm514, %v3869, 0
      %v3958 = vsel %vm514, %v3870, 0
      %v3961 = vsel %vm514, %v3871, 0
      %v3964 = vsel %vm514, %v3872, 0
      %v3967 = vsel %vm514, %v3873, 0
      %v3970 = vsel %vm514, %v3874, 0
      %v3973 = vsel %vm514, %v3875, 0
      %v3976 = vsel %vm514, %v3876, 0
      %v3979 = vsel %vm514, %v3877, 0
      %v3982 = vsel %vm514, %v3878, 0
      %v3985 = vsel %vm514, %v3879, 0
      %v3988 = vsel %vm514, %v3880, 0
      %v3991 = vsel %vm514, %v3881, 0
      %v3994 = vsel %vm514, %v3882, 0
      %v3997 = vsel %vm514, %v3883, 0
      %v4000 = vsel %vm514, %v3884, 0
      %v4003 = vsel %vm514, %v3885, 0
      %v4006 = vsel %vm514, %v3886, 0
      %v4009 = vsel %vm514, %v3887, 0
      %v4012 = vsel %vm514, %v3888, 0
      %v4015 = vsel %vm514, %v3889, 0
      %v4018 = vsel %vm514, %v3890, 0
      %v4021 = vsel %vm514, %v3891, 0
      %v4024 = vsel %vm514, %v3892, 0
      %v4027 = vsel %vm514, %v3893, 0
      %v4030 = vsel %vm514, %v3894, 0
      %v4033 = vsel %vm514, %v3895, 0
      %v4036 = vsel %vm514, %v3896, 0
      %v4039 = vsel %vm514, %v3897, 0
      %v4042 = vsel %vm514, %v3898, 0
      %v4045 = vsel %vm514, %v3899, 0
      %v4048 = vsel %vm514, %v3900, 0
      %v4051 = vsel %vm514, %v3901, 0
      %v4054 = vsel %vm514, %v3902, 0
      %v4057 = vsel %vm514, %v3903, 0
      %v4060 = vsel %vm514, %v3904, 0
      %v4063 = vsel %vm514, %v3905, 0
      %v4066 = vsel %vm514, %v3906, 0
      %v4069 = vsel %vm514, %v3907, 0
      %v4072 = vsel %vm514, %v3908, 0
      %v4075 = vsel %vm514, %v3909, 0
      %v4078 = vsel %vm659, %v3929, 0
      %v4081 = vsel %vm659, %v3930, 0
      %4083 = vmatprep.subr.bf16.mxu0 0
      %4084 = vmatpush1.bf16.msra.mxu0 0
      %4085 = vmatprep.subr.bf16.mxu0 0
      %4086 = vmatpush1.bf16.msra.mxu0 0
      %4087 = vmatprep.subr.bf16.mxu0 0
      %4088 = vmatpush1.bf16.msra.mxu0 0
      %4089 = vmatprep.subr.bf16.mxu0 0
      %4090 = vmatpush1.bf16.msra.mxu0 0
      %4091 = vmatprep.subr.bf16.mxu0 0
      %4092 = vmatpush1.bf16.msra.mxu0 0
      %4093 = vmatprep.subr.bf16.mxu0 0
      %4094 = vmatpush1.bf16.msra.mxu0 0
      %4095 = vmatprep.subr.bf16.mxu0 %v4081
      %4096 = vmatpush1.bf16.msra.mxu0 %v4078
      %4097 = vmatprep.subr.bf16.mxu0 %v3928
      %4098 = vmatpush1.bf16.msra.mxu0 %v3927
      %4099 = vmatprep.subr.bf16.mxu0 0
      %4100 = vmatpush2.bf16.msra.mxu0 0
      %4101 = vmatprep.subr.bf16.mxu0 0
      %4102 = vmatpush2.bf16.msra.mxu0 0
      %4103 = vmatprep.subr.bf16.mxu0 0
      %4104 = vmatpush2.bf16.msra.mxu0 0
      %4105 = vmatprep.subr.bf16.mxu0 0
      %4106 = vmatpush2.bf16.msra.mxu0 0
      %4107 = vmatprep.subr.bf16.mxu0 0
      %4108 = vmatpush2.bf16.msra.mxu0 0
      %4109 = vmatprep.subr.bf16.mxu0 0
      %4110 = vmatpush2.bf16.msra.mxu0 0
      %4111 = vmatprep.subr.bf16.mxu0 0
      %4112 = vmatpush2.bf16.msra.mxu0 0
      %4113 = vmatprep.subr.bf16.mxu0 0
      %4114 = vmatpush2.bf16.msra.mxu0 0
      %4115 = vmatprep.mubr.bf16.mxu0 0
      %4116 = vmatmul.mubr.bf16.gmra.mxu0 %v3934
      %v4117 = vpop.f32.mrf.mxu0
      %v4118 = vadd.f32 0.0, %v4117
      %v4119 = vpop.f32.mrf.mxu0
      %v4120 = vadd.f32 0.0, %v4119
      %v4121 = vpop.f32.mrf.mxu0
      %v4122 = vadd.f32 0.0, %v4121
      %v4123 = vpop.f32.mrf.mxu0
      %v4124 = vadd.f32 0.0, %v4123
      %4125 = vmatprep.mubr.bf16.mxu0 0
      %4126 = vmatmul.mubr.bf16.gmra.mxu0 %v3937
      %v4127 = vpop.f32.mrf.mxu0
      %v4128 = vadd.f32 0.0, %v4127
      %v4129 = vpop.f32.mrf.mxu0
      %v4130 = vadd.f32 0.0, %v4129
      %v4131 = vpop.f32.mrf.mxu0
      %v4132 = vadd.f32 0.0, %v4131
      %v4133 = vpop.f32.mrf.mxu0
      %v4134 = vadd.f32 0.0, %v4133
      %4135 = vmatprep.mubr.bf16.mxu0 0
      %4136 = vmatmul.mubr.bf16.gmra.mxu0 %v3940
      %v4137 = vpop.f32.mrf.mxu0
      %v4138 = vadd.f32 0.0, %v4137
      %v4139 = vpop.f32.mrf.mxu0
      %v4140 = vadd.f32 0.0, %v4139
      %v4141 = vpop.f32.mrf.mxu0
      %v4142 = vadd.f32 0.0, %v4141
      %v4143 = vpop.f32.mrf.mxu0
      %v4144 = vadd.f32 0.0, %v4143
      %4145 = vmatprep.mubr.bf16.mxu0 0
      %4146 = vmatmul.mubr.bf16.gmra.mxu0 %v3943
      %v4147 = vpop.f32.mrf.mxu0
      %v4148 = vadd.f32 0.0, %v4147
      %v4149 = vpop.f32.mrf.mxu0
      %v4150 = vadd.f32 0.0, %v4149
      %v4151 = vpop.f32.mrf.mxu0
      %v4152 = vadd.f32 0.0, %v4151
      %v4153 = vpop.f32.mrf.mxu0
      %v4154 = vadd.f32 0.0, %v4153
      %4155 = vmatprep.mubr.bf16.mxu0 0
      %4156 = vmatmul.mubr.bf16.gmra.mxu0 %v3946
      %v4157 = vpop.f32.mrf.mxu0
      %v4158 = vadd.f32 0.0, %v4157
      %v4159 = vpop.f32.mrf.mxu0
      %v4160 = vadd.f32 0.0, %v4159
      %v4161 = vpop.f32.mrf.mxu0
      %v4162 = vadd.f32 0.0, %v4161
      %v4163 = vpop.f32.mrf.mxu0
      %v4164 = vadd.f32 0.0, %v4163
      %4165 = vmatprep.mubr.bf16.mxu0 0
      %4166 = vmatmul.mubr.bf16.gmra.mxu0 %v3949
      %v4167 = vpop.f32.mrf.mxu0
      %v4168 = vadd.f32 0.0, %v4167
      %v4169 = vpop.f32.mrf.mxu0
      %v4170 = vadd.f32 0.0, %v4169
      %v4171 = vpop.f32.mrf.mxu0
      %v4172 = vadd.f32 0.0, %v4171
      %v4173 = vpop.f32.mrf.mxu0
      %v4174 = vadd.f32 0.0, %v4173
      %4175 = vmatprep.mubr.bf16.mxu0 0
      %4176 = vmatmul.mubr.bf16.gmra.mxu0 %v3952
      %v4177 = vpop.f32.mrf.mxu0
      %v4178 = vadd.f32 0.0, %v4177
      %v4179 = vpop.f32.mrf.mxu0
      %v4180 = vadd.f32 0.0, %v4179
      %v4181 = vpop.f32.mrf.mxu0
      %v4182 = vadd.f32 0.0, %v4181
      %v4183 = vpop.f32.mrf.mxu0
      %v4184 = vadd.f32 0.0, %v4183
      %4185 = vmatprep.mubr.bf16.mxu0 0
      %4186 = vmatmul.mubr.bf16.gmra.mxu0 %v3955
      %v4187 = vpop.f32.mrf.mxu0
      %v4188 = vadd.f32 0.0, %v4187
      %v4189 = vpop.f32.mrf.mxu0
      %v4190 = vadd.f32 0.0, %v4189
      %v4191 = vpop.f32.mrf.mxu0
      %v4192 = vadd.f32 0.0, %v4191
      %v4193 = vpop.f32.mrf.mxu0
      %v4194 = vadd.f32 0.0, %v4193
      %4195 = vmatprep.mubr.bf16.mxu0 0
      %4196 = vmatmul.mubr.bf16.gmra.mxu0 %v3958
      %v4197 = vpop.f32.mrf.mxu0
      %v4198 = vadd.f32 0.0, %v4197
      %v4199 = vpop.f32.mrf.mxu0
      %v4200 = vadd.f32 0.0, %v4199
      %v4201 = vpop.f32.mrf.mxu0
      %v4202 = vadd.f32 0.0, %v4201
      %v4203 = vpop.f32.mrf.mxu0
      %v4204 = vadd.f32 0.0, %v4203
      %4205 = vmatprep.mubr.bf16.mxu0 0
      %4206 = vmatmul.mubr.bf16.gmra.mxu0 %v3961
      %v4207 = vpop.f32.mrf.mxu0
      %v4208 = vadd.f32 0.0, %v4207
      %v4209 = vpop.f32.mrf.mxu0
      %v4210 = vadd.f32 0.0, %v4209
      %v4211 = vpop.f32.mrf.mxu0
      %v4212 = vadd.f32 0.0, %v4211
      %v4213 = vpop.f32.mrf.mxu0
      %v4214 = vadd.f32 0.0, %v4213
      %4215 = vmatprep.mubr.bf16.mxu0 0
      %4216 = vmatmul.mubr.bf16.gmra.mxu0 %v3964
      %v4217 = vpop.f32.mrf.mxu0
      %v4218 = vadd.f32 0.0, %v4217
      %v4219 = vpop.f32.mrf.mxu0
      %v4220 = vadd.f32 0.0, %v4219
      %v4221 = vpop.f32.mrf.mxu0
      %v4222 = vadd.f32 0.0, %v4221
      %v4223 = vpop.f32.mrf.mxu0
      %v4224 = vadd.f32 0.0, %v4223
      %4225 = vmatprep.mubr.bf16.mxu0 0
      %4226 = vmatmul.mubr.bf16.gmra.mxu0 %v3967
      %v4227 = vpop.f32.mrf.mxu0
      %v4228 = vadd.f32 0.0, %v4227
      %v4229 = vpop.f32.mrf.mxu0
      %v4230 = vadd.f32 0.0, %v4229
      %v4231 = vpop.f32.mrf.mxu0
      %v4232 = vadd.f32 0.0, %v4231
      %v4233 = vpop.f32.mrf.mxu0
      %v4234 = vadd.f32 0.0, %v4233
      %4235 = vmatprep.mubr.bf16.mxu0 0
      %4236 = vmatmul.mubr.bf16.gmra.mxu0 %v3970
      %v4237 = vpop.f32.mrf.mxu0
      %v4238 = vadd.f32 0.0, %v4237
      %v4239 = vpop.f32.mrf.mxu0
      %v4240 = vadd.f32 0.0, %v4239
      %v4241 = vpop.f32.mrf.mxu0
      %v4242 = vadd.f32 0.0, %v4241
      %v4243 = vpop.f32.mrf.mxu0
      %v4244 = vadd.f32 0.0, %v4243
      %4245 = vmatprep.mubr.bf16.mxu0 0
      %4246 = vmatmul.mubr.bf16.gmra.mxu0 %v3973
      %v4247 = vpop.f32.mrf.mxu0
      %v4248 = vadd.f32 0.0, %v4247
      %v4249 = vpop.f32.mrf.mxu0
      %v4250 = vadd.f32 0.0, %v4249
      %v4251 = vpop.f32.mrf.mxu0
      %v4252 = vadd.f32 0.0, %v4251
      %v4253 = vpop.f32.mrf.mxu0
      %v4254 = vadd.f32 0.0, %v4253
      %4255 = vmatprep.mubr.bf16.mxu0 0
      %4256 = vmatmul.mubr.bf16.gmra.mxu0 %v3976
      %v4257 = vpop.f32.mrf.mxu0
      %v4258 = vadd.f32 0.0, %v4257
      %v4259 = vpop.f32.mrf.mxu0
      %v4260 = vadd.f32 0.0, %v4259
      %v4261 = vpop.f32.mrf.mxu0
      %v4262 = vadd.f32 0.0, %v4261
      %v4263 = vpop.f32.mrf.mxu0
      %v4264 = vadd.f32 0.0, %v4263
      %4265 = vmatprep.mubr.bf16.mxu0 0
      %4266 = vmatmul.mubr.bf16.gmra.mxu0 %v3979
      %v4267 = vpop.f32.mrf.mxu0
      %v4268 = vadd.f32 0.0, %v4267
      %v4269 = vpop.f32.mrf.mxu0
      %v4270 = vadd.f32 0.0, %v4269
      %v4271 = vpop.f32.mrf.mxu0
      %v4272 = vadd.f32 0.0, %v4271
      %v4273 = vpop.f32.mrf.mxu0
      %v4274 = vadd.f32 0.0, %v4273
      %4275 = vmatprep.mubr.bf16.mxu0 0
      %4276 = vmatmul.mubr.bf16.gmra.mxu0 %v3982
      %v4277 = vpop.f32.mrf.mxu0
      %v4278 = vadd.f32 0.0, %v4277
      %v4279 = vpop.f32.mrf.mxu0
      %v4280 = vadd.f32 0.0, %v4279
      %v4281 = vpop.f32.mrf.mxu0
      %v4282 = vadd.f32 0.0, %v4281
      %v4283 = vpop.f32.mrf.mxu0
      %v4284 = vadd.f32 0.0, %v4283
      %4285 = vmatprep.mubr.bf16.mxu0 0
      %4286 = vmatmul.mubr.bf16.gmra.mxu0 %v3985
      %v4287 = vpop.f32.mrf.mxu0
      %v4288 = vadd.f32 0.0, %v4287
      %v4289 = vpop.f32.mrf.mxu0
      %v4290 = vadd.f32 0.0, %v4289
      %v4291 = vpop.f32.mrf.mxu0
      %v4292 = vadd.f32 0.0, %v4291
      %v4293 = vpop.f32.mrf.mxu0
      %v4294 = vadd.f32 0.0, %v4293
      %4295 = vmatprep.mubr.bf16.mxu0 0
      %4296 = vmatmul.mubr.bf16.gmra.mxu0 %v3988
      %v4297 = vpop.f32.mrf.mxu0
      %v4298 = vadd.f32 0.0, %v4297
      %v4299 = vpop.f32.mrf.mxu0
      %v4300 = vadd.f32 0.0, %v4299
      %v4301 = vpop.f32.mrf.mxu0
      %v4302 = vadd.f32 0.0, %v4301
      %v4303 = vpop.f32.mrf.mxu0
      %v4304 = vadd.f32 0.0, %v4303
      %4305 = vmatprep.mubr.bf16.mxu0 0
      %4306 = vmatmul.mubr.bf16.gmra.mxu0 %v3991
      %v4307 = vpop.f32.mrf.mxu0
      %v4308 = vadd.f32 0.0, %v4307
      %v4309 = vpop.f32.mrf.mxu0
      %v4310 = vadd.f32 0.0, %v4309
      %v4311 = vpop.f32.mrf.mxu0
      %v4312 = vadd.f32 0.0, %v4311
      %v4313 = vpop.f32.mrf.mxu0
      %v4314 = vadd.f32 0.0, %v4313
      %4315 = vmatprep.mubr.bf16.mxu0 0
      %4316 = vmatmul.mubr.bf16.gmra.mxu0 %v3994
      %v4317 = vpop.f32.mrf.mxu0
      %v4318 = vadd.f32 0.0, %v4317
      %v4319 = vpop.f32.mrf.mxu0
      %v4320 = vadd.f32 0.0, %v4319
      %v4321 = vpop.f32.mrf.mxu0
      %v4322 = vadd.f32 0.0, %v4321
      %v4323 = vpop.f32.mrf.mxu0
      %v4324 = vadd.f32 0.0, %v4323
      %4325 = vmatprep.mubr.bf16.mxu0 0
      %4326 = vmatmul.mubr.bf16.gmra.mxu0 %v3997
      %v4327 = vpop.f32.mrf.mxu0
      %v4328 = vadd.f32 0.0, %v4327
      %v4329 = vpop.f32.mrf.mxu0
      %v4330 = vadd.f32 0.0, %v4329
      %v4331 = vpop.f32.mrf.mxu0
      %v4332 = vadd.f32 0.0, %v4331
      %v4333 = vpop.f32.mrf.mxu0
      %v4334 = vadd.f32 0.0, %v4333
      %4335 = vmatprep.mubr.bf16.mxu0 0
      %4336 = vmatmul.mubr.bf16.gmra.mxu0 %v4000
      %v4337 = vpop.f32.mrf.mxu0
      %v4338 = vadd.f32 0.0, %v4337
      %v4339 = vpop.f32.mrf.mxu0
      %v4340 = vadd.f32 0.0, %v4339
      %v4341 = vpop.f32.mrf.mxu0
      %v4342 = vadd.f32 0.0, %v4341
      %v4343 = vpop.f32.mrf.mxu0
      %v4344 = vadd.f32 0.0, %v4343
      %4345 = vmatprep.mubr.bf16.mxu0 0
      %4346 = vmatmul.mubr.bf16.gmra.mxu0 %v4003
      %v4347 = vpop.f32.mrf.mxu0
      %v4348 = vadd.f32 0.0, %v4347
      %v4349 = vpop.f32.mrf.mxu0
      %v4350 = vadd.f32 0.0, %v4349
      %v4351 = vpop.f32.mrf.mxu0
      %v4352 = vadd.f32 0.0, %v4351
      %v4353 = vpop.f32.mrf.mxu0
      %v4354 = vadd.f32 0.0, %v4353
      %4355 = vmatprep.mubr.bf16.mxu0 0
      %4356 = vmatmul.mubr.bf16.gmra.mxu0 %v4006
      %v4357 = vpop.f32.mrf.mxu0
      %v4358 = vadd.f32 0.0, %v4357
      %v4359 = vpop.f32.mrf.mxu0
      %v4360 = vadd.f32 0.0, %v4359
      %v4361 = vpop.f32.mrf.mxu0
      %v4362 = vadd.f32 0.0, %v4361
      %v4363 = vpop.f32.mrf.mxu0
      %v4364 = vadd.f32 0.0, %v4363
      %4365 = vmatprep.mubr.bf16.mxu0 0
      %4366 = vmatmul.mubr.bf16.gmra.mxu0 %v4009
      %v4367 = vpop.f32.mrf.mxu0
      %v4368 = vadd.f32 0.0, %v4367
      %v4369 = vpop.f32.mrf.mxu0
      %v4370 = vadd.f32 0.0, %v4369
      %v4371 = vpop.f32.mrf.mxu0
      %v4372 = vadd.f32 0.0, %v4371
      %v4373 = vpop.f32.mrf.mxu0
      %v4374 = vadd.f32 0.0, %v4373
      %4375 = vmatprep.mubr.bf16.mxu0 0
      %4376 = vmatmul.mubr.bf16.gmra.mxu0 %v4012
      %v4377 = vpop.f32.mrf.mxu0
      %v4378 = vadd.f32 0.0, %v4377
      %v4379 = vpop.f32.mrf.mxu0
      %v4380 = vadd.f32 0.0, %v4379
      %v4381 = vpop.f32.mrf.mxu0
      %v4382 = vadd.f32 0.0, %v4381
      %v4383 = vpop.f32.mrf.mxu0
      %v4384 = vadd.f32 0.0, %v4383
      %4385 = vmatprep.mubr.bf16.mxu0 0
      %4386 = vmatmul.mubr.bf16.gmra.mxu0 %v4015
      %v4387 = vpop.f32.mrf.mxu0
      %v4388 = vadd.f32 0.0, %v4387
      %v4389 = vpop.f32.mrf.mxu0
      %v4390 = vadd.f32 0.0, %v4389
      %v4391 = vpop.f32.mrf.mxu0
      %v4392 = vadd.f32 0.0, %v4391
      %v4393 = vpop.f32.mrf.mxu0
      %v4394 = vadd.f32 0.0, %v4393
      %4395 = vmatprep.mubr.bf16.mxu0 0
      %4396 = vmatmul.mubr.bf16.gmra.mxu0 %v4018
      %v4397 = vpop.f32.mrf.mxu0
      %v4398 = vadd.f32 0.0, %v4397
      %v4399 = vpop.f32.mrf.mxu0
      %v4400 = vadd.f32 0.0, %v4399
      %v4401 = vpop.f32.mrf.mxu0
      %v4402 = vadd.f32 0.0, %v4401
      %v4403 = vpop.f32.mrf.mxu0
      %v4404 = vadd.f32 0.0, %v4403
      %4405 = vmatprep.mubr.bf16.mxu0 0
      %4406 = vmatmul.mubr.bf16.gmra.mxu0 %v4021
      %v4407 = vpop.f32.mrf.mxu0
      %v4408 = vadd.f32 0.0, %v4407
      %v4409 = vpop.f32.mrf.mxu0
      %v4410 = vadd.f32 0.0, %v4409
      %v4411 = vpop.f32.mrf.mxu0
      %v4412 = vadd.f32 0.0, %v4411
      %v4413 = vpop.f32.mrf.mxu0
      %v4414 = vadd.f32 0.0, %v4413
      %4415 = vmatprep.mubr.bf16.mxu0 0
      %4416 = vmatmul.mubr.bf16.gmra.mxu0 %v4024
      %v4417 = vpop.f32.mrf.mxu0
      %v4418 = vadd.f32 0.0, %v4417
      %v4419 = vpop.f32.mrf.mxu0
      %v4420 = vadd.f32 0.0, %v4419
      %v4421 = vpop.f32.mrf.mxu0
      %v4422 = vadd.f32 0.0, %v4421
      %v4423 = vpop.f32.mrf.mxu0
      %v4424 = vadd.f32 0.0, %v4423
      %4425 = vmatprep.mubr.bf16.mxu0 0
      %4426 = vmatmul.mubr.bf16.gmra.mxu0 %v4027
      %v4427 = vpop.f32.mrf.mxu0
      %v4428 = vadd.f32 0.0, %v4427
      %v4429 = vpop.f32.mrf.mxu0
      %v4430 = vadd.f32 0.0, %v4429
      %v4431 = vpop.f32.mrf.mxu0
      %v4432 = vadd.f32 0.0, %v4431
      %v4433 = vpop.f32.mrf.mxu0
      %v4434 = vadd.f32 0.0, %v4433
      %4435 = vmatprep.mubr.bf16.mxu0 0
      %4436 = vmatmul.mubr.bf16.gmra.mxu0 %v4030
      %v4437 = vpop.f32.mrf.mxu0
      %v4438 = vadd.f32 0.0, %v4437
      %v4439 = vpop.f32.mrf.mxu0
      %v4440 = vadd.f32 0.0, %v4439
      %v4441 = vpop.f32.mrf.mxu0
      %v4442 = vadd.f32 0.0, %v4441
      %v4443 = vpop.f32.mrf.mxu0
      %v4444 = vadd.f32 0.0, %v4443
      %4445 = vmatprep.mubr.bf16.mxu0 0
      %4446 = vmatmul.mubr.bf16.gmra.mxu0 %v4033
      %v4447 = vpop.f32.mrf.mxu0
      %v4448 = vadd.f32 0.0, %v4447
      %v4449 = vpop.f32.mrf.mxu0
      %v4450 = vadd.f32 0.0, %v4449
      %v4451 = vpop.f32.mrf.mxu0
      %v4452 = vadd.f32 0.0, %v4451
      %v4453 = vpop.f32.mrf.mxu0
      %v4454 = vadd.f32 0.0, %v4453
      %4455 = vmatprep.mubr.bf16.mxu0 0
      %4456 = vmatmul.mubr.bf16.gmra.mxu0 %v4036
      %v4457 = vpop.f32.mrf.mxu0
      %v4458 = vadd.f32 0.0, %v4457
      %v4459 = vpop.f32.mrf.mxu0
      %v4460 = vadd.f32 0.0, %v4459
      %v4461 = vpop.f32.mrf.mxu0
      %v4462 = vadd.f32 0.0, %v4461
      %v4463 = vpop.f32.mrf.mxu0
      %v4464 = vadd.f32 0.0, %v4463
      %4465 = vmatprep.mubr.bf16.mxu0 0
      %4466 = vmatmul.mubr.bf16.gmra.mxu0 %v4039
      %v4467 = vpop.f32.mrf.mxu0
      %v4468 = vadd.f32 0.0, %v4467
      %v4469 = vpop.f32.mrf.mxu0
      %v4470 = vadd.f32 0.0, %v4469
      %v4471 = vpop.f32.mrf.mxu0
      %v4472 = vadd.f32 0.0, %v4471
      %v4473 = vpop.f32.mrf.mxu0
      %v4474 = vadd.f32 0.0, %v4473
      %4475 = vmatprep.mubr.bf16.mxu0 0
      %4476 = vmatmul.mubr.bf16.gmra.mxu0 %v4042
      %v4477 = vpop.f32.mrf.mxu0
      %v4478 = vadd.f32 0.0, %v4477
      %v4479 = vpop.f32.mrf.mxu0
      %v4480 = vadd.f32 0.0, %v4479
      %v4481 = vpop.f32.mrf.mxu0
      %v4482 = vadd.f32 0.0, %v4481
      %v4483 = vpop.f32.mrf.mxu0
      %v4484 = vadd.f32 0.0, %v4483
      %4485 = vmatprep.mubr.bf16.mxu0 0
      %4486 = vmatmul.mubr.bf16.gmra.mxu0 %v4045
      %v4487 = vpop.f32.mrf.mxu0
      %v4488 = vadd.f32 0.0, %v4487
      %v4489 = vpop.f32.mrf.mxu0
      %v4490 = vadd.f32 0.0, %v4489
      %v4491 = vpop.f32.mrf.mxu0
      %v4492 = vadd.f32 0.0, %v4491
      %v4493 = vpop.f32.mrf.mxu0
      %v4494 = vadd.f32 0.0, %v4493
      %4495 = vmatprep.mubr.bf16.mxu0 0
      %4496 = vmatmul.mubr.bf16.gmra.mxu0 %v4048
      %v4497 = vpop.f32.mrf.mxu0
      %v4498 = vadd.f32 0.0, %v4497
      %v4499 = vpop.f32.mrf.mxu0
      %v4500 = vadd.f32 0.0, %v4499
      %v4501 = vpop.f32.mrf.mxu0
      %v4502 = vadd.f32 0.0, %v4501
      %v4503 = vpop.f32.mrf.mxu0
      %v4504 = vadd.f32 0.0, %v4503
      %4505 = vmatprep.mubr.bf16.mxu0 0
      %4506 = vmatmul.mubr.bf16.gmra.mxu0 %v4051
      %v4507 = vpop.f32.mrf.mxu0
      %v4508 = vadd.f32 0.0, %v4507
      %v4509 = vpop.f32.mrf.mxu0
      %v4510 = vadd.f32 0.0, %v4509
      %v4511 = vpop.f32.mrf.mxu0
      %v4512 = vadd.f32 0.0, %v4511
      %v4513 = vpop.f32.mrf.mxu0
      %v4514 = vadd.f32 0.0, %v4513
      %4515 = vmatprep.mubr.bf16.mxu0 0
      %4516 = vmatmul.mubr.bf16.gmra.mxu0 %v4054
      %v4517 = vpop.f32.mrf.mxu0
      %v4518 = vadd.f32 0.0, %v4517
      %v4519 = vpop.f32.mrf.mxu0
      %v4520 = vadd.f32 0.0, %v4519
      %v4521 = vpop.f32.mrf.mxu0
      %v4522 = vadd.f32 0.0, %v4521
      %v4523 = vpop.f32.mrf.mxu0
      %v4524 = vadd.f32 0.0, %v4523
      %4525 = vmatprep.mubr.bf16.mxu0 0
      %4526 = vmatmul.mubr.bf16.gmra.mxu0 %v4057
      %v4527 = vpop.f32.mrf.mxu0
      %v4528 = vadd.f32 0.0, %v4527
      %v4529 = vpop.f32.mrf.mxu0
      %v4530 = vadd.f32 0.0, %v4529
      %v4531 = vpop.f32.mrf.mxu0
      %v4532 = vadd.f32 0.0, %v4531
      %v4533 = vpop.f32.mrf.mxu0
      %v4534 = vadd.f32 0.0, %v4533
      %4535 = vmatprep.mubr.bf16.mxu0 0
      %4536 = vmatmul.mubr.bf16.gmra.mxu0 %v4060
      %v4537 = vpop.f32.mrf.mxu0
      %v4538 = vadd.f32 0.0, %v4537
      %v4539 = vpop.f32.mrf.mxu0
      %v4540 = vadd.f32 0.0, %v4539
      %v4541 = vpop.f32.mrf.mxu0
      %v4542 = vadd.f32 0.0, %v4541
      %v4543 = vpop.f32.mrf.mxu0
      %v4544 = vadd.f32 0.0, %v4543
      %4545 = vmatprep.mubr.bf16.mxu0 0
      %4546 = vmatmul.mubr.bf16.gmra.mxu0 %v4063
      %v4547 = vpop.f32.mrf.mxu0
      %v4548 = vadd.f32 0.0, %v4547
      %v4549 = vpop.f32.mrf.mxu0
      %v4550 = vadd.f32 0.0, %v4549
      %v4551 = vpop.f32.mrf.mxu0
      %v4552 = vadd.f32 0.0, %v4551
      %v4553 = vpop.f32.mrf.mxu0
      %v4554 = vadd.f32 0.0, %v4553
      %4555 = vmatprep.mubr.bf16.mxu0 0
      %4556 = vmatmul.mubr.bf16.gmra.mxu0 %v4066
      %v4557 = vpop.f32.mrf.mxu0
      %v4558 = vadd.f32 0.0, %v4557
      %v4559 = vpop.f32.mrf.mxu0
      %v4560 = vadd.f32 0.0, %v4559
      %v4561 = vpop.f32.mrf.mxu0
      %v4562 = vadd.f32 0.0, %v4561
      %v4563 = vpop.f32.mrf.mxu0
      %v4564 = vadd.f32 0.0, %v4563
      %4565 = vmatprep.mubr.bf16.mxu0 0
      %4566 = vmatmul.mubr.bf16.gmra.mxu0 %v4069
      %v4567 = vpop.f32.mrf.mxu0
      %v4568 = vadd.f32 0.0, %v4567
      %v4569 = vpop.f32.mrf.mxu0
      %v4570 = vadd.f32 0.0, %v4569
      %v4571 = vpop.f32.mrf.mxu0
      %v4572 = vadd.f32 0.0, %v4571
      %v4573 = vpop.f32.mrf.mxu0
      %v4574 = vadd.f32 0.0, %v4573
      %4575 = vmatprep.mubr.bf16.mxu0 0
      %4576 = vmatmul.mubr.bf16.gmra.mxu0 %v4072
      %v4577 = vpop.f32.mrf.mxu0
      %v4578 = vadd.f32 0.0, %v4577
      %v4579 = vpop.f32.mrf.mxu0
      %v4580 = vadd.f32 0.0, %v4579
      %v4581 = vpop.f32.mrf.mxu0
      %v4582 = vadd.f32 0.0, %v4581
      %v4583 = vpop.f32.mrf.mxu0
      %v4584 = vadd.f32 0.0, %v4583
      %4585 = vmatprep.mubr.bf16.mxu0 0
      %4586 = vmatmul.mubr.bf16.gmra.mxu0 %v4075
      %v4587 = vpop.f32.mrf.mxu0
      %v4588 = vadd.f32 0.0, %v4587
      %v4589 = vpop.f32.mrf.mxu0
      %v4590 = vadd.f32 0.0, %v4589
      %v4591 = vpop.f32.mrf.mxu0
      %v4592 = vadd.f32 0.0, %v4591
      %v4593 = vpop.f32.mrf.mxu0
      %v4594 = vadd.f32 0.0, %v4593
      %4595 = vdwg.mxu0
      %v4596 = vadd.f32 %v3574, %v4118
      %v4597 = vadd.f32 %v3575, %v4120
      %v4598 = vadd.f32 %v3576, %v4122
      %v4599 = vadd.f32 %v3577, %v4124
      %v4600 = vadd.f32 %v3578, %v4128
      %v4601 = vadd.f32 %v3579, %v4130
      %v4602 = vadd.f32 %v3580, %v4132
      %v4603 = vadd.f32 %v3581, %v4134
      %v4604 = vadd.f32 %v3582, %v4138
      %v4605 = vadd.f32 %v3583, %v4140
      %v4606 = vadd.f32 %v3584, %v4142
      %v4607 = vadd.f32 %v3585, %v4144
      %v4608 = vadd.f32 %v3586, %v4148
      %v4609 = vadd.f32 %v3587, %v4150
      %v4610 = vadd.f32 %v3588, %v4152
      %v4611 = vadd.f32 %v3589, %v4154
      %v4612 = vadd.f32 %v3590, %v4158
      %v4613 = vadd.f32 %v3591, %v4160
      %v4614 = vadd.f32 %v3592, %v4162
      %v4615 = vadd.f32 %v3593, %v4164
      %v4616 = vadd.f32 %v3594, %v4168
      %v4617 = vadd.f32 %v3595, %v4170
      %v4618 = vadd.f32 %v3596, %v4172
      %v4619 = vadd.f32 %v3597, %v4174
      %v4620 = vadd.f32 %v3598, %v4178
      %v4621 = vadd.f32 %v3599, %v4180
      %v4622 = vadd.f32 %v3600, %v4182
      %v4623 = vadd.f32 %v3601, %v4184
      %v4624 = vadd.f32 %v3602, %v4188
      %v4625 = vadd.f32 %v3603, %v4190
      %v4626 = vadd.f32 %v3604, %v4192
      %v4627 = vadd.f32 %v3605, %v4194
      %v4628 = vadd.f32 %v3606, %v4198
      %v4629 = vadd.f32 %v3607, %v4200
      %v4630 = vadd.f32 %v3608, %v4202
      %v4631 = vadd.f32 %v3609, %v4204
      %v4632 = vadd.f32 %v3610, %v4208
      %v4633 = vadd.f32 %v3611, %v4210
      %v4634 = vadd.f32 %v3612, %v4212
      %v4635 = vadd.f32 %v3613, %v4214
      %v4636 = vadd.f32 %v3614, %v4218
      %v4637 = vadd.f32 %v3615, %v4220
      %v4638 = vadd.f32 %v3616, %v4222
      %v4639 = vadd.f32 %v3617, %v4224
      %v4640 = vadd.f32 %v3618, %v4228
      %v4641 = vadd.f32 %v3619, %v4230
      %v4642 = vadd.f32 %v3620, %v4232
      %v4643 = vadd.f32 %v3621, %v4234
      %v4644 = vadd.f32 %v3622, %v4238
      %v4645 = vadd.f32 %v3623, %v4240
      %v4646 = vadd.f32 %v3624, %v4242
      %v4647 = vadd.f32 %v3625, %v4244
      %v4648 = vadd.f32 %v3626, %v4248
      %v4649 = vadd.f32 %v3627, %v4250
      %v4650 = vadd.f32 %v3628, %v4252
      %v4651 = vadd.f32 %v3629, %v4254
      %v4652 = vadd.f32 %v3630, %v4258
      %v4653 = vadd.f32 %v3631, %v4260
      %v4654 = vadd.f32 %v3632, %v4262
      %v4655 = vadd.f32 %v3633, %v4264
      %v4656 = vadd.f32 %v3634, %v4268
      %v4657 = vadd.f32 %v3635, %v4270
      %v4658 = vadd.f32 %v3636, %v4272
      %v4659 = vadd.f32 %v3637, %v4274
      %v4660 = vadd.f32 %v3638, %v4278
      %v4661 = vadd.f32 %v3639, %v4280
      %v4662 = vadd.f32 %v3640, %v4282
      %v4663 = vadd.f32 %v3641, %v4284
      %v4664 = vadd.f32 %v3642, %v4288
      %v4665 = vadd.f32 %v3643, %v4290
      %v4666 = vadd.f32 %v3644, %v4292
      %v4667 = vadd.f32 %v3645, %v4294
      %v4668 = vadd.f32 %v3646, %v4298
      %v4669 = vadd.f32 %v3647, %v4300
      %v4670 = vadd.f32 %v3648, %v4302
      %v4671 = vadd.f32 %v3649, %v4304
      %v4672 = vadd.f32 %v3650, %v4308
      %v4673 = vadd.f32 %v3651, %v4310
      %v4674 = vadd.f32 %v3652, %v4312
      %v4675 = vadd.f32 %v3653, %v4314
      %v4676 = vadd.f32 %v3654, %v4318
      %v4677 = vadd.f32 %v3655, %v4320
      %v4678 = vadd.f32 %v3656, %v4322
      %v4679 = vadd.f32 %v3657, %v4324
      %v4680 = vadd.f32 %v3658, %v4328
      %v4681 = vadd.f32 %v3659, %v4330
      %v4682 = vadd.f32 %v3660, %v4332
      %v4683 = vadd.f32 %v3661, %v4334
      %v4684 = vadd.f32 %v3662, %v4338
      %v4685 = vadd.f32 %v3663, %v4340
      %v4686 = vadd.f32 %v3664, %v4342
      %v4687 = vadd.f32 %v3665, %v4344
      %v4688 = vadd.f32 %v3666, %v4348
      %v4689 = vadd.f32 %v3667, %v4350
      %v4690 = vadd.f32 %v3668, %v4352
      %v4691 = vadd.f32 %v3669, %v4354
      %v4692 = vadd.f32 %v3670, %v4358
      %v4693 = vadd.f32 %v3671, %v4360
      %v4694 = vadd.f32 %v3672, %v4362
      %v4695 = vadd.f32 %v3673, %v4364
      %v4696 = vadd.f32 %v3674, %v4368
      %v4697 = vadd.f32 %v3675, %v4370
      %v4698 = vadd.f32 %v3676, %v4372
      %v4699 = vadd.f32 %v3677, %v4374
      %v4700 = vadd.f32 %v3678, %v4378
      %v4701 = vadd.f32 %v3679, %v4380
      %v4702 = vadd.f32 %v3680, %v4382
      %v4703 = vadd.f32 %v3681, %v4384
      %v4704 = vadd.f32 %v3682, %v4388
      %v4705 = vadd.f32 %v3683, %v4390
      %v4706 = vadd.f32 %v3684, %v4392
      %v4707 = vadd.f32 %v3685, %v4394
      %v4708 = vadd.f32 %v3686, %v4398
      %v4709 = vadd.f32 %v3687, %v4400
      %v4710 = vadd.f32 %v3688, %v4402
      %v4711 = vadd.f32 %v3689, %v4404
      %v4712 = vadd.f32 %v3690, %v4408
      %v4713 = vadd.f32 %v3691, %v4410
      %v4714 = vadd.f32 %v3692, %v4412
      %v4715 = vadd.f32 %v3693, %v4414
      %v4716 = vadd.f32 %v3694, %v4418
      %v4717 = vadd.f32 %v3695, %v4420
      %v4718 = vadd.f32 %v3696, %v4422
      %v4719 = vadd.f32 %v3697, %v4424
      %v4720 = vadd.f32 %v3698, %v4428
      %v4721 = vadd.f32 %v3699, %v4430
      %v4722 = vadd.f32 %v3700, %v4432
      %v4723 = vadd.f32 %v3701, %v4434
      %v4724 = vadd.f32 %v3702, %v4438
      %v4725 = vadd.f32 %v3703, %v4440
      %v4726 = vadd.f32 %v3704, %v4442
      %v4727 = vadd.f32 %v3705, %v4444
      %v4728 = vadd.f32 %v3706, %v4448
      %v4729 = vadd.f32 %v3707, %v4450
      %v4730 = vadd.f32 %v3708, %v4452
      %v4731 = vadd.f32 %v3709, %v4454
      %v4732 = vadd.f32 %v3710, %v4458
      %v4733 = vadd.f32 %v3711, %v4460
      %v4734 = vadd.f32 %v3712, %v4462
      %v4735 = vadd.f32 %v3713, %v4464
      %v4736 = vadd.f32 %v3714, %v4468
      %v4737 = vadd.f32 %v3715, %v4470
      %v4738 = vadd.f32 %v3716, %v4472
      %v4739 = vadd.f32 %v3717, %v4474
      %v4740 = vadd.f32 %v3718, %v4478
      %v4741 = vadd.f32 %v3719, %v4480
      %v4742 = vadd.f32 %v3720, %v4482
      %v4743 = vadd.f32 %v3721, %v4484
      %v4744 = vadd.f32 %v3722, %v4488
      %v4745 = vadd.f32 %v3723, %v4490
      %v4746 = vadd.f32 %v3724, %v4492
      %v4747 = vadd.f32 %v3725, %v4494
      %v4748 = vadd.f32 %v3726, %v4498
      %v4749 = vadd.f32 %v3727, %v4500
      %v4750 = vadd.f32 %v3728, %v4502
      %v4751 = vadd.f32 %v3729, %v4504
      %v4752 = vadd.f32 %v3730, %v4508
      %v4753 = vadd.f32 %v3731, %v4510
      %v4754 = vadd.f32 %v3732, %v4512
      %v4755 = vadd.f32 %v3733, %v4514
      %v4756 = vadd.f32 %v3734, %v4518
      %v4757 = vadd.f32 %v3735, %v4520
      %v4758 = vadd.f32 %v3736, %v4522
      %v4759 = vadd.f32 %v3737, %v4524
      %v4760 = vadd.f32 %v3738, %v4528
      %v4761 = vadd.f32 %v3739, %v4530
      %v4762 = vadd.f32 %v3740, %v4532
      %v4763 = vadd.f32 %v3741, %v4534
      %v4764 = vadd.f32 %v3742, %v4538
      %v4765 = vadd.f32 %v3743, %v4540
      %v4766 = vadd.f32 %v3744, %v4542
      %v4767 = vadd.f32 %v3745, %v4544
      %v4768 = vadd.f32 %v3746, %v4548
      %v4769 = vadd.f32 %v3747, %v4550
      %v4770 = vadd.f32 %v3748, %v4552
      %v4771 = vadd.f32 %v3749, %v4554
      %v4772 = vadd.f32 %v3750, %v4558
      %v4773 = vadd.f32 %v3751, %v4560
      %v4774 = vadd.f32 %v3752, %v4562
      %v4775 = vadd.f32 %v3753, %v4564
      %v4776 = vadd.f32 %v3754, %v4568
      %v4777 = vadd.f32 %v3755, %v4570
      %v4778 = vadd.f32 %v3756, %v4572
      %v4779 = vadd.f32 %v3757, %v4574
      %v4780 = vadd.f32 %v3758, %v4578
      %v4781 = vadd.f32 %v3759, %v4580
      %v4782 = vadd.f32 %v3760, %v4582
      %v4783 = vadd.f32 %v3761, %v4584
      %v4784 = vadd.f32 %v3762, %v4588
      %v4785 = vadd.f32 %v3763, %v4590
      %v4786 = vadd.f32 %v3764, %v4592
      %v4787 = vadd.f32 %v3765, %v4594
      %v4788 = vld [vmem:[%s2] sm:$0x3]
      %v4790 = vlaneseq
      %v4791 = vshrl.u32 %v4790, 7
      %v4792 = vsub.s32 0, %v4791
      %v4793 = vrot.slane %v4788, %v4792
      %v4794 = vlaneseq
      %v4795 = vshrl.u32 %v4794, 7
      %v4796 = vsub.s32 1, %v4795
      %v4797 = vrot.slane %v4788, %v4796
      %v4800 = vadd.f32 %v4596, %v4793
      %v4801 = vadd.f32 %v4597, %v4797
      %v4802 = vadd.f32 %v4598, %v4793
      %v4803 = vadd.f32 %v4599, %v4797
      %v4804 = vadd.f32 %v4600, %v4793
      %v4805 = vadd.f32 %v4601, %v4797
      %v4806 = vadd.f32 %v4602, %v4793
      %v4807 = vadd.f32 %v4603, %v4797
      %v4808 = vadd.f32 %v4604, %v4793
      %v4809 = vadd.f32 %v4605, %v4797
      %v4810 = vadd.f32 %v4606, %v4793
      %v4811 = vadd.f32 %v4607, %v4797
      %v4812 = vadd.f32 %v4608, %v4793
      %v4813 = vadd.f32 %v4609, %v4797
      %v4814 = vadd.f32 %v4610, %v4793
      %v4815 = vadd.f32 %v4611, %v4797
      %v4816 = vadd.f32 %v4612, %v4793
      %v4817 = vadd.f32 %v4613, %v4797
      %v4818 = vadd.f32 %v4614, %v4793
      %v4819 = vadd.f32 %v4615, %v4797
      %v4820 = vadd.f32 %v4616, %v4793
      %v4821 = vadd.f32 %v4617, %v4797
      %v4822 = vadd.f32 %v4618, %v4793
      %v4823 = vadd.f32 %v4619, %v4797
      %v4824 = vadd.f32 %v4620, %v4793
      %v4825 = vadd.f32 %v4621, %v4797
      %v4826 = vadd.f32 %v4622, %v4793
      %v4827 = vadd.f32 %v4623, %v4797
      %v4828 = vadd.f32 %v4624, %v4793
      %v4829 = vadd.f32 %v4625, %v4797
      %v4830 = vadd.f32 %v4626, %v4793
      %v4831 = vadd.f32 %v4627, %v4797
      %v4832 = vadd.f32 %v4628, %v4793
      %v4833 = vadd.f32 %v4629, %v4797
      %v4834 = vadd.f32 %v4630, %v4793
      %v4835 = vadd.f32 %v4631, %v4797
      %v4836 = vadd.f32 %v4632, %v4793
      %v4837 = vadd.f32 %v4633, %v4797
      %v4838 = vadd.f32 %v4634, %v4793
      %v4839 = vadd.f32 %v4635, %v4797
      %v4840 = vadd.f32 %v4636, %v4793
      %v4841 = vadd.f32 %v4637, %v4797
      %v4842 = vadd.f32 %v4638, %v4793
      %v4843 = vadd.f32 %v4639, %v4797
      %v4844 = vadd.f32 %v4640, %v4793
      %v4845 = vadd.f32 %v4641, %v4797
      %v4846 = vadd.f32 %v4642, %v4793
      %v4847 = vadd.f32 %v4643, %v4797
      %v4848 = vadd.f32 %v4644, %v4793
      %v4849 = vadd.f32 %v4645, %v4797
      %v4850 = vadd.f32 %v4646, %v4793
      %v4851 = vadd.f32 %v4647, %v4797
      %v4852 = vadd.f32 %v4648, %v4793
      %v4853 = vadd.f32 %v4649, %v4797
      %v4854 = vadd.f32 %v4650, %v4793
      %v4855 = vadd.f32 %v4651, %v4797
      %v4856 = vadd.f32 %v4652, %v4793
      %v4857 = vadd.f32 %v4653, %v4797
      %v4858 = vadd.f32 %v4654, %v4793
      %v4859 = vadd.f32 %v4655, %v4797
      %v4860 = vadd.f32 %v4656, %v4793
      %v4861 = vadd.f32 %v4657, %v4797
      %v4862 = vadd.f32 %v4658, %v4793
      %v4863 = vadd.f32 %v4659, %v4797
      %v4864 = vadd.f32 %v4660, %v4793
      %v4865 = vadd.f32 %v4661, %v4797
      %v4866 = vadd.f32 %v4662, %v4793
      %v4867 = vadd.f32 %v4663, %v4797
      %v4868 = vadd.f32 %v4664, %v4793
      %v4869 = vadd.f32 %v4665, %v4797
      %v4870 = vadd.f32 %v4666, %v4793
      %v4871 = vadd.f32 %v4667, %v4797
      %v4872 = vadd.f32 %v4668, %v4793
      %v4873 = vadd.f32 %v4669, %v4797
      %v4874 = vadd.f32 %v4670, %v4793
      %v4875 = vadd.f32 %v4671, %v4797
      %v4876 = vadd.f32 %v4672, %v4793
      %v4877 = vadd.f32 %v4673, %v4797
      %v4878 = vadd.f32 %v4674, %v4793
      %v4879 = vadd.f32 %v4675, %v4797
      %v4880 = vadd.f32 %v4676, %v4793
      %v4881 = vadd.f32 %v4677, %v4797
      %v4882 = vadd.f32 %v4678, %v4793
      %v4883 = vadd.f32 %v4679, %v4797
      %v4884 = vadd.f32 %v4680, %v4793
      %v4885 = vadd.f32 %v4681, %v4797
      %v4886 = vadd.f32 %v4682, %v4793
      %v4887 = vadd.f32 %v4683, %v4797
      %v4888 = vadd.f32 %v4684, %v4793
      %v4889 = vadd.f32 %v4685, %v4797
      %v4890 = vadd.f32 %v4686, %v4793
      %v4891 = vadd.f32 %v4687, %v4797
      %v4892 = vadd.f32 %v4688, %v4793
      %v4893 = vadd.f32 %v4689, %v4797
      %v4894 = vadd.f32 %v4690, %v4793
      %v4895 = vadd.f32 %v4691, %v4797
      %v4896 = vadd.f32 %v4692, %v4793
      %v4897 = vadd.f32 %v4693, %v4797
      %v4898 = vadd.f32 %v4694, %v4793
      %v4899 = vadd.f32 %v4695, %v4797
      %v4900 = vadd.f32 %v4696, %v4793
      %v4901 = vadd.f32 %v4697, %v4797
      %v4902 = vadd.f32 %v4698, %v4793
      %v4903 = vadd.f32 %v4699, %v4797
      %v4904 = vadd.f32 %v4700, %v4793
      %v4905 = vadd.f32 %v4701, %v4797
      %v4906 = vadd.f32 %v4702, %v4793
      %v4907 = vadd.f32 %v4703, %v4797
      %v4908 = vadd.f32 %v4704, %v4793
      %v4909 = vadd.f32 %v4705, %v4797
      %v4910 = vadd.f32 %v4706, %v4793
      %v4911 = vadd.f32 %v4707, %v4797
      %v4912 = vadd.f32 %v4708, %v4793
      %v4913 = vadd.f32 %v4709, %v4797
      %v4914 = vadd.f32 %v4710, %v4793
      %v4915 = vadd.f32 %v4711, %v4797
      %v4916 = vadd.f32 %v4712, %v4793
      %v4917 = vadd.f32 %v4713, %v4797
      %v4918 = vadd.f32 %v4714, %v4793
      %v4919 = vadd.f32 %v4715, %v4797
      %v4920 = vadd.f32 %v4716, %v4793
      %v4921 = vadd.f32 %v4717, %v4797
      %v4922 = vadd.f32 %v4718, %v4793
      %v4923 = vadd.f32 %v4719, %v4797
      %v4924 = vadd.f32 %v4720, %v4793
      %v4925 = vadd.f32 %v4721, %v4797
      %v4926 = vadd.f32 %v4722, %v4793
      %v4927 = vadd.f32 %v4723, %v4797
      %v4928 = vadd.f32 %v4724, %v4793
      %v4929 = vadd.f32 %v4725, %v4797
      %v4930 = vadd.f32 %v4726, %v4793
      %v4931 = vadd.f32 %v4727, %v4797
      %v4932 = vadd.f32 %v4728, %v4793
      %v4933 = vadd.f32 %v4729, %v4797
      %v4934 = vadd.f32 %v4730, %v4793
      %v4935 = vadd.f32 %v4731, %v4797
      %v4936 = vadd.f32 %v4732, %v4793
      %v4937 = vadd.f32 %v4733, %v4797
      %v4938 = vadd.f32 %v4734, %v4793
      %v4939 = vadd.f32 %v4735, %v4797
      %v4940 = vadd.f32 %v4736, %v4793
      %v4941 = vadd.f32 %v4737, %v4797
      %v4942 = vadd.f32 %v4738, %v4793
      %v4943 = vadd.f32 %v4739, %v4797
      %v4944 = vadd.f32 %v4740, %v4793
      %v4945 = vadd.f32 %v4741, %v4797
      %v4946 = vadd.f32 %v4742, %v4793
      %v4947 = vadd.f32 %v4743, %v4797
      %v4948 = vadd.f32 %v4744, %v4793
      %v4949 = vadd.f32 %v4745, %v4797
      %v4950 = vadd.f32 %v4746, %v4793
      %v4951 = vadd.f32 %v4747, %v4797
      %v4952 = vadd.f32 %v4748, %v4793
      %v4953 = vadd.f32 %v4749, %v4797
      %v4954 = vadd.f32 %v4750, %v4793
      %v4955 = vadd.f32 %v4751, %v4797
      %v4956 = vadd.f32 %v4752, %v4793
      %v4957 = vadd.f32 %v4753, %v4797
      %v4958 = vadd.f32 %v4754, %v4793
      %v4959 = vadd.f32 %v4755, %v4797
      %v4960 = vadd.f32 %v4756, %v4793
      %v4961 = vadd.f32 %v4757, %v4797
      %v4962 = vadd.f32 %v4758, %v4793
      %v4963 = vadd.f32 %v4759, %v4797
      %v4964 = vadd.f32 %v4760, %v4793
      %v4965 = vadd.f32 %v4761, %v4797
      %v4966 = vadd.f32 %v4762, %v4793
      %v4967 = vadd.f32 %v4763, %v4797
      %v4968 = vadd.f32 %v4764, %v4793
      %v4969 = vadd.f32 %v4765, %v4797
      %v4970 = vadd.f32 %v4766, %v4793
      %v4971 = vadd.f32 %v4767, %v4797
      %v4972 = vadd.f32 %v4768, %v4793
      %v4973 = vadd.f32 %v4769, %v4797
      %v4974 = vadd.f32 %v4770, %v4793
      %v4975 = vadd.f32 %v4771, %v4797
      %v4976 = vadd.f32 %v4772, %v4793
      %v4977 = vadd.f32 %v4773, %v4797
      %v4978 = vadd.f32 %v4774, %v4793
      %v4979 = vadd.f32 %v4775, %v4797
      %v4980 = vadd.f32 %v4776, %v4793
      %v4981 = vadd.f32 %v4777, %v4797
      %v4982 = vadd.f32 %v4778, %v4793
      %v4983 = vadd.f32 %v4779, %v4797
      %v4984 = vadd.f32 %v4780, %v4793
      %v4985 = vadd.f32 %v4781, %v4797
      %v4986 = vadd.f32 %v4782, %v4793
      %v4987 = vadd.f32 %v4783, %v4797
      %v4988 = vadd.f32 %v4784, %v4793
      %v4989 = vadd.f32 %v4785, %v4797
      %v4990 = vadd.f32 %v4786, %v4793
      %v4991 = vadd.f32 %v4787, %v4797
      %v4992 = vmax.f32 %v4800, 0.0
      %v4993 = vmax.f32 %v4801, 0.0
      %v4994 = vmax.f32 %v4802, 0.0
      %v4995 = vmax.f32 %v4803, 0.0
      %v4996 = vmax.f32 %v4804, 0.0
      %v4997 = vmax.f32 %v4805, 0.0
      %v4998 = vmax.f32 %v4806, 0.0
      %v4999 = vmax.f32 %v4807, 0.0
      %v5000 = vmax.f32 %v4808, 0.0
      %v5001 = vmax.f32 %v4809, 0.0
      %v5002 = vmax.f32 %v4810, 0.0
      %v5003 = vmax.f32 %v4811, 0.0
      %v5004 = vmax.f32 %v4812, 0.0
      %v5005 = vmax.f32 %v4813, 0.0
      %v5006 = vmax.f32 %v4814, 0.0
      %v5007 = vmax.f32 %v4815, 0.0
      %v5008 = vmax.f32 %v4816, 0.0
      %v5009 = vmax.f32 %v4817, 0.0
      %v5010 = vmax.f32 %v4818, 0.0
      %v5011 = vmax.f32 %v4819, 0.0
      %v5012 = vmax.f32 %v4820, 0.0
      %v5013 = vmax.f32 %v4821, 0.0
      %v5014 = vmax.f32 %v4822, 0.0
      %v5015 = vmax.f32 %v4823, 0.0
      %v5016 = vmax.f32 %v4824, 0.0
      %v5017 = vmax.f32 %v4825, 0.0
      %v5018 = vmax.f32 %v4826, 0.0
      %v5019 = vmax.f32 %v4827, 0.0
      %v5020 = vmax.f32 %v4828, 0.0
      %v5021 = vmax.f32 %v4829, 0.0
      %v5022 = vmax.f32 %v4830, 0.0
      %v5023 = vmax.f32 %v4831, 0.0
      %v5024 = vmax.f32 %v4832, 0.0
      %v5025 = vmax.f32 %v4833, 0.0
      %v5026 = vmax.f32 %v4834, 0.0
      %v5027 = vmax.f32 %v4835, 0.0
      %v5028 = vmax.f32 %v4836, 0.0
      %v5029 = vmax.f32 %v4837, 0.0
      %v5030 = vmax.f32 %v4838, 0.0
      %v5031 = vmax.f32 %v4839, 0.0
      %v5032 = vmax.f32 %v4840, 0.0
      %v5033 = vmax.f32 %v4841, 0.0
      %v5034 = vmax.f32 %v4842, 0.0
      %v5035 = vmax.f32 %v4843, 0.0
      %v5036 = vmax.f32 %v4844, 0.0
      %v5037 = vmax.f32 %v4845, 0.0
      %v5038 = vmax.f32 %v4846, 0.0
      %v5039 = vmax.f32 %v4847, 0.0
      %v5040 = vmax.f32 %v4848, 0.0
      %v5041 = vmax.f32 %v4849, 0.0
      %v5042 = vmax.f32 %v4850, 0.0
      %v5043 = vmax.f32 %v4851, 0.0
      %v5044 = vmax.f32 %v4852, 0.0
      %v5045 = vmax.f32 %v4853, 0.0
      %v5046 = vmax.f32 %v4854, 0.0
      %v5047 = vmax.f32 %v4855, 0.0
      %v5048 = vmax.f32 %v4856, 0.0
      %v5049 = vmax.f32 %v4857, 0.0
      %v5050 = vmax.f32 %v4858, 0.0
      %v5051 = vmax.f32 %v4859, 0.0
      %v5052 = vmax.f32 %v4860, 0.0
      %v5053 = vmax.f32 %v4861, 0.0
      %v5054 = vmax.f32 %v4862, 0.0
      %v5055 = vmax.f32 %v4863, 0.0
      %v5056 = vmax.f32 %v4864, 0.0
      %v5057 = vmax.f32 %v4865, 0.0
      %v5058 = vmax.f32 %v4866, 0.0
      %v5059 = vmax.f32 %v4867, 0.0
      %v5060 = vmax.f32 %v4868, 0.0
      %v5061 = vmax.f32 %v4869, 0.0
      %v5062 = vmax.f32 %v4870, 0.0
      %v5063 = vmax.f32 %v4871, 0.0
      %v5064 = vmax.f32 %v4872, 0.0
      %v5065 = vmax.f32 %v4873, 0.0
      %v5066 = vmax.f32 %v4874, 0.0
      %v5067 = vmax.f32 %v4875, 0.0
      %v5068 = vmax.f32 %v4876, 0.0
      %v5069 = vmax.f32 %v4877, 0.0
      %v5070 = vmax.f32 %v4878, 0.0
      %v5071 = vmax.f32 %v4879, 0.0
      %v5072 = vmax.f32 %v4880, 0.0
      %v5073 = vmax.f32 %v4881, 0.0
      %v5074 = vmax.f32 %v4882, 0.0
      %v5075 = vmax.f32 %v4883, 0.0
      %v5076 = vmax.f32 %v4884, 0.0
      %v5077 = vmax.f32 %v4885, 0.0
      %v5078 = vmax.f32 %v4886, 0.0
      %v5079 = vmax.f32 %v4887, 0.0
      %v5080 = vmax.f32 %v4888, 0.0
      %v5081 = vmax.f32 %v4889, 0.0
      %v5082 = vmax.f32 %v4890, 0.0
      %v5083 = vmax.f32 %v4891, 0.0
      %v5084 = vmax.f32 %v4892, 0.0
      %v5085 = vmax.f32 %v4893, 0.0
      %v5086 = vmax.f32 %v4894, 0.0
      %v5087 = vmax.f32 %v4895, 0.0
      %v5088 = vmax.f32 %v4896, 0.0
      %v5089 = vmax.f32 %v4897, 0.0
      %v5090 = vmax.f32 %v4898, 0.0
      %v5091 = vmax.f32 %v4899, 0.0
      %v5092 = vmax.f32 %v4900, 0.0
      %v5093 = vmax.f32 %v4901, 0.0
      %v5094 = vmax.f32 %v4902, 0.0
      %v5095 = vmax.f32 %v4903, 0.0
      %v5096 = vmax.f32 %v4904, 0.0
      %v5097 = vmax.f32 %v4905, 0.0
      %v5098 = vmax.f32 %v4906, 0.0
      %v5099 = vmax.f32 %v4907, 0.0
      %v5100 = vmax.f32 %v4908, 0.0
      %v5101 = vmax.f32 %v4909, 0.0
      %v5102 = vmax.f32 %v4910, 0.0
      %v5103 = vmax.f32 %v4911, 0.0
      %v5104 = vmax.f32 %v4912, 0.0
      %v5105 = vmax.f32 %v4913, 0.0
      %v5106 = vmax.f32 %v4914, 0.0
      %v5107 = vmax.f32 %v4915, 0.0
      %v5108 = vmax.f32 %v4916, 0.0
      %v5109 = vmax.f32 %v4917, 0.0
      %v5110 = vmax.f32 %v4918, 0.0
      %v5111 = vmax.f32 %v4919, 0.0
      %v5112 = vmax.f32 %v4920, 0.0
      %v5113 = vmax.f32 %v4921, 0.0
      %v5114 = vmax.f32 %v4922, 0.0
      %v5115 = vmax.f32 %v4923, 0.0
      %v5116 = vmax.f32 %v4924, 0.0
      %v5117 = vmax.f32 %v4925, 0.0
      %v5118 = vmax.f32 %v4926, 0.0
      %v5119 = vmax.f32 %v4927, 0.0
      %v5120 = vmax.f32 %v4928, 0.0
      %v5121 = vmax.f32 %v4929, 0.0
      %v5122 = vmax.f32 %v4930, 0.0
      %v5123 = vmax.f32 %v4931, 0.0
      %v5124 = vmax.f32 %v4932, 0.0
      %v5125 = vmax.f32 %v4933, 0.0
      %v5126 = vmax.f32 %v4934, 0.0
      %v5127 = vmax.f32 %v4935, 0.0
      %v5128 = vmax.f32 %v4936, 0.0
      %v5129 = vmax.f32 %v4937, 0.0
      %v5130 = vmax.f32 %v4938, 0.0
      %v5131 = vmax.f32 %v4939, 0.0
      %v5132 = vmax.f32 %v4940, 0.0
      %v5133 = vmax.f32 %v4941, 0.0
      %v5134 = vmax.f32 %v4942, 0.0
      %v5135 = vmax.f32 %v4943, 0.0
      %v5136 = vmax.f32 %v4944, 0.0
      %v5137 = vmax.f32 %v4945, 0.0
      %v5138 = vmax.f32 %v4946, 0.0
      %v5139 = vmax.f32 %v4947, 0.0
      %v5140 = vmax.f32 %v4948, 0.0
      %v5141 = vmax.f32 %v4949, 0.0
      %v5142 = vmax.f32 %v4950, 0.0
      %v5143 = vmax.f32 %v4951, 0.0
      %v5144 = vmax.f32 %v4952, 0.0
      %v5145 = vmax.f32 %v4953, 0.0
      %v5146 = vmax.f32 %v4954, 0.0
      %v5147 = vmax.f32 %v4955, 0.0
      %v5148 = vmax.f32 %v4956, 0.0
      %v5149 = vmax.f32 %v4957, 0.0
      %v5150 = vmax.f32 %v4958, 0.0
      %v5151 = vmax.f32 %v4959, 0.0
      %v5152 = vmax.f32 %v4960, 0.0
      %v5153 = vmax.f32 %v4961, 0.0
      %v5154 = vmax.f32 %v4962, 0.0
      %v5155 = vmax.f32 %v4963, 0.0
      %v5156 = vmax.f32 %v4964, 0.0
      %v5157 = vmax.f32 %v4965, 0.0
      %v5158 = vmax.f32 %v4966, 0.0
      %v5159 = vmax.f32 %v4967, 0.0
      %v5160 = vmax.f32 %v4968, 0.0
      %v5161 = vmax.f32 %v4969, 0.0
      %v5162 = vmax.f32 %v4970, 0.0
      %v5163 = vmax.f32 %v4971, 0.0
      %v5164 = vmax.f32 %v4972, 0.0
      %v5165 = vmax.f32 %v4973, 0.0
      %v5166 = vmax.f32 %v4974, 0.0
      %v5167 = vmax.f32 %v4975, 0.0
      %v5168 = vmax.f32 %v4976, 0.0
      %v5169 = vmax.f32 %v4977, 0.0
      %v5170 = vmax.f32 %v4978, 0.0
      %v5171 = vmax.f32 %v4979, 0.0
      %v5172 = vmax.f32 %v4980, 0.0
      %v5173 = vmax.f32 %v4981, 0.0
      %v5174 = vmax.f32 %v4982, 0.0
      %v5175 = vmax.f32 %v4983, 0.0
      %v5176 = vmax.f32 %v4984, 0.0
      %v5177 = vmax.f32 %v4985, 0.0
      %v5178 = vmax.f32 %v4986, 0.0
      %v5179 = vmax.f32 %v4987, 0.0
      %v5180 = vmax.f32 %v4988, 0.0
      %v5181 = vmax.f32 %v4989, 0.0
      %v5182 = vmax.f32 %v4990, 0.0
      %v5183 = vmax.f32 %v4991, 0.0
      %v5184 = vmax.f32 %v4992, %v5000
      %v5185 = vmax.f32 %v4993, %v5001
      %v5186 = vmax.f32 %v4994, %v5002
      %v5187 = vmax.f32 %v4995, %v5003
      %v5188 = vmax.f32 %v4996, %v5004
      %v5189 = vmax.f32 %v4997, %v5005
      %v5190 = vmax.f32 %v4998, %v5006
      %v5191 = vmax.f32 %v4999, %v5007
      %v5192 = vmax.f32 %v5008, %v5016
      %v5193 = vmax.f32 %v5009, %v5017
      %v5194 = vmax.f32 %v5010, %v5018
      %v5195 = vmax.f32 %v5011, %v5019
      %v5196 = vmax.f32 %v5012, %v5020
      %v5197 = vmax.f32 %v5013, %v5021
      %v5198 = vmax.f32 %v5014, %v5022
      %v5199 = vmax.f32 %v5015, %v5023
      %v5200 = vmax.f32 %v5024, %v5032
      %v5201 = vmax.f32 %v5025, %v5033
      %v5202 = vmax.f32 %v5026, %v5034
      %v5203 = vmax.f32 %v5027, %v5035
      %v5204 = vmax.f32 %v5028, %v5036
      %v5205 = vmax.f32 %v5029, %v5037
      %v5206 = vmax.f32 %v5030, %v5038
      %v5207 = vmax.f32 %v5031, %v5039
      %v5208 = vmax.f32 %v5040, %v5048
      %v5209 = vmax.f32 %v5041, %v5049
      %v5210 = vmax.f32 %v5042, %v5050
      %v5211 = vmax.f32 %v5043, %v5051
      %v5212 = vmax.f32 %v5044, %v5052
      %v5213 = vmax.f32 %v5045, %v5053
      %v5214 = vmax.f32 %v5046, %v5054
      %v5215 = vmax.f32 %v5047, %v5055
      %v5216 = vmax.f32 %v5056, %v5064
      %v5217 = vmax.f32 %v5057, %v5065
      %v5218 = vmax.f32 %v5058, %v5066
      %v5219 = vmax.f32 %v5059, %v5067
      %v5220 = vmax.f32 %v5060, %v5068
      %v5221 = vmax.f32 %v5061, %v5069
      %v5222 = vmax.f32 %v5062, %v5070
      %v5223 = vmax.f32 %v5063, %v5071
      %v5224 = vmax.f32 %v5072, %v5080
      %v5225 = vmax.f32 %v5073, %v5081
      %v5226 = vmax.f32 %v5074, %v5082
      %v5227 = vmax.f32 %v5075, %v5083
      %v5228 = vmax.f32 %v5076, %v5084
      %v5229 = vmax.f32 %v5077, %v5085
      %v5230 = vmax.f32 %v5078, %v5086
      %v5231 = vmax.f32 %v5079, %v5087
      %v5232 = vmax.f32 %v5088, %v5096
      %v5233 = vmax.f32 %v5089, %v5097
      %v5234 = vmax.f32 %v5090, %v5098
      %v5235 = vmax.f32 %v5091, %v5099
      %v5236 = vmax.f32 %v5092, %v5100
      %v5237 = vmax.f32 %v5093, %v5101
      %v5238 = vmax.f32 %v5094, %v5102
      %v5239 = vmax.f32 %v5095, %v5103
      %v5240 = vmax.f32 %v5104, %v5112
      %v5241 = vmax.f32 %v5105, %v5113
      %v5242 = vmax.f32 %v5106, %v5114
      %v5243 = vmax.f32 %v5107, %v5115
      %v5244 = vmax.f32 %v5108, %v5116
      %v5245 = vmax.f32 %v5109, %v5117
      %v5246 = vmax.f32 %v5110, %v5118
      %v5247 = vmax.f32 %v5111, %v5119
      %v5248 = vmax.f32 %v5120, %v5128
      %v5249 = vmax.f32 %v5121, %v5129
      %v5250 = vmax.f32 %v5122, %v5130
      %v5251 = vmax.f32 %v5123, %v5131
      %v5252 = vmax.f32 %v5124, %v5132
      %v5253 = vmax.f32 %v5125, %v5133
      %v5254 = vmax.f32 %v5126, %v5134
      %v5255 = vmax.f32 %v5127, %v5135
      %v5256 = vmax.f32 %v5136, %v5144
      %v5257 = vmax.f32 %v5137, %v5145
      %v5258 = vmax.f32 %v5138, %v5146
      %v5259 = vmax.f32 %v5139, %v5147
      %v5260 = vmax.f32 %v5140, %v5148
      %v5261 = vmax.f32 %v5141, %v5149
      %v5262 = vmax.f32 %v5142, %v5150
      %v5263 = vmax.f32 %v5143, %v5151
      %v5264 = vmax.f32 %v5152, %v5160
      %v5265 = vmax.f32 %v5153, %v5161
      %v5266 = vmax.f32 %v5154, %v5162
      %v5267 = vmax.f32 %v5155, %v5163
      %v5268 = vmax.f32 %v5156, %v5164
      %v5269 = vmax.f32 %v5157, %v5165
      %v5270 = vmax.f32 %v5158, %v5166
      %v5271 = vmax.f32 %v5159, %v5167
      %v5272 = vmax.f32 %v5168, %v5176
      %v5273 = vmax.f32 %v5169, %v5177
      %v5274 = vmax.f32 %v5170, %v5178
      %v5275 = vmax.f32 %v5171, %v5179
      %v5276 = vmax.f32 %v5172, %v5180
      %v5277 = vmax.f32 %v5173, %v5181
      %v5278 = vmax.f32 %v5174, %v5182
      %v5279 = vmax.f32 %v5175, %v5183
      %v5280 = vpack.c.bf16 %v5186, %v5184
      %v5281 = vpack.c.bf16 %v5187, %v5185
      %v5282 = vpack.c.bf16 %v5190, %v5188
      %v5283 = vpack.c.bf16 %v5191, %v5189
      %v5284 = vpack.c.bf16 %v5194, %v5192
      %v5285 = vpack.c.bf16 %v5195, %v5193
      %v5286 = vpack.c.bf16 %v5198, %v5196
      %v5287 = vpack.c.bf16 %v5199, %v5197
      %v5288 = vpack.c.bf16 %v5202, %v5200
      %v5289 = vpack.c.bf16 %v5203, %v5201
      %v5290 = vpack.c.bf16 %v5206, %v5204
      %v5291 = vpack.c.bf16 %v5207, %v5205
      %v5292 = vpack.c.bf16 %v5210, %v5208
      %v5293 = vpack.c.bf16 %v5211, %v5209
      %v5294 = vpack.c.bf16 %v5214, %v5212
      %v5295 = vpack.c.bf16 %v5215, %v5213
      %v5296 = vpack.c.bf16 %v5218, %v5216
      %v5297 = vpack.c.bf16 %v5219, %v5217
      %v5298 = vpack.c.bf16 %v5222, %v5220
      %v5299 = vpack.c.bf16 %v5223, %v5221
      %v5300 = vpack.c.bf16 %v5226, %v5224
      %v5301 = vpack.c.bf16 %v5227, %v5225
      %v5302 = vpack.c.bf16 %v5230, %v5228
      %v5303 = vpack.c.bf16 %v5231, %v5229
      %v5304 = vpack.c.bf16 %v5234, %v5232
      %v5305 = vpack.c.bf16 %v5235, %v5233
      %v5306 = vpack.c.bf16 %v5238, %v5236
      %v5307 = vpack.c.bf16 %v5239, %v5237
      %v5308 = vpack.c.bf16 %v5242, %v5240
      %v5309 = vpack.c.bf16 %v5243, %v5241
      %v5310 = vpack.c.bf16 %v5246, %v5244
      %v5311 = vpack.c.bf16 %v5247, %v5245
      %v5312 = vpack.c.bf16 %v5250, %v5248
      %v5313 = vpack.c.bf16 %v5251, %v5249
      %v5314 = vpack.c.bf16 %v5254, %v5252
      %v5315 = vpack.c.bf16 %v5255, %v5253
      %v5316 = vpack.c.bf16 %v5258, %v5256
      %v5317 = vpack.c.bf16 %v5259, %v5257
      %v5318 = vpack.c.bf16 %v5262, %v5260
      %v5319 = vpack.c.bf16 %v5263, %v5261
      %v5320 = vpack.c.bf16 %v5266, %v5264
      %v5321 = vpack.c.bf16 %v5267, %v5265
      %v5322 = vpack.c.bf16 %v5270, %v5268
      %v5323 = vpack.c.bf16 %v5271, %v5269
      %v5324 = vpack.c.bf16 %v5274, %v5272
      %v5325 = vpack.c.bf16 %v5275, %v5273
      %v5326 = vpack.c.bf16 %v5278, %v5276
      %v5327 = vpack.c.bf16 %v5279, %v5277
      %v5328 = vld [vmem:[%s3] sm:$0xf]
      %v5329 = vld [vmem:[%s3 + $0x4] sm:$0xf]
      %v5330 = vld [vmem:[%s3 + $0x8] sm:$0xf]
      %v5331 = vld [vmem:[%s3 + $0xc] sm:$0xf]
      %v5332 = vld [vmem:[%s3 + $0x10] sm:$0xf]
      %v5333 = vld [vmem:[%s3 + $0x14] sm:$0xf]
      %v5334 = vld [vmem:[%s3 + $0x18] sm:$0xf]
      %v5335 = vld [vmem:[%s3 + $0x1c] sm:$0xf]
      %v5336 = vld [vmem:[%s3 + $0x20] sm:$0xf]
      %v5337 = vld [vmem:[%s3 + $0x24] sm:$0xf]
      %v5338 = vld [vmem:[%s3 + $0x28] sm:$0xf]
      %v5339 = vld [vmem:[%s3 + $0x2c] sm:$0xf]
      %v5340 = vld [vmem:[%s3 + $0x30] sm:$0xf]
      %v5341 = vld [vmem:[%s3 + $0x34] sm:$0xf]
      %v5342 = vld [vmem:[%s3 + $0x38] sm:$0xf]
      %v5343 = vld [vmem:[%s3 + $0x3c] sm:$0xf]
      %v5344 = vld [vmem:[%s3 + $0x40] sm:$0xf]
      %v5345 = vld [vmem:[%s3 + $0x44] sm:$0xf]
      %v5364 = vunpack.c.l.b16 %v5328
      %v5365 = vunpack.c.l.b16 %v5329
      %v5366 = vunpack.c.l.b16 %v5330
      %v5367 = vunpack.c.l.b16 %v5331
      %v5368 = vunpack.c.l.b16 %v5332
      %v5369 = vunpack.c.l.b16 %v5333
      %v5370 = vunpack.c.l.b16 %v5334
      %v5371 = vunpack.c.l.b16 %v5335
      %v5372 = vunpack.c.l.b16 %v5336
      %v5373 = vunpack.c.l.b16 %v5337
      %v5374 = vunpack.c.l.b16 %v5338
      %v5375 = vunpack.c.l.b16 %v5339
      %v5376 = vunpack.c.l.b16 %v5340
      %v5377 = vunpack.c.l.b16 %v5341
      %v5378 = vunpack.c.l.b16 %v5342
      %v5379 = vunpack.c.l.b16 %v5343
      %v5380 = vunpack.c.l.b16 %v5344
      %v5381 = vunpack.c.l.b16 %v5345
      %v5382 = vpack.c.b16 %v5365, %v5364
      %v5383 = vpack.c.b16 %v5367, %v5366
      %v5384 = vpack.c.b16 %v5369, %v5368
      %v5385 = vpack.c.b16 %v5371, %v5370
      %v5386 = vpack.c.b16 %v5373, %v5372
      %v5387 = vpack.c.b16 %v5375, %v5374
      %v5388 = vpack.c.b16 %v5377, %v5376
      %v5389 = vpack.c.b16 %v5379, %v5378
      %v5390 = vpack.c.b16 %v5381, %v5380
      %vm5400 = vcmask 130048
      %v5402 = vsel %vm5400, %v5281, 0
      %v5405 = vsel %vm5400, %v5283, 0
      %v5408 = vsel %vm5400, %v5285, 0
      %v5411 = vsel %vm5400, %v5287, 0
      %v5414 = vsel %vm5400, %v5289, 0
      %v5417 = vsel %vm5400, %v5291, 0
      %v5420 = vsel %vm5400, %v5293, 0
      %v5423 = vsel %vm5400, %v5295, 0
      %v5426 = vsel %vm5400, %v5297, 0
      %v5429 = vsel %vm5400, %v5299, 0
      %v5432 = vsel %vm5400, %v5301, 0
      %v5435 = vsel %vm5400, %v5303, 0
      %v5438 = vsel %vm5400, %v5305, 0
      %v5441 = vsel %vm5400, %v5307, 0
      %v5444 = vsel %vm5400, %v5309, 0
      %v5447 = vsel %vm5400, %v5311, 0
      %v5450 = vsel %vm5400, %v5313, 0
      %v5453 = vsel %vm5400, %v5315, 0
      %v5456 = vsel %vm5400, %v5317, 0
      %v5459 = vsel %vm5400, %v5319, 0
      %v5462 = vsel %vm5400, %v5321, 0
      %v5465 = vsel %vm5400, %v5323, 0
      %v5468 = vsel %vm5400, %v5325, 0
      %v5471 = vsel %vm5400, %v5327, 0
      %5473 = vmatprep.subr.bf16.mxu0 0
      %5474 = vmatpush1.bf16.msra.mxu0 %v5389
      %5475 = vmatprep.subr.bf16.mxu0 0
      %5476 = vmatpush1.bf16.msra.mxu0 %v5388
      %5477 = vmatprep.subr.bf16.mxu0 0
      %5478 = vmatpush1.bf16.msra.mxu0 %v5387
      %5479 = vmatprep.subr.bf16.mxu0 0
      %5480 = vmatpush1.bf16.msra.mxu0 %v5386
      %5481 = vmatprep.subr.bf16.mxu0 0
      %5482 = vmatpush1.bf16.msra.mxu0 %v5385
      %5483 = vmatprep.subr.bf16.mxu0 0
      %5484 = vmatpush1.bf16.msra.mxu0 %v5384
      %5485 = vmatprep.subr.bf16.mxu0 0
      %5486 = vmatpush1.bf16.msra.mxu0 %v5383
      %5487 = vmatprep.subr.bf16.mxu0 0
      %5488 = vmatpush1.bf16.msra.mxu0 %v5382
      %5489 = vmatprep.subr.bf16.mxu0 0
      %5490 = vmatpush2.bf16.msra.mxu0 0
      %5491 = vmatprep.subr.bf16.mxu0 0
      %5492 = vmatpush2.bf16.msra.mxu0 0
      %5493 = vmatprep.subr.bf16.mxu0 0
      %5494 = vmatpush2.bf16.msra.mxu0 0
      %5495 = vmatprep.subr.bf16.mxu0 0
      %5496 = vmatpush2.bf16.msra.mxu0 0
      %5497 = vmatprep.subr.bf16.mxu0 0
      %5498 = vmatpush2.bf16.msra.mxu0 0
      %5499 = vmatprep.subr.bf16.mxu0 0
      %5500 = vmatpush2.bf16.msra.mxu0 0
      %5501 = vmatprep.subr.bf16.mxu0 0
      %5502 = vmatpush2.bf16.msra.mxu0 0
      %5503 = vmatprep.subr.bf16.mxu0 0
      %5504 = vmatpush2.bf16.msra.mxu0 %v5390
      %5505 = vmatprep.mubr.bf16.mxu0 %v5402
      %5506 = vmatmul.mubr.bf16.gmra.mxu0 %v5280
      %v5507 = vpop.f32.mrf.mxu0
      %v5508 = vadd.f32 0.0, %v5507
      %v5509 = vpop.f32.mrf.mxu0
      %v5510 = vpop.f32.mrf.mxu0
      %v5511 = vadd.f32 0.0, %v5510
      %v5512 = vpop.f32.mrf.mxu0
      %5513 = vmatprep.mubr.bf16.mxu0 %v5405
      %5514 = vmatmul.mubr.bf16.gmra.mxu0 %v5282
      %v5515 = vpop.f32.mrf.mxu0
      %v5516 = vadd.f32 0.0, %v5515
      %v5517 = vpop.f32.mrf.mxu0
      %v5518 = vpop.f32.mrf.mxu0
      %v5519 = vadd.f32 0.0, %v5518
      %v5520 = vpop.f32.mrf.mxu0
      %5521 = vmatprep.mubr.bf16.mxu0 %v5408
      %5522 = vmatmul.mubr.bf16.gmra.mxu0 %v5284
      %v5523 = vpop.f32.mrf.mxu0
      %v5524 = vadd.f32 0.0, %v5523
      %v5525 = vpop.f32.mrf.mxu0
      %v5526 = vpop.f32.mrf.mxu0
      %v5527 = vadd.f32 0.0, %v5526
      %v5528 = vpop.f32.mrf.mxu0
      %5529 = vmatprep.mubr.bf16.mxu0 %v5411
      %5530 = vmatmul.mubr.bf16.gmra.mxu0 %v5286
      %v5531 = vpop.f32.mrf.mxu0
      %v5532 = vadd.f32 0.0, %v5531
      %v5533 = vpop.f32.mrf.mxu0
      %v5534 = vpop.f32.mrf.mxu0
      %v5535 = vadd.f32 0.0, %v5534
      %v5536 = vpop.f32.mrf.mxu0
      %5537 = vmatprep.mubr.bf16.mxu0 %v5414
      %5538 = vmatmul.mubr.bf16.gmra.mxu0 %v5288
      %v5539 = vpop.f32.mrf.mxu0
      %v5540 = vadd.f32 0.0, %v5539
      %v5541 = vpop.f32.mrf.mxu0
      %v5542 = vpop.f32.mrf.mxu0
      %v5543 = vadd.f32 0.0, %v5542
      %v5544 = vpop.f32.mrf.mxu0
      %5545 = vmatprep.mubr.bf16.mxu0 %v5417
      %5546 = vmatmul.mubr.bf16.gmra.mxu0 %v5290
      %v5547 = vpop.f32.mrf.mxu0
      %v5548 = vadd.f32 0.0, %v5547
      %v5549 = vpop.f32.mrf.mxu0
      %v5550 = vpop.f32.mrf.mxu0
      %v5551 = vadd.f32 0.0, %v5550
      %v5552 = vpop.f32.mrf.mxu0
      %5553 = vmatprep.mubr.bf16.mxu0 %v5420
      %5554 = vmatmul.mubr.bf16.gmra.mxu0 %v5292
      %v5555 = vpop.f32.mrf.mxu0
      %v5556 = vadd.f32 0.0, %v5555
      %v5557 = vpop.f32.mrf.mxu0
      %v5558 = vpop.f32.mrf.mxu0
      %v5559 = vadd.f32 0.0, %v5558
      %v5560 = vpop.f32.mrf.mxu0
      %5561 = vmatprep.mubr.bf16.mxu0 %v5423
      %5562 = vmatmul.mubr.bf16.gmra.mxu0 %v5294
      %v5563 = vpop.f32.mrf.mxu0
      %v5564 = vadd.f32 0.0, %v5563
      %v5565 = vpop.f32.mrf.mxu0
      %v5566 = vpop.f32.mrf.mxu0
      %v5567 = vadd.f32 0.0, %v5566
      %v5568 = vpop.f32.mrf.mxu0
      %5569 = vmatprep.mubr.bf16.mxu0 %v5426
      %5570 = vmatmul.mubr.bf16.gmra.mxu0 %v5296
      %v5571 = vpop.f32.mrf.mxu0
      %v5572 = vadd.f32 0.0, %v5571
      %v5573 = vpop.f32.mrf.mxu0
      %v5574 = vpop.f32.mrf.mxu0
      %v5575 = vadd.f32 0.0, %v5574
      %v5576 = vpop.f32.mrf.mxu0
      %5577 = vmatprep.mubr.bf16.mxu0 %v5429
      %5578 = vmatmul.mubr.bf16.gmra.mxu0 %v5298
      %v5579 = vpop.f32.mrf.mxu0
      %v5580 = vadd.f32 0.0, %v5579
      %v5581 = vpop.f32.mrf.mxu0
      %v5582 = vpop.f32.mrf.mxu0
      %v5583 = vadd.f32 0.0, %v5582
      %v5584 = vpop.f32.mrf.mxu0
      %5585 = vmatprep.mubr.bf16.mxu0 %v5432
      %5586 = vmatmul.mubr.bf16.gmra.mxu0 %v5300
      %v5587 = vpop.f32.mrf.mxu0
      %v5588 = vadd.f32 0.0, %v5587
      %v5589 = vpop.f32.mrf.mxu0
      %v5590 = vpop.f32.mrf.mxu0
      %v5591 = vadd.f32 0.0, %v5590
      %v5592 = vpop.f32.mrf.mxu0
      %5593 = vmatprep.mubr.bf16.mxu0 %v5435
      %5594 = vmatmul.mubr.bf16.gmra.mxu0 %v5302
      %v5595 = vpop.f32.mrf.mxu0
      %v5596 = vadd.f32 0.0, %v5595
      %v5597 = vpop.f32.mrf.mxu0
      %v5598 = vpop.f32.mrf.mxu0
      %v5599 = vadd.f32 0.0, %v5598
      %v5600 = vpop.f32.mrf.mxu0
      %5601 = vmatprep.mubr.bf16.mxu0 %v5438
      %5602 = vmatmul.mubr.bf16.gmra.mxu0 %v5304
      %v5603 = vpop.f32.mrf.mxu0
      %v5604 = vadd.f32 0.0, %v5603
      %v5605 = vpop.f32.mrf.mxu0
      %v5606 = vpop.f32.mrf.mxu0
      %v5607 = vadd.f32 0.0, %v5606
      %v5608 = vpop.f32.mrf.mxu0
      %5609 = vmatprep.mubr.bf16.mxu0 %v5441
      %5610 = vmatmul.mubr.bf16.gmra.mxu0 %v5306
      %v5611 = vpop.f32.mrf.mxu0
      %v5612 = vadd.f32 0.0, %v5611
      %v5613 = vpop.f32.mrf.mxu0
      %v5614 = vpop.f32.mrf.mxu0
      %v5615 = vadd.f32 0.0, %v5614
      %v5616 = vpop.f32.mrf.mxu0
      %5617 = vmatprep.mubr.bf16.mxu0 %v5444
      %5618 = vmatmul.mubr.bf16.gmra.mxu0 %v5308
      %v5619 = vpop.f32.mrf.mxu0
      %v5620 = vadd.f32 0.0, %v5619
      %v5621 = vpop.f32.mrf.mxu0
      %v5622 = vpop.f32.mrf.mxu0
      %v5623 = vadd.f32 0.0, %v5622
      %v5624 = vpop.f32.mrf.mxu0
      %5625 = vmatprep.mubr.bf16.mxu0 %v5447
      %5626 = vmatmul.mubr.bf16.gmra.mxu0 %v5310
      %v5627 = vpop.f32.mrf.mxu0
      %v5628 = vadd.f32 0.0, %v5627
      %v5629 = vpop.f32.mrf.mxu0
      %v5630 = vpop.f32.mrf.mxu0
      %v5631 = vadd.f32 0.0, %v5630
      %v5632 = vpop.f32.mrf.mxu0
      %5633 = vmatprep.mubr.bf16.mxu0 %v5450
      %5634 = vmatmul.mubr.bf16.gmra.mxu0 %v5312
      %v5635 = vpop.f32.mrf.mxu0
      %v5636 = vadd.f32 0.0, %v5635
      %v5637 = vpop.f32.mrf.mxu0
      %v5638 = vpop.f32.mrf.mxu0
      %v5639 = vadd.f32 0.0, %v5638
      %v5640 = vpop.f32.mrf.mxu0
      %5641 = vmatprep.mubr.bf16.mxu0 %v5453
      %5642 = vmatmul.mubr.bf16.gmra.mxu0 %v5314
      %v5643 = vpop.f32.mrf.mxu0
      %v5644 = vadd.f32 0.0, %v5643
      %v5645 = vpop.f32.mrf.mxu0
      %v5646 = vpop.f32.mrf.mxu0
      %v5647 = vadd.f32 0.0, %v5646
      %v5648 = vpop.f32.mrf.mxu0
      %5649 = vmatprep.mubr.bf16.mxu0 %v5456
      %5650 = vmatmul.mubr.bf16.gmra.mxu0 %v5316
      %v5651 = vpop.f32.mrf.mxu0
      %v5652 = vadd.f32 0.0, %v5651
      %v5653 = vpop.f32.mrf.mxu0
      %v5654 = vpop.f32.mrf.mxu0
      %v5655 = vadd.f32 0.0, %v5654
      %v5656 = vpop.f32.mrf.mxu0
      %5657 = vmatprep.mubr.bf16.mxu0 %v5459
      %5658 = vmatmul.mubr.bf16.gmra.mxu0 %v5318
      %v5659 = vpop.f32.mrf.mxu0
      %v5660 = vadd.f32 0.0, %v5659
      %v5661 = vpop.f32.mrf.mxu0
      %v5662 = vpop.f32.mrf.mxu0
      %v5663 = vadd.f32 0.0, %v5662
      %v5664 = vpop.f32.mrf.mxu0
      %5665 = vmatprep.mubr.bf16.mxu0 %v5462
      %5666 = vmatmul.mubr.bf16.gmra.mxu0 %v5320
      %v5667 = vpop.f32.mrf.mxu0
      %v5668 = vadd.f32 0.0, %v5667
      %v5669 = vpop.f32.mrf.mxu0
      %v5670 = vpop.f32.mrf.mxu0
      %v5671 = vadd.f32 0.0, %v5670
      %v5672 = vpop.f32.mrf.mxu0
      %5673 = vmatprep.mubr.bf16.mxu0 %v5465
      %5674 = vmatmul.mubr.bf16.gmra.mxu0 %v5322
      %v5675 = vpop.f32.mrf.mxu0
      %v5676 = vadd.f32 0.0, %v5675
      %v5677 = vpop.f32.mrf.mxu0
      %v5678 = vpop.f32.mrf.mxu0
      %v5679 = vadd.f32 0.0, %v5678
      %v5680 = vpop.f32.mrf.mxu0
      %5681 = vmatprep.mubr.bf16.mxu0 %v5468
      %5682 = vmatmul.mubr.bf16.gmra.mxu0 %v5324
      %v5683 = vpop.f32.mrf.mxu0
      %v5684 = vadd.f32 0.0, %v5683
      %v5685 = vpop.f32.mrf.mxu0
      %v5686 = vpop.f32.mrf.mxu0
      %v5687 = vadd.f32 0.0, %v5686
      %v5688 = vpop.f32.mrf.mxu0
      %5689 = vmatprep.mubr.bf16.mxu0 %v5471
      %5690 = vmatmul.mubr.bf16.gmra.mxu0 %v5326
      %v5691 = vpop.f32.mrf.mxu0
      %v5692 = vadd.f32 0.0, %v5691
      %v5693 = vpop.f32.mrf.mxu0
      %v5694 = vpop.f32.mrf.mxu0
      %v5695 = vadd.f32 0.0, %v5694
      %v5696 = vpop.f32.mrf.mxu0
      %5697 = vdwg.mxu0
      %s5698 = scalar_lea.vmem %s3, 72
      %v5699 = vld [vmem:[%s5698] sm:$0xf]
      %v5700 = vld [vmem:[%s5698 + $0x4] sm:$0xf]
      %v5701 = vld [vmem:[%s5698 + $0x8] sm:$0xf]
      %v5702 = vld [vmem:[%s5698 + $0xc] sm:$0xf]
      %v5703 = vld [vmem:[%s5698 + $0x10] sm:$0xf]
      %v5704 = vld [vmem:[%s5698 + $0x14] sm:$0xf]
      %v5705 = vld [vmem:[%s5698 + $0x18] sm:$0xf]
      %v5706 = vld [vmem:[%s5698 + $0x1c] sm:$0xf]
      %v5707 = vld [vmem:[%s5698 + $0x20] sm:$0xf]
      %v5708 = vld [vmem:[%s5698 + $0x24] sm:$0xf]
      %v5709 = vld [vmem:[%s5698 + $0x28] sm:$0xf]
      %v5710 = vld [vmem:[%s5698 + $0x2c] sm:$0xf]
      %v5711 = vld [vmem:[%s5698 + $0x30] sm:$0xf]
      %v5712 = vld [vmem:[%s5698 + $0x34] sm:$0xf]
      %v5713 = vld [vmem:[%s5698 + $0x38] sm:$0xf]
      %v5714 = vld [vmem:[%s5698 + $0x3c] sm:$0xf]
      %v5715 = vld [vmem:[%s5698 + $0x40] sm:$0xf]
      %v5716 = vld [vmem:[%s5698 + $0x44] sm:$0xf]
      %v5735 = vunpack.c.l.b16 %v5699
      %v5736 = vunpack.c.l.b16 %v5700
      %v5737 = vunpack.c.l.b16 %v5701
      %v5738 = vunpack.c.l.b16 %v5702
      %v5739 = vunpack.c.l.b16 %v5703
      %v5740 = vunpack.c.l.b16 %v5704
      %v5741 = vunpack.c.l.b16 %v5705
      %v5742 = vunpack.c.l.b16 %v5706
      %v5743 = vunpack.c.l.b16 %v5707
      %v5744 = vunpack.c.l.b16 %v5708
      %v5745 = vunpack.c.l.b16 %v5709
      %v5746 = vunpack.c.l.b16 %v5710
      %v5747 = vunpack.c.l.b16 %v5711
      %v5748 = vunpack.c.l.b16 %v5712
      %v5749 = vunpack.c.l.b16 %v5713
      %v5750 = vunpack.c.l.b16 %v5714
      %v5751 = vunpack.c.l.b16 %v5715
      %v5752 = vunpack.c.l.b16 %v5716
      %v5753 = vpack.c.b16 %v5736, %v5735
      %v5754 = vpack.c.b16 %v5738, %v5737
      %v5755 = vpack.c.b16 %v5740, %v5739
      %v5756 = vpack.c.b16 %v5742, %v5741
      %v5757 = vpack.c.b16 %v5744, %v5743
      %v5758 = vpack.c.b16 %v5746, %v5745
      %v5759 = vpack.c.b16 %v5748, %v5747
      %v5760 = vpack.c.b16 %v5750, %v5749
      %v5761 = vpack.c.b16 %v5752, %v5751
      %5771 = vmatprep.subr.bf16.mxu0 0
      %5772 = vmatpush1.bf16.msra.mxu0 %v5760
      %5773 = vmatprep.subr.bf16.mxu0 0
      %5774 = vmatpush1.bf16.msra.mxu0 %v5759
      %5775 = vmatprep.subr.bf16.mxu0 0
      %5776 = vmatpush1.bf16.msra.mxu0 %v5758
      %5777 = vmatprep.subr.bf16.mxu0 0
      %5778 = vmatpush1.bf16.msra.mxu0 %v5757
      %5779 = vmatprep.subr.bf16.mxu0 0
      %5780 = vmatpush1.bf16.msra.mxu0 %v5756
      %5781 = vmatprep.subr.bf16.mxu0 0
      %5782 = vmatpush1.bf16.msra.mxu0 %v5755
      %5783 = vmatprep.subr.bf16.mxu0 0
      %5784 = vmatpush1.bf16.msra.mxu0 %v5754
      %5785 = vmatprep.subr.bf16.mxu0 0
      %5786 = vmatpush1.bf16.msra.mxu0 %v5753
      %5787 = vmatprep.subr.bf16.mxu0 0
      %5788 = vmatpush2.bf16.msra.mxu0 0
      %5789 = vmatprep.subr.bf16.mxu0 0
      %5790 = vmatpush2.bf16.msra.mxu0 0
      %5791 = vmatprep.subr.bf16.mxu0 0
      %5792 = vmatpush2.bf16.msra.mxu0 0
      %5793 = vmatprep.subr.bf16.mxu0 0
      %5794 = vmatpush2.bf16.msra.mxu0 0
      %5795 = vmatprep.subr.bf16.mxu0 0
      %5796 = vmatpush2.bf16.msra.mxu0 0
      %5797 = vmatprep.subr.bf16.mxu0 0
      %5798 = vmatpush2.bf16.msra.mxu0 0
      %5799 = vmatprep.subr.bf16.mxu0 0
      %5800 = vmatpush2.bf16.msra.mxu0 0
      %5801 = vmatprep.subr.bf16.mxu0 0
      %5802 = vmatpush2.bf16.msra.mxu0 %v5761
      %5803 = vmatprep.mubr.bf16.mxu0 %v5402
      %5804 = vmatmul.mubr.bf16.gmra.mxu0 %v5280
      %v5805 = vpop.f32.mrf.mxu0
      %v5806 = vadd.f32 0.0, %v5805
      %v5807 = vpop.f32.mrf.mxu0
      %v5808 = vpop.f32.mrf.mxu0
      %v5809 = vadd.f32 0.0, %v5808
      %v5810 = vpop.f32.mrf.mxu0
      %5811 = vmatprep.mubr.bf16.mxu0 %v5405
      %5812 = vmatmul.mubr.bf16.gmra.mxu0 %v5282
      %v5813 = vpop.f32.mrf.mxu0
      %v5814 = vadd.f32 0.0, %v5813
      %v5815 = vpop.f32.mrf.mxu0
      %v5816 = vpop.f32.mrf.mxu0
      %v5817 = vadd.f32 0.0, %v5816
      %v5818 = vpop.f32.mrf.mxu0
      %5819 = vmatprep.mubr.bf16.mxu0 %v5408
      %5820 = vmatmul.mubr.bf16.gmra.mxu0 %v5284
      %v5821 = vpop.f32.mrf.mxu0
      %v5822 = vadd.f32 0.0, %v5821
      %v5823 = vpop.f32.mrf.mxu0
      %v5824 = vpop.f32.mrf.mxu0
      %v5825 = vadd.f32 0.0, %v5824
      %v5826 = vpop.f32.mrf.mxu0
      %5827 = vmatprep.mubr.bf16.mxu0 %v5411
      %5828 = vmatmul.mubr.bf16.gmra.mxu0 %v5286
      %v5829 = vpop.f32.mrf.mxu0
      %v5830 = vadd.f32 0.0, %v5829
      %v5831 = vpop.f32.mrf.mxu0
      %v5832 = vpop.f32.mrf.mxu0
      %v5833 = vadd.f32 0.0, %v5832
      %v5834 = vpop.f32.mrf.mxu0
      %5835 = vmatprep.mubr.bf16.mxu0 %v5414
      %5836 = vmatmul.mubr.bf16.gmra.mxu0 %v5288
      %v5837 = vpop.f32.mrf.mxu0
      %v5838 = vadd.f32 0.0, %v5837
      %v5839 = vpop.f32.mrf.mxu0
      %v5840 = vpop.f32.mrf.mxu0
      %v5841 = vadd.f32 0.0, %v5840
      %v5842 = vpop.f32.mrf.mxu0
      %5843 = vmatprep.mubr.bf16.mxu0 %v5417
      %5844 = vmatmul.mubr.bf16.gmra.mxu0 %v5290
      %v5845 = vpop.f32.mrf.mxu0
      %v5846 = vadd.f32 0.0, %v5845
      %v5847 = vpop.f32.mrf.mxu0
      %v5848 = vpop.f32.mrf.mxu0
      %v5849 = vadd.f32 0.0, %v5848
      %v5850 = vpop.f32.mrf.mxu0
      %5851 = vmatprep.mubr.bf16.mxu0 %v5420
      %5852 = vmatmul.mubr.bf16.gmra.mxu0 %v5292
      %v5853 = vpop.f32.mrf.mxu0
      %v5854 = vadd.f32 0.0, %v5853
      %v5855 = vpop.f32.mrf.mxu0
      %v5856 = vpop.f32.mrf.mxu0
      %v5857 = vadd.f32 0.0, %v5856
      %v5858 = vpop.f32.mrf.mxu0
      %5859 = vmatprep.mubr.bf16.mxu0 %v5423
      %5860 = vmatmul.mubr.bf16.gmra.mxu0 %v5294
      %v5861 = vpop.f32.mrf.mxu0
      %v5862 = vadd.f32 0.0, %v5861
      %v5863 = vpop.f32.mrf.mxu0
      %v5864 = vpop.f32.mrf.mxu0
      %v5865 = vadd.f32 0.0, %v5864
      %v5866 = vpop.f32.mrf.mxu0
      %5867 = vmatprep.mubr.bf16.mxu0 %v5426
      %5868 = vmatmul.mubr.bf16.gmra.mxu0 %v5296
      %v5869 = vpop.f32.mrf.mxu0
      %v5870 = vadd.f32 0.0, %v5869
      %v5871 = vpop.f32.mrf.mxu0
      %v5872 = vpop.f32.mrf.mxu0
      %v5873 = vadd.f32 0.0, %v5872
      %v5874 = vpop.f32.mrf.mxu0
      %5875 = vmatprep.mubr.bf16.mxu0 %v5429
      %5876 = vmatmul.mubr.bf16.gmra.mxu0 %v5298
      %v5877 = vpop.f32.mrf.mxu0
      %v5878 = vadd.f32 0.0, %v5877
      %v5879 = vpop.f32.mrf.mxu0
      %v5880 = vpop.f32.mrf.mxu0
      %v5881 = vadd.f32 0.0, %v5880
      %v5882 = vpop.f32.mrf.mxu0
      %5883 = vmatprep.mubr.bf16.mxu0 %v5432
      %5884 = vmatmul.mubr.bf16.gmra.mxu0 %v5300
      %v5885 = vpop.f32.mrf.mxu0
      %v5886 = vadd.f32 0.0, %v5885
      %v5887 = vpop.f32.mrf.mxu0
      %v5888 = vpop.f32.mrf.mxu0
      %v5889 = vadd.f32 0.0, %v5888
      %v5890 = vpop.f32.mrf.mxu0
      %5891 = vmatprep.mubr.bf16.mxu0 %v5435
      %5892 = vmatmul.mubr.bf16.gmra.mxu0 %v5302
      %v5893 = vpop.f32.mrf.mxu0
      %v5894 = vadd.f32 0.0, %v5893
      %v5895 = vpop.f32.mrf.mxu0
      %v5896 = vpop.f32.mrf.mxu0
      %v5897 = vadd.f32 0.0, %v5896
      %v5898 = vpop.f32.mrf.mxu0
      %5899 = vmatprep.mubr.bf16.mxu0 %v5438
      %5900 = vmatmul.mubr.bf16.gmra.mxu0 %v5304
      %v5901 = vpop.f32.mrf.mxu0
      %v5902 = vadd.f32 0.0, %v5901
      %v5903 = vpop.f32.mrf.mxu0
      %v5904 = vpop.f32.mrf.mxu0
      %v5905 = vadd.f32 0.0, %v5904
      %v5906 = vpop.f32.mrf.mxu0
      %5907 = vmatprep.mubr.bf16.mxu0 %v5441
      %5908 = vmatmul.mubr.bf16.gmra.mxu0 %v5306
      %v5909 = vpop.f32.mrf.mxu0
      %v5910 = vadd.f32 0.0, %v5909
      %v5911 = vpop.f32.mrf.mxu0
      %v5912 = vpop.f32.mrf.mxu0
      %v5913 = vadd.f32 0.0, %v5912
      %v5914 = vpop.f32.mrf.mxu0
      %5915 = vmatprep.mubr.bf16.mxu0 %v5444
      %5916 = vmatmul.mubr.bf16.gmra.mxu0 %v5308
      %v5917 = vpop.f32.mrf.mxu0
      %v5918 = vadd.f32 0.0, %v5917
      %v5919 = vpop.f32.mrf.mxu0
      %v5920 = vpop.f32.mrf.mxu0
      %v5921 = vadd.f32 0.0, %v5920
      %v5922 = vpop.f32.mrf.mxu0
      %5923 = vmatprep.mubr.bf16.mxu0 %v5447
      %5924 = vmatmul.mubr.bf16.gmra.mxu0 %v5310
      %v5925 = vpop.f32.mrf.mxu0
      %v5926 = vadd.f32 0.0, %v5925
      %v5927 = vpop.f32.mrf.mxu0
      %v5928 = vpop.f32.mrf.mxu0
      %v5929 = vadd.f32 0.0, %v5928
      %v5930 = vpop.f32.mrf.mxu0
      %5931 = vmatprep.mubr.bf16.mxu0 %v5450
      %5932 = vmatmul.mubr.bf16.gmra.mxu0 %v5312
      %v5933 = vpop.f32.mrf.mxu0
      %v5934 = vadd.f32 0.0, %v5933
      %v5935 = vpop.f32.mrf.mxu0
      %v5936 = vpop.f32.mrf.mxu0
      %v5937 = vadd.f32 0.0, %v5936
      %v5938 = vpop.f32.mrf.mxu0
      %5939 = vmatprep.mubr.bf16.mxu0 %v5453
      %5940 = vmatmul.mubr.bf16.gmra.mxu0 %v5314
      %v5941 = vpop.f32.mrf.mxu0
      %v5942 = vadd.f32 0.0, %v5941
      %v5943 = vpop.f32.mrf.mxu0
      %v5944 = vpop.f32.mrf.mxu0
      %v5945 = vadd.f32 0.0, %v5944
      %v5946 = vpop.f32.mrf.mxu0
      %5947 = vmatprep.mubr.bf16.mxu0 %v5456
      %5948 = vmatmul.mubr.bf16.gmra.mxu0 %v5316
      %v5949 = vpop.f32.mrf.mxu0
      %v5950 = vadd.f32 0.0, %v5949
      %v5951 = vpop.f32.mrf.mxu0
      %v5952 = vpop.f32.mrf.mxu0
      %v5953 = vadd.f32 0.0, %v5952
      %v5954 = vpop.f32.mrf.mxu0
      %5955 = vmatprep.mubr.bf16.mxu0 %v5459
      %5956 = vmatmul.mubr.bf16.gmra.mxu0 %v5318
      %v5957 = vpop.f32.mrf.mxu0
      %v5958 = vadd.f32 0.0, %v5957
      %v5959 = vpop.f32.mrf.mxu0
      %v5960 = vpop.f32.mrf.mxu0
      %v5961 = vadd.f32 0.0, %v5960
      %v5962 = vpop.f32.mrf.mxu0
      %5963 = vmatprep.mubr.bf16.mxu0 %v5462
      %5964 = vmatmul.mubr.bf16.gmra.mxu0 %v5320
      %v5965 = vpop.f32.mrf.mxu0
      %v5966 = vadd.f32 0.0, %v5965
      %v5967 = vpop.f32.mrf.mxu0
      %v5968 = vpop.f32.mrf.mxu0
      %v5969 = vadd.f32 0.0, %v5968
      %v5970 = vpop.f32.mrf.mxu0
      %5971 = vmatprep.mubr.bf16.mxu0 %v5465
      %5972 = vmatmul.mubr.bf16.gmra.mxu0 %v5322
      %v5973 = vpop.f32.mrf.mxu0
      %v5974 = vadd.f32 0.0, %v5973
      %v5975 = vpop.f32.mrf.mxu0
      %v5976 = vpop.f32.mrf.mxu0
      %v5977 = vadd.f32 0.0, %v5976
      %v5978 = vpop.f32.mrf.mxu0
      %5979 = vmatprep.mubr.bf16.mxu0 %v5468
      %5980 = vmatmul.mubr.bf16.gmra.mxu0 %v5324
      %v5981 = vpop.f32.mrf.mxu0
      %v5982 = vadd.f32 0.0, %v5981
      %v5983 = vpop.f32.mrf.mxu0
      %v5984 = vpop.f32.mrf.mxu0
      %v5985 = vadd.f32 0.0, %v5984
      %v5986 = vpop.f32.mrf.mxu0
      %5987 = vmatprep.mubr.bf16.mxu0 %v5471
      %5988 = vmatmul.mubr.bf16.gmra.mxu0 %v5326
      %v5989 = vpop.f32.mrf.mxu0
      %v5990 = vadd.f32 0.0, %v5989
      %v5991 = vpop.f32.mrf.mxu0
      %v5992 = vpop.f32.mrf.mxu0
      %v5993 = vadd.f32 0.0, %v5992
      %v5994 = vpop.f32.mrf.mxu0
      %5995 = vdwg.mxu0
      %v5996 = vmax.f32 %v5508, %v5806
      %v5997 = vmax.f32 %v5511, %v5809
      %v5998 = vmax.f32 %v5516, %v5814
      %v5999 = vmax.f32 %v5519, %v5817
      %v6000 = vmax.f32 %v5524, %v5822
      %v6001 = vmax.f32 %v5527, %v5825
      %v6002 = vmax.f32 %v5532, %v5830
      %v6003 = vmax.f32 %v5535, %v5833
      %v6004 = vmax.f32 %v5540, %v5838
      %v6005 = vmax.f32 %v5543, %v5841
      %v6006 = vmax.f32 %v5548, %v5846
      %v6007 = vmax.f32 %v5551, %v5849
      %v6008 = vmax.f32 %v5556, %v5854
      %v6009 = vmax.f32 %v5559, %v5857
      %v6010 = vmax.f32 %v5564, %v5862
      %v6011 = vmax.f32 %v5567, %v5865
      %v6012 = vmax.f32 %v5572, %v5870
      %v6013 = vmax.f32 %v5575, %v5873
      %v6014 = vmax.f32 %v5580, %v5878
      %v6015 = vmax.f32 %v5583, %v5881
      %v6016 = vmax.f32 %v5588, %v5886
      %v6017 = vmax.f32 %v5591, %v5889
      %v6018 = vmax.f32 %v5596, %v5894
      %v6019 = vmax.f32 %v5599, %v5897
      %v6020 = vmax.f32 %v5604, %v5902
      %v6021 = vmax.f32 %v5607, %v5905
      %v6022 = vmax.f32 %v5612, %v5910
      %v6023 = vmax.f32 %v5615, %v5913
      %v6024 = vmax.f32 %v5620, %v5918
      %v6025 = vmax.f32 %v5623, %v5921
      %v6026 = vmax.f32 %v5628, %v5926
      %v6027 = vmax.f32 %v5631, %v5929
      %v6028 = vmax.f32 %v5636, %v5934
      %v6029 = vmax.f32 %v5639, %v5937
      %v6030 = vmax.f32 %v5644, %v5942
      %v6031 = vmax.f32 %v5647, %v5945
      %v6032 = vmax.f32 %v5652, %v5950
      %v6033 = vmax.f32 %v5655, %v5953
      %v6034 = vmax.f32 %v5660, %v5958
      %v6035 = vmax.f32 %v5663, %v5961
      %v6036 = vmax.f32 %v5668, %v5966
      %v6037 = vmax.f32 %v5671, %v5969
      %v6038 = vmax.f32 %v5676, %v5974
      %v6039 = vmax.f32 %v5679, %v5977
      %v6040 = vmax.f32 %v5684, %v5982
      %v6041 = vmax.f32 %v5687, %v5985
      %v6042 = vmax.f32 %v5692, %v5990
      %v6043 = vmax.f32 %v5695, %v5993
      %v6044 = vpack.c.bf16 %v5997, %v5996
      %v6045 = vpack.c.bf16 %v5999, %v5998
      %v6046 = vpack.c.bf16 %v6001, %v6000
      %v6047 = vpack.c.bf16 %v6003, %v6002
      %v6048 = vpack.c.bf16 %v6005, %v6004
      %v6049 = vpack.c.bf16 %v6007, %v6006
      %v6050 = vpack.c.bf16 %v6009, %v6008
      %v6051 = vpack.c.bf16 %v6011, %v6010
      %v6052 = vpack.c.bf16 %v6013, %v6012
      %v6053 = vpack.c.bf16 %v6015, %v6014
      %v6054 = vpack.c.bf16 %v6017, %v6016
      %v6055 = vpack.c.bf16 %v6019, %v6018
      %v6056 = vpack.c.bf16 %v6021, %v6020
      %v6057 = vpack.c.bf16 %v6023, %v6022
      %v6058 = vpack.c.bf16 %v6025, %v6024
      %v6059 = vpack.c.bf16 %v6027, %v6026
      %v6060 = vld [vmem:[%s4] sm:$0xf]
      %v6061 = vld [vmem:[%s4 + $0x4] sm:$0xf]
      %v6062 = vld [vmem:[%s4 + $0x8] sm:$0xf]
      %v6063 = vld [vmem:[%s4 + $0xc] sm:$0xf]
      %v6064 = vld [vmem:[%s4 + $0x10] sm:$0xf]
      %v6065 = vld [vmem:[%s4 + $0x14] sm:$0xf]
      %v6066 = vld [vmem:[%s4 + $0x18] sm:$0xf]
      %v6067 = vld [vmem:[%s4 + $0x1c] sm:$0xf]
      %v6068 = vld [vmem:[%s4 + $0x20] sm:$0xf]
      %v6069 = vpack.c.bf16 %v6029, %v6028
      %v6070 = vpack.c.bf16 %v6031, %v6030
      %s6071 = scalar_lea.vmem %s4, 36
      %v6072 = vld [vmem:[%s6071] sm:$0xf]
      %v6073 = vld [vmem:[%s6071 + $0x4] sm:$0xf]
      %v6074 = vld [vmem:[%s6071 + $0x8] sm:$0xf]
      %v6075 = vld [vmem:[%s6071 + $0xc] sm:$0xf]
      %v6076 = vld [vmem:[%s6071 + $0x10] sm:$0xf]
      %v6077 = vld [vmem:[%s6071 + $0x14] sm:$0xf]
      %v6078 = vld [vmem:[%s6071 + $0x18] sm:$0xf]
      %v6079 = vld [vmem:[%s6071 + $0x1c] sm:$0xf]
      %v6080 = vld [vmem:[%s6071 + $0x20] sm:$0xf]
      %v6090 = vunpack.c.l.b16 %v6072
      %v6091 = vunpack.c.l.b16 %v6073
      %v6092 = vunpack.c.l.b16 %v6074
      %v6093 = vunpack.c.l.b16 %v6075
      %v6094 = vunpack.c.l.b16 %v6076
      %v6095 = vunpack.c.l.b16 %v6077
      %v6096 = vunpack.c.l.b16 %v6078
      %v6097 = vunpack.c.l.b16 %v6079
      %v6098 = vunpack.c.l.b16 %v6080
      %v6099 = vpack.c.b16 %v6091, %v6090
      %v6100 = vpack.c.b16 %v6093, %v6092
      %v6101 = vpack.c.b16 %v6095, %v6094
      %v6102 = vpack.c.b16 %v6097, %v6096
      %v6103 = vpack.c.b16 %v6098, %v6098
      %vm6108 = vcmask 588800
      %v6110 = vsel %vm6108, %v6046, 0
      %v6113 = vsel %vm6108, %v6047, 0
      %v6116 = vsel %vm6108, %v6048, 0
      %v6119 = vsel %vm6108, %v6049, 0
      %v6122 = vsel %vm6108, %v6050, 0
      %v6125 = vsel %vm6108, %v6051, 0
      %v6128 = vsel %vm6108, %v6052, 0
      %v6131 = vsel %vm6108, %v6053, 0
      %v6134 = vsel %vm6108, %v6054, 0
      %v6137 = vsel %vm6108, %v6055, 0
      %v6140 = vsel %vm6108, %v6056, 0
      %v6143 = vsel %vm6108, %v6057, 0
      %v6146 = vsel %vm6108, %v6058, 0
      %v6149 = vsel %vm6108, %v6059, 0
      %v6152 = vsel %vm6108, %v6069, 0
      %v6155 = vsel %vm6108, %v6070, 0
      %vm6157 = vcmask 1043456
      %v6159 = vsel %vm6157, %v6103, 0
      %6161 = vmatprep.subr.bf16.mxu0 0
      %6162 = vmatpush1.bf16.msra.mxu0 0
      %6163 = vmatprep.subr.bf16.mxu0 0
      %6164 = vmatpush1.bf16.msra.mxu0 0
      %6165 = vmatprep.subr.bf16.mxu0 0
      %6166 = vmatpush1.bf16.msra.mxu0 0
      %6167 = vmatprep.subr.bf16.mxu0 0
      %6168 = vmatpush1.bf16.msra.mxu0 %v6159
      %6169 = vmatprep.subr.bf16.mxu0 0
      %6170 = vmatpush1.bf16.msra.mxu0 %v6102
      %6171 = vmatprep.subr.bf16.mxu0 0
      %6172 = vmatpush1.bf16.msra.mxu0 %v6101
      %6173 = vmatprep.subr.bf16.mxu0 0
      %6174 = vmatpush1.bf16.msra.mxu0 %v6100
      %6175 = vmatprep.subr.bf16.mxu0 0
      %6176 = vmatpush1.bf16.msra.mxu0 %v6099
      %6177 = vmatprep.subr.bf16.mxu0 0
      %6178 = vmatpush2.bf16.msra.mxu0 0
      %6179 = vmatprep.subr.bf16.mxu0 0
      %6180 = vmatpush2.bf16.msra.mxu0 0
      %6181 = vmatprep.subr.bf16.mxu0 0
      %6182 = vmatpush2.bf16.msra.mxu0 0
      %6183 = vmatprep.subr.bf16.mxu0 0
      %6184 = vmatpush2.bf16.msra.mxu0 0
      %6185 = vmatprep.subr.bf16.mxu0 0
      %6186 = vmatpush2.bf16.msra.mxu0 0
      %6187 = vmatprep.subr.bf16.mxu0 0
      %6188 = vmatpush2.bf16.msra.mxu0 0
      %6189 = vmatprep.subr.bf16.mxu0 0
      %6190 = vmatpush2.bf16.msra.mxu0 0
      %6191 = vmatprep.subr.bf16.mxu0 0
      %6192 = vmatpush2.bf16.msra.mxu0 0
      %6193 = vmatprep.mubr.bf16.mxu0 0
      %6194 = vmatmul.mubr.bf16.gmra.mxu0 %v6110
      %v6195 = vpop.f32.mrf.mxu0
      %v6196 = vadd.f32 0.0, %v6195
      %v6197 = vpop.f32.mrf.mxu0
      %v6198 = vpop.f32.mrf.mxu0
      %v6199 = vadd.f32 0.0, %v6198
      %v6200 = vpop.f32.mrf.mxu0
      %6201 = vmatprep.mubr.bf16.mxu0 0
      %6202 = vmatmul.mubr.bf16.gmra.mxu0 %v6113
      %v6203 = vpop.f32.mrf.mxu0
      %v6204 = vadd.f32 0.0, %v6203
      %v6205 = vpop.f32.mrf.mxu0
      %v6206 = vpop.f32.mrf.mxu0
      %v6207 = vadd.f32 0.0, %v6206
      %v6208 = vpop.f32.mrf.mxu0
      %6209 = vmatprep.mubr.bf16.mxu0 0
      %6210 = vmatmul.mubr.bf16.gmra.mxu0 %v6116
      %v6211 = vpop.f32.mrf.mxu0
      %v6212 = vadd.f32 0.0, %v6211
      %v6213 = vpop.f32.mrf.mxu0
      %v6214 = vpop.f32.mrf.mxu0
      %v6215 = vadd.f32 0.0, %v6214
      %v6216 = vpop.f32.mrf.mxu0
      %6217 = vmatprep.mubr.bf16.mxu0 0
      %6218 = vmatmul.mubr.bf16.gmra.mxu0 %v6119
      %v6219 = vpop.f32.mrf.mxu0
      %v6220 = vadd.f32 0.0, %v6219
      %v6221 = vpop.f32.mrf.mxu0
      %v6222 = vpop.f32.mrf.mxu0
      %v6223 = vadd.f32 0.0, %v6222
      %v6224 = vpop.f32.mrf.mxu0
      %6225 = vmatprep.mubr.bf16.mxu0 0
      %6226 = vmatmul.mubr.bf16.gmra.mxu0 %v6122
      %v6227 = vpop.f32.mrf.mxu0
      %v6228 = vadd.f32 0.0, %v6227
      %v6229 = vpop.f32.mrf.mxu0
      %v6230 = vpop.f32.mrf.mxu0
      %v6231 = vadd.f32 0.0, %v6230
      %v6232 = vpop.f32.mrf.mxu0
      %6233 = vmatprep.mubr.bf16.mxu0 0
      %6234 = vmatmul.mubr.bf16.gmra.mxu0 %v6125
      %v6235 = vpop.f32.mrf.mxu0
      %v6236 = vadd.f32 0.0, %v6235
      %v6237 = vpop.f32.mrf.mxu0
      %v6238 = vpop.f32.mrf.mxu0
      %v6239 = vadd.f32 0.0, %v6238
      %v6240 = vpop.f32.mrf.mxu0
      %6241 = vmatprep.mubr.bf16.mxu0 0
      %6242 = vmatmul.mubr.bf16.gmra.mxu0 %v6128
      %v6243 = vpop.f32.mrf.mxu0
      %v6244 = vadd.f32 0.0, %v6243
      %v6245 = vpop.f32.mrf.mxu0
      %v6246 = vpop.f32.mrf.mxu0
      %v6247 = vadd.f32 0.0, %v6246
      %v6248 = vpop.f32.mrf.mxu0
      %6249 = vmatprep.mubr.bf16.mxu0 0
      %6250 = vmatmul.mubr.bf16.gmra.mxu0 %v6131
      %v6251 = vpop.f32.mrf.mxu0
      %v6252 = vadd.f32 0.0, %v6251
      %v6253 = vpop.f32.mrf.mxu0
      %v6254 = vpop.f32.mrf.mxu0
      %v6255 = vadd.f32 0.0, %v6254
      %v6256 = vpop.f32.mrf.mxu0
      %6257 = vmatprep.mubr.bf16.mxu0 0
      %6258 = vmatmul.mubr.bf16.gmra.mxu0 %v6134
      %v6259 = vpop.f32.mrf.mxu0
      %v6260 = vadd.f32 0.0, %v6259
      %v6261 = vpop.f32.mrf.mxu0
      %v6262 = vpop.f32.mrf.mxu0
      %v6263 = vadd.f32 0.0, %v6262
      %v6264 = vpop.f32.mrf.mxu0
      %6265 = vmatprep.mubr.bf16.mxu0 0
      %6266 = vmatmul.mubr.bf16.gmra.mxu0 %v6137
      %v6267 = vpop.f32.mrf.mxu0
      %v6268 = vadd.f32 0.0, %v6267
      %v6269 = vpop.f32.mrf.mxu0
      %v6270 = vpop.f32.mrf.mxu0
      %v6271 = vadd.f32 0.0, %v6270
      %v6272 = vpop.f32.mrf.mxu0
      %6273 = vmatprep.mubr.bf16.mxu0 0
      %6274 = vmatmul.mubr.bf16.gmra.mxu0 %v6140
      %v6275 = vpop.f32.mrf.mxu0
      %v6276 = vadd.f32 0.0, %v6275
      %v6277 = vpop.f32.mrf.mxu0
      %v6278 = vpop.f32.mrf.mxu0
      %v6279 = vadd.f32 0.0, %v6278
      %v6280 = vpop.f32.mrf.mxu0
      %6281 = vmatprep.mubr.bf16.mxu0 0
      %6282 = vmatmul.mubr.bf16.gmra.mxu0 %v6143
      %v6283 = vpop.f32.mrf.mxu0
      %v6284 = vadd.f32 0.0, %v6283
      %v6285 = vpop.f32.mrf.mxu0
      %v6286 = vpop.f32.mrf.mxu0
      %v6287 = vadd.f32 0.0, %v6286
      %v6288 = vpop.f32.mrf.mxu0
      %6289 = vmatprep.mubr.bf16.mxu0 0
      %6290 = vmatmul.mubr.bf16.gmra.mxu0 %v6146
      %v6291 = vpop.f32.mrf.mxu0
      %v6292 = vadd.f32 0.0, %v6291
      %v6293 = vpop.f32.mrf.mxu0
      %v6294 = vpop.f32.mrf.mxu0
      %v6295 = vadd.f32 0.0, %v6294
      %v6296 = vpop.f32.mrf.mxu0
      %6297 = vmatprep.mubr.bf16.mxu0 0
      %6298 = vmatmul.mubr.bf16.gmra.mxu0 %v6149
      %v6299 = vpop.f32.mrf.mxu0
      %v6300 = vadd.f32 0.0, %v6299
      %v6301 = vpop.f32.mrf.mxu0
      %v6302 = vpop.f32.mrf.mxu0
      %v6303 = vadd.f32 0.0, %v6302
      %v6304 = vpop.f32.mrf.mxu0
      %6305 = vmatprep.mubr.bf16.mxu0 0
      %6306 = vmatmul.mubr.bf16.gmra.mxu0 %v6152
      %v6307 = vpop.f32.mrf.mxu0
      %v6308 = vadd.f32 0.0, %v6307
      %v6309 = vpop.f32.mrf.mxu0
      %v6310 = vpop.f32.mrf.mxu0
      %v6311 = vadd.f32 0.0, %v6310
      %v6312 = vpop.f32.mrf.mxu0
      %6313 = vmatprep.mubr.bf16.mxu0 0
      %6314 = vmatmul.mubr.bf16.gmra.mxu0 %v6155
      %v6315 = vpop.f32.mrf.mxu0
      %v6316 = vadd.f32 0.0, %v6315
      %v6317 = vpop.f32.mrf.mxu0
      %v6318 = vpop.f32.mrf.mxu0
      %v6319 = vadd.f32 0.0, %v6318
      %v6320 = vpop.f32.mrf.mxu0
      %6321 = vdwg.mxu0
      %v6331 = vunpack.c.l.b16 %v6060
      %v6332 = vunpack.c.l.b16 %v6061
      %v6333 = vunpack.c.l.b16 %v6062
      %v6334 = vunpack.c.l.b16 %v6063
      %v6335 = vunpack.c.l.b16 %v6064
      %v6336 = vunpack.c.l.b16 %v6065
      %v6337 = vunpack.c.l.b16 %v6066
      %v6338 = vunpack.c.l.b16 %v6067
      %v6339 = vunpack.c.l.b16 %v6068
      %v6340 = vpack.c.b16 %v6332, %v6331
      %v6341 = vpack.c.b16 %v6334, %v6333
      %v6342 = vpack.c.b16 %v6336, %v6335
      %v6343 = vpack.c.b16 %v6338, %v6337
      %v6344 = vpack.c.b16 %v6339, %v6339
      %v6350 = vsel %vm6108, %v6044, 0
      %v6353 = vsel %vm6108, %v6045, 0
      %v6356 = vsel %vm6157, %v6344, 0
      %6358 = vmatprep.subr.bf16.mxu0 0
      %6359 = vmatpush1.bf16.msra.mxu0 0
      %6360 = vmatprep.subr.bf16.mxu0 0
      %6361 = vmatpush1.bf16.msra.mxu0 0
      %6362 = vmatprep.subr.bf16.mxu0 0
      %6363 = vmatpush1.bf16.msra.mxu0 0
      %6364 = vmatprep.subr.bf16.mxu0 0
      %6365 = vmatpush1.bf16.msra.mxu0 %v6356
      %6366 = vmatprep.subr.bf16.mxu0 0
      %6367 = vmatpush1.bf16.msra.mxu0 %v6343
      %6368 = vmatprep.subr.bf16.mxu0 0
      %6369 = vmatpush1.bf16.msra.mxu0 %v6342
      %6370 = vmatprep.subr.bf16.mxu0 0
      %6371 = vmatpush1.bf16.msra.mxu0 %v6341
      %6372 = vmatprep.subr.bf16.mxu0 0
      %6373 = vmatpush1.bf16.msra.mxu0 %v6340
      %6374 = vmatprep.subr.bf16.mxu0 0
      %6375 = vmatpush2.bf16.msra.mxu0 0
      %6376 = vmatprep.subr.bf16.mxu0 0
      %6377 = vmatpush2.bf16.msra.mxu0 0
      %6378 = vmatprep.subr.bf16.mxu0 0
      %6379 = vmatpush2.bf16.msra.mxu0 0
      %6380 = vmatprep.subr.bf16.mxu0 0
      %6381 = vmatpush2.bf16.msra.mxu0 0
      %6382 = vmatprep.subr.bf16.mxu0 0
      %6383 = vmatpush2.bf16.msra.mxu0 0
      %6384 = vmatprep.subr.bf16.mxu0 0
      %6385 = vmatpush2.bf16.msra.mxu0 0
      %6386 = vmatprep.subr.bf16.mxu0 0
      %6387 = vmatpush2.bf16.msra.mxu0 0
      %6388 = vmatprep.subr.bf16.mxu0 0
      %6389 = vmatpush2.bf16.msra.mxu0 0
      %6390 = vmatprep.mubr.bf16.mxu0 0
      %6391 = vmatmul.mubr.bf16.gmra.mxu0 %v6350
      %v6392 = vpop.f32.mrf.mxu0
      %v6393 = vadd.f32 %v6196, %v6392
      %v6394 = vpop.f32.mrf.mxu0
      %v6395 = vpop.f32.mrf.mxu0
      %v6396 = vadd.f32 %v6199, %v6395
      %v6397 = vpop.f32.mrf.mxu0
      %6398 = vmatprep.mubr.bf16.mxu0 0
      %6399 = vmatmul.mubr.bf16.gmra.mxu0 %v6353
      %v6400 = vpop.f32.mrf.mxu0
      %v6401 = vadd.f32 %v6204, %v6400
      %v6402 = vpop.f32.mrf.mxu0
      %v6403 = vpop.f32.mrf.mxu0
      %v6404 = vadd.f32 %v6207, %v6403
      %v6405 = vpop.f32.mrf.mxu0
      %6406 = vmatprep.mubr.bf16.mxu0 0
      %6407 = vmatmul.mubr.bf16.gmra.mxu0 %v6110
      %v6408 = vpop.f32.mrf.mxu0
      %v6409 = vadd.f32 %v6212, %v6408
      %v6410 = vpop.f32.mrf.mxu0
      %v6411 = vpop.f32.mrf.mxu0
      %v6412 = vadd.f32 %v6215, %v6411
      %v6413 = vpop.f32.mrf.mxu0
      %6414 = vmatprep.mubr.bf16.mxu0 0
      %6415 = vmatmul.mubr.bf16.gmra.mxu0 %v6113
      %v6416 = vpop.f32.mrf.mxu0
      %v6417 = vadd.f32 %v6220, %v6416
      %v6418 = vpop.f32.mrf.mxu0
      %v6419 = vpop.f32.mrf.mxu0
      %v6420 = vadd.f32 %v6223, %v6419
      %v6421 = vpop.f32.mrf.mxu0
      %6422 = vmatprep.mubr.bf16.mxu0 0
      %6423 = vmatmul.mubr.bf16.gmra.mxu0 %v6116
      %v6424 = vpop.f32.mrf.mxu0
      %v6425 = vadd.f32 %v6228, %v6424
      %v6426 = vpop.f32.mrf.mxu0
      %v6427 = vpop.f32.mrf.mxu0
      %v6428 = vadd.f32 %v6231, %v6427
      %v6429 = vpop.f32.mrf.mxu0
      %6430 = vmatprep.mubr.bf16.mxu0 0
      %6431 = vmatmul.mubr.bf16.gmra.mxu0 %v6119
      %v6432 = vpop.f32.mrf.mxu0
      %v6433 = vadd.f32 %v6236, %v6432
      %v6434 = vpop.f32.mrf.mxu0
      %v6435 = vpop.f32.mrf.mxu0
      %v6436 = vadd.f32 %v6239, %v6435
      %v6437 = vpop.f32.mrf.mxu0
      %6438 = vmatprep.mubr.bf16.mxu0 0
      %6439 = vmatmul.mubr.bf16.gmra.mxu0 %v6122
      %v6440 = vpop.f32.mrf.mxu0
      %v6441 = vadd.f32 %v6244, %v6440
      %v6442 = vpop.f32.mrf.mxu0
      %v6443 = vpop.f32.mrf.mxu0
      %v6444 = vadd.f32 %v6247, %v6443
      %v6445 = vpop.f32.mrf.mxu0
      %6446 = vmatprep.mubr.bf16.mxu0 0
      %6447 = vmatmul.mubr.bf16.gmra.mxu0 %v6125
      %v6448 = vpop.f32.mrf.mxu0
      %v6449 = vadd.f32 %v6252, %v6448
      %v6450 = vpop.f32.mrf.mxu0
      %v6451 = vpop.f32.mrf.mxu0
      %v6452 = vadd.f32 %v6255, %v6451
      %v6453 = vpop.f32.mrf.mxu0
      %6454 = vmatprep.mubr.bf16.mxu0 0
      %6455 = vmatmul.mubr.bf16.gmra.mxu0 %v6128
      %v6456 = vpop.f32.mrf.mxu0
      %v6457 = vadd.f32 %v6260, %v6456
      %v6458 = vpop.f32.mrf.mxu0
      %v6459 = vpop.f32.mrf.mxu0
      %v6460 = vadd.f32 %v6263, %v6459
      %v6461 = vpop.f32.mrf.mxu0
      %6462 = vmatprep.mubr.bf16.mxu0 0
      %6463 = vmatmul.mubr.bf16.gmra.mxu0 %v6131
      %v6464 = vpop.f32.mrf.mxu0
      %v6465 = vadd.f32 %v6268, %v6464
      %v6466 = vpop.f32.mrf.mxu0
      %v6467 = vpop.f32.mrf.mxu0
      %v6468 = vadd.f32 %v6271, %v6467
      %v6469 = vpop.f32.mrf.mxu0
      %6470 = vmatprep.mubr.bf16.mxu0 0
      %6471 = vmatmul.mubr.bf16.gmra.mxu0 %v6134
      %v6472 = vpop.f32.mrf.mxu0
      %v6473 = vadd.f32 %v6276, %v6472
      %v6474 = vpop.f32.mrf.mxu0
      %v6475 = vpop.f32.mrf.mxu0
      %v6476 = vadd.f32 %v6279, %v6475
      %v6477 = vpop.f32.mrf.mxu0
      %6478 = vmatprep.mubr.bf16.mxu0 0
      %6479 = vmatmul.mubr.bf16.gmra.mxu0 %v6137
      %v6480 = vpop.f32.mrf.mxu0
      %v6481 = vadd.f32 %v6284, %v6480
      %v6482 = vpop.f32.mrf.mxu0
      %v6483 = vpop.f32.mrf.mxu0
      %v6484 = vadd.f32 %v6287, %v6483
      %v6485 = vpop.f32.mrf.mxu0
      %6486 = vmatprep.mubr.bf16.mxu0 0
      %6487 = vmatmul.mubr.bf16.gmra.mxu0 %v6140
      %v6488 = vpop.f32.mrf.mxu0
      %v6489 = vadd.f32 %v6292, %v6488
      %v6490 = vpop.f32.mrf.mxu0
      %v6491 = vpop.f32.mrf.mxu0
      %v6492 = vadd.f32 %v6295, %v6491
      %v6493 = vpop.f32.mrf.mxu0
      %6494 = vmatprep.mubr.bf16.mxu0 0
      %6495 = vmatmul.mubr.bf16.gmra.mxu0 %v6143
      %v6496 = vpop.f32.mrf.mxu0
      %v6497 = vadd.f32 %v6300, %v6496
      %v6498 = vpop.f32.mrf.mxu0
      %v6499 = vpop.f32.mrf.mxu0
      %v6500 = vadd.f32 %v6303, %v6499
      %v6501 = vpop.f32.mrf.mxu0
      %6502 = vmatprep.mubr.bf16.mxu0 0
      %6503 = vmatmul.mubr.bf16.gmra.mxu0 %v6146
      %v6504 = vpop.f32.mrf.mxu0
      %v6505 = vadd.f32 %v6308, %v6504
      %v6506 = vpop.f32.mrf.mxu0
      %v6507 = vpop.f32.mrf.mxu0
      %v6508 = vadd.f32 %v6311, %v6507
      %v6509 = vpop.f32.mrf.mxu0
      %6510 = vmatprep.mubr.bf16.mxu0 0
      %6511 = vmatmul.mubr.bf16.gmra.mxu0 %v6149
      %v6512 = vpop.f32.mrf.mxu0
      %v6513 = vadd.f32 %v6316, %v6512
      %v6514 = vpop.f32.mrf.mxu0
      %v6515 = vpop.f32.mrf.mxu0
      %v6516 = vadd.f32 %v6319, %v6515
      %v6517 = vpop.f32.mrf.mxu0
      %6518 = vdwg.mxu0
      %v6519 = vpack.c.bf16 %v6033, %v6032
      %v6520 = vpack.c.bf16 %v6035, %v6034
      %s6521 = scalar_lea.vmem %s4, 72
      %v6522 = vld [vmem:[%s6521] sm:$0xf]
      %v6523 = vld [vmem:[%s6521 + $0x4] sm:$0xf]
      %v6524 = vld [vmem:[%s6521 + $0x8] sm:$0xf]
      %v6525 = vld [vmem:[%s6521 + $0xc] sm:$0xf]
      %v6526 = vld [vmem:[%s6521 + $0x10] sm:$0xf]
      %v6527 = vld [vmem:[%s6521 + $0x14] sm:$0xf]
      %v6528 = vld [vmem:[%s6521 + $0x18] sm:$0xf]
      %v6529 = vld [vmem:[%s6521 + $0x1c] sm:$0xf]
      %v6530 = vld [vmem:[%s6521 + $0x20] sm:$0xf]
      %v6540 = vunpack.c.l.b16 %v6522
      %v6541 = vunpack.c.l.b16 %v6523
      %v6542 = vunpack.c.l.b16 %v6524
      %v6543 = vunpack.c.l.b16 %v6525
      %v6544 = vunpack.c.l.b16 %v6526
      %v6545 = vunpack.c.l.b16 %v6527
      %v6546 = vunpack.c.l.b16 %v6528
      %v6547 = vunpack.c.l.b16 %v6529
      %v6548 = vunpack.c.l.b16 %v6530
      %v6549 = vpack.c.b16 %v6541, %v6540
      %v6550 = vpack.c.b16 %v6543, %v6542
      %v6551 = vpack.c.b16 %v6545, %v6544
      %v6552 = vpack.c.b16 %v6547, %v6546
      %v6553 = vpack.c.b16 %v6548, %v6548
      %v6559 = vsel %vm6108, %v6519, 0
      %v6562 = vsel %vm6108, %v6520, 0
      %v6565 = vsel %vm6157, %v6553, 0
      %6567 = vmatprep.subr.bf16.mxu0 0
      %6568 = vmatpush1.bf16.msra.mxu0 0
      %6569 = vmatprep.subr.bf16.mxu0 0
      %6570 = vmatpush1.bf16.msra.mxu0 0
      %6571 = vmatprep.subr.bf16.mxu0 0
      %6572 = vmatpush1.bf16.msra.mxu0 0
      %6573 = vmatprep.subr.bf16.mxu0 0
      %6574 = vmatpush1.bf16.msra.mxu0 %v6565
      %6575 = vmatprep.subr.bf16.mxu0 0
      %6576 = vmatpush1.bf16.msra.mxu0 %v6552
      %6577 = vmatprep.subr.bf16.mxu0 0
      %6578 = vmatpush1.bf16.msra.mxu0 %v6551
      %6579 = vmatprep.subr.bf16.mxu0 0
      %6580 = vmatpush1.bf16.msra.mxu0 %v6550
      %6581 = vmatprep.subr.bf16.mxu0 0
      %6582 = vmatpush1.bf16.msra.mxu0 %v6549
      %6583 = vmatprep.subr.bf16.mxu0 0
      %6584 = vmatpush2.bf16.msra.mxu0 0
      %6585 = vmatprep.subr.bf16.mxu0 0
      %6586 = vmatpush2.bf16.msra.mxu0 0
      %6587 = vmatprep.subr.bf16.mxu0 0
      %6588 = vmatpush2.bf16.msra.mxu0 0
      %6589 = vmatprep.subr.bf16.mxu0 0
      %6590 = vmatpush2.bf16.msra.mxu0 0
      %6591 = vmatprep.subr.bf16.mxu0 0
      %6592 = vmatpush2.bf16.msra.mxu0 0
      %6593 = vmatprep.subr.bf16.mxu0 0
      %6594 = vmatpush2.bf16.msra.mxu0 0
      %6595 = vmatprep.subr.bf16.mxu0 0
      %6596 = vmatpush2.bf16.msra.mxu0 0
      %6597 = vmatprep.subr.bf16.mxu0 0
      %6598 = vmatpush2.bf16.msra.mxu0 0
      %6599 = vmatprep.mubr.bf16.mxu0 0
      %6600 = vmatmul.mubr.bf16.gmra.mxu0 %v6116
      %v6601 = vpop.f32.mrf.mxu0
      %v6602 = vadd.f32 0.0, %v6601
      %v6603 = vpop.f32.mrf.mxu0
      %v6604 = vpop.f32.mrf.mxu0
      %v6605 = vadd.f32 0.0, %v6604
      %v6606 = vpop.f32.mrf.mxu0
      %6607 = vmatprep.mubr.bf16.mxu0 0
      %6608 = vmatmul.mubr.bf16.gmra.mxu0 %v6119
      %v6609 = vpop.f32.mrf.mxu0
      %v6610 = vadd.f32 0.0, %v6609
      %v6611 = vpop.f32.mrf.mxu0
      %v6612 = vpop.f32.mrf.mxu0
      %v6613 = vadd.f32 0.0, %v6612
      %v6614 = vpop.f32.mrf.mxu0
      %6615 = vmatprep.mubr.bf16.mxu0 0
      %6616 = vmatmul.mubr.bf16.gmra.mxu0 %v6122
      %v6617 = vpop.f32.mrf.mxu0
      %v6618 = vadd.f32 0.0, %v6617
      %v6619 = vpop.f32.mrf.mxu0
      %v6620 = vpop.f32.mrf.mxu0
      %v6621 = vadd.f32 0.0, %v6620
      %v6622 = vpop.f32.mrf.mxu0
      %6623 = vmatprep.mubr.bf16.mxu0 0
      %6624 = vmatmul.mubr.bf16.gmra.mxu0 %v6125
      %v6625 = vpop.f32.mrf.mxu0
      %v6626 = vadd.f32 0.0, %v6625
      %v6627 = vpop.f32.mrf.mxu0
      %v6628 = vpop.f32.mrf.mxu0
      %v6629 = vadd.f32 0.0, %v6628
      %v6630 = vpop.f32.mrf.mxu0
      %6631 = vmatprep.mubr.bf16.mxu0 0
      %6632 = vmatmul.mubr.bf16.gmra.mxu0 %v6128
      %v6633 = vpop.f32.mrf.mxu0
      %v6634 = vadd.f32 0.0, %v6633
      %v6635 = vpop.f32.mrf.mxu0
      %v6636 = vpop.f32.mrf.mxu0
      %v6637 = vadd.f32 0.0, %v6636
      %v6638 = vpop.f32.mrf.mxu0
      %6639 = vmatprep.mubr.bf16.mxu0 0
      %6640 = vmatmul.mubr.bf16.gmra.mxu0 %v6131
      %v6641 = vpop.f32.mrf.mxu0
      %v6642 = vadd.f32 0.0, %v6641
      %v6643 = vpop.f32.mrf.mxu0
      %v6644 = vpop.f32.mrf.mxu0
      %v6645 = vadd.f32 0.0, %v6644
      %v6646 = vpop.f32.mrf.mxu0
      %6647 = vmatprep.mubr.bf16.mxu0 0
      %6648 = vmatmul.mubr.bf16.gmra.mxu0 %v6134
      %v6649 = vpop.f32.mrf.mxu0
      %v6650 = vadd.f32 0.0, %v6649
      %v6651 = vpop.f32.mrf.mxu0
      %v6652 = vpop.f32.mrf.mxu0
      %v6653 = vadd.f32 0.0, %v6652
      %v6654 = vpop.f32.mrf.mxu0
      %6655 = vmatprep.mubr.bf16.mxu0 0
      %6656 = vmatmul.mubr.bf16.gmra.mxu0 %v6137
      %v6657 = vpop.f32.mrf.mxu0
      %v6658 = vadd.f32 0.0, %v6657
      %v6659 = vpop.f32.mrf.mxu0
      %v6660 = vpop.f32.mrf.mxu0
      %v6661 = vadd.f32 0.0, %v6660
      %v6662 = vpop.f32.mrf.mxu0
      %6663 = vmatprep.mubr.bf16.mxu0 0
      %6664 = vmatmul.mubr.bf16.gmra.mxu0 %v6140
      %v6665 = vpop.f32.mrf.mxu0
      %v6666 = vadd.f32 0.0, %v6665
      %v6667 = vpop.f32.mrf.mxu0
      %v6668 = vpop.f32.mrf.mxu0
      %v6669 = vadd.f32 0.0, %v6668
      %v6670 = vpop.f32.mrf.mxu0
      %6671 = vmatprep.mubr.bf16.mxu0 0
      %6672 = vmatmul.mubr.bf16.gmra.mxu0 %v6143
      %v6673 = vpop.f32.mrf.mxu0
      %v6674 = vadd.f32 0.0, %v6673
      %v6675 = vpop.f32.mrf.mxu0
      %v6676 = vpop.f32.mrf.mxu0
      %v6677 = vadd.f32 0.0, %v6676
      %v6678 = vpop.f32.mrf.mxu0
      %6679 = vmatprep.mubr.bf16.mxu0 0
      %6680 = vmatmul.mubr.bf16.gmra.mxu0 %v6146
      %v6681 = vpop.f32.mrf.mxu0
      %v6682 = vadd.f32 0.0, %v6681
      %v6683 = vpop.f32.mrf.mxu0
      %v6684 = vpop.f32.mrf.mxu0
      %v6685 = vadd.f32 0.0, %v6684
      %v6686 = vpop.f32.mrf.mxu0
      %6687 = vmatprep.mubr.bf16.mxu0 0
      %6688 = vmatmul.mubr.bf16.gmra.mxu0 %v6149
      %v6689 = vpop.f32.mrf.mxu0
      %v6690 = vadd.f32 0.0, %v6689
      %v6691 = vpop.f32.mrf.mxu0
      %v6692 = vpop.f32.mrf.mxu0
      %v6693 = vadd.f32 0.0, %v6692
      %v6694 = vpop.f32.mrf.mxu0
      %6695 = vmatprep.mubr.bf16.mxu0 0
      %6696 = vmatmul.mubr.bf16.gmra.mxu0 %v6152
      %v6697 = vpop.f32.mrf.mxu0
      %v6698 = vadd.f32 0.0, %v6697
      %v6699 = vpop.f32.mrf.mxu0
      %v6700 = vpop.f32.mrf.mxu0
      %v6701 = vadd.f32 0.0, %v6700
      %v6702 = vpop.f32.mrf.mxu0
      %6703 = vmatprep.mubr.bf16.mxu0 0
      %6704 = vmatmul.mubr.bf16.gmra.mxu0 %v6155
      %v6705 = vpop.f32.mrf.mxu0
      %v6706 = vadd.f32 0.0, %v6705
      %v6707 = vpop.f32.mrf.mxu0
      %v6708 = vpop.f32.mrf.mxu0
      %v6709 = vadd.f32 0.0, %v6708
      %v6710 = vpop.f32.mrf.mxu0
      %6711 = vmatprep.mubr.bf16.mxu0 0
      %6712 = vmatmul.mubr.bf16.gmra.mxu0 %v6559
      %v6713 = vpop.f32.mrf.mxu0
      %v6714 = vadd.f32 0.0, %v6713
      %v6715 = vpop.f32.mrf.mxu0
      %v6716 = vpop.f32.mrf.mxu0
      %v6717 = vadd.f32 0.0, %v6716
      %v6718 = vpop.f32.mrf.mxu0
      %6719 = vmatprep.mubr.bf16.mxu0 0
      %6720 = vmatmul.mubr.bf16.gmra.mxu0 %v6562
      %v6721 = vpop.f32.mrf.mxu0
      %v6722 = vadd.f32 0.0, %v6721
      %v6723 = vpop.f32.mrf.mxu0
      %v6724 = vpop.f32.mrf.mxu0
      %v6725 = vadd.f32 0.0, %v6724
      %v6726 = vpop.f32.mrf.mxu0
      %6727 = vdwg.mxu0
      %v6728 = vadd.f32 %v6393, %v6602
      %v6729 = vadd.f32 %v6396, %v6605
      %v6730 = vadd.f32 %v6401, %v6610
      %v6731 = vadd.f32 %v6404, %v6613
      %v6732 = vadd.f32 %v6409, %v6618
      %v6733 = vadd.f32 %v6412, %v6621
      %v6734 = vadd.f32 %v6417, %v6626
      %v6735 = vadd.f32 %v6420, %v6629
      %v6736 = vadd.f32 %v6425, %v6634
      %v6737 = vadd.f32 %v6428, %v6637
      %v6738 = vadd.f32 %v6433, %v6642
      %v6739 = vadd.f32 %v6436, %v6645
      %v6740 = vadd.f32 %v6441, %v6650
      %v6741 = vadd.f32 %v6444, %v6653
      %v6742 = vadd.f32 %v6449, %v6658
      %v6743 = vadd.f32 %v6452, %v6661
      %v6744 = vadd.f32 %v6457, %v6666
      %v6745 = vadd.f32 %v6460, %v6669
      %v6746 = vadd.f32 %v6465, %v6674
      %v6747 = vadd.f32 %v6468, %v6677
      %v6748 = vadd.f32 %v6473, %v6682
      %v6749 = vadd.f32 %v6476, %v6685
      %v6750 = vadd.f32 %v6481, %v6690
      %v6751 = vadd.f32 %v6484, %v6693
      %v6752 = vadd.f32 %v6489, %v6698
      %v6753 = vadd.f32 %v6492, %v6701
      %v6754 = vadd.f32 %v6497, %v6706
      %v6755 = vadd.f32 %v6500, %v6709
      %v6756 = vadd.f32 %v6505, %v6714
      %v6757 = vadd.f32 %v6508, %v6717
      %v6758 = vadd.f32 %v6513, %v6722
      %v6759 = vadd.f32 %v6516, %v6725
      %v6760 = vpack.c.bf16 %v6037, %v6036
      %v6761 = vpack.c.bf16 %v6039, %v6038
      %s6762 = scalar_lea.vmem %s4, 108
      %v6763 = vld [vmem:[%s6762] sm:$0xf]
      %v6764 = vld [vmem:[%s6762 + $0x4] sm:$0xf]
      %v6765 = vld [vmem:[%s6762 + $0x8] sm:$0xf]
      %v6766 = vld [vmem:[%s6762 + $0xc] sm:$0xf]
      %v6767 = vld [vmem:[%s6762 + $0x10] sm:$0xf]
      %v6768 = vld [vmem:[%s6762 + $0x14] sm:$0xf]
      %v6769 = vld [vmem:[%s6762 + $0x18] sm:$0xf]
      %v6770 = vld [vmem:[%s6762 + $0x1c] sm:$0xf]
      %v6771 = vld [vmem:[%s6762 + $0x20] sm:$0xf]
      %v6781 = vunpack.c.l.b16 %v6763
      %v6782 = vunpack.c.l.b16 %v6764
      %v6783 = vunpack.c.l.b16 %v6765
      %v6784 = vunpack.c.l.b16 %v6766
      %v6785 = vunpack.c.l.b16 %v6767
      %v6786 = vunpack.c.l.b16 %v6768
      %v6787 = vunpack.c.l.b16 %v6769
      %v6788 = vunpack.c.l.b16 %v6770
      %v6789 = vunpack.c.l.b16 %v6771
      %v6790 = vpack.c.b16 %v6782, %v6781
      %v6791 = vpack.c.b16 %v6784, %v6783
      %v6792 = vpack.c.b16 %v6786, %v6785
      %v6793 = vpack.c.b16 %v6788, %v6787
      %v6794 = vpack.c.b16 %v6789, %v6789
      %v6800 = vsel %vm6108, %v6760, 0
      %v6803 = vsel %vm6108, %v6761, 0
      %v6806 = vsel %vm6157, %v6794, 0
      %6808 = vmatprep.subr.bf16.mxu0 0
      %6809 = vmatpush1.bf16.msra.mxu0 0
      %6810 = vmatprep.subr.bf16.mxu0 0
      %6811 = vmatpush1.bf16.msra.mxu0 0
      %6812 = vmatprep.subr.bf16.mxu0 0
      %6813 = vmatpush1.bf16.msra.mxu0 0
      %6814 = vmatprep.subr.bf16.mxu0 0
      %6815 = vmatpush1.bf16.msra.mxu0 %v6806
      %6816 = vmatprep.subr.bf16.mxu0 0
      %6817 = vmatpush1.bf16.msra.mxu0 %v6793
      %6818 = vmatprep.subr.bf16.mxu0 0
      %6819 = vmatpush1.bf16.msra.mxu0 %v6792
      %6820 = vmatprep.subr.bf16.mxu0 0
      %6821 = vmatpush1.bf16.msra.mxu0 %v6791
      %6822 = vmatprep.subr.bf16.mxu0 0
      %6823 = vmatpush1.bf16.msra.mxu0 %v6790
      %6824 = vmatprep.subr.bf16.mxu0 0
      %6825 = vmatpush2.bf16.msra.mxu0 0
      %6826 = vmatprep.subr.bf16.mxu0 0
      %6827 = vmatpush2.bf16.msra.mxu0 0
      %6828 = vmatprep.subr.bf16.mxu0 0
      %6829 = vmatpush2.bf16.msra.mxu0 0
      %6830 = vmatprep.subr.bf16.mxu0 0
      %6831 = vmatpush2.bf16.msra.mxu0 0
      %6832 = vmatprep.subr.bf16.mxu0 0
      %6833 = vmatpush2.bf16.msra.mxu0 0
      %6834 = vmatprep.subr.bf16.mxu0 0
      %6835 = vmatpush2.bf16.msra.mxu0 0
      %6836 = vmatprep.subr.bf16.mxu0 0
      %6837 = vmatpush2.bf16.msra.mxu0 0
      %6838 = vmatprep.subr.bf16.mxu0 0
      %6839 = vmatpush2.bf16.msra.mxu0 0
      %6840 = vmatprep.mubr.bf16.mxu0 0
      %6841 = vmatmul.mubr.bf16.gmra.mxu0 %v6122
      %v6842 = vpop.f32.mrf.mxu0
      %v6843 = vadd.f32 0.0, %v6842
      %v6844 = vpop.f32.mrf.mxu0
      %v6845 = vpop.f32.mrf.mxu0
      %v6846 = vadd.f32 0.0, %v6845
      %v6847 = vpop.f32.mrf.mxu0
      %6848 = vmatprep.mubr.bf16.mxu0 0
      %6849 = vmatmul.mubr.bf16.gmra.mxu0 %v6125
      %v6850 = vpop.f32.mrf.mxu0
      %v6851 = vadd.f32 0.0, %v6850
      %v6852 = vpop.f32.mrf.mxu0
      %v6853 = vpop.f32.mrf.mxu0
      %v6854 = vadd.f32 0.0, %v6853
      %v6855 = vpop.f32.mrf.mxu0
      %6856 = vmatprep.mubr.bf16.mxu0 0
      %6857 = vmatmul.mubr.bf16.gmra.mxu0 %v6128
      %v6858 = vpop.f32.mrf.mxu0
      %v6859 = vadd.f32 0.0, %v6858
      %v6860 = vpop.f32.mrf.mxu0
      %v6861 = vpop.f32.mrf.mxu0
      %v6862 = vadd.f32 0.0, %v6861
      %v6863 = vpop.f32.mrf.mxu0
      %6864 = vmatprep.mubr.bf16.mxu0 0
      %6865 = vmatmul.mubr.bf16.gmra.mxu0 %v6131
      %v6866 = vpop.f32.mrf.mxu0
      %v6867 = vadd.f32 0.0, %v6866
      %v6868 = vpop.f32.mrf.mxu0
      %v6869 = vpop.f32.mrf.mxu0
      %v6870 = vadd.f32 0.0, %v6869
      %v6871 = vpop.f32.mrf.mxu0
      %6872 = vmatprep.mubr.bf16.mxu0 0
      %6873 = vmatmul.mubr.bf16.gmra.mxu0 %v6134
      %v6874 = vpop.f32.mrf.mxu0
      %v6875 = vadd.f32 0.0, %v6874
      %v6876 = vpop.f32.mrf.mxu0
      %v6877 = vpop.f32.mrf.mxu0
      %v6878 = vadd.f32 0.0, %v6877
      %v6879 = vpop.f32.mrf.mxu0
      %6880 = vmatprep.mubr.bf16.mxu0 0
      %6881 = vmatmul.mubr.bf16.gmra.mxu0 %v6137
      %v6882 = vpop.f32.mrf.mxu0
      %v6883 = vadd.f32 0.0, %v6882
      %v6884 = vpop.f32.mrf.mxu0
      %v6885 = vpop.f32.mrf.mxu0
      %v6886 = vadd.f32 0.0, %v6885
      %v6887 = vpop.f32.mrf.mxu0
      %6888 = vmatprep.mubr.bf16.mxu0 0
      %6889 = vmatmul.mubr.bf16.gmra.mxu0 %v6140
      %v6890 = vpop.f32.mrf.mxu0
      %v6891 = vadd.f32 0.0, %v6890
      %v6892 = vpop.f32.mrf.mxu0
      %v6893 = vpop.f32.mrf.mxu0
      %v6894 = vadd.f32 0.0, %v6893
      %v6895 = vpop.f32.mrf.mxu0
      %6896 = vmatprep.mubr.bf16.mxu0 0
      %6897 = vmatmul.mubr.bf16.gmra.mxu0 %v6143
      %v6898 = vpop.f32.mrf.mxu0
      %v6899 = vadd.f32 0.0, %v6898
      %v6900 = vpop.f32.mrf.mxu0
      %v6901 = vpop.f32.mrf.mxu0
      %v6902 = vadd.f32 0.0, %v6901
      %v6903 = vpop.f32.mrf.mxu0
      %6904 = vmatprep.mubr.bf16.mxu0 0
      %6905 = vmatmul.mubr.bf16.gmra.mxu0 %v6146
      %v6906 = vpop.f32.mrf.mxu0
      %v6907 = vadd.f32 0.0, %v6906
      %v6908 = vpop.f32.mrf.mxu0
      %v6909 = vpop.f32.mrf.mxu0
      %v6910 = vadd.f32 0.0, %v6909
      %v6911 = vpop.f32.mrf.mxu0
      %6912 = vmatprep.mubr.bf16.mxu0 0
      %6913 = vmatmul.mubr.bf16.gmra.mxu0 %v6149
      %v6914 = vpop.f32.mrf.mxu0
      %v6915 = vadd.f32 0.0, %v6914
      %v6916 = vpop.f32.mrf.mxu0
      %v6917 = vpop.f32.mrf.mxu0
      %v6918 = vadd.f32 0.0, %v6917
      %v6919 = vpop.f32.mrf.mxu0
      %6920 = vmatprep.mubr.bf16.mxu0 0
      %6921 = vmatmul.mubr.bf16.gmra.mxu0 %v6152
      %v6922 = vpop.f32.mrf.mxu0
      %v6923 = vadd.f32 0.0, %v6922
      %v6924 = vpop.f32.mrf.mxu0
      %v6925 = vpop.f32.mrf.mxu0
      %v6926 = vadd.f32 0.0, %v6925
      %v6927 = vpop.f32.mrf.mxu0
      %6928 = vmatprep.mubr.bf16.mxu0 0
      %6929 = vmatmul.mubr.bf16.gmra.mxu0 %v6155
      %v6930 = vpop.f32.mrf.mxu0
      %v6931 = vadd.f32 0.0, %v6930
      %v6932 = vpop.f32.mrf.mxu0
      %v6933 = vpop.f32.mrf.mxu0
      %v6934 = vadd.f32 0.0, %v6933
      %v6935 = vpop.f32.mrf.mxu0
      %6936 = vmatprep.mubr.bf16.mxu0 0
      %6937 = vmatmul.mubr.bf16.gmra.mxu0 %v6559
      %v6938 = vpop.f32.mrf.mxu0
      %v6939 = vadd.f32 0.0, %v6938
      %v6940 = vpop.f32.mrf.mxu0
      %v6941 = vpop.f32.mrf.mxu0
      %v6942 = vadd.f32 0.0, %v6941
      %v6943 = vpop.f32.mrf.mxu0
      %6944 = vmatprep.mubr.bf16.mxu0 0
      %6945 = vmatmul.mubr.bf16.gmra.mxu0 %v6562
      %v6946 = vpop.f32.mrf.mxu0
      %v6947 = vadd.f32 0.0, %v6946
      %v6948 = vpop.f32.mrf.mxu0
      %v6949 = vpop.f32.mrf.mxu0
      %v6950 = vadd.f32 0.0, %v6949
      %v6951 = vpop.f32.mrf.mxu0
      %6952 = vmatprep.mubr.bf16.mxu0 0
      %6953 = vmatmul.mubr.bf16.gmra.mxu0 %v6800
      %v6954 = vpop.f32.mrf.mxu0
      %v6955 = vadd.f32 0.0, %v6954
      %v6956 = vpop.f32.mrf.mxu0
      %v6957 = vpop.f32.mrf.mxu0
      %v6958 = vadd.f32 0.0, %v6957
      %v6959 = vpop.f32.mrf.mxu0
      %6960 = vmatprep.mubr.bf16.mxu0 0
      %6961 = vmatmul.mubr.bf16.gmra.mxu0 %v6803
      %v6962 = vpop.f32.mrf.mxu0
      %v6963 = vadd.f32 0.0, %v6962
      %v6964 = vpop.f32.mrf.mxu0
      %v6965 = vpop.f32.mrf.mxu0
      %v6966 = vadd.f32 0.0, %v6965
      %v6967 = vpop.f32.mrf.mxu0
      %6968 = vdwg.mxu0
      %v6969 = vadd.f32 %v6728, %v6843
      %v6970 = vadd.f32 %v6729, %v6846
      %v6971 = vadd.f32 %v6730, %v6851
      %v6972 = vadd.f32 %v6731, %v6854
      %v6973 = vadd.f32 %v6732, %v6859
      %v6974 = vadd.f32 %v6733, %v6862
      %v6975 = vadd.f32 %v6734, %v6867
      %v6976 = vadd.f32 %v6735, %v6870
      %v6977 = vadd.f32 %v6736, %v6875
      %v6978 = vadd.f32 %v6737, %v6878
      %v6979 = vadd.f32 %v6738, %v6883
      %v6980 = vadd.f32 %v6739, %v6886
      %v6981 = vadd.f32 %v6740, %v6891
      %v6982 = vadd.f32 %v6741, %v6894
      %v6983 = vadd.f32 %v6742, %v6899
      %v6984 = vadd.f32 %v6743, %v6902
      %v6985 = vadd.f32 %v6744, %v6907
      %v6986 = vadd.f32 %v6745, %v6910
      %v6987 = vadd.f32 %v6746, %v6915
      %v6988 = vadd.f32 %v6747, %v6918
      %v6989 = vadd.f32 %v6748, %v6923
      %v6990 = vadd.f32 %v6749, %v6926
      %v6991 = vadd.f32 %v6750, %v6931
      %v6992 = vadd.f32 %v6751, %v6934
      %v6993 = vadd.f32 %v6752, %v6939
      %v6994 = vadd.f32 %v6753, %v6942
      %v6995 = vadd.f32 %v6754, %v6947
      %v6996 = vadd.f32 %v6755, %v6950
      %v6997 = vadd.f32 %v6756, %v6955
      %v6998 = vadd.f32 %v6757, %v6958
      %v6999 = vadd.f32 %v6758, %v6963
      %v7000 = vadd.f32 %v6759, %v6966
      %v7001 = vpack.c.bf16 %v6041, %v6040
      %v7002 = vpack.c.bf16 %v6043, %v6042
      %s7003 = scalar_lea.vmem %s4, 144
      %v7004 = vld [vmem:[%s7003] sm:$0xf]
      %v7005 = vld [vmem:[%s7003 + $0x4] sm:$0xf]
      %v7006 = vld [vmem:[%s7003 + $0x8] sm:$0xf]
      %v7007 = vld [vmem:[%s7003 + $0xc] sm:$0xf]
      %v7008 = vld [vmem:[%s7003 + $0x10] sm:$0xf]
      %v7009 = vld [vmem:[%s7003 + $0x14] sm:$0xf]
      %v7010 = vld [vmem:[%s7003 + $0x18] sm:$0xf]
      %v7011 = vld [vmem:[%s7003 + $0x1c] sm:$0xf]
      %v7012 = vld [vmem:[%s7003 + $0x20] sm:$0xf]
      %v7022 = vunpack.c.l.b16 %v7004
      %v7023 = vunpack.c.l.b16 %v7005
      %v7024 = vunpack.c.l.b16 %v7006
      %v7025 = vunpack.c.l.b16 %v7007
      %v7026 = vunpack.c.l.b16 %v7008
      %v7027 = vunpack.c.l.b16 %v7009
      %v7028 = vunpack.c.l.b16 %v7010
      %v7029 = vunpack.c.l.b16 %v7011
      %v7030 = vunpack.c.l.b16 %v7012
      %v7031 = vpack.c.b16 %v7023, %v7022
      %v7032 = vpack.c.b16 %v7025, %v7024
      %v7033 = vpack.c.b16 %v7027, %v7026
      %v7034 = vpack.c.b16 %v7029, %v7028
      %v7035 = vpack.c.b16 %v7030, %v7030
      %v7041 = vsel %vm6108, %v7001, 0
      %v7044 = vsel %vm6108, %v7002, 0
      %v7047 = vsel %vm6157, %v7035, 0
      %7049 = vmatprep.subr.bf16.mxu0 0
      %7050 = vmatpush1.bf16.msra.mxu0 0
      %7051 = vmatprep.subr.bf16.mxu0 0
      %7052 = vmatpush1.bf16.msra.mxu0 0
      %7053 = vmatprep.subr.bf16.mxu0 0
      %7054 = vmatpush1.bf16.msra.mxu0 0
      %7055 = vmatprep.subr.bf16.mxu0 0
      %7056 = vmatpush1.bf16.msra.mxu0 %v7047
      %7057 = vmatprep.subr.bf16.mxu0 0
      %7058 = vmatpush1.bf16.msra.mxu0 %v7034
      %7059 = vmatprep.subr.bf16.mxu0 0
      %7060 = vmatpush1.bf16.msra.mxu0 %v7033
      %7061 = vmatprep.subr.bf16.mxu0 0
      %7062 = vmatpush1.bf16.msra.mxu0 %v7032
      %7063 = vmatprep.subr.bf16.mxu0 0
      %7064 = vmatpush1.bf16.msra.mxu0 %v7031
      %7065 = vmatprep.subr.bf16.mxu0 0
      %7066 = vmatpush2.bf16.msra.mxu0 0
      %7067 = vmatprep.subr.bf16.mxu0 0
      %7068 = vmatpush2.bf16.msra.mxu0 0
      %7069 = vmatprep.subr.bf16.mxu0 0
      %7070 = vmatpush2.bf16.msra.mxu0 0
      %7071 = vmatprep.subr.bf16.mxu0 0
      %7072 = vmatpush2.bf16.msra.mxu0 0
      %7073 = vmatprep.subr.bf16.mxu0 0
      %7074 = vmatpush2.bf16.msra.mxu0 0
      %7075 = vmatprep.subr.bf16.mxu0 0
      %7076 = vmatpush2.bf16.msra.mxu0 0
      %7077 = vmatprep.subr.bf16.mxu0 0
      %7078 = vmatpush2.bf16.msra.mxu0 0
      %7079 = vmatprep.subr.bf16.mxu0 0
      %7080 = vmatpush2.bf16.msra.mxu0 0
      %7081 = vmatprep.mubr.bf16.mxu0 0
      %7082 = vmatmul.mubr.bf16.gmra.mxu0 %v6128
      %v7083 = vpop.f32.mrf.mxu0
      %v7084 = vadd.f32 0.0, %v7083
      %v7085 = vpop.f32.mrf.mxu0
      %v7086 = vpop.f32.mrf.mxu0
      %v7087 = vadd.f32 0.0, %v7086
      %v7088 = vpop.f32.mrf.mxu0
      %7089 = vmatprep.mubr.bf16.mxu0 0
      %7090 = vmatmul.mubr.bf16.gmra.mxu0 %v6131
      %v7091 = vpop.f32.mrf.mxu0
      %v7092 = vadd.f32 0.0, %v7091
      %v7093 = vpop.f32.mrf.mxu0
      %v7094 = vpop.f32.mrf.mxu0
      %v7095 = vadd.f32 0.0, %v7094
      %v7096 = vpop.f32.mrf.mxu0
      %7097 = vmatprep.mubr.bf16.mxu0 0
      %7098 = vmatmul.mubr.bf16.gmra.mxu0 %v6134
      %v7099 = vpop.f32.mrf.mxu0
      %v7100 = vadd.f32 0.0, %v7099
      %v7101 = vpop.f32.mrf.mxu0
      %v7102 = vpop.f32.mrf.mxu0
      %v7103 = vadd.f32 0.0, %v7102
      %v7104 = vpop.f32.mrf.mxu0
      %7105 = vmatprep.mubr.bf16.mxu0 0
      %7106 = vmatmul.mubr.bf16.gmra.mxu0 %v6137
      %v7107 = vpop.f32.mrf.mxu0
      %v7108 = vadd.f32 0.0, %v7107
      %v7109 = vpop.f32.mrf.mxu0
      %v7110 = vpop.f32.mrf.mxu0
      %v7111 = vadd.f32 0.0, %v7110
      %v7112 = vpop.f32.mrf.mxu0
      %7113 = vmatprep.mubr.bf16.mxu0 0
      %7114 = vmatmul.mubr.bf16.gmra.mxu0 %v6140
      %v7115 = vpop.f32.mrf.mxu0
      %v7116 = vadd.f32 0.0, %v7115
      %v7117 = vpop.f32.mrf.mxu0
      %v7118 = vpop.f32.mrf.mxu0
      %v7119 = vadd.f32 0.0, %v7118
      %v7120 = vpop.f32.mrf.mxu0
      %7121 = vmatprep.mubr.bf16.mxu0 0
      %7122 = vmatmul.mubr.bf16.gmra.mxu0 %v6143
      %v7123 = vpop.f32.mrf.mxu0
      %v7124 = vadd.f32 0.0, %v7123
      %v7125 = vpop.f32.mrf.mxu0
      %v7126 = vpop.f32.mrf.mxu0
      %v7127 = vadd.f32 0.0, %v7126
      %v7128 = vpop.f32.mrf.mxu0
      %7129 = vmatprep.mubr.bf16.mxu0 0
      %7130 = vmatmul.mubr.bf16.gmra.mxu0 %v6146
      %v7131 = vpop.f32.mrf.mxu0
      %v7132 = vadd.f32 0.0, %v7131
      %v7133 = vpop.f32.mrf.mxu0
      %v7134 = vpop.f32.mrf.mxu0
      %v7135 = vadd.f32 0.0, %v7134
      %v7136 = vpop.f32.mrf.mxu0
      %7137 = vmatprep.mubr.bf16.mxu0 0
      %7138 = vmatmul.mubr.bf16.gmra.mxu0 %v6149
      %v7139 = vpop.f32.mrf.mxu0
      %v7140 = vadd.f32 0.0, %v7139
      %v7141 = vpop.f32.mrf.mxu0
      %v7142 = vpop.f32.mrf.mxu0
      %v7143 = vadd.f32 0.0, %v7142
      %v7144 = vpop.f32.mrf.mxu0
      %7145 = vmatprep.mubr.bf16.mxu0 0
      %7146 = vmatmul.mubr.bf16.gmra.mxu0 %v6152
      %v7147 = vpop.f32.mrf.mxu0
      %v7148 = vadd.f32 0.0, %v7147
      %v7149 = vpop.f32.mrf.mxu0
      %v7150 = vpop.f32.mrf.mxu0
      %v7151 = vadd.f32 0.0, %v7150
      %v7152 = vpop.f32.mrf.mxu0
      %7153 = vmatprep.mubr.bf16.mxu0 0
      %7154 = vmatmul.mubr.bf16.gmra.mxu0 %v6155
      %v7155 = vpop.f32.mrf.mxu0
      %v7156 = vadd.f32 0.0, %v7155
      %v7157 = vpop.f32.mrf.mxu0
      %v7158 = vpop.f32.mrf.mxu0
      %v7159 = vadd.f32 0.0, %v7158
      %v7160 = vpop.f32.mrf.mxu0
      %7161 = vmatprep.mubr.bf16.mxu0 0
      %7162 = vmatmul.mubr.bf16.gmra.mxu0 %v6559
      %v7163 = vpop.f32.mrf.mxu0
      %v7164 = vadd.f32 0.0, %v7163
      %v7165 = vpop.f32.mrf.mxu0
      %v7166 = vpop.f32.mrf.mxu0
      %v7167 = vadd.f32 0.0, %v7166
      %v7168 = vpop.f32.mrf.mxu0
      %7169 = vmatprep.mubr.bf16.mxu0 0
      %7170 = vmatmul.mubr.bf16.gmra.mxu0 %v6562
      %v7171 = vpop.f32.mrf.mxu0
      %v7172 = vadd.f32 0.0, %v7171
      %v7173 = vpop.f32.mrf.mxu0
      %v7174 = vpop.f32.mrf.mxu0
      %v7175 = vadd.f32 0.0, %v7174
      %v7176 = vpop.f32.mrf.mxu0
      %7177 = vmatprep.mubr.bf16.mxu0 0
      %7178 = vmatmul.mubr.bf16.gmra.mxu0 %v6800
      %v7179 = vpop.f32.mrf.mxu0
      %v7180 = vadd.f32 0.0, %v7179
      %v7181 = vpop.f32.mrf.mxu0
      %v7182 = vpop.f32.mrf.mxu0
      %v7183 = vadd.f32 0.0, %v7182
      %v7184 = vpop.f32.mrf.mxu0
      %7185 = vmatprep.mubr.bf16.mxu0 0
      %7186 = vmatmul.mubr.bf16.gmra.mxu0 %v6803
      %v7187 = vpop.f32.mrf.mxu0
      %v7188 = vadd.f32 0.0, %v7187
      %v7189 = vpop.f32.mrf.mxu0
      %v7190 = vpop.f32.mrf.mxu0
      %v7191 = vadd.f32 0.0, %v7190
      %v7192 = vpop.f32.mrf.mxu0
      %7193 = vmatprep.mubr.bf16.mxu0 0
      %7194 = vmatmul.mubr.bf16.gmra.mxu0 %v7041
      %v7195 = vpop.f32.mrf.mxu0
      %v7196 = vadd.f32 0.0, %v7195
      %v7197 = vpop.f32.mrf.mxu0
      %v7198 = vpop.f32.mrf.mxu0
      %v7199 = vadd.f32 0.0, %v7198
      %v7200 = vpop.f32.mrf.mxu0
      %7201 = vmatprep.mubr.bf16.mxu0 0
      %7202 = vmatmul.mubr.bf16.gmra.mxu0 %v7044
      %v7203 = vpop.f32.mrf.mxu0
      %v7204 = vadd.f32 0.0, %v7203
      %v7205 = vpop.f32.mrf.mxu0
      %v7206 = vpop.f32.mrf.mxu0
      %v7207 = vadd.f32 0.0, %v7206
      %v7208 = vpop.f32.mrf.mxu0
      %7209 = vdwg.mxu0
      %v7210 = vadd.f32 %v6969, %v7084
      %v7211 = vadd.f32 %v6970, %v7087
      %v7212 = vadd.f32 %v6971, %v7092
      %v7213 = vadd.f32 %v6972, %v7095
      %v7214 = vadd.f32 %v6973, %v7100
      %v7215 = vadd.f32 %v6974, %v7103
      %v7216 = vadd.f32 %v6975, %v7108
      %v7217 = vadd.f32 %v6976, %v7111
      %v7218 = vadd.f32 %v6977, %v7116
      %v7219 = vadd.f32 %v6978, %v7119
      %v7220 = vadd.f32 %v6979, %v7124
      %v7221 = vadd.f32 %v6980, %v7127
      %v7222 = vadd.f32 %v6981, %v7132
      %v7223 = vadd.f32 %v6982, %v7135
      %v7224 = vadd.f32 %v6983, %v7140
      %v7225 = vadd.f32 %v6984, %v7143
      %v7226 = vadd.f32 %v6985, %v7148
      %v7227 = vadd.f32 %v6986, %v7151
      %v7228 = vadd.f32 %v6987, %v7156
      %v7229 = vadd.f32 %v6988, %v7159
      %v7230 = vadd.f32 %v6989, %v7164
      %v7231 = vadd.f32 %v6990, %v7167
      %v7232 = vadd.f32 %v6991, %v7172
      %v7233 = vadd.f32 %v6992, %v7175
      %v7234 = vadd.f32 %v6993, %v7180
      %v7235 = vadd.f32 %v6994, %v7183
      %v7236 = vadd.f32 %v6995, %v7188
      %v7237 = vadd.f32 %v6996, %v7191
      %v7238 = vadd.f32 %v6997, %v7196
      %v7239 = vadd.f32 %v6998, %v7199
      %v7240 = vadd.f32 %v6999, %v7204
      %v7241 = vadd.f32 %v7000, %v7207
      %v7242 = vld [vmem:[%s8] sm:$0x1]
      %v7243 = vlaneseq
      %v7244 = vshrl.u32 %v7243, 7
      %v7245 = vsub.s32 0, %v7244
      %v7246 = vrot.slane %v7242, %v7245
      %v7247 = vadd.f32 %v7210, %v7246
      %v7248 = vadd.f32 %v7211, %v7246
      %v7249 = vadd.f32 %v7212, %v7246
      %v7250 = vadd.f32 %v7213, %v7246
      %v7251 = vadd.f32 %v7214, %v7246
      %v7252 = vadd.f32 %v7215, %v7246
      %v7253 = vadd.f32 %v7216, %v7246
      %v7254 = vadd.f32 %v7217, %v7246
      %v7255 = vadd.f32 %v7218, %v7246
      %v7256 = vadd.f32 %v7219, %v7246
      %v7257 = vadd.f32 %v7220, %v7246
      %v7258 = vadd.f32 %v7221, %v7246
      %v7259 = vadd.f32 %v7222, %v7246
      %v7260 = vadd.f32 %v7223, %v7246
      %v7261 = vadd.f32 %v7224, %v7246
      %v7262 = vadd.f32 %v7225, %v7246
      %v7263 = vadd.f32 %v7226, %v7246
      %v7264 = vadd.f32 %v7227, %v7246
      %v7265 = vadd.f32 %v7228, %v7246
      %v7266 = vadd.f32 %v7229, %v7246
      %v7267 = vadd.f32 %v7230, %v7246
      %v7268 = vadd.f32 %v7231, %v7246
      %v7269 = vadd.f32 %v7232, %v7246
      %v7270 = vadd.f32 %v7233, %v7246
      %v7271 = vadd.f32 %v7234, %v7246
      %v7272 = vadd.f32 %v7235, %v7246
      %v7273 = vadd.f32 %v7236, %v7246
      %v7274 = vadd.f32 %v7237, %v7246
      %v7275 = vadd.f32 %v7238, %v7246
      %v7276 = vadd.f32 %v7239, %v7246
      %v7277 = vadd.f32 %v7240, %v7246
      %v7278 = vadd.f32 %v7241, %v7246
      %v7279 = vmax.f32 %v7247, 0.0
      %v7280 = vmax.f32 %v7248, 0.0
      %v7281 = vmax.f32 %v7249, 0.0
      %v7282 = vmax.f32 %v7250, 0.0
      %v7283 = vmax.f32 %v7251, 0.0
      %v7284 = vmax.f32 %v7252, 0.0
      %v7285 = vmax.f32 %v7253, 0.0
      %v7286 = vmax.f32 %v7254, 0.0
      %v7287 = vmax.f32 %v7255, 0.0
      %v7288 = vmax.f32 %v7256, 0.0
      %v7289 = vmax.f32 %v7257, 0.0
      %v7290 = vmax.f32 %v7258, 0.0
      %v7291 = vmax.f32 %v7259, 0.0
      %v7292 = vmax.f32 %v7260, 0.0
      %v7293 = vmax.f32 %v7261, 0.0
      %v7294 = vmax.f32 %v7262, 0.0
      %v7295 = vmax.f32 %v7263, 0.0
      %v7296 = vmax.f32 %v7264, 0.0
      %v7297 = vmax.f32 %v7265, 0.0
      %v7298 = vmax.f32 %v7266, 0.0
      %v7299 = vmax.f32 %v7267, 0.0
      %v7300 = vmax.f32 %v7268, 0.0
      %v7301 = vmax.f32 %v7269, 0.0
      %v7302 = vmax.f32 %v7270, 0.0
      %v7303 = vmax.f32 %v7271, 0.0
      %v7304 = vmax.f32 %v7272, 0.0
      %v7305 = vmax.f32 %v7273, 0.0
      %v7306 = vmax.f32 %v7274, 0.0
      %v7307 = vmax.f32 %v7275, 0.0
      %v7308 = vmax.f32 %v7276, 0.0
      %v7309 = vmax.f32 %v7277, 0.0
      %v7310 = vmax.f32 %v7278, 0.0
      %v7311 = vmax.f32 %v7279, %v7283
      %v7312 = vmax.f32 %v7280, %v7284
      %v7313 = vmax.f32 %v7281, %v7285
      %v7314 = vmax.f32 %v7282, %v7286
      %v7315 = vmax.f32 %v7287, %v7291
      %v7316 = vmax.f32 %v7288, %v7292
      %v7317 = vmax.f32 %v7289, %v7293
      %v7318 = vmax.f32 %v7290, %v7294
      %v7319 = vmax.f32 %v7295, %v7299
      %v7320 = vmax.f32 %v7296, %v7300
      %v7321 = vmax.f32 %v7297, %v7301
      %v7322 = vmax.f32 %v7298, %v7302
      %v7323 = vmax.f32 %v7303, %v7307
      %v7324 = vmax.f32 %v7304, %v7308
      %v7325 = vmax.f32 %v7305, %v7309
      %v7326 = vmax.f32 %v7306, %v7310
      %v7327 = vpack.c.bf16 %v7312, %v7311
      %v7328 = vpack.c.bf16 %v7314, %v7313
      %v7329 = vpack.c.bf16 %v7316, %v7315
      %v7330 = vpack.c.bf16 %v7318, %v7317
      %v7331 = vpack.c.bf16 %v7320, %v7319
      %v7332 = vpack.c.bf16 %v7322, %v7321
      %v7333 = vpack.c.bf16 %v7324, %v7323
      %v7334 = vpack.c.bf16 %v7326, %v7325
      %v7335 = vld [vmem:[%s5] sm:$0xf]
      %v7336 = vld [vmem:[%s5 + $0x4] sm:$0xf]
      %v7337 = vld [vmem:[%s5 + $0x8] sm:$0xf]
      %v7338 = vld [vmem:[%s5 + $0xc] sm:$0xf]
      %v7339 = vld [vmem:[%s5 + $0x10] sm:$0xf]
      %v7340 = vld [vmem:[%s5 + $0x14] sm:$0xf]
      %v7341 = vld [vmem:[%s5 + $0x18] sm:$0xf]
      %v7342 = vld [vmem:[%s5 + $0x1c] sm:$0xf]
      %v7343 = vld [vmem:[%s5 + $0x20] sm:$0xf]
      %v7344 = vld [vmem:[%s5 + $0x24] sm:$0xf]
      %v7345 = vld [vmem:[%s5 + $0x28] sm:$0xf]
      %v7346 = vld [vmem:[%s5 + $0x2c] sm:$0xf]
      %v7347 = vld [vmem:[%s5 + $0x30] sm:$0xf]
      %v7348 = vld [vmem:[%s5 + $0x34] sm:$0xf]
      %v7349 = vld [vmem:[%s5 + $0x38] sm:$0xf]
      %v7350 = vld [vmem:[%s5 + $0x3c] sm:$0xf]
      %v7367 = vunpack.c.l.b16 %v7335
      %v7368 = vunpack.c.l.b16 %v7336
      %v7369 = vunpack.c.l.b16 %v7337
      %v7370 = vunpack.c.l.b16 %v7338
      %v7371 = vunpack.c.l.b16 %v7339
      %v7372 = vunpack.c.l.b16 %v7340
      %v7373 = vunpack.c.l.b16 %v7341
      %v7374 = vunpack.c.l.b16 %v7342
      %v7375 = vunpack.c.l.b16 %v7343
      %v7376 = vunpack.c.l.b16 %v7344
      %v7377 = vunpack.c.l.b16 %v7345
      %v7378 = vunpack.c.l.b16 %v7346
      %v7379 = vunpack.c.l.b16 %v7347
      %v7380 = vunpack.c.l.b16 %v7348
      %v7381 = vunpack.c.l.b16 %v7349
      %v7382 = vunpack.c.l.b16 %v7350
      %v7383 = vpack.c.b16 %v7368, %v7367
      %v7384 = vpack.c.b16 %v7370, %v7369
      %v7385 = vpack.c.b16 %v7372, %v7371
      %v7386 = vpack.c.b16 %v7374, %v7373
      %v7387 = vpack.c.b16 %v7376, %v7375
      %v7388 = vpack.c.b16 %v7378, %v7377
      %v7389 = vpack.c.b16 %v7380, %v7379
      %v7390 = vpack.c.b16 %v7382, %v7381
      %7399 = vmatprep.subr.bf16.mxu0 0
      %7400 = vmatpush1.bf16.msra.mxu0 %v7390
      %7401 = vmatprep.subr.bf16.mxu0 0
      %7402 = vmatpush1.bf16.msra.mxu0 %v7389
      %7403 = vmatprep.subr.bf16.mxu0 0
      %7404 = vmatpush1.bf16.msra.mxu0 %v7388
      %7405 = vmatprep.subr.bf16.mxu0 0
      %7406 = vmatpush1.bf16.msra.mxu0 %v7387
      %7407 = vmatprep.subr.bf16.mxu0 0
      %7408 = vmatpush1.bf16.msra.mxu0 %v7386
      %7409 = vmatprep.subr.bf16.mxu0 0
      %7410 = vmatpush1.bf16.msra.mxu0 %v7385
      %7411 = vmatprep.subr.bf16.mxu0 0
      %7412 = vmatpush1.bf16.msra.mxu0 %v7384
      %7413 = vmatprep.subr.bf16.mxu0 0
      %7414 = vmatpush1.bf16.msra.mxu0 %v7383
      %7415 = vmatprep.subr.bf16.mxu0 0
      %7416 = vmatpush2.bf16.msra.mxu0 0
      %7417 = vmatprep.subr.bf16.mxu0 0
      %7418 = vmatpush2.bf16.msra.mxu0 0
      %7419 = vmatprep.subr.bf16.mxu0 0
      %7420 = vmatpush2.bf16.msra.mxu0 0
      %7421 = vmatprep.subr.bf16.mxu0 0
      %7422 = vmatpush2.bf16.msra.mxu0 0
      %7423 = vmatprep.subr.bf16.mxu0 0
      %7424 = vmatpush2.bf16.msra.mxu0 0
      %7425 = vmatprep.subr.bf16.mxu0 0
      %7426 = vmatpush2.bf16.msra.mxu0 0
      %7427 = vmatprep.subr.bf16.mxu0 0
      %7428 = vmatpush2.bf16.msra.mxu0 0
      %7429 = vmatprep.subr.bf16.mxu0 0
      %7430 = vmatpush2.bf16.msra.mxu0 0
      %7431 = vmatprep.mubr.bf16.mxu0 0
      %7432 = vmatmul.mubr.bf16.gmra.mxu0 %v7327
      %v7433 = vpop.f32.mrf.mxu0
      %v7434 = vadd.f32 0.0, %v7433
      %v7435 = vpop.f32.mrf.mxu0
      %v7436 = vpop.f32.mrf.mxu0
      %v7437 = vadd.f32 0.0, %v7436
      %v7438 = vpop.f32.mrf.mxu0
      %7439 = vmatprep.mubr.bf16.mxu0 0
      %7440 = vmatmul.mubr.bf16.gmra.mxu0 %v7328
      %v7441 = vpop.f32.mrf.mxu0
      %v7442 = vadd.f32 0.0, %v7441
      %v7443 = vpop.f32.mrf.mxu0
      %v7444 = vpop.f32.mrf.mxu0
      %v7445 = vadd.f32 0.0, %v7444
      %v7446 = vpop.f32.mrf.mxu0
      %7447 = vmatprep.mubr.bf16.mxu0 0
      %7448 = vmatmul.mubr.bf16.gmra.mxu0 %v7329
      %v7449 = vpop.f32.mrf.mxu0
      %v7450 = vadd.f32 0.0, %v7449
      %v7451 = vpop.f32.mrf.mxu0
      %v7452 = vpop.f32.mrf.mxu0
      %v7453 = vadd.f32 0.0, %v7452
      %v7454 = vpop.f32.mrf.mxu0
      %7455 = vmatprep.mubr.bf16.mxu0 0
      %7456 = vmatmul.mubr.bf16.gmra.mxu0 %v7330
      %v7457 = vpop.f32.mrf.mxu0
      %v7458 = vadd.f32 0.0, %v7457
      %v7459 = vpop.f32.mrf.mxu0
      %v7460 = vpop.f32.mrf.mxu0
      %v7461 = vadd.f32 0.0, %v7460
      %v7462 = vpop.f32.mrf.mxu0
      %7463 = vmatprep.mubr.bf16.mxu0 0
      %7464 = vmatmul.mubr.bf16.gmra.mxu0 %v7331
      %v7465 = vpop.f32.mrf.mxu0
      %v7466 = vadd.f32 0.0, %v7465
      %v7467 = vpop.f32.mrf.mxu0
      %v7468 = vpop.f32.mrf.mxu0
      %v7469 = vadd.f32 0.0, %v7468
      %v7470 = vpop.f32.mrf.mxu0
      %7471 = vmatprep.mubr.bf16.mxu0 0
      %7472 = vmatmul.mubr.bf16.gmra.mxu0 %v7332
      %v7473 = vpop.f32.mrf.mxu0
      %v7474 = vadd.f32 0.0, %v7473
      %v7475 = vpop.f32.mrf.mxu0
      %v7476 = vpop.f32.mrf.mxu0
      %v7477 = vadd.f32 0.0, %v7476
      %v7478 = vpop.f32.mrf.mxu0
      %7479 = vmatprep.mubr.bf16.mxu0 0
      %7480 = vmatmul.mubr.bf16.gmra.mxu0 %v7333
      %v7481 = vpop.f32.mrf.mxu0
      %v7482 = vadd.f32 0.0, %v7481
      %v7483 = vpop.f32.mrf.mxu0
      %v7484 = vpop.f32.mrf.mxu0
      %v7485 = vadd.f32 0.0, %v7484
      %v7486 = vpop.f32.mrf.mxu0
      %7487 = vmatprep.mubr.bf16.mxu0 0
      %7488 = vmatmul.mubr.bf16.gmra.mxu0 %v7334
      %v7489 = vpop.f32.mrf.mxu0
      %v7490 = vadd.f32 0.0, %v7489
      %v7491 = vpop.f32.mrf.mxu0
      %v7492 = vpop.f32.mrf.mxu0
      %v7493 = vadd.f32 0.0, %v7492
      %v7494 = vpop.f32.mrf.mxu0
      %7495 = vdwg.mxu0
      %s7496 = scalar_lea.vmem %s5, 64
      %v7497 = vld [vmem:[%s7496] sm:$0xf]
      %v7498 = vld [vmem:[%s7496 + $0x4] sm:$0xf]
      %v7499 = vld [vmem:[%s7496 + $0x8] sm:$0xf]
      %v7500 = vld [vmem:[%s7496 + $0xc] sm:$0xf]
      %v7501 = vld [vmem:[%s7496 + $0x10] sm:$0xf]
      %v7502 = vld [vmem:[%s7496 + $0x14] sm:$0xf]
      %v7503 = vld [vmem:[%s7496 + $0x18] sm:$0xf]
      %v7504 = vld [vmem:[%s7496 + $0x1c] sm:$0xf]
      %v7505 = vld [vmem:[%s7496 + $0x20] sm:$0xf]
      %v7506 = vld [vmem:[%s7496 + $0x24] sm:$0xf]
      %v7507 = vld [vmem:[%s7496 + $0x28] sm:$0xf]
      %v7508 = vld [vmem:[%s7496 + $0x2c] sm:$0xf]
      %v7509 = vld [vmem:[%s7496 + $0x30] sm:$0xf]
      %v7510 = vld [vmem:[%s7496 + $0x34] sm:$0xf]
      %v7511 = vld [vmem:[%s7496 + $0x38] sm:$0xf]
      %v7512 = vld [vmem:[%s7496 + $0x3c] sm:$0xf]
      %v7529 = vunpack.c.l.b16 %v7497
      %v7530 = vunpack.c.l.b16 %v7498
      %v7531 = vunpack.c.l.b16 %v7499
      %v7532 = vunpack.c.l.b16 %v7500
      %v7533 = vunpack.c.l.b16 %v7501
      %v7534 = vunpack.c.l.b16 %v7502
      %v7535 = vunpack.c.l.b16 %v7503
      %v7536 = vunpack.c.l.b16 %v7504
      %v7537 = vunpack.c.l.b16 %v7505
      %v7538 = vunpack.c.l.b16 %v7506
      %v7539 = vunpack.c.l.b16 %v7507
      %v7540 = vunpack.c.l.b16 %v7508
      %v7541 = vunpack.c.l.b16 %v7509
      %v7542 = vunpack.c.l.b16 %v7510
      %v7543 = vunpack.c.l.b16 %v7511
      %v7544 = vunpack.c.l.b16 %v7512
      %v7545 = vpack.c.b16 %v7530, %v7529
      %v7546 = vpack.c.b16 %v7532, %v7531
      %v7547 = vpack.c.b16 %v7534, %v7533
      %v7548 = vpack.c.b16 %v7536, %v7535
      %v7549 = vpack.c.b16 %v7538, %v7537
      %v7550 = vpack.c.b16 %v7540, %v7539
      %v7551 = vpack.c.b16 %v7542, %v7541
      %v7552 = vpack.c.b16 %v7544, %v7543
      %7561 = vmatprep.subr.bf16.mxu0 0
      %7562 = vmatpush1.bf16.msra.mxu0 %v7552
      %7563 = vmatprep.subr.bf16.mxu0 0
      %7564 = vmatpush1.bf16.msra.mxu0 %v7551
      %7565 = vmatprep.subr.bf16.mxu0 0
      %7566 = vmatpush1.bf16.msra.mxu0 %v7550
      %7567 = vmatprep.subr.bf16.mxu0 0
      %7568 = vmatpush1.bf16.msra.mxu0 %v7549
      %7569 = vmatprep.subr.bf16.mxu0 0
      %7570 = vmatpush1.bf16.msra.mxu0 %v7548
      %7571 = vmatprep.subr.bf16.mxu0 0
      %7572 = vmatpush1.bf16.msra.mxu0 %v7547
      %7573 = vmatprep.subr.bf16.mxu0 0
      %7574 = vmatpush1.bf16.msra.mxu0 %v7546
      %7575 = vmatprep.subr.bf16.mxu0 0
      %7576 = vmatpush1.bf16.msra.mxu0 %v7545
      %7577 = vmatprep.subr.bf16.mxu0 0
      %7578 = vmatpush2.bf16.msra.mxu0 0
      %7579 = vmatprep.subr.bf16.mxu0 0
      %7580 = vmatpush2.bf16.msra.mxu0 0
      %7581 = vmatprep.subr.bf16.mxu0 0
      %7582 = vmatpush2.bf16.msra.mxu0 0
      %7583 = vmatprep.subr.bf16.mxu0 0
      %7584 = vmatpush2.bf16.msra.mxu0 0
      %7585 = vmatprep.subr.bf16.mxu0 0
      %7586 = vmatpush2.bf16.msra.mxu0 0
      %7587 = vmatprep.subr.bf16.mxu0 0
      %7588 = vmatpush2.bf16.msra.mxu0 0
      %7589 = vmatprep.subr.bf16.mxu0 0
      %7590 = vmatpush2.bf16.msra.mxu0 0
      %7591 = vmatprep.subr.bf16.mxu0 0
      %7592 = vmatpush2.bf16.msra.mxu0 0
      %7593 = vmatprep.mubr.bf16.mxu0 0
      %7594 = vmatmul.mubr.bf16.gmra.mxu0 %v7327
      %v7595 = vpop.f32.mrf.mxu0
      %v7596 = vadd.f32 0.0, %v7595
      %v7597 = vpop.f32.mrf.mxu0
      %v7598 = vpop.f32.mrf.mxu0
      %v7599 = vadd.f32 0.0, %v7598
      %v7600 = vpop.f32.mrf.mxu0
      %7601 = vmatprep.mubr.bf16.mxu0 0
      %7602 = vmatmul.mubr.bf16.gmra.mxu0 %v7328
      %v7603 = vpop.f32.mrf.mxu0
      %v7604 = vadd.f32 0.0, %v7603
      %v7605 = vpop.f32.mrf.mxu0
      %v7606 = vpop.f32.mrf.mxu0
      %v7607 = vadd.f32 0.0, %v7606
      %v7608 = vpop.f32.mrf.mxu0
      %7609 = vmatprep.mubr.bf16.mxu0 0
      %7610 = vmatmul.mubr.bf16.gmra.mxu0 %v7329
      %v7611 = vpop.f32.mrf.mxu0
      %v7612 = vadd.f32 0.0, %v7611
      %v7613 = vpop.f32.mrf.mxu0
      %v7614 = vpop.f32.mrf.mxu0
      %v7615 = vadd.f32 0.0, %v7614
      %v7616 = vpop.f32.mrf.mxu0
      %7617 = vmatprep.mubr.bf16.mxu0 0
      %7618 = vmatmul.mubr.bf16.gmra.mxu0 %v7330
      %v7619 = vpop.f32.mrf.mxu0
      %v7620 = vadd.f32 0.0, %v7619
      %v7621 = vpop.f32.mrf.mxu0
      %v7622 = vpop.f32.mrf.mxu0
      %v7623 = vadd.f32 0.0, %v7622
      %v7624 = vpop.f32.mrf.mxu0
      %7625 = vmatprep.mubr.bf16.mxu0 0
      %7626 = vmatmul.mubr.bf16.gmra.mxu0 %v7331
      %v7627 = vpop.f32.mrf.mxu0
      %v7628 = vadd.f32 0.0, %v7627
      %v7629 = vpop.f32.mrf.mxu0
      %v7630 = vpop.f32.mrf.mxu0
      %v7631 = vadd.f32 0.0, %v7630
      %v7632 = vpop.f32.mrf.mxu0
      %7633 = vmatprep.mubr.bf16.mxu0 0
      %7634 = vmatmul.mubr.bf16.gmra.mxu0 %v7332
      %v7635 = vpop.f32.mrf.mxu0
      %v7636 = vadd.f32 0.0, %v7635
      %v7637 = vpop.f32.mrf.mxu0
      %v7638 = vpop.f32.mrf.mxu0
      %v7639 = vadd.f32 0.0, %v7638
      %v7640 = vpop.f32.mrf.mxu0
      %7641 = vmatprep.mubr.bf16.mxu0 0
      %7642 = vmatmul.mubr.bf16.gmra.mxu0 %v7333
      %v7643 = vpop.f32.mrf.mxu0
      %v7644 = vadd.f32 0.0, %v7643
      %v7645 = vpop.f32.mrf.mxu0
      %v7646 = vpop.f32.mrf.mxu0
      %v7647 = vadd.f32 0.0, %v7646
      %v7648 = vpop.f32.mrf.mxu0
      %7649 = vmatprep.mubr.bf16.mxu0 0
      %7650 = vmatmul.mubr.bf16.gmra.mxu0 %v7334
      %v7651 = vpop.f32.mrf.mxu0
      %v7652 = vadd.f32 0.0, %v7651
      %v7653 = vpop.f32.mrf.mxu0
      %v7654 = vpop.f32.mrf.mxu0
      %v7655 = vadd.f32 0.0, %v7654
      %v7656 = vpop.f32.mrf.mxu0
      %7657 = vdwg.mxu0
      %v7658 = vmax.f32 %v7434, %v7596
      %v7659 = vmax.f32 %v7437, %v7599
      %v7660 = vmax.f32 %v7442, %v7604
      %v7661 = vmax.f32 %v7445, %v7607
      %v7662 = vmax.f32 %v7450, %v7612
      %v7663 = vmax.f32 %v7453, %v7615
      %v7664 = vmax.f32 %v7458, %v7620
      %v7665 = vmax.f32 %v7461, %v7623
      %v7666 = vmax.f32 %v7466, %v7628
      %v7667 = vmax.f32 %v7469, %v7631
      %v7668 = vmax.f32 %v7474, %v7636
      %v7669 = vmax.f32 %v7477, %v7639
      %v7670 = vmax.f32 %v7482, %v7644
      %v7671 = vmax.f32 %v7485, %v7647
      %v7672 = vmax.f32 %v7490, %v7652
      %v7673 = vmax.f32 %v7493, %v7655
      %v7674 = vpack.c.bf16 %v7659, %v7658
      %v7675 = vpack.c.bf16 %v7661, %v7660
      %v7676 = vld [vmem:[%s6] sm:$0xf]
      %v7677 = vld [vmem:[%s6 + $0x4] sm:$0xf]
      %v7678 = vld [vmem:[%s6 + $0x8] sm:$0xf]
      %v7679 = vld [vmem:[%s6 + $0xc] sm:$0xf]
      %v7680 = vld [vmem:[%s6 + $0x10] sm:$0xf]
      %v7681 = vld [vmem:[%s6 + $0x14] sm:$0xf]
      %v7682 = vld [vmem:[%s6 + $0x18] sm:$0xf]
      %v7683 = vld [vmem:[%s6 + $0x1c] sm:$0xf]
      %v7684 = vpack.c.bf16 %v7663, %v7662
      %v7685 = vpack.c.bf16 %v7665, %v7664
      %s7686 = scalar_lea.vmem %s6, 32
      %v7687 = vld [vmem:[%s7686] sm:$0xf]
      %v7688 = vld [vmem:[%s7686 + $0x4] sm:$0xf]
      %v7689 = vld [vmem:[%s7686 + $0x8] sm:$0xf]
      %v7690 = vld [vmem:[%s7686 + $0xc] sm:$0xf]
      %v7691 = vld [vmem:[%s7686 + $0x10] sm:$0xf]
      %v7692 = vld [vmem:[%s7686 + $0x14] sm:$0xf]
      %v7693 = vld [vmem:[%s7686 + $0x18] sm:$0xf]
      %v7694 = vld [vmem:[%s7686 + $0x1c] sm:$0xf]
      %v7703 = vunpack.c.l.b16 %v7687
      %v7704 = vunpack.c.l.b16 %v7688
      %v7705 = vunpack.c.l.b16 %v7689
      %v7706 = vunpack.c.l.b16 %v7690
      %v7707 = vunpack.c.l.b16 %v7691
      %v7708 = vunpack.c.l.b16 %v7692
      %v7709 = vunpack.c.l.b16 %v7693
      %v7710 = vunpack.c.l.b16 %v7694
      %v7711 = vpack.c.b16 %v7704, %v7703
      %v7712 = vpack.c.b16 %v7706, %v7705
      %v7713 = vpack.c.b16 %v7708, %v7707
      %v7714 = vpack.c.b16 %v7710, %v7709
      %vm7719 = vcmask 523264
      %v7721 = vsel %vm7719, %v7684, 0
      %v7724 = vsel %vm7719, %v7685, 0
      %7726 = vmatprep.subr.bf16.mxu0 0
      %7727 = vmatpush1.bf16.msra.mxu0 0
      %7728 = vmatprep.subr.bf16.mxu0 0
      %7729 = vmatpush1.bf16.msra.mxu0 0
      %7730 = vmatprep.subr.bf16.mxu0 0
      %7731 = vmatpush1.bf16.msra.mxu0 0
      %7732 = vmatprep.subr.bf16.mxu0 0
      %7733 = vmatpush1.bf16.msra.mxu0 0
      %7734 = vmatprep.subr.bf16.mxu0 0
      %7735 = vmatpush1.bf16.msra.mxu0 %v7714
      %7736 = vmatprep.subr.bf16.mxu0 0
      %7737 = vmatpush1.bf16.msra.mxu0 %v7713
      %7738 = vmatprep.subr.bf16.mxu0 0
      %7739 = vmatpush1.bf16.msra.mxu0 %v7712
      %7740 = vmatprep.subr.bf16.mxu0 0
      %7741 = vmatpush1.bf16.msra.mxu0 %v7711
      %7742 = vmatprep.subr.bf16.mxu0 0
      %7743 = vmatpush2.bf16.msra.mxu0 0
      %7744 = vmatprep.subr.bf16.mxu0 0
      %7745 = vmatpush2.bf16.msra.mxu0 0
      %7746 = vmatprep.subr.bf16.mxu0 0
      %7747 = vmatpush2.bf16.msra.mxu0 0
      %7748 = vmatprep.subr.bf16.mxu0 0
      %7749 = vmatpush2.bf16.msra.mxu0 0
      %7750 = vmatprep.subr.bf16.mxu0 0
      %7751 = vmatpush2.bf16.msra.mxu0 0
      %7752 = vmatprep.subr.bf16.mxu0 0
      %7753 = vmatpush2.bf16.msra.mxu0 0
      %7754 = vmatprep.subr.bf16.mxu0 0
      %7755 = vmatpush2.bf16.msra.mxu0 0
      %7756 = vmatprep.subr.bf16.mxu0 0
      %7757 = vmatpush2.bf16.msra.mxu0 0
      %7758 = vmatprep.mubr.bf16.mxu0 0
      %7759 = vmatmul.mubr.bf16.gmra.mxu0 %v7721
      %v7760 = vpop.f32.mrf.mxu0
      %v7761 = vadd.f32 0.0, %v7760
      %v7762 = vpop.f32.mrf.mxu0
      %v7763 = vpop.f32.mrf.mxu0
      %v7764 = vadd.f32 0.0, %v7763
      %v7765 = vpop.f32.mrf.mxu0
      %7766 = vmatprep.mubr.bf16.mxu0 0
      %7767 = vmatmul.mubr.bf16.gmra.mxu0 %v7724
      %v7768 = vpop.f32.mrf.mxu0
      %v7769 = vadd.f32 0.0, %v7768
      %v7770 = vpop.f32.mrf.mxu0
      %v7771 = vpop.f32.mrf.mxu0
      %v7772 = vadd.f32 0.0, %v7771
      %v7773 = vpop.f32.mrf.mxu0
      %7774 = vdwg.mxu0
      %v7783 = vunpack.c.l.b16 %v7676
      %v7784 = vunpack.c.l.b16 %v7677
      %v7785 = vunpack.c.l.b16 %v7678
      %v7786 = vunpack.c.l.b16 %v7679
      %v7787 = vunpack.c.l.b16 %v7680
      %v7788 = vunpack.c.l.b16 %v7681
      %v7789 = vunpack.c.l.b16 %v7682
      %v7790 = vunpack.c.l.b16 %v7683
      %v7791 = vpack.c.b16 %v7784, %v7783
      %v7792 = vpack.c.b16 %v7786, %v7785
      %v7793 = vpack.c.b16 %v7788, %v7787
      %v7794 = vpack.c.b16 %v7790, %v7789
      %v7800 = vsel %vm7719, %v7674, 0
      %v7803 = vsel %vm7719, %v7675, 0
      %7805 = vmatprep.subr.bf16.mxu0 0
      %7806 = vmatpush1.bf16.msra.mxu0 0
      %7807 = vmatprep.subr.bf16.mxu0 0
      %7808 = vmatpush1.bf16.msra.mxu0 0
      %7809 = vmatprep.subr.bf16.mxu0 0
      %7810 = vmatpush1.bf16.msra.mxu0 0
      %7811 = vmatprep.subr.bf16.mxu0 0
      %7812 = vmatpush1.bf16.msra.mxu0 0
      %7813 = vmatprep.subr.bf16.mxu0 0
      %7814 = vmatpush1.bf16.msra.mxu0 %v7794
      %7815 = vmatprep.subr.bf16.mxu0 0
      %7816 = vmatpush1.bf16.msra.mxu0 %v7793
      %7817 = vmatprep.subr.bf16.mxu0 0
      %7818 = vmatpush1.bf16.msra.mxu0 %v7792
      %7819 = vmatprep.subr.bf16.mxu0 0
      %7820 = vmatpush1.bf16.msra.mxu0 %v7791
      %7821 = vmatprep.subr.bf16.mxu0 0
      %7822 = vmatpush2.bf16.msra.mxu0 0
      %7823 = vmatprep.subr.bf16.mxu0 0
      %7824 = vmatpush2.bf16.msra.mxu0 0
      %7825 = vmatprep.subr.bf16.mxu0 0
      %7826 = vmatpush2.bf16.msra.mxu0 0
      %7827 = vmatprep.subr.bf16.mxu0 0
      %7828 = vmatpush2.bf16.msra.mxu0 0
      %7829 = vmatprep.subr.bf16.mxu0 0
      %7830 = vmatpush2.bf16.msra.mxu0 0
      %7831 = vmatprep.subr.bf16.mxu0 0
      %7832 = vmatpush2.bf16.msra.mxu0 0
      %7833 = vmatprep.subr.bf16.mxu0 0
      %7834 = vmatpush2.bf16.msra.mxu0 0
      %7835 = vmatprep.subr.bf16.mxu0 0
      %7836 = vmatpush2.bf16.msra.mxu0 0
      %7837 = vmatprep.mubr.bf16.mxu0 0
      %7838 = vmatmul.mubr.bf16.gmra.mxu0 %v7800
      %v7839 = vpop.f32.mrf.mxu0
      %v7840 = vadd.f32 %v7761, %v7839
      %v7841 = vpop.f32.mrf.mxu0
      %v7842 = vpop.f32.mrf.mxu0
      %v7843 = vadd.f32 %v7764, %v7842
      %v7844 = vpop.f32.mrf.mxu0
      %7845 = vmatprep.mubr.bf16.mxu0 0
      %7846 = vmatmul.mubr.bf16.gmra.mxu0 %v7803
      %v7847 = vpop.f32.mrf.mxu0
      %v7848 = vadd.f32 %v7769, %v7847
      %v7849 = vpop.f32.mrf.mxu0
      %v7850 = vpop.f32.mrf.mxu0
      %v7851 = vadd.f32 %v7772, %v7850
      %v7852 = vpop.f32.mrf.mxu0
      %7853 = vdwg.mxu0
      %v7854 = vpack.c.bf16 %v7667, %v7666
      %v7855 = vpack.c.bf16 %v7669, %v7668
      %s7856 = scalar_lea.vmem %s6, 64
      %v7857 = vld [vmem:[%s7856] sm:$0xf]
      %v7858 = vld [vmem:[%s7856 + $0x4] sm:$0xf]
      %v7859 = vld [vmem:[%s7856 + $0x8] sm:$0xf]
      %v7860 = vld [vmem:[%s7856 + $0xc] sm:$0xf]
      %v7861 = vld [vmem:[%s7856 + $0x10] sm:$0xf]
      %v7862 = vld [vmem:[%s7856 + $0x14] sm:$0xf]
      %v7863 = vld [vmem:[%s7856 + $0x18] sm:$0xf]
      %v7864 = vld [vmem:[%s7856 + $0x1c] sm:$0xf]
      %v7873 = vunpack.c.l.b16 %v7857
      %v7874 = vunpack.c.l.b16 %v7858
      %v7875 = vunpack.c.l.b16 %v7859
      %v7876 = vunpack.c.l.b16 %v7860
      %v7877 = vunpack.c.l.b16 %v7861
      %v7878 = vunpack.c.l.b16 %v7862
      %v7879 = vunpack.c.l.b16 %v7863
      %v7880 = vunpack.c.l.b16 %v7864
      %v7881 = vpack.c.b16 %v7874, %v7873
      %v7882 = vpack.c.b16 %v7876, %v7875
      %v7883 = vpack.c.b16 %v7878, %v7877
      %v7884 = vpack.c.b16 %v7880, %v7879
      %v7890 = vsel %vm7719, %v7854, 0
      %v7893 = vsel %vm7719, %v7855, 0
      %7895 = vmatprep.subr.bf16.mxu0 0
      %7896 = vmatpush1.bf16.msra.mxu0 0
      %7897 = vmatprep.subr.bf16.mxu0 0
      %7898 = vmatpush1.bf16.msra.mxu0 0
      %7899 = vmatprep.subr.bf16.mxu0 0
      %7900 = vmatpush1.bf16.msra.mxu0 0
      %7901 = vmatprep.subr.bf16.mxu0 0
      %7902 = vmatpush1.bf16.msra.mxu0 0
      %7903 = vmatprep.subr.bf16.mxu0 0
      %7904 = vmatpush1.bf16.msra.mxu0 %v7884
      %7905 = vmatprep.subr.bf16.mxu0 0
      %7906 = vmatpush1.bf16.msra.mxu0 %v7883
      %7907 = vmatprep.subr.bf16.mxu0 0
      %7908 = vmatpush1.bf16.msra.mxu0 %v7882
      %7909 = vmatprep.subr.bf16.mxu0 0
      %7910 = vmatpush1.bf16.msra.mxu0 %v7881
      %7911 = vmatprep.subr.bf16.mxu0 0
      %7912 = vmatpush2.bf16.msra.mxu0 0
      %7913 = vmatprep.subr.bf16.mxu0 0
      %7914 = vmatpush2.bf16.msra.mxu0 0
      %7915 = vmatprep.subr.bf16.mxu0 0
      %7916 = vmatpush2.bf16.msra.mxu0 0
      %7917 = vmatprep.subr.bf16.mxu0 0
      %7918 = vmatpush2.bf16.msra.mxu0 0
      %7919 = vmatprep.subr.bf16.mxu0 0
      %7920 = vmatpush2.bf16.msra.mxu0 0
      %7921 = vmatprep.subr.bf16.mxu0 0
      %7922 = vmatpush2.bf16.msra.mxu0 0
      %7923 = vmatprep.subr.bf16.mxu0 0
      %7924 = vmatpush2.bf16.msra.mxu0 0
      %7925 = vmatprep.subr.bf16.mxu0 0
      %7926 = vmatpush2.bf16.msra.mxu0 0
      %7927 = vmatprep.mubr.bf16.mxu0 0
      %7928 = vmatmul.mubr.bf16.gmra.mxu0 %v7890
      %v7929 = vpop.f32.mrf.mxu0
      %v7930 = vadd.f32 0.0, %v7929
      %v7931 = vpop.f32.mrf.mxu0
      %v7932 = vpop.f32.mrf.mxu0
      %v7933 = vadd.f32 0.0, %v7932
      %v7934 = vpop.f32.mrf.mxu0
      %7935 = vmatprep.mubr.bf16.mxu0 0
      %7936 = vmatmul.mubr.bf16.gmra.mxu0 %v7893
      %v7937 = vpop.f32.mrf.mxu0
      %v7938 = vadd.f32 0.0, %v7937
      %v7939 = vpop.f32.mrf.mxu0
      %v7940 = vpop.f32.mrf.mxu0
      %v7941 = vadd.f32 0.0, %v7940
      %v7942 = vpop.f32.mrf.mxu0
      %7943 = vdwg.mxu0
      %v7944 = vadd.f32 %v7840, %v7930
      %v7945 = vadd.f32 %v7843, %v7933
      %v7946 = vadd.f32 %v7848, %v7938
      %v7947 = vadd.f32 %v7851, %v7941
      %v7948 = vpack.c.bf16 %v7671, %v7670
      %v7949 = vpack.c.bf16 %v7673, %v7672
      %s7950 = scalar_lea.vmem %s6, 96
      %v7951 = vld [vmem:[%s7950] sm:$0xf]
      %v7952 = vld [vmem:[%s7950 + $0x4] sm:$0xf]
      %v7953 = vld [vmem:[%s7950 + $0x8] sm:$0xf]
      %v7954 = vld [vmem:[%s7950 + $0xc] sm:$0xf]
      %v7955 = vld [vmem:[%s7950 + $0x10] sm:$0xf]
      %v7956 = vld [vmem:[%s7950 + $0x14] sm:$0xf]
      %v7957 = vld [vmem:[%s7950 + $0x18] sm:$0xf]
      %v7958 = vld [vmem:[%s7950 + $0x1c] sm:$0xf]
      %v7967 = vunpack.c.l.b16 %v7951
      %v7968 = vunpack.c.l.b16 %v7952
      %v7969 = vunpack.c.l.b16 %v7953
      %v7970 = vunpack.c.l.b16 %v7954
      %v7971 = vunpack.c.l.b16 %v7955
      %v7972 = vunpack.c.l.b16 %v7956
      %v7973 = vunpack.c.l.b16 %v7957
      %v7974 = vunpack.c.l.b16 %v7958
      %v7975 = vpack.c.b16 %v7968, %v7967
      %v7976 = vpack.c.b16 %v7970, %v7969
      %v7977 = vpack.c.b16 %v7972, %v7971
      %v7978 = vpack.c.b16 %v7974, %v7973
      %v7984 = vsel %vm7719, %v7948, 0
      %v7987 = vsel %vm7719, %v7949, 0
      %7989 = vmatprep.subr.bf16.mxu0 0
      %7990 = vmatpush1.bf16.msra.mxu0 0
      %7991 = vmatprep.subr.bf16.mxu0 0
      %7992 = vmatpush1.bf16.msra.mxu0 0
      %7993 = vmatprep.subr.bf16.mxu0 0
      %7994 = vmatpush1.bf16.msra.mxu0 0
      %7995 = vmatprep.subr.bf16.mxu0 0
      %7996 = vmatpush1.bf16.msra.mxu0 0
      %7997 = vmatprep.subr.bf16.mxu0 0
      %7998 = vmatpush1.bf16.msra.mxu0 %v7978
      %7999 = vmatprep.subr.bf16.mxu0 0
      %8000 = vmatpush1.bf16.msra.mxu0 %v7977
      %8001 = vmatprep.subr.bf16.mxu0 0
      %8002 = vmatpush1.bf16.msra.mxu0 %v7976
      %8003 = vmatprep.subr.bf16.mxu0 0
      %8004 = vmatpush1.bf16.msra.mxu0 %v7975
      %8005 = vmatprep.subr.bf16.mxu0 0
      %8006 = vmatpush2.bf16.msra.mxu0 0
      %8007 = vmatprep.subr.bf16.mxu0 0
      %8008 = vmatpush2.bf16.msra.mxu0 0
      %8009 = vmatprep.subr.bf16.mxu0 0
      %8010 = vmatpush2.bf16.msra.mxu0 0
      %8011 = vmatprep.subr.bf16.mxu0 0
      %8012 = vmatpush2.bf16.msra.mxu0 0
      %8013 = vmatprep.subr.bf16.mxu0 0
      %8014 = vmatpush2.bf16.msra.mxu0 0
      %8015 = vmatprep.subr.bf16.mxu0 0
      %8016 = vmatpush2.bf16.msra.mxu0 0
      %8017 = vmatprep.subr.bf16.mxu0 0
      %8018 = vmatpush2.bf16.msra.mxu0 0
      %8019 = vmatprep.subr.bf16.mxu0 0
      %8020 = vmatpush2.bf16.msra.mxu0 0
      %8021 = vmatprep.mubr.bf16.mxu0 0
      %8022 = vmatmul.mubr.bf16.gmra.mxu0 %v7984
      %v8023 = vpop.f32.mrf.mxu0
      %v8024 = vadd.f32 0.0, %v8023
      %v8025 = vpop.f32.mrf.mxu0
      %v8026 = vpop.f32.mrf.mxu0
      %v8027 = vadd.f32 0.0, %v8026
      %v8028 = vpop.f32.mrf.mxu0
      %8029 = vmatprep.mubr.bf16.mxu0 0
      %8030 = vmatmul.mubr.bf16.gmra.mxu0 %v7987
      %v8031 = vpop.f32.mrf.mxu0
      %v8032 = vadd.f32 0.0, %v8031
      %v8033 = vpop.f32.mrf.mxu0
      %v8034 = vpop.f32.mrf.mxu0
      %v8035 = vadd.f32 0.0, %v8034
      %v8036 = vpop.f32.mrf.mxu0
      %8037 = vdwg.mxu0
      %v8038 = vadd.f32 %v7944, %v8024
      %v8039 = vadd.f32 %v7945, %v8027
      %v8040 = vadd.f32 %v7946, %v8032
      %v8041 = vadd.f32 %v7947, %v8035
      %v8042 = vld [vmem:[%s8 + $0x1] sm:$0x1]
      %v8043 = vlaneseq
      %v8044 = vshrl.u32 %v8043, 7
      %v8045 = vsub.s32 0, %v8044
      %v8046 = vrot.slane %v8042, %v8045
      %v8047 = vadd.f32 %v8038, %v8046
      %v8048 = vadd.f32 %v8039, %v8046
      %v8049 = vadd.f32 %v8040, %v8046
      %v8050 = vadd.f32 %v8041, %v8046
      %v8051 = vmax.f32 %v8047, 0.0
      %v8052 = vmax.f32 %v8048, 0.0
      %v8053 = vmax.f32 %v8049, 0.0
      %v8054 = vmax.f32 %v8050, 0.0
      %v8055 = vpack.c.bf16 %v8052, %v8051
      %v8056 = vpack.c.bf16 %v8054, %v8053
      %v8057 = vld [vmem:[%s7] sm:$0xf]
      %v8058 = vld [vmem:[%s7 + $0x4] sm:$0xf]
      %v8059 = vld [vmem:[%s7 + $0x8] sm:$0xf]
      %v8060 = vld [vmem:[%s7 + $0xc] sm:$0xf]
      %v8061 = vld [vmem:[%s7 + $0x10] sm:$0xf]
      %v8062 = vld [vmem:[%s7 + $0x14] sm:$0xf]
      %v8063 = vld [vmem:[%s7 + $0x18] sm:$0xf]
      %v8064 = vld [vmem:[%s7 + $0x1c] sm:$0xf]
      %v8065 = vld [vmem:[%s7 + $0x20] sm:$0xf]
      %v8066 = vld [vmem:[%s7 + $0x24] sm:$0xf]
      %v8067 = vld [vmem:[%s7 + $0x28] sm:$0xf]
      %v8068 = vld [vmem:[%s7 + $0x2c] sm:$0xf]
      %v8069 = vld [vmem:[%s7 + $0x30] sm:$0xf]
      %v8070 = vld [vmem:[%s7 + $0x34] sm:$0xf]
      %v8071 = vld [vmem:[%s7 + $0x38] sm:$0xf]
      %v8072 = vld [vmem:[%s7 + $0x3c] sm:$0xf]
      %v8073 = vld [vmem:[%s8 + $0x2] sm:$0x1]
      %v8074 = vlaneseq
      %v8075 = vshrl.u32 %v8074, 7
      %v8076 = vsub.s32 0, %v8075
      %v8077 = vrot.slane %v8073, %v8076
      %v8094 = vunpack.c.l.b16 %v8057
      %v8095 = vunpack.c.l.b16 %v8058
      %v8096 = vunpack.c.l.b16 %v8059
      %v8097 = vunpack.c.l.b16 %v8060
      %v8098 = vunpack.c.l.b16 %v8061
      %v8099 = vunpack.c.l.b16 %v8062
      %v8100 = vunpack.c.l.b16 %v8063
      %v8101 = vunpack.c.l.b16 %v8064
      %v8102 = vunpack.c.l.b16 %v8065
      %v8103 = vunpack.c.l.b16 %v8066
      %v8104 = vunpack.c.l.b16 %v8067
      %v8105 = vunpack.c.l.b16 %v8068
      %v8106 = vunpack.c.l.b16 %v8069
      %v8107 = vunpack.c.l.b16 %v8070
      %v8108 = vunpack.c.l.b16 %v8071
      %v8109 = vunpack.c.l.b16 %v8072
      %v8110 = vpack.c.b16 %v8095, %v8094
      %v8111 = vpack.c.b16 %v8097, %v8096
      %v8112 = vpack.c.b16 %v8099, %v8098
      %v8113 = vpack.c.b16 %v8101, %v8100
      %v8114 = vpack.c.b16 %v8103, %v8102
      %v8115 = vpack.c.b16 %v8105, %v8104
      %v8116 = vpack.c.b16 %v8107, %v8106
      %v8117 = vpack.c.b16 %v8109, %v8108
      %8126 = vmatprep.subr.bf16.mxu0 0
      %8127 = vmatpush1.bf16.msra.mxu0 %v8117
      %8128 = vmatprep.subr.bf16.mxu0 0
      %8129 = vmatpush1.bf16.msra.mxu0 %v8116
      %8130 = vmatprep.subr.bf16.mxu0 0
      %8131 = vmatpush1.bf16.msra.mxu0 %v8115
      %8132 = vmatprep.subr.bf16.mxu0 0
      %8133 = vmatpush1.bf16.msra.mxu0 %v8114
      %8134 = vmatprep.subr.bf16.mxu0 0
      %8135 = vmatpush1.bf16.msra.mxu0 %v8113
      %8136 = vmatprep.subr.bf16.mxu0 0
      %8137 = vmatpush1.bf16.msra.mxu0 %v8112
      %8138 = vmatprep.subr.bf16.mxu0 0
      %8139 = vmatpush1.bf16.msra.mxu0 %v8111
      %8140 = vmatprep.subr.bf16.mxu0 0
      %8141 = vmatpush1.bf16.msra.mxu0 %v8110
      %8142 = vmatprep.subr.bf16.mxu0 0
      %8143 = vmatpush2.bf16.msra.mxu0 0
      %8144 = vmatprep.subr.bf16.mxu0 0
      %8145 = vmatpush2.bf16.msra.mxu0 0
      %8146 = vmatprep.subr.bf16.mxu0 0
      %8147 = vmatpush2.bf16.msra.mxu0 0
      %8148 = vmatprep.subr.bf16.mxu0 0
      %8149 = vmatpush2.bf16.msra.mxu0 0
      %8150 = vmatprep.subr.bf16.mxu0 0
      %8151 = vmatpush2.bf16.msra.mxu0 0
      %8152 = vmatprep.subr.bf16.mxu0 0
      %8153 = vmatpush2.bf16.msra.mxu0 0
      %8154 = vmatprep.subr.bf16.mxu0 0
      %8155 = vmatpush2.bf16.msra.mxu0 0
      %8156 = vmatprep.subr.bf16.mxu0 0
      %8157 = vmatpush2.bf16.msra.mxu0 0
      %8158 = vmatprep.mubr.bf16.mxu0 0
      %8159 = vmatmul.mubr.bf16.gmra.mxu0 %v8055
      %v8160 = vpop.f32.mrf.mxu0
      %v8161 = vadd.f32 %v8077, %v8160
      %v8162 = vpop.f32.mrf.mxu0
      %v8163 = vpop.f32.mrf.mxu0
      %v8164 = vadd.f32 %v8077, %v8163
      %v8165 = vpop.f32.mrf.mxu0
      %8166 = vmatprep.mubr.bf16.mxu0 0
      %8167 = vmatmul.mubr.bf16.gmra.mxu0 %v8056
      %v8168 = vpop.f32.mrf.mxu0
      %v8169 = vadd.f32 %v8077, %v8168
      %v8170 = vpop.f32.mrf.mxu0
      %v8171 = vpop.f32.mrf.mxu0
      %v8172 = vadd.f32 %v8077, %v8171
      %v8173 = vpop.f32.mrf.mxu0
      %8174 = vdwg.mxu0
      %v8175 = vmax.f32 %v8161, 0.0
      %v8176 = vmax.f32 %v8164, 0.0
      %v8177 = vmax.f32 %v8169, 0.0
      %v8178 = vmax.f32 %v8172, 0.0
      %v8179 = vpack.c.bf16 %v8176, %v8175
      %v8180 = vpack.c.bf16 %v8178, %v8177
      %s8181 = scalar_lea.vmem %s7, 64
      %v8182 = vld [vmem:[%s8181] sm:$0xf]
      %v8183 = vld [vmem:[%s8181 + $0x4] sm:$0xf]
      %v8184 = vld [vmem:[%s8181 + $0x8] sm:$0xf]
      %v8185 = vld [vmem:[%s8181 + $0xc] sm:$0xf]
      %v8186 = vld [vmem:[%s8181 + $0x10] sm:$0xf]
      %v8187 = vld [vmem:[%s8181 + $0x14] sm:$0xf]
      %v8188 = vld [vmem:[%s8181 + $0x18] sm:$0xf]
      %v8189 = vld [vmem:[%s8181 + $0x1c] sm:$0xf]
      %v8190 = vld [vmem:[%s8181 + $0x20] sm:$0xf]
      %v8191 = vld [vmem:[%s8181 + $0x24] sm:$0xf]
      %v8192 = vld [vmem:[%s8181 + $0x28] sm:$0xf]
      %v8193 = vld [vmem:[%s8181 + $0x2c] sm:$0xf]
      %v8194 = vld [vmem:[%s8181 + $0x30] sm:$0xf]
      %v8195 = vld [vmem:[%s8181 + $0x34] sm:$0xf]
      %v8196 = vld [vmem:[%s8181 + $0x38] sm:$0xf]
      %v8197 = vld [vmem:[%s8181 + $0x3c] sm:$0xf]
      %v8198 = vld [vmem:[%s8 + $0x3] sm:$0x1]
      %v8199 = vlaneseq
      %v8200 = vshrl.u32 %v8199, 7
      %v8201 = vsub.s32 0, %v8200
      %v8202 = vrot.slane %v8198, %v8201
      %v8219 = vunpack.c.l.b16 %v8182
      %v8220 = vunpack.c.l.b16 %v8183
      %v8221 = vunpack.c.l.b16 %v8184
      %v8222 = vunpack.c.l.b16 %v8185
      %v8223 = vunpack.c.l.b16 %v8186
      %v8224 = vunpack.c.l.b16 %v8187
      %v8225 = vunpack.c.l.b16 %v8188
      %v8226 = vunpack.c.l.b16 %v8189
      %v8227 = vunpack.c.l.b16 %v8190
      %v8228 = vunpack.c.l.b16 %v8191
      %v8229 = vunpack.c.l.b16 %v8192
      %v8230 = vunpack.c.l.b16 %v8193
      %v8231 = vunpack.c.l.b16 %v8194
      %v8232 = vunpack.c.l.b16 %v8195
      %v8233 = vunpack.c.l.b16 %v8196
      %v8234 = vunpack.c.l.b16 %v8197
      %v8235 = vpack.c.b16 %v8220, %v8219
      %v8236 = vpack.c.b16 %v8222, %v8221
      %v8237 = vpack.c.b16 %v8224, %v8223
      %v8238 = vpack.c.b16 %v8226, %v8225
      %v8239 = vpack.c.b16 %v8228, %v8227
      %v8240 = vpack.c.b16 %v8230, %v8229
      %v8241 = vpack.c.b16 %v8232, %v8231
      %v8242 = vpack.c.b16 %v8234, %v8233
      %8251 = vmatprep.subr.bf16.mxu0 0
      %8252 = vmatpush1.bf16.msra.mxu0 %v8242
      %8253 = vmatprep.subr.bf16.mxu0 0
      %8254 = vmatpush1.bf16.msra.mxu0 %v8241
      %8255 = vmatprep.subr.bf16.mxu0 0
      %8256 = vmatpush1.bf16.msra.mxu0 %v8240
      %8257 = vmatprep.subr.bf16.mxu0 0
      %8258 = vmatpush1.bf16.msra.mxu0 %v8239
      %8259 = vmatprep.subr.bf16.mxu0 0
      %8260 = vmatpush1.bf16.msra.mxu0 %v8238
      %8261 = vmatprep.subr.bf16.mxu0 0
      %8262 = vmatpush1.bf16.msra.mxu0 %v8237
      %8263 = vmatprep.subr.bf16.mxu0 0
      %8264 = vmatpush1.bf16.msra.mxu0 %v8236
      %8265 = vmatprep.subr.bf16.mxu0 0
      %8266 = vmatpush1.bf16.msra.mxu0 %v8235
      %8267 = vmatprep.subr.bf16.mxu0 0
      %8268 = vmatpush2.bf16.msra.mxu0 0
      %8269 = vmatprep.subr.bf16.mxu0 0
      %8270 = vmatpush2.bf16.msra.mxu0 0
      %8271 = vmatprep.subr.bf16.mxu0 0
      %8272 = vmatpush2.bf16.msra.mxu0 0
      %8273 = vmatprep.subr.bf16.mxu0 0
      %8274 = vmatpush2.bf16.msra.mxu0 0
      %8275 = vmatprep.subr.bf16.mxu0 0
      %8276 = vmatpush2.bf16.msra.mxu0 0
      %8277 = vmatprep.subr.bf16.mxu0 0
      %8278 = vmatpush2.bf16.msra.mxu0 0
      %8279 = vmatprep.subr.bf16.mxu0 0
      %8280 = vmatpush2.bf16.msra.mxu0 0
      %8281 = vmatprep.subr.bf16.mxu0 0
      %8282 = vmatpush2.bf16.msra.mxu0 0
      %8283 = vmatprep.mubr.bf16.mxu0 0
      %8284 = vmatmul.mubr.bf16.gmra.mxu0 %v8179
      %v8285 = vpop.f32.mrf.mxu0
      %v8286 = vadd.f32 %v8202, %v8285
      %v8287 = vpop.f32.mrf.mxu0
      %v8288 = vpop.f32.mrf.mxu0
      %v8289 = vadd.f32 %v8202, %v8288
      %v8290 = vpop.f32.mrf.mxu0
      %8291 = vmatprep.mubr.bf16.mxu0 0
      %8292 = vmatmul.mubr.bf16.gmra.mxu0 %v8180
      %v8293 = vpop.f32.mrf.mxu0
      %v8294 = vadd.f32 %v8202, %v8293
      %v8295 = vpop.f32.mrf.mxu0
      %v8296 = vpop.f32.mrf.mxu0
      %v8297 = vadd.f32 %v8202, %v8296
      %v8298 = vpop.f32.mrf.mxu0
      %8299 = vdwg.mxu0
      %8300 = vst [vmem:[%s334] sm:$0xff] %v8286
      %8301 = vst [vmem:[%s334 + $0x8] sm:$0xff] %v8289
      %8302 = vst [vmem:[%s334 + $0x10] sm:$0xff] %v8294
      %8303 = vst [vmem:[%s334 + $0x18] sm:$0xff] %v8297
      %s8304 = smul.u32 4, %s20
      %p8305 = scmp.lt.s32.totalorder %s8304, 7
      %s8306 = scalar_select %p8305, %s8304, 7
      %s8307 = smul.addr %s8306, 8
      %s8308 = scalar_lea.vmem %s9, %s8307
      // Predicated region
      $region57: #{lenet_forward.1} parent=55 // pred_check
        %p8309 = pneg %p232
      $region58: #{lenet_forward.1} parent=55 // pred_check_branch
        %8311 = sbr.rel (%p8309) target = $region60
      $region59: #{lenet_forward.1} parent=55 // pred_region
        %s8312 = smul.u32 4, %s20
      $region60: #{lenet_forward.1} parent=55 // pred_fallthru
        _
    $region56: #{lenet_forward.1} parent=5 // pred_fallthru
      _
    %p8313 = scmp.le.s32.totalorder 2, %s15
    // Predicated region
    $region61: #{lenet_forward.1} parent=5 // pred_check
      %p8314 = pneg %p8313
    $region62: #{lenet_forward.1} parent=5 // pred_check_branch
      %8316 = sbr.rel (%p8314) target = $region64
    $region63: #{lenet_forward.1} parent=5 // pred_region
      %s8317 = ssub.s32 %s15, 2
      // Predicated region
      $region65: #{lenet_forward.1} parent=63 // pred_check
        %p8318 = pneg %p238
      $region66: #{lenet_forward.1} parent=63 // pred_check_branch
        %8320 = sbr.rel (%p8318) target = $region68
      $region67: #{lenet_forward.1} parent=63 // pred_region
        %s8321 = smul.u32 4, %s21
        %p8322 = scmp.lt.s32.totalorder %s8321, 7
        %s8323 = scalar_select %p8322, %s8321, 7
        %s8324 = smul.addr %s8323, 8
        %s8325 = scalar_lea.vmem %s9, %s8324
      $region68: #{lenet_forward.1} parent=63 // pred_fallthru
        _
    $region64: #{lenet_forward.1} parent=5 // pred_fallthru
      _
  $region6: #{lenet_forward.1} parent=0 // loop_footer
    %s19 = sadd.s32 1, %s15
  $region7: #{lenet_forward.1} parent=0 // loop_footer_branch
    %14 = sbr.rel target = $region3
  $region8: #{lenet_forward.1} parent=0 // loop_exit
    _

</llo_original>
